<compile_context>
chip_gen: v5e
topology: v5e:2x2
jax: 0.10.0
libtpu: 0.0.40
codegen_flags: <defaults>
</compile_context>

<pallas_src>
import jax
import jax.numpy as jnp
from jax.experimental import pallas as pl
from jax.experimental.pallas import tpu as pltpu

_MXU_DTYPE = jnp.bfloat16  # matmul-input dtype; accumulation is always f32


# ----------------------------------------------------------------------------
# In-kernel helpers (operate on loaded values; everything stays in VMEM/vregs)
# ----------------------------------------------------------------------------
def _im2col_3x3(x):
    """x: (N,H,W,C) -> (N*H*W, 9*C) patch matrix for a stride-1 'same' zero-padded 3x3 conv.

    Zero padding is built in-register with concatenations; the 9 taps are concatenated
    along the lane (channel) axis so the conv becomes a single MXU matmul with K = 9*C.
    """
    N, H, W, C = x.shape
    zh = jnp.zeros((N, 1, W, C), x.dtype)
    xp = jnp.concatenate([zh, x, zh], axis=1)                 # (N, H+2, W,   C)
    zw = jnp.zeros((N, H + 2, 1, C), x.dtype)
    xp = jnp.concatenate([zw, xp, zw], axis=2)                # (N, H+2, W+2, C)
    taps = [xp[:, dy:dy + H, dx:dx + W, :] for dy in range(3) for dx in range(3)]
    cols = jnp.concatenate(taps, axis=-1)                     # (N, H, W, 9*C)
    return cols.reshape(N * H * W, 9 * C)


def _conv3x3_bn(x, w_ref, sb_ref, relu=True):
    """3x3 'same' conv + folded-BN affine (+optional ReLU).

    x: (N,H,W,Cin) f32 value.  w_ref: (9*Cin, Cout) bf16.  sb_ref: (2, Cout) f32
    (row 0 = scale, row 1 = bias).  Returns (N*H*W, Cout) f32.
    """
    cols = _im2col_3x3(x).astype(_MXU_DTYPE)
    y = jnp.dot(cols, w_ref[...], preferred_element_type=jnp.float32)
    y = y * sb_ref[0:1, :] + sb_ref[1:2, :]
    return jnp.maximum(y, 0.0) if relu else y


# ----------------------------------------------------------------------------
# Kernel 1: fused HiDDeN encoder (4 conv layers, message broadcast + concat in VMEM)
# ----------------------------------------------------------------------------
def _make_encoder_kernel(N, H, W, L, C1):
    def kernel(img_ref, msg_ref, w1_ref, sb1_ref, w2_ref, sb2_ref,
               w3_ref, sb3_ref, w4_ref, sb4_ref, out_ref):
        x = img_ref[...]                                              # (N,H,W,3) f32
        f1 = _conv3x3_bn(x, w1_ref, sb1_ref)                          # (N*H*W, C1)
        f2 = _conv3x3_bn(f1.reshape(N, H, W, C1), w2_ref, sb2_ref)    # (N*H*W, C1)
        # message broadcast + [msg | feat | image] channel concat, entirely in VMEM
        msg_map = jnp.broadcast_to(msg_ref[...].reshape(N, 1, 1, L), (N, H, W, L))
        cat = jnp.concatenate([msg_map, f2.reshape(N, H, W, C1), x], axis=-1)
        f3 = _conv3x3_bn(cat, w3_ref, sb3_ref)                        # (N*H*W, C1)
        # final 1x1 conv (no ReLU): one matmul
        y = jnp.dot(f3.astype(_MXU_DTYPE), w4_ref[...],
                    preferred_element_type=jnp.float32)
        out_ref[...] = y * sb4_ref[0:1, :] + sb4_ref[1:2, :]          # (N*H*W, 3)

    return kernel


def _fold_conv_w(w):
    """(KH,KW,Cin,Cout) f32 -> (KH*KW*Cin, Cout) bf16, ordering matched to _im2col_3x3."""
    kh, kw, cin, cout = w.shape
    return w.reshape(kh * kw * cin, cout).astype(_MXU_DTYPE)


def _fold_sb(block):
    """Folded-BN scale/bias packed as a single (2, Cout) f32 array."""
    return jnp.stack([block["scale"], block["bias"]]).astype(jnp.float32)


def encoder_fused(p, image_nhwc, message):
    N, H, W, _ = image_nhwc.shape
    L = message.shape[1]
    C1 = p["enc_c1"]["w"].shape[-1]
    out = pl.pallas_call(
        _make_encoder_kernel(N, H, W, L, C1),
        out_shape=jax.ShapeDtypeStruct((N * H * W, 3), jnp.float32),
    )(image_nhwc, message,
      _fold_conv_w(p["enc_c1"]["w"]), _fold_sb(p["enc_c1"]),
      _fold_conv_w(p["enc_c2"]["w"]), _fold_sb(p["enc_c2"]),
      _fold_conv_w(p["enc_cat"]["w"]), _fold_sb(p["enc_cat"]),
      _fold_conv_w(p["enc_final"]["w"]), _fold_sb(p["enc_final"]))
    return out.reshape(N, H, W, 3)


# ----------------------------------------------------------------------------
# Kernel 2: fused feature extractors (noiser & me_model), conv + GAP, for both inputs
# ----------------------------------------------------------------------------
def _make_feature_kernel(N, H, W, F2):
    def kernel(x_ref, w_ref, sb_ref, o_ref):
        f = _conv3x3_bn(x_ref[...], w_ref, sb_ref)                    # (N*H*W, F2)
        o_ref[0] = jnp.mean(f.reshape(N, H * W, F2), axis=1)          # GAP -> (N, F2)

    return kernel


def features_fused(p, encoded_nhwc, image_nhwc):
    """conv -> GAP (== the fc-input tensor captured by the forward hooks) for the noiser
    and me_model extractors (Cout-concatenated weights), applied to the encoded image
    (grid step 0) and the cover image (grid step 1).  Returns (2, N, 2*F)."""
    N, H, W, _ = image_nhwc.shape
    F = p["noi_c1"]["w"].shape[-1]
    wf = jnp.concatenate([_fold_conv_w(p["noi_c1"]["w"]),
                          _fold_conv_w(p["me_c1"]["w"])], axis=1)            # (27, 2F) bf16
    sbf = jnp.concatenate([_fold_sb(p["noi_c1"]), _fold_sb(p["me_c1"])], axis=1)  # (2, 2F)
    stacked = jnp.concatenate([encoded_nhwc, image_nhwc], axis=0)            # (2N, H, W, 3)

    return pl.pallas_call(
        _make_feature_kernel(N, H, W, 2 * F),
        out_shape=jax.ShapeDtypeStruct((2, N, 2 * F), jnp.float32),
        grid=(2,),
        in_specs=[
            pl.BlockSpec((N, H, W, 3), lambda i: (i, 0, 0, 0)),
            pl.BlockSpec((9 * 3, 2 * F), lambda i: (0, 0)),
            pl.BlockSpec((2, 2 * F), lambda i: (0, 0)),
        ],
        out_specs=pl.BlockSpec((1, N, 2 * F), lambda i: (i, 0, 0)),
        compiler_params=pltpu.CompilerParams(dimension_semantics=("parallel",)),
    )(stacked, wf, sbf)


# ----------------------------------------------------------------------------
# Kernel 3: fused decoder MLP (both decoder calls batched together)
# ----------------------------------------------------------------------------
def _decoder_kernel(x_ref, w1_ref, b1_ref, w2_ref, b2_ref, o_ref):
    h = jnp.dot(x_ref[...], w1_ref[...], preferred_element_type=jnp.float32) + b1_ref[...]
    h = jnp.maximum(h, 0.0)
    o_ref[...] = jnp.dot(h, w2_ref[...], preferred_element_type=jnp.float32) + b2_ref[...]


def decoder_fused(p, emb):
    n = emb.shape[0]
    msg_len = p["dec_w2"].shape[1]
    return pl.pallas_call(
        _decoder_kernel,
        out_shape=jax.ShapeDtypeStruct((n, msg_len), jnp.float32),
    )(emb, p["dec_w1"], p["dec_b1"].reshape(1, -1),
      p["dec_w2"], p["dec_b2"].reshape(1, -1))


# ----------------------------------------------------------------------------
# Parameters + full forward (glue in plain JAX, all heavy compute in the 3 kernels)
# ----------------------------------------------------------------------------
def init_params(key, *, enc_channels=16, feat_channels=32, msg_len=8, dec_hidden=32):
    ks = list(jax.random.split(key, 32))
    k = iter(ks)

    def conv_block(cin, cout, kh=3, kw=3):
        return dict(
            w=jax.random.normal(next(k), (kh, kw, cin, cout), jnp.float32) * 0.1,
            scale=1.0 + 0.05 * jax.random.normal(next(k), (cout,), jnp.float32),
            bias=0.05 * jax.random.normal(next(k), (cout,), jnp.float32),
        )

    # noiser/me_model fc heads exist in the PyTorch models but their outputs are discarded
    # by the forward (only the hook-captured fc INPUT is used), so no fc params are kept.
    return {
        "enc_c1": conv_block(3, enc_channels),
        "enc_c2": conv_block(enc_channels, enc_channels),
        "enc_cat": conv_block(msg_len + enc_channels + 3, enc_channels),
        "enc_final": conv_block(enc_channels, 3, 1, 1),
        "noi_c1": conv_block(3, feat_channels),
        "me_c1": conv_block(3, feat_channels),
        "dec_w1": jax.random.normal(next(k), (feat_channels, dec_hidden), jnp.float32) * 0.1,
        "dec_b1": 0.05 * jax.random.normal(next(k), (dec_hidden,), jnp.float32),
        "dec_w2": jax.random.normal(next(k), (dec_hidden, msg_len), jnp.float32) * 0.1,
        "dec_b2": 0.05 * jax.random.normal(next(k), (msg_len,), jnp.float32),
    }


def encoder_decoder_forward(p, image_nchw, message):
    N = image_nchw.shape[0]
    F = p["noi_c1"]["w"].shape[-1]
    image = jnp.transpose(image_nchw, (0, 2, 3, 1))             # NCHW -> NHWC

    encoded = encoder_fused(p, image, message)                  # (N,H,W,3)

    embs = features_fused(p, encoded, image)                    # (2, N, 2F)
    embedding, me_embedding = embs[0, :, :F], embs[0, :, F:]    # hooks on noiser/me(encoded)
    s_embedding, s_me_embedding = embs[1, :, :F], embs[1, :, F:]  # hooks on noiser/me(image)

    dec_out = decoder_fused(p, jnp.concatenate([embedding, me_embedding], axis=0))
    decoded_message, me_decoded_message = dec_out[:N], dec_out[N:]

    encoded_image = jnp.transpose(encoded, (0, 3, 1, 2))        # back to NCHW
    return (encoded_image, s_embedding, s_me_embedding, embedding,
            decoded_message, me_decoded_message)


# ----------------------------------------------------------------------------
if __name__ == "__main__":
    key = jax.random.PRNGKey(0)
    kp, ki, km = jax.random.split(key, 3)

    N, C, H, W = 2, 3, 16, 16
    MSG_LEN = 8
    FEAT = 32

    params = init_params(kp, enc_channels=16, feat_channels=FEAT, msg_len=MSG_LEN)
    image = jax.random.normal(ki, (N, C, H, W), jnp.float32)
    message = jax.random.bernoulli(km, 0.5, (N, MSG_LEN)).astype(jnp.float32)

    fwd = jax.jit(encoder_decoder_forward)
    outs = fwd(params, image, message)
    outs = jax.block_until_ready(outs)

    (enc_img, s_emb, s_me_emb, emb, dec_msg, me_dec_msg) = outs
    assert enc_img.shape == (N, C, H, W)
    assert s_emb.shape == (N, FEAT) and s_me_emb.shape == (N, FEAT) and emb.shape == (N, FEAT)
    assert dec_msg.shape == (N, MSG_LEN) and me_dec_msg.shape == (N, MSG_LEN)
    assert all(bool(jnp.all(jnp.isfinite(o))) for o in outs)
    print("KERNEL_OK")
</pallas_src>

<mosaic_0001>
module attributes {stable_mosaic.version = 11 : i64} {
  func.func @kernel(%arg0: memref<2x16x16x3xf32, #tpu.memory_space<vmem>>, %arg1: memref<2x8xf32, #tpu.memory_space<vmem>>, %arg2: memref<27x16xbf16, #tpu.memory_space<vmem>>, %arg3: memref<2x16xf32, #tpu.memory_space<vmem>>, %arg4: memref<144x16xbf16, #tpu.memory_space<vmem>>, %arg5: memref<2x16xf32, #tpu.memory_space<vmem>>, %arg6: memref<243x16xbf16, #tpu.memory_space<vmem>>, %arg7: memref<2x16xf32, #tpu.memory_space<vmem>>, %arg8: memref<16x3xbf16, #tpu.memory_space<vmem>>, %arg9: memref<2x3xf32, #tpu.memory_space<vmem>>, %arg10: memref<512x3xf32, #tpu.memory_space<vmem>>) attributes {dimension_semantics = [], scalar_prefetch = 0 : i64, scratch_operands = 0 : i64, tpu.core_type = #tpu.core_type<tc>} {
    %c0 = arith.constant 0 : index
    %c0_0 = arith.constant 0 : index
    %c0_1 = arith.constant 0 : index
    %c0_2 = arith.constant 0 : index
    %0 = vector.load %arg0[%c0, %c0_0, %c0_1, %c0_2] : memref<2x16x16x3xf32, #tpu.memory_space<vmem>>, vector<2x16x16x3xf32>
    %cst = arith.constant 0.000000e+00 : f32
    %1 = vector.broadcast %cst : f32 to vector<2x1x16x3xf32>
    %2 = tpu.concatenate %1, %0, %1 in 1 : vector<2x1x16x3xf32>, vector<2x16x16x3xf32>, vector<2x1x16x3xf32> -> vector<2x18x16x3xf32>
    %cst_3 = arith.constant 0.000000e+00 : f32
    %3 = vector.broadcast %cst_3 : f32 to vector<2x18x1x3xf32>
    %4 = tpu.concatenate %3, %2, %3 in 2 : vector<2x18x1x3xf32>, vector<2x18x16x3xf32>, vector<2x18x1x3xf32> -> vector<2x18x18x3xf32>
    %5 = vector.extract_strided_slice %4 {offsets = [0, 0, 0, 0], sizes = [2, 16, 16, 3], strides = [1, 1, 1, 1]} : vector<2x18x18x3xf32> to vector<2x16x16x3xf32>
    %6 = vector.extract_strided_slice %4 {offsets = [0, 0, 1, 0], sizes = [2, 16, 16, 3], strides = [1, 1, 1, 1]} : vector<2x18x18x3xf32> to vector<2x16x16x3xf32>
    %7 = vector.extract_strided_slice %4 {offsets = [0, 0, 2, 0], sizes = [2, 16, 16, 3], strides = [1, 1, 1, 1]} : vector<2x18x18x3xf32> to vector<2x16x16x3xf32>
    %8 = vector.extract_strided_slice %4 {offsets = [0, 1, 0, 0], sizes = [2, 16, 16, 3], strides = [1, 1, 1, 1]} : vector<2x18x18x3xf32> to vector<2x16x16x3xf32>
    %9 = vector.extract_strided_slice %4 {offsets = [0, 1, 1, 0], sizes = [2, 16, 16, 3], strides = [1, 1, 1, 1]} : vector<2x18x18x3xf32> to vector<2x16x16x3xf32>
    %10 = vector.extract_strided_slice %4 {offsets = [0, 1, 2, 0], sizes = [2, 16, 16, 3], strides = [1, 1, 1, 1]} : vector<2x18x18x3xf32> to vector<2x16x16x3xf32>
    %11 = vector.extract_strided_slice %4 {offsets = [0, 2, 0, 0], sizes = [2, 16, 16, 3], strides = [1, 1, 1, 1]} : vector<2x18x18x3xf32> to vector<2x16x16x3xf32>
    %12 = vector.extract_strided_slice %4 {offsets = [0, 2, 1, 0], sizes = [2, 16, 16, 3], strides = [1, 1, 1, 1]} : vector<2x18x18x3xf32> to vector<2x16x16x3xf32>
    %13 = vector.extract_strided_slice %4 {offsets = [0, 2, 2, 0], sizes = [2, 16, 16, 3], strides = [1, 1, 1, 1]} : vector<2x18x18x3xf32> to vector<2x16x16x3xf32>
    %14 = tpu.concatenate %5, %6, %7, %8, %9, %10, %11, %12, %13 in 3 : vector<2x16x16x3xf32>, vector<2x16x16x3xf32>, vector<2x16x16x3xf32>, vector<2x16x16x3xf32>, vector<2x16x16x3xf32>, vector<2x16x16x3xf32>, vector<2x16x16x3xf32>, vector<2x16x16x3xf32>, vector<2x16x16x3xf32> -> vector<2x16x16x27xf32>
    %15 = vector.shape_cast %14 : vector<2x16x16x27xf32> to vector<512x27xf32>
    %16 = arith.truncf %15 : vector<512x27xf32> to vector<512x27xbf16>
    %c0_4 = arith.constant 0 : index
    %c0_5 = arith.constant 0 : index
    %17 = vector.load %arg2[%c0_4, %c0_5] : memref<27x16xbf16, #tpu.memory_space<vmem>>, vector<27x16xbf16>
    %cst_6 = arith.constant dense<0.000000e+00> : vector<512x16xf32>
    %18 = tpu.matmul %16, %17, %cst_6 {dimension_numbers = #tpu.dot_dimension_numbers<[1], [0], [0], [1], [0, 0, 1, 1], [], []>} : vector<512x27xbf16>, vector<27x16xbf16>, vector<512x16xf32> -> vector<512x16xf32>
    %c0_7 = arith.constant 0 : index
    %c0_8 = arith.constant 0 : index
    %19 = vector.load %arg3[%c0_7, %c0_8] : memref<2x16xf32, #tpu.memory_space<vmem>>, vector<1x16xf32>
    %20 = vector.broadcast %19 : vector<1x16xf32> to vector<512x16xf32>
    %21 = arith.mulf %18, %20 : vector<512x16xf32>
    %c1 = arith.constant 1 : index
    %c0_9 = arith.constant 0 : index
    %22 = vector.load %arg3[%c1, %c0_9] : memref<2x16xf32, #tpu.memory_space<vmem>>, vector<1x16xf32>
    %23 = vector.broadcast %22 : vector<1x16xf32> to vector<512x16xf32>
    %24 = arith.addf %21, %23 : vector<512x16xf32>
    %cst_10 = arith.constant 0.000000e+00 : f32
    %25 = vector.broadcast %cst_10 : f32 to vector<512x16xf32>
    %26 = arith.maximumf %24, %25 : vector<512x16xf32>
    %27 = vector.shape_cast %26 : vector<512x16xf32> to vector<2x16x16x16xf32>
    %cst_11 = arith.constant 0.000000e+00 : f32
    %28 = vector.broadcast %cst_11 : f32 to vector<2x1x16x16xf32>
    %29 = tpu.concatenate %28, %27, %28 in 1 : vector<2x1x16x16xf32>, vector<2x16x16x16xf32>, vector<2x1x16x16xf32> -> vector<2x18x16x16xf32>
    %cst_12 = arith.constant 0.000000e+00 : f32
    %30 = vector.broadcast %cst_12 : f32 to vector<2x18x1x16xf32>
    %31 = tpu.concatenate %30, %29, %30 in 2 : vector<2x18x1x16xf32>, vector<2x18x16x16xf32>, vector<2x18x1x16xf32> -> vector<2x18x18x16xf32>
    %32 = vector.extract_strided_slice %31 {offsets = [0, 0, 0, 0], sizes = [2, 16, 16, 16], strides = [1, 1, 1, 1]} : vector<2x18x18x16xf32> to vector<2x16x16x16xf32>
    %33 = vector.extract_strided_slice %31 {offsets = [0, 0, 1, 0], sizes = [2, 16, 16, 16], strides = [1, 1, 1, 1]} : vector<2x18x18x16xf32> to vector<2x16x16x16xf32>
    %34 = vector.extract_strided_slice %31 {offsets = [0, 0, 2, 0], sizes = [2, 16, 16, 16], strides = [1, 1, 1, 1]} : vector<2x18x18x16xf32> to vector<2x16x16x16xf32>
    %35 = vector.extract_strided_slice %31 {offsets = [0, 1, 0, 0], sizes = [2, 16, 16, 16], strides = [1, 1, 1, 1]} : vector<2x18x18x16xf32> to vector<2x16x16x16xf32>
    %36 = vector.extract_strided_slice %31 {offsets = [0, 1, 1, 0], sizes = [2, 16, 16, 16], strides = [1, 1, 1, 1]} : vector<2x18x18x16xf32> to vector<2x16x16x16xf32>
    %37 = vector.extract_strided_slice %31 {offsets = [0, 1, 2, 0], sizes = [2, 16, 16, 16], strides = [1, 1, 1, 1]} : vector<2x18x18x16xf32> to vector<2x16x16x16xf32>
    %38 = vector.extract_strided_slice %31 {offsets = [0, 2, 0, 0], sizes = [2, 16, 16, 16], strides = [1, 1, 1, 1]} : vector<2x18x18x16xf32> to vector<2x16x16x16xf32>
    %39 = vector.extract_strided_slice %31 {offsets = [0, 2, 1, 0], sizes = [2, 16, 16, 16], strides = [1, 1, 1, 1]} : vector<2x18x18x16xf32> to vector<2x16x16x16xf32>
    %40 = vector.extract_strided_slice %31 {offsets = [0, 2, 2, 0], sizes = [2, 16, 16, 16], strides = [1, 1, 1, 1]} : vector<2x18x18x16xf32> to vector<2x16x16x16xf32>
    %41 = tpu.concatenate %32, %33, %34, %35, %36, %37, %38, %39, %40 in 3 : vector<2x16x16x16xf32>, vector<2x16x16x16xf32>, vector<2x16x16x16xf32>, vector<2x16x16x16xf32>, vector<2x16x16x16xf32>, vector<2x16x16x16xf32>, vector<2x16x16x16xf32>, vector<2x16x16x16xf32>, vector<2x16x16x16xf32> -> vector<2x16x16x144xf32>
    %42 = vector.shape_cast %41 : vector<2x16x16x144xf32> to vector<512x144xf32>
    %43 = arith.truncf %42 : vector<512x144xf32> to vector<512x144xbf16>
    %c0_13 = arith.constant 0 : index
    %c0_14 = arith.constant 0 : index
    %44 = vector.load %arg4[%c0_13, %c0_14] : memref<144x16xbf16, #tpu.memory_space<vmem>>, vector<144x16xbf16>
    %cst_15 = arith.constant dense<0.000000e+00> : vector<512x16xf32>
    %45 = tpu.matmul %43, %44, %cst_15 {dimension_numbers = #tpu.dot_dimension_numbers<[1], [0], [0], [1], [0, 0, 1, 1], [], []>} : vector<512x144xbf16>, vector<144x16xbf16>, vector<512x16xf32> -> vector<512x16xf32>
    %c0_16 = arith.constant 0 : index
    %c0_17 = arith.constant 0 : index
    %46 = vector.load %arg5[%c0_16, %c0_17] : memref<2x16xf32, #tpu.memory_space<vmem>>, vector<1x16xf32>
    %47 = vector.broadcast %46 : vector<1x16xf32> to vector<512x16xf32>
    %48 = arith.mulf %45, %47 : vector<512x16xf32>
    %c1_18 = arith.constant 1 : index
    %c0_19 = arith.constant 0 : index
    %49 = vector.load %arg5[%c1_18, %c0_19] : memref<2x16xf32, #tpu.memory_space<vmem>>, vector<1x16xf32>
    %50 = vector.broadcast %49 : vector<1x16xf32> to vector<512x16xf32>
    %51 = arith.addf %48, %50 : vector<512x16xf32>
    %cst_20 = arith.constant 0.000000e+00 : f32
    %52 = vector.broadcast %cst_20 : f32 to vector<512x16xf32>
    %53 = arith.maximumf %51, %52 : vector<512x16xf32>
    %c0_21 = arith.constant 0 : index
    %c0_22 = arith.constant 0 : index
    %54 = vector.load %arg1[%c0_21, %c0_22] : memref<2x8xf32, #tpu.memory_space<vmem>>, vector<2x8xf32>
    %55 = vector.shape_cast %54 : vector<2x8xf32> to vector<2x1x1x8xf32>
    %56 = vector.shape_cast %55 : vector<2x1x1x8xf32> to vector<2x1x1x8xf32>
    %57 = vector.broadcast %56 : vector<2x1x1x8xf32> to vector<2x16x16x8xf32>
    %58 = vector.shape_cast %53 : vector<512x16xf32> to vector<2x16x16x16xf32>
    %59 = tpu.concatenate %57, %58, %0 in 3 : vector<2x16x16x8xf32>, vector<2x16x16x16xf32>, vector<2x16x16x3xf32> -> vector<2x16x16x27xf32>
    %cst_23 = arith.constant 0.000000e+00 : f32
    %60 = vector.broadcast %cst_23 : f32 to vector<2x1x16x27xf32>
    %61 = tpu.concatenate %60, %59, %60 in 1 : vector<2x1x16x27xf32>, vector<2x16x16x27xf32>, vector<2x1x16x27xf32> -> vector<2x18x16x27xf32>
    %cst_24 = arith.constant 0.000000e+00 : f32
    %62 = vector.broadcast %cst_24 : f32 to vector<2x18x1x27xf32>
    %63 = tpu.concatenate %62, %61, %62 in 2 : vector<2x18x1x27xf32>, vector<2x18x16x27xf32>, vector<2x18x1x27xf32> -> vector<2x18x18x27xf32>
    %64 = vector.extract_strided_slice %63 {offsets = [0, 0, 0, 0], sizes = [2, 16, 16, 27], strides = [1, 1, 1, 1]} : vector<2x18x18x27xf32> to vector<2x16x16x27xf32>
    %65 = vector.extract_strided_slice %63 {offsets = [0, 0, 1, 0], sizes = [2, 16, 16, 27], strides = [1, 1, 1, 1]} : vector<2x18x18x27xf32> to vector<2x16x16x27xf32>
    %66 = vector.extract_strided_slice %63 {offsets = [0, 0, 2, 0], sizes = [2, 16, 16, 27], strides = [1, 1, 1, 1]} : vector<2x18x18x27xf32> to vector<2x16x16x27xf32>
    %67 = vector.extract_strided_slice %63 {offsets = [0, 1, 0, 0], sizes = [2, 16, 16, 27], strides = [1, 1, 1, 1]} : vector<2x18x18x27xf32> to vector<2x16x16x27xf32>
    %68 = vector.extract_strided_slice %63 {offsets = [0, 1, 1, 0], sizes = [2, 16, 16, 27], strides = [1, 1, 1, 1]} : vector<2x18x18x27xf32> to vector<2x16x16x27xf32>
    %69 = vector.extract_strided_slice %63 {offsets = [0, 1, 2, 0], sizes = [2, 16, 16, 27], strides = [1, 1, 1, 1]} : vector<2x18x18x27xf32> to vector<2x16x16x27xf32>
    %70 = vector.extract_strided_slice %63 {offsets = [0, 2, 0, 0], sizes = [2, 16, 16, 27], strides = [1, 1, 1, 1]} : vector<2x18x18x27xf32> to vector<2x16x16x27xf32>
    %71 = vector.extract_strided_slice %63 {offsets = [0, 2, 1, 0], sizes = [2, 16, 16, 27], strides = [1, 1, 1, 1]} : vector<2x18x18x27xf32> to vector<2x16x16x27xf32>
    %72 = vector.extract_strided_slice %63 {offsets = [0, 2, 2, 0], sizes = [2, 16, 16, 27], strides = [1, 1, 1, 1]} : vector<2x18x18x27xf32> to vector<2x16x16x27xf32>
    %73 = tpu.concatenate %64, %65, %66, %67, %68, %69, %70, %71, %72 in 3 : vector<2x16x16x27xf32>, vector<2x16x16x27xf32>, vector<2x16x16x27xf32>, vector<2x16x16x27xf32>, vector<2x16x16x27xf32>, vector<2x16x16x27xf32>, vector<2x16x16x27xf32>, vector<2x16x16x27xf32>, vector<2x16x16x27xf32> -> vector<2x16x16x243xf32>
    %74 = vector.shape_cast %73 : vector<2x16x16x243xf32> to vector<512x243xf32>
    %75 = arith.truncf %74 : vector<512x243xf32> to vector<512x243xbf16>
    %c0_25 = arith.constant 0 : index
    %c0_26 = arith.constant 0 : index
    %76 = vector.load %arg6[%c0_25, %c0_26] : memref<243x16xbf16, #tpu.memory_space<vmem>>, vector<243x16xbf16>
    %cst_27 = arith.constant dense<0.000000e+00> : vector<512x16xf32>
    %77 = tpu.matmul %75, %76, %cst_27 {dimension_numbers = #tpu.dot_dimension_numbers<[1], [0], [0], [1], [0, 0, 1, 1], [], []>} : vector<512x243xbf16>, vector<243x16xbf16>, vector<512x16xf32> -> vector<512x16xf32>
    %c0_28 = arith.constant 0 : index
    %c0_29 = arith.constant 0 : index
    %78 = vector.load %arg7[%c0_28, %c0_29] : memref<2x16xf32, #tpu.memory_space<vmem>>, vector<1x16xf32>
    %79 = vector.broadcast %78 : vector<1x16xf32> to vector<512x16xf32>
    %80 = arith.mulf %77, %79 : vector<512x16xf32>
    %c1_30 = arith.constant 1 : index
    %c0_31 = arith.constant 0 : index
    %81 = vector.load %arg7[%c1_30, %c0_31] : memref<2x16xf32, #tpu.memory_space<vmem>>, vector<1x16xf32>
    %82 = vector.broadcast %81 : vector<1x16xf32> to vector<512x16xf32>
    %83 = arith.addf %80, %82 : vector<512x16xf32>
    %cst_32 = arith.constant 0.000000e+00 : f32
    %84 = vector.broadcast %cst_32 : f32 to vector<512x16xf32>
    %85 = arith.maximumf %83, %84 : vector<512x16xf32>
    %86 = arith.truncf %85 : vector<512x16xf32> to vector<512x16xbf16>
    %c0_33 = arith.constant 0 : index
    %c0_34 = arith.constant 0 : index
    %87 = vector.load %arg8[%c0_33, %c0_34] : memref<16x3xbf16, #tpu.memory_space<vmem>>, vector<16x3xbf16>
    %cst_35 = arith.constant dense<0.000000e+00> : vector<512x3xf32>
    %88 = tpu.matmul %86, %87, %cst_35 {dimension_numbers = #tpu.dot_dimension_numbers<[1], [0], [0], [1], [0, 0, 1, 1], [], []>} : vector<512x16xbf16>, vector<16x3xbf16>, vector<512x3xf32> -> vector<512x3xf32>
    %c0_36 = arith.constant 0 : index
    %c0_37 = arith.constant 0 : index
    %89 = vector.load %arg9[%c0_36, %c0_37] : memref<2x3xf32, #tpu.memory_space<vmem>>, vector<1x3xf32>
    %90 = vector.broadcast %89 : vector<1x3xf32> to vector<512x3xf32>
    %91 = arith.mulf %88, %90 : vector<512x3xf32>
    %c1_38 = arith.constant 1 : index
    %c0_39 = arith.constant 0 : index
    %92 = vector.load %arg9[%c1_38, %c0_39] : memref<2x3xf32, #tpu.memory_space<vmem>>, vector<1x3xf32>
    %93 = vector.broadcast %92 : vector<1x3xf32> to vector<512x3xf32>
    %94 = arith.addf %91, %93 : vector<512x3xf32>
    %c0_40 = arith.constant 0 : index
    %c0_41 = arith.constant 0 : index
    %95 = vector.load %arg10[%c0_40, %c0_41] : memref<512x3xf32, #tpu.memory_space<vmem>>, vector<512x3xf32>
    tpu.vector_store %arg10[%c0_40, %c0_41], %94 {strides = array<i32>} : memref<512x3xf32, #tpu.memory_space<vmem>>, vector<512x3xf32>,
    return
  }
}

module attributes {stable_mosaic.version = 11 : i64} {
  func.func @_decoder_kernel(%arg0: memref<4x32xf32, #tpu.memory_space<vmem>>, %arg1: memref<32x32xf32, #tpu.memory_space<vmem>>, %arg2: memref<1x32xf32, #tpu.memory_space<vmem>>, %arg3: memref<32x8xf32, #tpu.memory_space<vmem>>, %arg4: memref<1x8xf32, #tpu.memory_space<vmem>>, %arg5: memref<4x8xf32, #tpu.memory_space<vmem>>) attributes {dimension_semantics = [], scalar_prefetch = 0 : i64, scratch_operands = 0 : i64, tpu.core_type = #tpu.core_type<tc>} {
    %c0 = arith.constant 0 : index
    %c0_0 = arith.constant 0 : index
    %0 = vector.load %arg0[%c0, %c0_0] : memref<4x32xf32, #tpu.memory_space<vmem>>, vector<4x32xf32>
    %c0_1 = arith.constant 0 : index
    %c0_2 = arith.constant 0 : index
    %1 = vector.load %arg1[%c0_1, %c0_2] : memref<32x32xf32, #tpu.memory_space<vmem>>, vector<32x32xf32>
    %cst = arith.constant dense<0.000000e+00> : vector<4x32xf32>
    %2 = tpu.matmul %0, %1, %cst {dimension_numbers = #tpu.dot_dimension_numbers<[1], [0], [0], [1], [0, 0, 1, 1], [], []>} : vector<4x32xf32>, vector<32x32xf32>, vector<4x32xf32> -> vector<4x32xf32>
    %c0_3 = arith.constant 0 : index
    %c0_4 = arith.constant 0 : index
    %3 = vector.load %arg2[%c0_3, %c0_4] : memref<1x32xf32, #tpu.memory_space<vmem>>, vector<1x32xf32>
    %4 = vector.broadcast %3 : vector<1x32xf32> to vector<4x32xf32>
    %5 = arith.addf %2, %4 : vector<4x32xf32>
    %cst_5 = arith.constant 0.000000e+00 : f32
    %6 = vector.broadcast %cst_5 : f32 to vector<4x32xf32>
    %7 = arith.maximumf %5, %6 : vector<4x32xf32>
    %c0_6 = arith.constant 0 : index
    %c0_7 = arith.constant 0 : index
    %8 = vector.load %arg3[%c0_6, %c0_7] : memref<32x8xf32, #tpu.memory_space<vmem>>, vector<32x8xf32>
    %cst_8 = arith.constant dense<0.000000e+00> : vector<4x8xf32>
    %9 = tpu.matmul %7, %8, %cst_8 {dimension_numbers = #tpu.dot_dimension_numbers<[1], [0], [0], [1], [0, 0, 1, 1], [], []>} : vector<4x32xf32>, vector<32x8xf32>, vector<4x8xf32> -> vector<4x8xf32>
    %c0_9 = arith.constant 0 : index
    %c0_10 = arith.constant 0 : index
    %10 = vector.load %arg4[%c0_9, %c0_10] : memref<1x8xf32, #tpu.memory_space<vmem>>, vector<1x8xf32>
    %11 = vector.broadcast %10 : vector<1x8xf32> to vector<4x8xf32>
    %12 = arith.addf %9, %11 : vector<4x8xf32>
    %c0_11 = arith.constant 0 : index
    %c0_12 = arith.constant 0 : index
    %13 = vector.load %arg5[%c0_11, %c0_12] : memref<4x8xf32, #tpu.memory_space<vmem>>, vector<4x8xf32>
    tpu.vector_store %arg5[%c0_11, %c0_12], %12 {strides = array<i32>} : memref<4x8xf32, #tpu.memory_space<vmem>>, vector<4x8xf32>,
    return
  }
}

module attributes {stable_mosaic.version = 11 : i64} {
  func.func @kernel(%arg0: i32, %arg1: memref<2x16x16x3xf32, #tpu.memory_space<vmem>>, %arg2: memref<27x64xbf16, #tpu.memory_space<vmem>>, %arg3: memref<2x64xf32, #tpu.memory_space<vmem>>, %arg4: memref<1x2x64xf32, #tpu.memory_space<vmem>>) attributes {dimension_semantics = [#tpu.dimension_semantics<parallel>], iteration_bounds = array<i64: 2>, scalar_prefetch = 0 : i64, scratch_operands = 0 : i64, tpu.core_type = #tpu.core_type<tc>, window_params = [{transform_indices = @transform_0, window_bounds = array<i64: 2, 16, 16, 3>}, {pipeline_mode = #tpu.pipeline_mode<synchronous>, transform_indices = @transform_1, window_bounds = array<i64: 27, 64>}, {pipeline_mode = #tpu.pipeline_mode<synchronous>, transform_indices = @transform_2, window_bounds = array<i64: 2, 64>}, {transform_indices = @transform_3, window_bounds = array<i64: 1, 2, 64>}]} {
    %c0 = arith.constant 0 : index
    %c0_0 = arith.constant 0 : index
    %c0_1 = arith.constant 0 : index
    %c0_2 = arith.constant 0 : index
    %0 = vector.load %arg1[%c0, %c0_0, %c0_1, %c0_2] : memref<2x16x16x3xf32, #tpu.memory_space<vmem>>, vector<2x16x16x3xf32>
    %cst = arith.constant 0.000000e+00 : f32
    %1 = vector.broadcast %cst : f32 to vector<2x1x16x3xf32>
    %2 = tpu.concatenate %1, %0, %1 in 1 : vector<2x1x16x3xf32>, vector<2x16x16x3xf32>, vector<2x1x16x3xf32> -> vector<2x18x16x3xf32>
    %cst_3 = arith.constant 0.000000e+00 : f32
    %3 = vector.broadcast %cst_3 : f32 to vector<2x18x1x3xf32>
    %4 = tpu.concatenate %3, %2, %3 in 2 : vector<2x18x1x3xf32>, vector<2x18x16x3xf32>, vector<2x18x1x3xf32> -> vector<2x18x18x3xf32>
    %5 = vector.extract_strided_slice %4 {offsets = [0, 0, 0, 0], sizes = [2, 16, 16, 3], strides = [1, 1, 1, 1]} : vector<2x18x18x3xf32> to vector<2x16x16x3xf32>
    %6 = vector.extract_strided_slice %4 {offsets = [0, 0, 1, 0], sizes = [2, 16, 16, 3], strides = [1, 1, 1, 1]} : vector<2x18x18x3xf32> to vector<2x16x16x3xf32>
    %7 = vector.extract_strided_slice %4 {offsets = [0, 0, 2, 0], sizes = [2, 16, 16, 3], strides = [1, 1, 1, 1]} : vector<2x18x18x3xf32> to vector<2x16x16x3xf32>
    %8 = vector.extract_strided_slice %4 {offsets = [0, 1, 0, 0], sizes = [2, 16, 16, 3], strides = [1, 1, 1, 1]} : vector<2x18x18x3xf32> to vector<2x16x16x3xf32>
    %9 = vector.extract_strided_slice %4 {offsets = [0, 1, 1, 0], sizes = [2, 16, 16, 3], strides = [1, 1, 1, 1]} : vector<2x18x18x3xf32> to vector<2x16x16x3xf32>
    %10 = vector.extract_strided_slice %4 {offsets = [0, 1, 2, 0], sizes = [2, 16, 16, 3], strides = [1, 1, 1, 1]} : vector<2x18x18x3xf32> to vector<2x16x16x3xf32>
    %11 = vector.extract_strided_slice %4 {offsets = [0, 2, 0, 0], sizes = [2, 16, 16, 3], strides = [1, 1, 1, 1]} : vector<2x18x18x3xf32> to vector<2x16x16x3xf32>
    %12 = vector.extract_strided_slice %4 {offsets = [0, 2, 1, 0], sizes = [2, 16, 16, 3], strides = [1, 1, 1, 1]} : vector<2x18x18x3xf32> to vector<2x16x16x3xf32>
    %13 = vector.extract_strided_slice %4 {offsets = [0, 2, 2, 0], sizes = [2, 16, 16, 3], strides = [1, 1, 1, 1]} : vector<2x18x18x3xf32> to vector<2x16x16x3xf32>
    %14 = tpu.concatenate %5, %6, %7, %8, %9, %10, %11, %12, %13 in 3 : vector<2x16x16x3xf32>, vector<2x16x16x3xf32>, vector<2x16x16x3xf32>, vector<2x16x16x3xf32>, vector<2x16x16x3xf32>, vector<2x16x16x3xf32>, vector<2x16x16x3xf32>, vector<2x16x16x3xf32>, vector<2x16x16x3xf32> -> vector<2x16x16x27xf32>
    %15 = vector.shape_cast %14 : vector<2x16x16x27xf32> to vector<512x27xf32>
    %16 = arith.truncf %15 : vector<512x27xf32> to vector<512x27xbf16>
    %c0_4 = arith.constant 0 : index
    %c0_5 = arith.constant 0 : index
    %17 = vector.load %arg2[%c0_4, %c0_5] : memref<27x64xbf16, #tpu.memory_space<vmem>>, vector<27x64xbf16>
    %cst_6 = arith.constant dense<0.000000e+00> : vector<512x64xf32>
    %18 = tpu.matmul %16, %17, %cst_6 {dimension_numbers = #tpu.dot_dimension_numbers<[1], [0], [0], [1], [0, 0, 1, 1], [], []>} : vector<512x27xbf16>, vector<27x64xbf16>, vector<512x64xf32> -> vector<512x64xf32>
    %c0_7 = arith.constant 0 : index
    %c0_8 = arith.constant 0 : index
    %19 = vector.load %arg3[%c0_7, %c0_8] : memref<2x64xf32, #tpu.memory_space<vmem>>, vector<1x64xf32>
    %20 = vector.broadcast %19 : vector<1x64xf32> to vector<512x64xf32>
    %21 = arith.mulf %18, %20 : vector<512x64xf32>
    %c1 = arith.constant 1 : index
    %c0_9 = arith.constant 0 : index
    %22 = vector.load %arg3[%c1, %c0_9] : memref<2x64xf32, #tpu.memory_space<vmem>>, vector<1x64xf32>
    %23 = vector.broadcast %22 : vector<1x64xf32> to vector<512x64xf32>
    %24 = arith.addf %21, %23 : vector<512x64xf32>
    %cst_10 = arith.constant 0.000000e+00 : f32
    %25 = vector.broadcast %cst_10 : f32 to vector<512x64xf32>
    %26 = arith.maximumf %24, %25 : vector<512x64xf32>
    %27 = vector.shape_cast %26 : vector<512x64xf32> to vector<2x256x64xf32>
    %cst_11 = arith.constant dense<0.000000e+00> : vector<2x64xf32>
    %28 = vector.multi_reduction <add>, %27, %cst_11 [1] : vector<2x256x64xf32> to vector<2x64xf32>
    %cst_12 = arith.constant 2.560000e+02 : f32
    %29 = vector.broadcast %cst_12 : f32 to vector<2x64xf32>
    %30 = arith.divf %28, %29 : vector<2x64xf32>
    %c0_13 = arith.constant 0 : index
    %c0_14 = arith.constant 0 : index
    %c0_15 = arith.constant 0 : index
    %31 = vector.load %arg4[%c0_13, %c0_14, %c0_15] : memref<1x2x64xf32, #tpu.memory_space<vmem>>, vector<1x2x64xf32>
    %32 = vector.shape_cast %31 : vector<1x2x64xf32> to vector<2x64xf32>
    %33 = vector.shape_cast %30 : vector<2x64xf32> to vector<1x2x64xf32>
    tpu.vector_store %arg4[%c0_13, %c0_14, %c0_15], %33 {strides = array<i32>} : memref<1x2x64xf32, #tpu.memory_space<vmem>>, vector<1x2x64xf32>,
    return
  }
  func.func @transform_0(%arg0: i32) -> (i32, i32, i32, i32) {
    %c0_i32 = arith.constant 0 : i32
    %c0_i32_0 = arith.constant 0 : i32
    %c0_i32_1 = arith.constant 0 : i32
    %c0_i32_2 = arith.constant 0 : i32
    return %arg0, %c0_i32, %c0_i32_0, %c0_i32_1 : i32, i32, i32, i32
  }
  func.func @transform_1(%arg0: i32) -> (i32, i32) {
    %c0_i32 = arith.constant 0 : i32
    %c0_i32_0 = arith.constant 0 : i32
    %c0_i32_1 = arith.constant 0 : i32
    return %c0_i32, %c0_i32_0 : i32, i32
  }
  func.func @transform_2(%arg0: i32) -> (i32, i32) {
    %c0_i32 = arith.constant 0 : i32
    %c0_i32_0 = arith.constant 0 : i32
    %c0_i32_1 = arith.constant 0 : i32
    return %c0_i32, %c0_i32_0 : i32, i32
  }
  func.func @transform_3(%arg0: i32) -> (i32, i32, i32) {
    %c0_i32 = arith.constant 0 : i32
    %c0_i32_0 = arith.constant 0 : i32
    %c0_i32_1 = arith.constant 0 : i32
    return %arg0, %c0_i32, %c0_i32_0 : i32, i32, i32
  }
}

</mosaic_0001>

<llo_original>
// kernel: encoder_decoder_forward.5
$region0: #{encoder_decoder_forward.5}
  #allocation0 [shape = 'u32[]', space=smem, size = 0x4, offset = 0x4, fixed_abs, tag = 'smem constant byte address 0x4 - core index']
  #allocation1 [shape = 'u32[72,128]{1,0:T(1,128)}', space=vmem, size = 0x9000, scoped, tag = 'internal scratch']
  %s0 = inlined_call_operand.vmem [shape: f32[4,32], index: 0, kind: input, shape index: {}]
  %s1 = inlined_call_operand.vmem [shape: f32[32,32], index: 1, kind: input, shape index: {}]
  %s2 = inlined_call_operand.vmem [shape: f32[1,32], index: 2, kind: input, shape index: {}]
  %s3 = inlined_call_operand.vmem [shape: f32[32,8], index: 3, kind: input, shape index: {}]
  %s4 = inlined_call_operand.vmem [shape: f32[1,8], index: 4, kind: input, shape index: {}]
  %s5 = inlined_call_operand.vmem [shape: f32[4,8], index: 5, kind: output, shape index: {}]
  %s6 = sld [smem:[#allocation0]]
  $region30: #{encoder_decoder_forward.5} parent=0
    _
  %s8 = ssub.s32 1, %s6
  %s9 = scalar_select 0, %s8, %s6
  // Predicated region
  $region2: #{encoder_decoder_forward.5} parent=0 // pred_check
    _
  $region3: #{encoder_decoder_forward.5} parent=0 // pred_check_branch
    %11 = sbr.rel (0) target = $region5
  $region4: #{encoder_decoder_forward.5} parent=0 // pred_region
    _
  $region5: #{encoder_decoder_forward.5} parent=0 // pred_fallthru
    _
  // Predicated region
  $region6: #{encoder_decoder_forward.5} parent=0 // pred_check
    _
  $region7: #{encoder_decoder_forward.5} parent=0 // pred_check_branch
    %13 = sbr.rel (0) target = $region9
  $region8: #{encoder_decoder_forward.5} parent=0 // pred_region
    _
  $region9: #{encoder_decoder_forward.5} parent=0 // pred_fallthru
    _
  // Predicated region
  $region10: #{encoder_decoder_forward.5} parent=0 // pred_check
    _
  $region11: #{encoder_decoder_forward.5} parent=0 // pred_check_branch
    %15 = sbr.rel (0) target = $region13
  $region12: #{encoder_decoder_forward.5} parent=0 // pred_region
    _
  $region13: #{encoder_decoder_forward.5} parent=0 // pred_fallthru
    _
  // Predicated region
  $region14: #{encoder_decoder_forward.5} parent=0 // pred_check
    _
  $region15: #{encoder_decoder_forward.5} parent=0 // pred_check_branch
    %17 = sbr.rel (0) target = $region17
  $region16: #{encoder_decoder_forward.5} parent=0 // pred_region
    _
  $region17: #{encoder_decoder_forward.5} parent=0 // pred_fallthru
    _
  // Predicated region
  $region18: #{encoder_decoder_forward.5} parent=0 // pred_check
    _
  $region19: #{encoder_decoder_forward.5} parent=0 // pred_check_branch
    %19 = sbr.rel (0) target = $region21
  $region20: #{encoder_decoder_forward.5} parent=0 // pred_region
    _
  $region21: #{encoder_decoder_forward.5} parent=0 // pred_fallthru
    _
  %v20 = vld [vmem:[%s0] sm:$0xf]
  %v21 = vld [vmem:[%s1] sm:$0xff]
  %v22 = vld [vmem:[%s1 + $0x8] sm:$0xff]
  %v23 = vld [vmem:[%s1 + $0x10] sm:$0xff]
  %v24 = vld [vmem:[%s1 + $0x18] sm:$0xff]
  %v25 = vld [vmem:[%s2] sm:$0x1]
  %v27 = vperm.slane %v25, 0
  %vm29 = vcmask 261120
  %v31 = vsel %vm29, %v20, 0
  %33 = vmatpush.msra.mxu0 0.0
  %34 = vmatpush.msra.mxu0 0.0
  %35 = vmatpush.msra.mxu0 0.0
  %36 = vmatpush.msra.mxu0 0.0
  %37 = vmatpush.msra.mxu0 0.0
  %38 = vmatpush.msra.mxu0 0.0
  %39 = vmatpush.msra.mxu0 0.0
  %40 = vmatpush.msra.mxu0 0.0
  %41 = vmatpush.msra.mxu0 0.0
  %42 = vmatpush.msra.mxu0 0.0
  %43 = vmatpush.msra.mxu0 0.0
  %44 = vmatpush.msra.mxu0 0.0
  %45 = vmatpush.msra.mxu0 %v24
  %46 = vmatpush.msra.mxu0 %v23
  %47 = vmatpush.msra.mxu0 %v22
  %48 = vmatpush.msra.mxu0 %v21
  %49 = vmatmul.f32.gmra.mxu0 %v31
  %v50 = vpop.f32.mrf.mxu0
  %v51 = vadd.f32 %v27, %v50
  %52 = vdwg.mxu0
  %v53 = vmax.f32 %v51, 0.0
  %v54 = vld [vmem:[%s3] sm:$0xff]
  %v55 = vld [vmem:[%s3 + $0x8] sm:$0xff]
  %v56 = vld [vmem:[%s3 + $0x10] sm:$0xff]
  %v57 = vld [vmem:[%s3 + $0x18] sm:$0xff]
  %v58 = vld [vmem:[%s4] sm:$0x1]
  %v60 = vperm.slane %v58, 0
  %v63 = vsel %vm29, %v53, 0
  %65 = vmatpush.msra.mxu0 0.0
  %66 = vmatpush.msra.mxu0 0.0
  %67 = vmatpush.msra.mxu0 0.0
  %68 = vmatpush.msra.mxu0 0.0
  %69 = vmatpush.msra.mxu0 0.0
  %70 = vmatpush.msra.mxu0 0.0
  %71 = vmatpush.msra.mxu0 0.0
  %72 = vmatpush.msra.mxu0 0.0
  %73 = vmatpush.msra.mxu0 0.0
  %74 = vmatpush.msra.mxu0 0.0
  %75 = vmatpush.msra.mxu0 0.0
  %76 = vmatpush.msra.mxu0 0.0
  %77 = vmatpush.msra.mxu0 %v57
  %78 = vmatpush.msra.mxu0 %v56
  %79 = vmatpush.msra.mxu0 %v55
  %80 = vmatpush.msra.mxu0 %v54
  %81 = vmatmul.f32.gmra.mxu0 %v63
  %v82 = vpop.f32.mrf.mxu0
  %v83 = vadd.f32 %v60, %v82
  %84 = vdwg.mxu0
  %vm85 = vcmask 60416
  %86 = vst.msk [vmem:[%s5] sm:$0xf] %vm85, %v83
  // Predicated region
  $region22: #{encoder_decoder_forward.5} parent=0 // pred_check
    _
  $region23: #{encoder_decoder_forward.5} parent=0 // pred_check_branch
    %88 = sbr.rel (0) target = $region25
  $region24: #{encoder_decoder_forward.5} parent=0 // pred_region
    _
  $region25: #{encoder_decoder_forward.5} parent=0 // pred_fallthru
    _
  // Predicated region
  $region26: #{encoder_decoder_forward.5} parent=0 // pred_check
    _
  $region27: #{encoder_decoder_forward.5} parent=0 // pred_check_branch
    %90 = sbr.rel (0) target = $region29
  $region28: #{encoder_decoder_forward.5} parent=0 // pred_region
    _
  $region29: #{encoder_decoder_forward.5} parent=0 // pred_fallthru
    _

// kernel: encoder_decoder_forward.4
$region0: #{encoder_decoder_forward.4}
  #allocation0 [shape = 'u32[]', space=smem, size = 0x4, offset = 0x4, fixed_abs, tag = 'smem constant byte address 0x4 - core index']
  #allocation1 [shape = 'u32[72,128]{1,0:T(1,128)}', space=vmem, size = 0x9000, scoped, tag = 'internal scratch']
  %s0 = inlined_call_operand.vmem [shape: f32[4,16,16,3], index: 0, kind: input, shape index: {}]
  %s1 = inlined_call_operand.vmem [shape: bf16[27,64], index: 1, kind: input, shape index: {}]
  %s2 = inlined_call_operand.vmem [shape: f32[2,64], index: 2, kind: input, shape index: {}]
  %s3 = inlined_call_operand.vmem [shape: f32[2,2,64], index: 3, kind: output, shape index: {}]
  %s4 = sld [smem:[#allocation0]]
  $region45: #{encoder_decoder_forward.4} parent=0
    _
  %s6 = ssub.s32 1, %s4
  %s7 = scalar_select 0, %s6, %s4
  loop: start=0, step=1, limit=4
  $region2: #{encoder_decoder_forward.4} parent=0 // loop_pre_header
    _
  $region3: #{encoder_decoder_forward.4} parent=0 // loop_header
    %s9 = sphi 0, %s13
    %p10 = scmp.ge.s32.totalorder %s9, 4
    %s19 = sphi 0, %s21
    %s22 = sphi 0, %s19
    %s23 = sphi 0, %s22
    %s39 = sphi 0, %s23
    %s43 = sphi 0, %s43
    %s45 = sphi 0, %s43
    %s46 = sphi 0, %s45
    %s60 = sphi 0, %s46
    %s64 = sphi 0, %s64
    %s66 = sphi 0, %s64
    %s67 = sphi 0, %s66
    %s81 = sphi 0, %s67
    %s87 = sphi 0, %s89
    %s90 = sphi 0, %s87
    %s91 = sphi 0, %s90
    %s107 = sphi 0, %s91
  $region4: #{encoder_decoder_forward.4} parent=0 // loop_header_branch
    %12 = sbr.rel (%p10) target = $region8
  $region5: #{encoder_decoder_forward.4} parent=0 // loop_body
    %s14 = ssub.s32 %s9, 1
    %s15 = ssub.s32 %s9, 2
    %s16 = sadd.s32 %s9, 1
    %s17 = ssub.s32 %s9, %s16
    %p18 = scmp.eq.s32.totalorder %s17, 0
    %s20 = sadd.s32 %s19, 1
    %s21 = scalar_select %p18, %s19, %s20
    %p24 = pneg %p18
    %p25 = scmp.eq.s32.totalorder %s9, 1
    %p26 = por %p24, %p25
    %p27 = scmp.ne.s32.totalorder %s19, %s22
    %p28 = scmp.eq.s32.totalorder %s9, 0
    %p29 = por %p27, %p28
    %p30 = scmp.ne.s32.totalorder %s19, %s22
    %p31 = scmp.eq.s32.totalorder %s14, 1
    %p32 = por %p30, %p31
    %p33 = scmp.ne.s32.totalorder %s22, %s23
    %p34 = scmp.eq.s32.totalorder %s14, 0
    %p35 = por %p33, %p34
    %p36 = scmp.ne.s32.totalorder %s22, %s23
    %p37 = scmp.eq.s32.totalorder %s15, 1
    %p38 = por %p36, %p37
    %p40 = scmp.ne.s32.totalorder %s23, %s39
    %p41 = scmp.eq.s32.totalorder %s15, 0
    %p42 = por %p40, %p41
    %s44 = sadd.s32 %s43, 1
    %p47 = scmp.eq.s32.totalorder %s9, 1
    %p48 = scmp.ne.s32.totalorder %s43, %s45
    %p49 = scmp.eq.s32.totalorder %s9, 0
    %p50 = por %p48, %p49
    %p51 = scmp.ne.s32.totalorder %s43, %s45
    %p52 = scmp.eq.s32.totalorder %s14, 1
    %p53 = por %p51, %p52
    %p54 = scmp.ne.s32.totalorder %s45, %s46
    %p55 = scmp.eq.s32.totalorder %s14, 0
    %p56 = por %p54, %p55
    %p57 = scmp.ne.s32.totalorder %s45, %s46
    %p58 = scmp.eq.s32.totalorder %s15, 1
    %p59 = por %p57, %p58
    %p61 = scmp.ne.s32.totalorder %s46, %s60
    %p62 = scmp.eq.s32.totalorder %s15, 0
    %p63 = por %p61, %p62
    %s65 = sadd.s32 %s64, 1
    %p68 = scmp.eq.s32.totalorder %s9, 1
    %p69 = scmp.ne.s32.totalorder %s64, %s66
    %p70 = scmp.eq.s32.totalorder %s9, 0
    %p71 = por %p69, %p70
    %p72 = scmp.ne.s32.totalorder %s64, %s66
    %p73 = scmp.eq.s32.totalorder %s14, 1
    %p74 = por %p72, %p73
    %p75 = scmp.ne.s32.totalorder %s66, %s67
    %p76 = scmp.eq.s32.totalorder %s14, 0
    %p77 = por %p75, %p76
    %p78 = scmp.ne.s32.totalorder %s66, %s67
    %p79 = scmp.eq.s32.totalorder %s15, 1
    %p80 = por %p78, %p79
    %p82 = scmp.ne.s32.totalorder %s67, %s81
    %p83 = scmp.eq.s32.totalorder %s15, 0
    %p84 = por %p82, %p83
    %s85 = ssub.s32 %s9, %s16
    %p86 = scmp.eq.s32.totalorder %s85, 0
    %s88 = sadd.s32 %s87, 1
    %s89 = scalar_select %p86, %s87, %s88
    %p92 = pneg %p86
    %p93 = scmp.eq.s32.totalorder %s9, 1
    %p94 = por %p92, %p93
    %p95 = scmp.ne.s32.totalorder %s87, %s90
    %p96 = scmp.eq.s32.totalorder %s9, 0
    %p97 = por %p95, %p96
    %p98 = scmp.ne.s32.totalorder %s87, %s90
    %p99 = scmp.eq.s32.totalorder %s14, 1
    %p100 = por %p98, %p99
    %p101 = scmp.ne.s32.totalorder %s90, %s91
    %p102 = scmp.eq.s32.totalorder %s14, 0
    %p103 = por %p101, %p102
    %p104 = scmp.ne.s32.totalorder %s90, %s91
    %p105 = scmp.eq.s32.totalorder %s15, 1
    %p106 = por %p104, %p105
    %p108 = scmp.ne.s32.totalorder %s91, %s107
    %p109 = scmp.eq.s32.totalorder %s15, 0
    %p110 = por %p108, %p109
    %p111 = scmp.le.s32.totalorder 1, %s9
    %p112 = scmp.lt.s32.totalorder %s9, 3
    %p113 = pnand %p111, %p112
    %p114 = pneg %p113
    // Predicated region
    $region9: #{encoder_decoder_forward.4} parent=5 // pred_check
      _
    $region10: #{encoder_decoder_forward.4} parent=5 // pred_check_branch
      %116 = sbr.rel (%p113) target = $region12
    $region11: #{encoder_decoder_forward.4} parent=5 // pred_region
      %s117 = ssub.s32 %s9, 1
      // Predicated region
      $region13: #{encoder_decoder_forward.4} parent=11 // pred_check
        %p118 = pneg %p56
      $region14: #{encoder_decoder_forward.4} parent=11 // pred_check_branch
        %120 = sbr.rel (%p118) target = $region16
      $region15: #{encoder_decoder_forward.4} parent=11 // pred_region
        _
      $region16: #{encoder_decoder_forward.4} parent=11 // pred_fallthru
        _
      // Predicated region
      $region17: #{encoder_decoder_forward.4} parent=11 // pred_check
        %p121 = pneg %p77
      $region18: #{encoder_decoder_forward.4} parent=11 // pred_check_branch
        %123 = sbr.rel (%p121) target = $region20
      $region19: #{encoder_decoder_forward.4} parent=11 // pred_region
        _
      $region20: #{encoder_decoder_forward.4} parent=11 // pred_fallthru
        _
    $region12: #{encoder_decoder_forward.4} parent=5 // pred_fallthru
      _
    %p124 = scmp.lt.s32.totalorder %s9, 2
    // Predicated region
    $region21: #{encoder_decoder_forward.4} parent=5 // pred_check
      %p125 = pneg %p124
    $region22: #{encoder_decoder_forward.4} parent=5 // pred_check_branch
      %127 = sbr.rel (%p125) target = $region24
    $region23: #{encoder_decoder_forward.4} parent=5 // pred_region
      // Predicated region
      $region25: #{encoder_decoder_forward.4} parent=23 // pred_check
        %p128 = pneg %p29
      $region26: #{encoder_decoder_forward.4} parent=23 // pred_check_branch
        %130 = sbr.rel (%p128) target = $region28
      $region27: #{encoder_decoder_forward.4} parent=23 // pred_region
        %s131 = smul.u32 2, %s9
        %p132 = scmp.lt.s32.totalorder %s131, 3
        %s133 = scalar_select %p132, %s131, 3
        %s134 = smul.addr %s133, 32
        %s135 = smul.addr %s134, 8
        %s136 = scalar_lea.vmem %s0, %s135
        %s137 = smul.u32 2, %s9
      $region28: #{encoder_decoder_forward.4} parent=23 // pred_fallthru
        _
    $region24: #{encoder_decoder_forward.4} parent=5 // pred_fallthru
      _
    %p138 = scmp.le.s32.totalorder 1, %s9
    %p139 = scmp.lt.s32.totalorder %s9, 3
    %p140 = pnand %p138, %p139
    %p141 = pneg %p140
    // Predicated region
    $region29: #{encoder_decoder_forward.4} parent=5 // pred_check
      _
    $region30: #{encoder_decoder_forward.4} parent=5 // pred_check_branch
      %143 = sbr.rel (%p140) target = $region32
    $region31: #{encoder_decoder_forward.4} parent=5 // pred_region
      %s144 = ssub.s32 %s9, 1
      %s145 = smul.u32 2, %s14
      %p146 = scmp.lt.s32.totalorder %s145, 3
      %s147 = scalar_select %p146, %s145, 3
      %s148 = smul.addr %s147, 32
      %s149 = smul.addr %s148, 8
      %s150 = scalar_lea.vmem %s0, %s149
      %p151 = pneg %p35
      %p152 = pneg %p32
      %p153 = pneg %p56
      %p154 = pneg %p53
      %p155 = pneg %p77
      %p156 = pneg %p74
      %p157 = pneg %p103
      %p158 = pneg %p100
      %p159 = scmp.lt.s32.totalorder %s14, 1
      %s160 = scalar_select %p159, %s14, 1
      %s161 = smul.addr %s160, 2
      %s162 = scalar_lea.vmem %s3, %s161
      %s163 = smul.u32 2, %s14
      %p164 = scmp.lt.s32.totalorder %s163, 3
      %s165 = scalar_select %p164, %s163, 3
      %s166 = smul.addr %s165, 32
      %s167 = smul.addr %s166, 8
      %s168 = scalar_lea.vmem %s0, %s167
      %s169 = smul.u32 2, %s14
      %p170 = scmp.lt.s32.totalorder %s14, 1
      %s171 = scalar_select %p170, %s14, 1
      %s172 = smul.addr %s171, 2
      %s173 = scalar_lea.vmem %s3, %s172
      %v175 = vld [vmem:[%s168] sm:$0xff]
      %v176 = vld [vmem:[%s168 + $0x8] sm:$0xff]
      %v177 = vld [vmem:[%s168 + $0x10] sm:$0xff]
      %v178 = vld [vmem:[%s168 + $0x18] sm:$0xff]
      %v179 = vld [vmem:[%s168 + $0x20] sm:$0xff]
      %v180 = vld [vmem:[%s168 + $0x28] sm:$0xff]
      %v181 = vld [vmem:[%s168 + $0x30] sm:$0xff]
      %v182 = vld [vmem:[%s168 + $0x38] sm:$0xff]
      %v183 = vld [vmem:[%s168 + $0x40] sm:$0xff]
      %v184 = vld [vmem:[%s168 + $0x48] sm:$0xff]
      %v185 = vld [vmem:[%s168 + $0x50] sm:$0xff]
      %v186 = vld [vmem:[%s168 + $0x58] sm:$0xff]
      %v187 = vld [vmem:[%s168 + $0x60] sm:$0xff]
      %v188 = vld [vmem:[%s168 + $0x68] sm:$0xff]
      %v189 = vld [vmem:[%s168 + $0x70] sm:$0xff]
      %v190 = vld [vmem:[%s168 + $0x78] sm:$0xff]
      %v191 = vld [vmem:[%s168 + $0x80] sm:$0xff]
      %v192 = vld [vmem:[%s168 + $0x88] sm:$0xff]
      %v193 = vld [vmem:[%s168 + $0x90] sm:$0xff]
      %v194 = vld [vmem:[%s168 + $0x98] sm:$0xff]
      %v195 = vld [vmem:[%s168 + $0xa0] sm:$0xff]
      %v196 = vld [vmem:[%s168 + $0xa8] sm:$0xff]
      %v197 = vld [vmem:[%s168 + $0xb0] sm:$0xff]
      %v198 = vld [vmem:[%s168 + $0xb8] sm:$0xff]
      %v199 = vld [vmem:[%s168 + $0xc0] sm:$0xff]
      %v200 = vld [vmem:[%s168 + $0xc8] sm:$0xff]
      %v201 = vld [vmem:[%s168 + $0xd0] sm:$0xff]
      %v202 = vld [vmem:[%s168 + $0xd8] sm:$0xff]
      %v203 = vld [vmem:[%s168 + $0xe0] sm:$0xff]
      %v204 = vld [vmem:[%s168 + $0xe8] sm:$0xff]
      %v205 = vld [vmem:[%s168 + $0xf0] sm:$0xff]
      %v206 = vld [vmem:[%s168 + $0xf8] sm:$0xff]
      %v207 = vld [vmem:[%s168 + $0x100] sm:$0xff]
      %v208 = vld [vmem:[%s168 + $0x108] sm:$0xff]
      %v209 = vld [vmem:[%s168 + $0x110] sm:$0xff]
      %v210 = vld [vmem:[%s168 + $0x118] sm:$0xff]
      %v211 = vld [vmem:[%s168 + $0x120] sm:$0xff]
      %v212 = vld [vmem:[%s168 + $0x128] sm:$0xff]
      %v213 = vld [vmem:[%s168 + $0x130] sm:$0xff]
      %v214 = vld [vmem:[%s168 + $0x138] sm:$0xff]
      %v215 = vld [vmem:[%s168 + $0x140] sm:$0xff]
      %v216 = vld [vmem:[%s168 + $0x148] sm:$0xff]
      %v217 = vld [vmem:[%s168 + $0x150] sm:$0xff]
      %v218 = vld [vmem:[%s168 + $0x158] sm:$0xff]
      %v219 = vld [vmem:[%s168 + $0x160] sm:$0xff]
      %v220 = vld [vmem:[%s168 + $0x168] sm:$0xff]
      %v221 = vld [vmem:[%s168 + $0x170] sm:$0xff]
      %v222 = vld [vmem:[%s168 + $0x178] sm:$0xff]
      %v223 = vld [vmem:[%s168 + $0x180] sm:$0xff]
      %v224 = vld [vmem:[%s168 + $0x188] sm:$0xff]
      %v225 = vld [vmem:[%s168 + $0x190] sm:$0xff]
      %v226 = vld [vmem:[%s168 + $0x198] sm:$0xff]
      %v227 = vld [vmem:[%s168 + $0x1a0] sm:$0xff]
      %v228 = vld [vmem:[%s168 + $0x1a8] sm:$0xff]
      %v229 = vld [vmem:[%s168 + $0x1b0] sm:$0xff]
      %v230 = vld [vmem:[%s168 + $0x1b8] sm:$0xff]
      %v231 = vld [vmem:[%s168 + $0x1c0] sm:$0xff]
      %v232 = vld [vmem:[%s168 + $0x1c8] sm:$0xff]
      %v233 = vld [vmem:[%s168 + $0x1d0] sm:$0xff]
      %v234 = vld [vmem:[%s168 + $0x1d8] sm:$0xff]
      %v235 = vld [vmem:[%s168 + $0x1e0] sm:$0xff]
      %v236 = vld [vmem:[%s168 + $0x1e8] sm:$0xff]
      %v237 = vld [vmem:[%s168 + $0x1f0] sm:$0xff]
      %v238 = vld [vmem:[%s168 + $0x1f8] sm:$0xff]
      %vm304 = vcmask 1040384
      %v305 = vrot.slane 0.0, 7
      %v306 = vsel %vm304, %v305, %v305
      %v307 = vrot.slane %v175, 7
      %v308 = vrot.slane %v176, 7
      %v309 = vsel %vm304, %v307, %v308
      %v310 = vrot.slane %v177, 7
      %v311 = vrot.slane %v178, 7
      %v312 = vsel %vm304, %v310, %v311
      %v313 = vrot.slane %v179, 7
      %v314 = vrot.slane %v180, 7
      %v315 = vsel %vm304, %v313, %v314
      %v316 = vrot.slane %v181, 7
      %v317 = vrot.slane %v182, 7
      %v318 = vsel %vm304, %v316, %v317
      %v319 = vrot.slane %v183, 7
      %v320 = vrot.slane %v184, 7
      %v321 = vsel %vm304, %v319, %v320
      %v322 = vrot.slane %v185, 7
      %v323 = vrot.slane %v186, 7
      %v324 = vsel %vm304, %v322, %v323
      %v325 = vrot.slane %v187, 7
      %v326 = vrot.slane %v188, 7
      %v327 = vsel %vm304, %v325, %v326
      %v328 = vrot.slane %v189, 7
      %v329 = vrot.slane %v190, 7
      %v330 = vsel %vm304, %v328, %v329
      %v331 = vrot.slane %v191, 7
      %v332 = vrot.slane %v192, 7
      %v333 = vsel %vm304, %v331, %v332
      %v334 = vrot.slane %v193, 7
      %v335 = vrot.slane %v194, 7
      %v336 = vsel %vm304, %v334, %v335
      %v337 = vrot.slane %v195, 7
      %v338 = vrot.slane %v196, 7
      %v339 = vsel %vm304, %v337, %v338
      %v340 = vrot.slane %v197, 7
      %v341 = vrot.slane %v198, 7
      %v342 = vsel %vm304, %v340, %v341
      %v343 = vrot.slane %v199, 7
      %v344 = vrot.slane %v200, 7
      %v345 = vsel %vm304, %v343, %v344
      %v346 = vrot.slane %v201, 7
      %v347 = vrot.slane %v202, 7
      %v348 = vsel %vm304, %v346, %v347
      %v349 = vrot.slane %v203, 7
      %v350 = vrot.slane %v204, 7
      %v351 = vsel %vm304, %v349, %v350
      %v352 = vrot.slane %v205, 7
      %v353 = vrot.slane %v206, 7
      %v354 = vsel %vm304, %v352, %v353
      %v355 = vrot.slane %v207, 7
      %v356 = vrot.slane %v208, 7
      %v357 = vsel %vm304, %v355, %v356
      %v358 = vrot.slane %v209, 7
      %v359 = vrot.slane %v210, 7
      %v360 = vsel %vm304, %v358, %v359
      %v361 = vrot.slane %v211, 7
      %v362 = vrot.slane %v212, 7
      %v363 = vsel %vm304, %v361, %v362
      %v364 = vrot.slane %v213, 7
      %v365 = vrot.slane %v214, 7
      %v366 = vsel %vm304, %v364, %v365
      %v367 = vrot.slane %v215, 7
      %v368 = vrot.slane %v216, 7
      %v369 = vsel %vm304, %v367, %v368
      %v370 = vrot.slane %v217, 7
      %v371 = vrot.slane %v218, 7
      %v372 = vsel %vm304, %v370, %v371
      %v373 = vrot.slane %v219, 7
      %v374 = vrot.slane %v220, 7
      %v375 = vsel %vm304, %v373, %v374
      %v376 = vrot.slane %v221, 7
      %v377 = vrot.slane %v222, 7
      %v378 = vsel %vm304, %v376, %v377
      %v379 = vrot.slane %v223, 7
      %v380 = vrot.slane %v224, 7
      %v381 = vsel %vm304, %v379, %v380
      %v382 = vrot.slane %v225, 7
      %v383 = vrot.slane %v226, 7
      %v384 = vsel %vm304, %v382, %v383
      %v385 = vrot.slane %v227, 7
      %v386 = vrot.slane %v228, 7
      %v387 = vsel %vm304, %v385, %v386
      %v388 = vrot.slane %v229, 7
      %v389 = vrot.slane %v230, 7
      %v390 = vsel %vm304, %v388, %v389
      %v391 = vrot.slane %v231, 7
      %v392 = vrot.slane %v232, 7
      %v393 = vsel %vm304, %v391, %v392
      %v394 = vrot.slane %v233, 7
      %v395 = vrot.slane %v234, 7
      %v396 = vsel %vm304, %v394, %v395
      %v397 = vrot.slane %v235, 7
      %v398 = vrot.slane %v236, 7
      %v399 = vsel %vm304, %v397, %v398
      %v400 = vrot.slane %v237, 7
      %v401 = vrot.slane %v238, 7
      %v402 = vsel %vm304, %v400, %v401
      %v499 = vsel %vm304, 0.0, %v305
      %v500 = vsel %vm304, 0.0, %v307
      %v501 = vsel %vm304, 0.0, %v310
      %v502 = vsel %vm304, 0.0, %v313
      %v503 = vsel %vm304, 0.0, %v316
      %v504 = vsel %vm304, 0.0, %v319
      %v505 = vsel %vm304, 0.0, %v322
      %v506 = vsel %vm304, 0.0, %v325
      %v507 = vsel %vm304, 0.0, %v328
      %v508 = vsel %vm304, 0.0, %v331
      %v509 = vsel %vm304, 0.0, %v334
      %v510 = vsel %vm304, 0.0, %v337
      %v511 = vsel %vm304, 0.0, %v340
      %v512 = vsel %vm304, 0.0, %v343
      %v513 = vsel %vm304, 0.0, %v346
      %v514 = vsel %vm304, 0.0, %v349
      %v515 = vsel %vm304, 0.0, %v352
      %v516 = vsel %vm304, 0.0, %v355
      %v517 = vsel %vm304, 0.0, %v358
      %v518 = vsel %vm304, 0.0, %v361
      %v519 = vsel %vm304, 0.0, %v364
      %v520 = vsel %vm304, 0.0, %v367
      %v521 = vsel %vm304, 0.0, %v370
      %v522 = vsel %vm304, 0.0, %v373
      %v523 = vsel %vm304, 0.0, %v376
      %v524 = vsel %vm304, 0.0, %v379
      %v525 = vsel %vm304, 0.0, %v382
      %v526 = vsel %vm304, 0.0, %v385
      %v527 = vsel %vm304, 0.0, %v388
      %v528 = vsel %vm304, 0.0, %v391
      %v529 = vsel %vm304, 0.0, %v394
      %v530 = vsel %vm304, 0.0, %v397
      %v531 = vsel %vm304, 0.0, %v400
      %v532 = vsel %vm304, %v305, 0.0
      %v533 = vsel %vm304, %v308, 0.0
      %v534 = vsel %vm304, %v311, 0.0
      %v535 = vsel %vm304, %v314, 0.0
      %v536 = vsel %vm304, %v317, 0.0
      %v537 = vsel %vm304, %v320, 0.0
      %v538 = vsel %vm304, %v323, 0.0
      %v539 = vsel %vm304, %v326, 0.0
      %v540 = vsel %vm304, %v329, 0.0
      %v541 = vsel %vm304, %v332, 0.0
      %v542 = vsel %vm304, %v335, 0.0
      %v543 = vsel %vm304, %v338, 0.0
      %v544 = vsel %vm304, %v341, 0.0
      %v545 = vsel %vm304, %v344, 0.0
      %v546 = vsel %vm304, %v347, 0.0
      %v547 = vsel %vm304, %v350, 0.0
      %v548 = vsel %vm304, %v353, 0.0
      %v549 = vsel %vm304, %v356, 0.0
      %v550 = vsel %vm304, %v359, 0.0
      %v551 = vsel %vm304, %v362, 0.0
      %v552 = vsel %vm304, %v365, 0.0
      %v553 = vsel %vm304, %v368, 0.0
      %v554 = vsel %vm304, %v371, 0.0
      %v555 = vsel %vm304, %v374, 0.0
      %v556 = vsel %vm304, %v377, 0.0
      %v557 = vsel %vm304, %v380, 0.0
      %v558 = vsel %vm304, %v383, 0.0
      %v559 = vsel %vm304, %v386, 0.0
      %v560 = vsel %vm304, %v389, 0.0
      %v561 = vsel %vm304, %v392, 0.0
      %v562 = vsel %vm304, %v395, 0.0
      %v563 = vsel %vm304, %v398, 0.0
      %v564 = vsel %vm304, %v401, 0.0
      %vm627 = vcmask 1046528
      %v628 = vrot.slane %v499, 1
      %v629 = vrot.slane %v306, 1
      %v630 = vsel %vm627, %v628, %v629
      %v631 = vrot.slane %v532, 1
      %v632 = vsel %vm627, %v629, %v631
      %v633 = vrot.slane %v500, 1
      %v634 = vrot.slane %v309, 1
      %v635 = vsel %vm627, %v633, %v634
      %v636 = vrot.slane %v533, 1
      %v637 = vsel %vm627, %v634, %v636
      %v638 = vrot.slane %v501, 1
      %v639 = vrot.slane %v312, 1
      %v640 = vsel %vm627, %v638, %v639
      %v641 = vrot.slane %v534, 1
      %v642 = vsel %vm627, %v639, %v641
      %v643 = vrot.slane %v502, 1
      %v644 = vrot.slane %v315, 1
      %v645 = vsel %vm627, %v643, %v644
      %v646 = vrot.slane %v535, 1
      %v647 = vsel %vm627, %v644, %v646
      %v648 = vrot.slane %v503, 1
      %v649 = vrot.slane %v318, 1
      %v650 = vsel %vm627, %v648, %v649
      %v651 = vrot.slane %v536, 1
      %v652 = vsel %vm627, %v649, %v651
      %v653 = vrot.slane %v504, 1
      %v654 = vrot.slane %v321, 1
      %v655 = vsel %vm627, %v653, %v654
      %v656 = vrot.slane %v537, 1
      %v657 = vsel %vm627, %v654, %v656
      %v658 = vrot.slane %v505, 1
      %v659 = vrot.slane %v324, 1
      %v660 = vsel %vm627, %v658, %v659
      %v661 = vrot.slane %v538, 1
      %v662 = vsel %vm627, %v659, %v661
      %v663 = vrot.slane %v506, 1
      %v664 = vrot.slane %v327, 1
      %v665 = vsel %vm627, %v663, %v664
      %v666 = vrot.slane %v539, 1
      %v667 = vsel %vm627, %v664, %v666
      %v668 = vrot.slane %v507, 1
      %v669 = vrot.slane %v330, 1
      %v670 = vsel %vm627, %v668, %v669
      %v671 = vrot.slane %v540, 1
      %v672 = vsel %vm627, %v669, %v671
      %v673 = vrot.slane %v508, 1
      %v674 = vrot.slane %v333, 1
      %v675 = vsel %vm627, %v673, %v674
      %v676 = vrot.slane %v541, 1
      %v677 = vsel %vm627, %v674, %v676
      %v678 = vrot.slane %v509, 1
      %v679 = vrot.slane %v336, 1
      %v680 = vsel %vm627, %v678, %v679
      %v681 = vrot.slane %v542, 1
      %v682 = vsel %vm627, %v679, %v681
      %v683 = vrot.slane %v510, 1
      %v684 = vrot.slane %v339, 1
      %v685 = vsel %vm627, %v683, %v684
      %v686 = vrot.slane %v543, 1
      %v687 = vsel %vm627, %v684, %v686
      %v688 = vrot.slane %v511, 1
      %v689 = vrot.slane %v342, 1
      %v690 = vsel %vm627, %v688, %v689
      %v691 = vrot.slane %v544, 1
      %v692 = vsel %vm627, %v689, %v691
      %v693 = vrot.slane %v512, 1
      %v694 = vrot.slane %v345, 1
      %v695 = vsel %vm627, %v693, %v694
      %v696 = vrot.slane %v545, 1
      %v697 = vsel %vm627, %v694, %v696
      %v698 = vrot.slane %v513, 1
      %v699 = vrot.slane %v348, 1
      %v700 = vsel %vm627, %v698, %v699
      %v701 = vrot.slane %v546, 1
      %v702 = vsel %vm627, %v699, %v701
      %v703 = vrot.slane %v514, 1
      %v704 = vrot.slane %v351, 1
      %v705 = vsel %vm627, %v703, %v704
      %v706 = vrot.slane %v547, 1
      %v707 = vsel %vm627, %v704, %v706
      %v708 = vrot.slane %v516, 1
      %v709 = vrot.slane %v357, 1
      %v710 = vsel %vm627, %v708, %v709
      %v711 = vrot.slane %v549, 1
      %v712 = vsel %vm627, %v709, %v711
      %v713 = vrot.slane %v517, 1
      %v714 = vrot.slane %v360, 1
      %v715 = vsel %vm627, %v713, %v714
      %v716 = vrot.slane %v550, 1
      %v717 = vsel %vm627, %v714, %v716
      %v718 = vrot.slane %v518, 1
      %v719 = vrot.slane %v363, 1
      %v720 = vsel %vm627, %v718, %v719
      %v721 = vrot.slane %v551, 1
      %v722 = vsel %vm627, %v719, %v721
      %v723 = vrot.slane %v519, 1
      %v724 = vrot.slane %v366, 1
      %v725 = vsel %vm627, %v723, %v724
      %v726 = vrot.slane %v552, 1
      %v727 = vsel %vm627, %v724, %v726
      %v728 = vrot.slane %v520, 1
      %v729 = vrot.slane %v369, 1
      %v730 = vsel %vm627, %v728, %v729
      %v731 = vrot.slane %v553, 1
      %v732 = vsel %vm627, %v729, %v731
      %v733 = vrot.slane %v521, 1
      %v734 = vrot.slane %v372, 1
      %v735 = vsel %vm627, %v733, %v734
      %v736 = vrot.slane %v554, 1
      %v737 = vsel %vm627, %v734, %v736
      %v738 = vrot.slane %v522, 1
      %v739 = vrot.slane %v375, 1
      %v740 = vsel %vm627, %v738, %v739
      %v741 = vrot.slane %v555, 1
      %v742 = vsel %vm627, %v739, %v741
      %v743 = vrot.slane %v523, 1
      %v744 = vrot.slane %v378, 1
      %v745 = vsel %vm627, %v743, %v744
      %v746 = vrot.slane %v556, 1
      %v747 = vsel %vm627, %v744, %v746
      %v748 = vrot.slane %v524, 1
      %v749 = vrot.slane %v381, 1
      %v750 = vsel %vm627, %v748, %v749
      %v751 = vrot.slane %v557, 1
      %v752 = vsel %vm627, %v749, %v751
      %v753 = vrot.slane %v525, 1
      %v754 = vrot.slane %v384, 1
      %v755 = vsel %vm627, %v753, %v754
      %v756 = vrot.slane %v558, 1
      %v757 = vsel %vm627, %v754, %v756
      %v758 = vrot.slane %v526, 1
      %v759 = vrot.slane %v387, 1
      %v760 = vsel %vm627, %v758, %v759
      %v761 = vrot.slane %v559, 1
      %v762 = vsel %vm627, %v759, %v761
      %v763 = vrot.slane %v527, 1
      %v764 = vrot.slane %v390, 1
      %v765 = vsel %vm627, %v763, %v764
      %v766 = vrot.slane %v560, 1
      %v767 = vsel %vm627, %v764, %v766
      %v768 = vrot.slane %v528, 1
      %v769 = vrot.slane %v393, 1
      %v770 = vsel %vm627, %v768, %v769
      %v771 = vrot.slane %v561, 1
      %v772 = vsel %vm627, %v769, %v771
      %v773 = vrot.slane %v529, 1
      %v774 = vrot.slane %v396, 1
      %v775 = vsel %vm627, %v773, %v774
      %v776 = vrot.slane %v562, 1
      %v777 = vsel %vm627, %v774, %v776
      %v778 = vrot.slane %v530, 1
      %v779 = vrot.slane %v399, 1
      %v780 = vsel %vm627, %v778, %v779
      %v781 = vrot.slane %v563, 1
      %v782 = vsel %vm627, %v779, %v781
      %783 = vrot.lane.b32.xlu0 %v630, 3
      %v784 = vpop.permute.xlu0 %783
      %785 = vrot.lane.b32.xlu0 %v632, 3
      %v786 = vpop.permute.xlu0 %785
      %787 = vrot.lane.b32.xlu0 %v635, 3
      %v788 = vpop.permute.xlu0 %787
      %789 = vrot.lane.b32.xlu0 %v637, 3
      %v790 = vpop.permute.xlu0 %789
      %791 = vrot.lane.b32.xlu0 %v640, 3
      %v792 = vpop.permute.xlu0 %791
      %793 = vrot.lane.b32.xlu0 %v642, 3
      %v794 = vpop.permute.xlu0 %793
      %795 = vrot.lane.b32.xlu0 %v645, 3
      %v796 = vpop.permute.xlu0 %795
      %797 = vrot.lane.b32.xlu0 %v647, 3
      %v798 = vpop.permute.xlu0 %797
      %799 = vrot.lane.b32.xlu0 %v650, 3
      %v800 = vpop.permute.xlu0 %799
      %801 = vrot.lane.b32.xlu0 %v652, 3
      %v802 = vpop.permute.xlu0 %801
      %803 = vrot.lane.b32.xlu0 %v655, 3
      %v804 = vpop.permute.xlu0 %803
      %805 = vrot.lane.b32.xlu0 %v657, 3
      %v806 = vpop.permute.xlu0 %805
      %807 = vrot.lane.b32.xlu0 %v660, 3
      %v808 = vpop.permute.xlu0 %807
      %809 = vrot.lane.b32.xlu0 %v662, 3
      %v810 = vpop.permute.xlu0 %809
      %811 = vrot.lane.b32.xlu0 %v665, 3
      %v812 = vpop.permute.xlu0 %811
      %813 = vrot.lane.b32.xlu0 %v667, 3
      %v814 = vpop.permute.xlu0 %813
      %815 = vrot.lane.b32.xlu0 %v670, 3
      %v816 = vpop.permute.xlu0 %815
      %817 = vrot.lane.b32.xlu0 %v672, 3
      %v818 = vpop.permute.xlu0 %817
      %819 = vrot.lane.b32.xlu0 %v675, 3
      %v820 = vpop.permute.xlu0 %819
      %821 = vrot.lane.b32.xlu0 %v677, 3
      %v822 = vpop.permute.xlu0 %821
      %823 = vrot.lane.b32.xlu0 %v680, 3
      %v824 = vpop.permute.xlu0 %823
      %825 = vrot.lane.b32.xlu0 %v682, 3
      %v826 = vpop.permute.xlu0 %825
      %827 = vrot.lane.b32.xlu0 %v685, 3
      %v828 = vpop.permute.xlu0 %827
      %829 = vrot.lane.b32.xlu0 %v687, 3
      %v830 = vpop.permute.xlu0 %829
      %831 = vrot.lane.b32.xlu0 %v690, 3
      %v832 = vpop.permute.xlu0 %831
      %833 = vrot.lane.b32.xlu0 %v692, 3
      %v834 = vpop.permute.xlu0 %833
      %835 = vrot.lane.b32.xlu0 %v695, 3
      %v836 = vpop.permute.xlu0 %835
      %837 = vrot.lane.b32.xlu0 %v697, 3
      %v838 = vpop.permute.xlu0 %837
      %839 = vrot.lane.b32.xlu0 %v700, 3
      %v840 = vpop.permute.xlu0 %839
      %841 = vrot.lane.b32.xlu0 %v702, 3
      %v842 = vpop.permute.xlu0 %841
      %843 = vrot.lane.b32.xlu0 %v705, 3
      %v844 = vpop.permute.xlu0 %843
      %845 = vrot.lane.b32.xlu0 %v707, 3
      %v846 = vpop.permute.xlu0 %845
      %847 = vrot.lane.b32.xlu0 %v710, 3
      %v848 = vpop.permute.xlu0 %847
      %849 = vrot.lane.b32.xlu0 %v712, 3
      %v850 = vpop.permute.xlu0 %849
      %851 = vrot.lane.b32.xlu0 %v715, 3
      %v852 = vpop.permute.xlu0 %851
      %853 = vrot.lane.b32.xlu0 %v717, 3
      %v854 = vpop.permute.xlu0 %853
      %855 = vrot.lane.b32.xlu0 %v720, 3
      %v856 = vpop.permute.xlu0 %855
      %857 = vrot.lane.b32.xlu0 %v722, 3
      %v858 = vpop.permute.xlu0 %857
      %859 = vrot.lane.b32.xlu0 %v725, 3
      %v860 = vpop.permute.xlu0 %859
      %861 = vrot.lane.b32.xlu0 %v727, 3
      %v862 = vpop.permute.xlu0 %861
      %863 = vrot.lane.b32.xlu0 %v730, 3
      %v864 = vpop.permute.xlu0 %863
      %865 = vrot.lane.b32.xlu0 %v732, 3
      %v866 = vpop.permute.xlu0 %865
      %867 = vrot.lane.b32.xlu0 %v735, 3
      %v868 = vpop.permute.xlu0 %867
      %869 = vrot.lane.b32.xlu0 %v737, 3
      %v870 = vpop.permute.xlu0 %869
      %871 = vrot.lane.b32.xlu0 %v740, 3
      %v872 = vpop.permute.xlu0 %871
      %873 = vrot.lane.b32.xlu0 %v742, 3
      %v874 = vpop.permute.xlu0 %873
      %875 = vrot.lane.b32.xlu0 %v745, 3
      %v876 = vpop.permute.xlu0 %875
      %877 = vrot.lane.b32.xlu0 %v747, 3
      %v878 = vpop.permute.xlu0 %877
      %879 = vrot.lane.b32.xlu0 %v750, 3
      %v880 = vpop.permute.xlu0 %879
      %881 = vrot.lane.b32.xlu0 %v752, 3
      %v882 = vpop.permute.xlu0 %881
      %883 = vrot.lane.b32.xlu0 %v755, 3
      %v884 = vpop.permute.xlu0 %883
      %885 = vrot.lane.b32.xlu0 %v757, 3
      %v886 = vpop.permute.xlu0 %885
      %887 = vrot.lane.b32.xlu0 %v760, 3
      %v888 = vpop.permute.xlu0 %887
      %889 = vrot.lane.b32.xlu0 %v762, 3
      %v890 = vpop.permute.xlu0 %889
      %891 = vrot.lane.b32.xlu0 %v765, 3
      %v892 = vpop.permute.xlu0 %891
      %893 = vrot.lane.b32.xlu0 %v767, 3
      %v894 = vpop.permute.xlu0 %893
      %895 = vrot.lane.b32.xlu0 %v770, 3
      %v896 = vpop.permute.xlu0 %895
      %897 = vrot.lane.b32.xlu0 %v772, 3
      %v898 = vpop.permute.xlu0 %897
      %899 = vrot.lane.b32.xlu0 %v775, 3
      %v900 = vpop.permute.xlu0 %899
      %901 = vrot.lane.b32.xlu0 %v777, 3
      %v902 = vpop.permute.xlu0 %901
      %903 = vrot.lane.b32.xlu0 %v780, 3
      %v904 = vpop.permute.xlu0 %903
      %905 = vrot.lane.b32.xlu0 %v782, 3
      %v906 = vpop.permute.xlu0 %905
      %vm969 = vcmask 1045504
      %v970 = vrot.slane %v499, 2
      %v971 = vrot.slane %v306, 2
      %v972 = vsel %vm969, %v970, %v971
      %v973 = vrot.slane %v532, 2
      %v974 = vsel %vm969, %v971, %v973
      %v975 = vrot.slane %v500, 2
      %v976 = vrot.slane %v309, 2
      %v977 = vsel %vm969, %v975, %v976
      %v978 = vrot.slane %v533, 2
      %v979 = vsel %vm969, %v976, %v978
      %v980 = vrot.slane %v501, 2
      %v981 = vrot.slane %v312, 2
      %v982 = vsel %vm969, %v980, %v981
      %v983 = vrot.slane %v534, 2
      %v984 = vsel %vm969, %v981, %v983
      %v985 = vrot.slane %v502, 2
      %v986 = vrot.slane %v315, 2
      %v987 = vsel %vm969, %v985, %v986
      %v988 = vrot.slane %v535, 2
      %v989 = vsel %vm969, %v986, %v988
      %v990 = vrot.slane %v503, 2
      %v991 = vrot.slane %v318, 2
      %v992 = vsel %vm969, %v990, %v991
      %v993 = vrot.slane %v536, 2
      %v994 = vsel %vm969, %v991, %v993
      %v995 = vrot.slane %v504, 2
      %v996 = vrot.slane %v321, 2
      %v997 = vsel %vm969, %v995, %v996
      %v998 = vrot.slane %v537, 2
      %v999 = vsel %vm969, %v996, %v998
      %v1000 = vrot.slane %v505, 2
      %v1001 = vrot.slane %v324, 2
      %v1002 = vsel %vm969, %v1000, %v1001
      %v1003 = vrot.slane %v538, 2
      %v1004 = vsel %vm969, %v1001, %v1003
      %v1005 = vrot.slane %v506, 2
      %v1006 = vrot.slane %v327, 2
      %v1007 = vsel %vm969, %v1005, %v1006
      %v1008 = vrot.slane %v539, 2
      %v1009 = vsel %vm969, %v1006, %v1008
      %v1010 = vrot.slane %v507, 2
      %v1011 = vrot.slane %v330, 2
      %v1012 = vsel %vm969, %v1010, %v1011
      %v1013 = vrot.slane %v540, 2
      %v1014 = vsel %vm969, %v1011, %v1013
      %v1015 = vrot.slane %v508, 2
      %v1016 = vrot.slane %v333, 2
      %v1017 = vsel %vm969, %v1015, %v1016
      %v1018 = vrot.slane %v541, 2
      %v1019 = vsel %vm969, %v1016, %v1018
      %v1020 = vrot.slane %v509, 2
      %v1021 = vrot.slane %v336, 2
      %v1022 = vsel %vm969, %v1020, %v1021
      %v1023 = vrot.slane %v542, 2
      %v1024 = vsel %vm969, %v1021, %v1023
      %v1025 = vrot.slane %v510, 2
      %v1026 = vrot.slane %v339, 2
      %v1027 = vsel %vm969, %v1025, %v1026
      %v1028 = vrot.slane %v543, 2
      %v1029 = vsel %vm969, %v1026, %v1028
      %v1030 = vrot.slane %v511, 2
      %v1031 = vrot.slane %v342, 2
      %v1032 = vsel %vm969, %v1030, %v1031
      %v1033 = vrot.slane %v544, 2
      %v1034 = vsel %vm969, %v1031, %v1033
      %v1035 = vrot.slane %v512, 2
      %v1036 = vrot.slane %v345, 2
      %v1037 = vsel %vm969, %v1035, %v1036
      %v1038 = vrot.slane %v545, 2
      %v1039 = vsel %vm969, %v1036, %v1038
      %v1040 = vrot.slane %v513, 2
      %v1041 = vrot.slane %v348, 2
      %v1042 = vsel %vm969, %v1040, %v1041
      %v1043 = vrot.slane %v546, 2
      %v1044 = vsel %vm969, %v1041, %v1043
      %v1045 = vrot.slane %v514, 2
      %v1046 = vrot.slane %v351, 2
      %v1047 = vsel %vm969, %v1045, %v1046
      %v1048 = vrot.slane %v547, 2
      %v1049 = vsel %vm969, %v1046, %v1048
      %v1050 = vrot.slane %v516, 2
      %v1051 = vrot.slane %v357, 2
      %v1052 = vsel %vm969, %v1050, %v1051
      %v1053 = vrot.slane %v549, 2
      %v1054 = vsel %vm969, %v1051, %v1053
      %v1055 = vrot.slane %v517, 2
      %v1056 = vrot.slane %v360, 2
      %v1057 = vsel %vm969, %v1055, %v1056
      %v1058 = vrot.slane %v550, 2
      %v1059 = vsel %vm969, %v1056, %v1058
      %v1060 = vrot.slane %v518, 2
      %v1061 = vrot.slane %v363, 2
      %v1062 = vsel %vm969, %v1060, %v1061
      %v1063 = vrot.slane %v551, 2
      %v1064 = vsel %vm969, %v1061, %v1063
      %v1065 = vrot.slane %v519, 2
      %v1066 = vrot.slane %v366, 2
      %v1067 = vsel %vm969, %v1065, %v1066
      %v1068 = vrot.slane %v552, 2
      %v1069 = vsel %vm969, %v1066, %v1068
      %v1070 = vrot.slane %v520, 2
      %v1071 = vrot.slane %v369, 2
      %v1072 = vsel %vm969, %v1070, %v1071
      %v1073 = vrot.slane %v553, 2
      %v1074 = vsel %vm969, %v1071, %v1073
      %v1075 = vrot.slane %v521, 2
      %v1076 = vrot.slane %v372, 2
      %v1077 = vsel %vm969, %v1075, %v1076
      %v1078 = vrot.slane %v554, 2
      %v1079 = vsel %vm969, %v1076, %v1078
      %v1080 = vrot.slane %v522, 2
      %v1081 = vrot.slane %v375, 2
      %v1082 = vsel %vm969, %v1080, %v1081
      %v1083 = vrot.slane %v555, 2
      %v1084 = vsel %vm969, %v1081, %v1083
      %v1085 = vrot.slane %v523, 2
      %v1086 = vrot.slane %v378, 2
      %v1087 = vsel %vm969, %v1085, %v1086
      %v1088 = vrot.slane %v556, 2
      %v1089 = vsel %vm969, %v1086, %v1088
      %v1090 = vrot.slane %v524, 2
      %v1091 = vrot.slane %v381, 2
      %v1092 = vsel %vm969, %v1090, %v1091
      %v1093 = vrot.slane %v557, 2
      %v1094 = vsel %vm969, %v1091, %v1093
      %v1095 = vrot.slane %v525, 2
      %v1096 = vrot.slane %v384, 2
      %v1097 = vsel %vm969, %v1095, %v1096
      %v1098 = vrot.slane %v558, 2
      %v1099 = vsel %vm969, %v1096, %v1098
      %v1100 = vrot.slane %v526, 2
      %v1101 = vrot.slane %v387, 2
      %v1102 = vsel %vm969, %v1100, %v1101
      %v1103 = vrot.slane %v559, 2
      %v1104 = vsel %vm969, %v1101, %v1103
      %v1105 = vrot.slane %v527, 2
      %v1106 = vrot.slane %v390, 2
      %v1107 = vsel %vm969, %v1105, %v1106
      %v1108 = vrot.slane %v560, 2
      %v1109 = vsel %vm969, %v1106, %v1108
      %v1110 = vrot.slane %v528, 2
      %v1111 = vrot.slane %v393, 2
      %v1112 = vsel %vm969, %v1110, %v1111
      %v1113 = vrot.slane %v561, 2
      %v1114 = vsel %vm969, %v1111, %v1113
      %v1115 = vrot.slane %v529, 2
      %v1116 = vrot.slane %v396, 2
      %v1117 = vsel %vm969, %v1115, %v1116
      %v1118 = vrot.slane %v562, 2
      %v1119 = vsel %vm969, %v1116, %v1118
      %v1120 = vrot.slane %v530, 2
      %v1121 = vrot.slane %v399, 2
      %v1122 = vsel %vm969, %v1120, %v1121
      %v1123 = vrot.slane %v563, 2
      %v1124 = vsel %vm969, %v1121, %v1123
      %1125 = vrot.lane.b32.xlu0 %v972, 6
      %v1126 = vpop.permute.xlu0 %1125
      %1127 = vrot.lane.b32.xlu0 %v974, 6
      %v1128 = vpop.permute.xlu0 %1127
      %1129 = vrot.lane.b32.xlu0 %v977, 6
      %v1130 = vpop.permute.xlu0 %1129
      %1131 = vrot.lane.b32.xlu0 %v979, 6
      %v1132 = vpop.permute.xlu0 %1131
      %1133 = vrot.lane.b32.xlu0 %v982, 6
      %v1134 = vpop.permute.xlu0 %1133
      %1135 = vrot.lane.b32.xlu0 %v984, 6
      %v1136 = vpop.permute.xlu0 %1135
      %1137 = vrot.lane.b32.xlu0 %v987, 6
      %v1138 = vpop.permute.xlu0 %1137
      %1139 = vrot.lane.b32.xlu0 %v989, 6
      %v1140 = vpop.permute.xlu0 %1139
      %1141 = vrot.lane.b32.xlu0 %v992, 6
      %v1142 = vpop.permute.xlu0 %1141
      %1143 = vrot.lane.b32.xlu0 %v994, 6
      %v1144 = vpop.permute.xlu0 %1143
      %1145 = vrot.lane.b32.xlu0 %v997, 6
      %v1146 = vpop.permute.xlu0 %1145
      %1147 = vrot.lane.b32.xlu0 %v999, 6
      %v1148 = vpop.permute.xlu0 %1147
      %1149 = vrot.lane.b32.xlu0 %v1002, 6
      %v1150 = vpop.permute.xlu0 %1149
      %1151 = vrot.lane.b32.xlu0 %v1004, 6
      %v1152 = vpop.permute.xlu0 %1151
      %1153 = vrot.lane.b32.xlu0 %v1007, 6
      %v1154 = vpop.permute.xlu0 %1153
      %1155 = vrot.lane.b32.xlu0 %v1009, 6
      %v1156 = vpop.permute.xlu0 %1155
      %1157 = vrot.lane.b32.xlu0 %v1012, 6
      %v1158 = vpop.permute.xlu0 %1157
      %1159 = vrot.lane.b32.xlu0 %v1014, 6
      %v1160 = vpop.permute.xlu0 %1159
      %1161 = vrot.lane.b32.xlu0 %v1017, 6
      %v1162 = vpop.permute.xlu0 %1161
      %1163 = vrot.lane.b32.xlu0 %v1019, 6
      %v1164 = vpop.permute.xlu0 %1163
      %1165 = vrot.lane.b32.xlu0 %v1022, 6
      %v1166 = vpop.permute.xlu0 %1165
      %1167 = vrot.lane.b32.xlu0 %v1024, 6
      %v1168 = vpop.permute.xlu0 %1167
      %1169 = vrot.lane.b32.xlu0 %v1027, 6
      %v1170 = vpop.permute.xlu0 %1169
      %1171 = vrot.lane.b32.xlu0 %v1029, 6
      %v1172 = vpop.permute.xlu0 %1171
      %1173 = vrot.lane.b32.xlu0 %v1032, 6
      %v1174 = vpop.permute.xlu0 %1173
      %1175 = vrot.lane.b32.xlu0 %v1034, 6
      %v1176 = vpop.permute.xlu0 %1175
      %1177 = vrot.lane.b32.xlu0 %v1037, 6
      %v1178 = vpop.permute.xlu0 %1177
      %1179 = vrot.lane.b32.xlu0 %v1039, 6
      %v1180 = vpop.permute.xlu0 %1179
      %1181 = vrot.lane.b32.xlu0 %v1042, 6
      %v1182 = vpop.permute.xlu0 %1181
      %1183 = vrot.lane.b32.xlu0 %v1044, 6
      %v1184 = vpop.permute.xlu0 %1183
      %1185 = vrot.lane.b32.xlu0 %v1047, 6
      %v1186 = vpop.permute.xlu0 %1185
      %1187 = vrot.lane.b32.xlu0 %v1049, 6
      %v1188 = vpop.permute.xlu0 %1187
      %1189 = vrot.lane.b32.xlu0 %v1052, 6
      %v1190 = vpop.permute.xlu0 %1189
      %1191 = vrot.lane.b32.xlu0 %v1054, 6
      %v1192 = vpop.permute.xlu0 %1191
      %1193 = vrot.lane.b32.xlu0 %v1057, 6
      %v1194 = vpop.permute.xlu0 %1193
      %1195 = vrot.lane.b32.xlu0 %v1059, 6
      %v1196 = vpop.permute.xlu0 %1195
      %1197 = vrot.lane.b32.xlu0 %v1062, 6
      %v1198 = vpop.permute.xlu0 %1197
      %1199 = vrot.lane.b32.xlu0 %v1064, 6
      %v1200 = vpop.permute.xlu0 %1199
      %1201 = vrot.lane.b32.xlu0 %v1067, 6
      %v1202 = vpop.permute.xlu0 %1201
      %1203 = vrot.lane.b32.xlu0 %v1069, 6
      %v1204 = vpop.permute.xlu0 %1203
      %1205 = vrot.lane.b32.xlu0 %v1072, 6
      %v1206 = vpop.permute.xlu0 %1205
      %1207 = vrot.lane.b32.xlu0 %v1074, 6
      %v1208 = vpop.permute.xlu0 %1207
      %1209 = vrot.lane.b32.xlu0 %v1077, 6
      %v1210 = vpop.permute.xlu0 %1209
      %1211 = vrot.lane.b32.xlu0 %v1079, 6
      %v1212 = vpop.permute.xlu0 %1211
      %1213 = vrot.lane.b32.xlu0 %v1082, 6
      %v1214 = vpop.permute.xlu0 %1213
      %1215 = vrot.lane.b32.xlu0 %v1084, 6
      %v1216 = vpop.permute.xlu0 %1215
      %1217 = vrot.lane.b32.xlu0 %v1087, 6
      %v1218 = vpop.permute.xlu0 %1217
      %1219 = vrot.lane.b32.xlu0 %v1089, 6
      %v1220 = vpop.permute.xlu0 %1219
      %1221 = vrot.lane.b32.xlu0 %v1092, 6
      %v1222 = vpop.permute.xlu0 %1221
      %1223 = vrot.lane.b32.xlu0 %v1094, 6
      %v1224 = vpop.permute.xlu0 %1223
      %1225 = vrot.lane.b32.xlu0 %v1097, 6
      %v1226 = vpop.permute.xlu0 %1225
      %1227 = vrot.lane.b32.xlu0 %v1099, 6
      %v1228 = vpop.permute.xlu0 %1227
      %1229 = vrot.lane.b32.xlu0 %v1102, 6
      %v1230 = vpop.permute.xlu0 %1229
      %1231 = vrot.lane.b32.xlu0 %v1104, 6
      %v1232 = vpop.permute.xlu0 %1231
      %1233 = vrot.lane.b32.xlu0 %v1107, 6
      %v1234 = vpop.permute.xlu0 %1233
      %1235 = vrot.lane.b32.xlu0 %v1109, 6
      %v1236 = vpop.permute.xlu0 %1235
      %1237 = vrot.lane.b32.xlu0 %v1112, 6
      %v1238 = vpop.permute.xlu0 %1237
      %1239 = vrot.lane.b32.xlu0 %v1114, 6
      %v1240 = vpop.permute.xlu0 %1239
      %1241 = vrot.lane.b32.xlu0 %v1117, 6
      %v1242 = vpop.permute.xlu0 %1241
      %1243 = vrot.lane.b32.xlu0 %v1119, 6
      %v1244 = vpop.permute.xlu0 %1243
      %1245 = vrot.lane.b32.xlu0 %v1122, 6
      %v1246 = vpop.permute.xlu0 %1245
      %1247 = vrot.lane.b32.xlu0 %v1124, 6
      %v1248 = vpop.permute.xlu0 %1247
      %1313 = vrot.lane.b32.xlu0 %v500, 9
      %v1314 = vpop.permute.xlu0 %1313
      %1315 = vrot.lane.b32.xlu0 %v309, 9
      %v1316 = vpop.permute.xlu0 %1315
      %1317 = vrot.lane.b32.xlu0 %v501, 9
      %v1318 = vpop.permute.xlu0 %1317
      %1319 = vrot.lane.b32.xlu0 %v312, 9
      %v1320 = vpop.permute.xlu0 %1319
      %1321 = vrot.lane.b32.xlu0 %v502, 9
      %v1322 = vpop.permute.xlu0 %1321
      %1323 = vrot.lane.b32.xlu0 %v315, 9
      %v1324 = vpop.permute.xlu0 %1323
      %1325 = vrot.lane.b32.xlu0 %v503, 9
      %v1326 = vpop.permute.xlu0 %1325
      %1327 = vrot.lane.b32.xlu0 %v318, 9
      %v1328 = vpop.permute.xlu0 %1327
      %1329 = vrot.lane.b32.xlu0 %v504, 9
      %v1330 = vpop.permute.xlu0 %1329
      %1331 = vrot.lane.b32.xlu0 %v321, 9
      %v1332 = vpop.permute.xlu0 %1331
      %1333 = vrot.lane.b32.xlu0 %v505, 9
      %v1334 = vpop.permute.xlu0 %1333
      %1335 = vrot.lane.b32.xlu0 %v324, 9
      %v1336 = vpop.permute.xlu0 %1335
      %1337 = vrot.lane.b32.xlu0 %v506, 9
      %v1338 = vpop.permute.xlu0 %1337
      %1339 = vrot.lane.b32.xlu0 %v327, 9
      %v1340 = vpop.permute.xlu0 %1339
      %1341 = vrot.lane.b32.xlu0 %v507, 9
      %v1342 = vpop.permute.xlu0 %1341
      %1343 = vrot.lane.b32.xlu0 %v330, 9
      %v1344 = vpop.permute.xlu0 %1343
      %1345 = vrot.lane.b32.xlu0 %v508, 9
      %v1346 = vpop.permute.xlu0 %1345
      %1347 = vrot.lane.b32.xlu0 %v333, 9
      %v1348 = vpop.permute.xlu0 %1347
      %1349 = vrot.lane.b32.xlu0 %v509, 9
      %v1350 = vpop.permute.xlu0 %1349
      %1351 = vrot.lane.b32.xlu0 %v336, 9
      %v1352 = vpop.permute.xlu0 %1351
      %1353 = vrot.lane.b32.xlu0 %v510, 9
      %v1354 = vpop.permute.xlu0 %1353
      %1355 = vrot.lane.b32.xlu0 %v339, 9
      %v1356 = vpop.permute.xlu0 %1355
      %1357 = vrot.lane.b32.xlu0 %v511, 9
      %v1358 = vpop.permute.xlu0 %1357
      %1359 = vrot.lane.b32.xlu0 %v342, 9
      %v1360 = vpop.permute.xlu0 %1359
      %1361 = vrot.lane.b32.xlu0 %v512, 9
      %v1362 = vpop.permute.xlu0 %1361
      %1363 = vrot.lane.b32.xlu0 %v345, 9
      %v1364 = vpop.permute.xlu0 %1363
      %1365 = vrot.lane.b32.xlu0 %v513, 9
      %v1366 = vpop.permute.xlu0 %1365
      %1367 = vrot.lane.b32.xlu0 %v348, 9
      %v1368 = vpop.permute.xlu0 %1367
      %1369 = vrot.lane.b32.xlu0 %v514, 9
      %v1370 = vpop.permute.xlu0 %1369
      %1371 = vrot.lane.b32.xlu0 %v351, 9
      %v1372 = vpop.permute.xlu0 %1371
      %1373 = vrot.lane.b32.xlu0 %v515, 9
      %v1374 = vpop.permute.xlu0 %1373
      %1375 = vrot.lane.b32.xlu0 %v354, 9
      %v1376 = vpop.permute.xlu0 %1375
      %1377 = vrot.lane.b32.xlu0 %v516, 9
      %v1378 = vpop.permute.xlu0 %1377
      %1379 = vrot.lane.b32.xlu0 %v357, 9
      %v1380 = vpop.permute.xlu0 %1379
      %1381 = vrot.lane.b32.xlu0 %v517, 9
      %v1382 = vpop.permute.xlu0 %1381
      %1383 = vrot.lane.b32.xlu0 %v360, 9
      %v1384 = vpop.permute.xlu0 %1383
      %1385 = vrot.lane.b32.xlu0 %v518, 9
      %v1386 = vpop.permute.xlu0 %1385
      %1387 = vrot.lane.b32.xlu0 %v363, 9
      %v1388 = vpop.permute.xlu0 %1387
      %1389 = vrot.lane.b32.xlu0 %v519, 9
      %v1390 = vpop.permute.xlu0 %1389
      %1391 = vrot.lane.b32.xlu0 %v366, 9
      %v1392 = vpop.permute.xlu0 %1391
      %1393 = vrot.lane.b32.xlu0 %v520, 9
      %v1394 = vpop.permute.xlu0 %1393
      %1395 = vrot.lane.b32.xlu0 %v369, 9
      %v1396 = vpop.permute.xlu0 %1395
      %1397 = vrot.lane.b32.xlu0 %v521, 9
      %v1398 = vpop.permute.xlu0 %1397
      %1399 = vrot.lane.b32.xlu0 %v372, 9
      %v1400 = vpop.permute.xlu0 %1399
      %1401 = vrot.lane.b32.xlu0 %v522, 9
      %v1402 = vpop.permute.xlu0 %1401
      %1403 = vrot.lane.b32.xlu0 %v375, 9
      %v1404 = vpop.permute.xlu0 %1403
      %1405 = vrot.lane.b32.xlu0 %v523, 9
      %v1406 = vpop.permute.xlu0 %1405
      %1407 = vrot.lane.b32.xlu0 %v378, 9
      %v1408 = vpop.permute.xlu0 %1407
      %1409 = vrot.lane.b32.xlu0 %v524, 9
      %v1410 = vpop.permute.xlu0 %1409
      %1411 = vrot.lane.b32.xlu0 %v381, 9
      %v1412 = vpop.permute.xlu0 %1411
      %1413 = vrot.lane.b32.xlu0 %v525, 9
      %v1414 = vpop.permute.xlu0 %1413
      %1415 = vrot.lane.b32.xlu0 %v384, 9
      %v1416 = vpop.permute.xlu0 %1415
      %1417 = vrot.lane.b32.xlu0 %v526, 9
      %v1418 = vpop.permute.xlu0 %1417
      %1419 = vrot.lane.b32.xlu0 %v387, 9
      %v1420 = vpop.permute.xlu0 %1419
      %1421 = vrot.lane.b32.xlu0 %v527, 9
      %v1422 = vpop.permute.xlu0 %1421
      %1423 = vrot.lane.b32.xlu0 %v390, 9
      %v1424 = vpop.permute.xlu0 %1423
      %1425 = vrot.lane.b32.xlu0 %v528, 9
      %v1426 = vpop.permute.xlu0 %1425
      %1427 = vrot.lane.b32.xlu0 %v393, 9
      %v1428 = vpop.permute.xlu0 %1427
      %1429 = vrot.lane.b32.xlu0 %v529, 9
      %v1430 = vpop.permute.xlu0 %1429
      %1431 = vrot.lane.b32.xlu0 %v396, 9
      %v1432 = vpop.permute.xlu0 %1431
      %1433 = vrot.lane.b32.xlu0 %v530, 9
      %v1434 = vpop.permute.xlu0 %1433
      %1435 = vrot.lane.b32.xlu0 %v399, 9
      %v1436 = vpop.permute.xlu0 %1435
      %1437 = vrot.lane.b32.xlu0 %v531, 9
      %v1438 = vpop.permute.xlu0 %1437
      %1439 = vrot.lane.b32.xlu0 %v402, 9
      %v1440 = vpop.permute.xlu0 %1439
      %v1507 = vrot.slane %v515, 1
      %v1508 = vrot.slane %v354, 1
      %v1509 = vsel %vm627, %v1507, %v1508
      %v1510 = vrot.slane %v548, 1
      %v1511 = vsel %vm627, %v1508, %v1510
      %v1512 = vrot.slane %v531, 1
      %v1513 = vrot.slane %v402, 1
      %v1514 = vsel %vm627, %v1512, %v1513
      %v1515 = vrot.slane %v564, 1
      %v1516 = vsel %vm627, %v1513, %v1515
      %1517 = vrot.lane.b32.xlu0 %v635, 12
      %v1518 = vpop.permute.xlu0 %1517
      %1519 = vrot.lane.b32.xlu0 %v637, 12
      %v1520 = vpop.permute.xlu0 %1519
      %1521 = vrot.lane.b32.xlu0 %v640, 12
      %v1522 = vpop.permute.xlu0 %1521
      %1523 = vrot.lane.b32.xlu0 %v642, 12
      %v1524 = vpop.permute.xlu0 %1523
      %1525 = vrot.lane.b32.xlu0 %v645, 12
      %v1526 = vpop.permute.xlu0 %1525
      %1527 = vrot.lane.b32.xlu0 %v647, 12
      %v1528 = vpop.permute.xlu0 %1527
      %1529 = vrot.lane.b32.xlu0 %v650, 12
      %v1530 = vpop.permute.xlu0 %1529
      %1531 = vrot.lane.b32.xlu0 %v652, 12
      %v1532 = vpop.permute.xlu0 %1531
      %1533 = vrot.lane.b32.xlu0 %v655, 12
      %v1534 = vpop.permute.xlu0 %1533
      %1535 = vrot.lane.b32.xlu0 %v657, 12
      %v1536 = vpop.permute.xlu0 %1535
      %1537 = vrot.lane.b32.xlu0 %v660, 12
      %v1538 = vpop.permute.xlu0 %1537
      %1539 = vrot.lane.b32.xlu0 %v662, 12
      %v1540 = vpop.permute.xlu0 %1539
      %1541 = vrot.lane.b32.xlu0 %v665, 12
      %v1542 = vpop.permute.xlu0 %1541
      %1543 = vrot.lane.b32.xlu0 %v667, 12
      %v1544 = vpop.permute.xlu0 %1543
      %1545 = vrot.lane.b32.xlu0 %v670, 12
      %v1546 = vpop.permute.xlu0 %1545
      %1547 = vrot.lane.b32.xlu0 %v672, 12
      %v1548 = vpop.permute.xlu0 %1547
      %1549 = vrot.lane.b32.xlu0 %v675, 12
      %v1550 = vpop.permute.xlu0 %1549
      %1551 = vrot.lane.b32.xlu0 %v677, 12
      %v1552 = vpop.permute.xlu0 %1551
      %1553 = vrot.lane.b32.xlu0 %v680, 12
      %v1554 = vpop.permute.xlu0 %1553
      %1555 = vrot.lane.b32.xlu0 %v682, 12
      %v1556 = vpop.permute.xlu0 %1555
      %1557 = vrot.lane.b32.xlu0 %v685, 12
      %v1558 = vpop.permute.xlu0 %1557
      %1559 = vrot.lane.b32.xlu0 %v687, 12
      %v1560 = vpop.permute.xlu0 %1559
      %1561 = vrot.lane.b32.xlu0 %v690, 12
      %v1562 = vpop.permute.xlu0 %1561
      %1563 = vrot.lane.b32.xlu0 %v692, 12
      %v1564 = vpop.permute.xlu0 %1563
      %1565 = vrot.lane.b32.xlu0 %v695, 12
      %v1566 = vpop.permute.xlu0 %1565
      %1567 = vrot.lane.b32.xlu0 %v697, 12
      %v1568 = vpop.permute.xlu0 %1567
      %1569 = vrot.lane.b32.xlu0 %v700, 12
      %v1570 = vpop.permute.xlu0 %1569
      %1571 = vrot.lane.b32.xlu0 %v702, 12
      %v1572 = vpop.permute.xlu0 %1571
      %1573 = vrot.lane.b32.xlu0 %v705, 12
      %v1574 = vpop.permute.xlu0 %1573
      %1575 = vrot.lane.b32.xlu0 %v707, 12
      %v1576 = vpop.permute.xlu0 %1575
      %1577 = vrot.lane.b32.xlu0 %v1509, 12
      %v1578 = vpop.permute.xlu0 %1577
      %1579 = vrot.lane.b32.xlu0 %v1511, 12
      %v1580 = vpop.permute.xlu0 %1579
      %1581 = vrot.lane.b32.xlu0 %v710, 12
      %v1582 = vpop.permute.xlu0 %1581
      %1583 = vrot.lane.b32.xlu0 %v712, 12
      %v1584 = vpop.permute.xlu0 %1583
      %1585 = vrot.lane.b32.xlu0 %v715, 12
      %v1586 = vpop.permute.xlu0 %1585
      %1587 = vrot.lane.b32.xlu0 %v717, 12
      %v1588 = vpop.permute.xlu0 %1587
      %1589 = vrot.lane.b32.xlu0 %v720, 12
      %v1590 = vpop.permute.xlu0 %1589
      %1591 = vrot.lane.b32.xlu0 %v722, 12
      %v1592 = vpop.permute.xlu0 %1591
      %1593 = vrot.lane.b32.xlu0 %v725, 12
      %v1594 = vpop.permute.xlu0 %1593
      %1595 = vrot.lane.b32.xlu0 %v727, 12
      %v1596 = vpop.permute.xlu0 %1595
      %1597 = vrot.lane.b32.xlu0 %v730, 12
      %v1598 = vpop.permute.xlu0 %1597
      %1599 = vrot.lane.b32.xlu0 %v732, 12
      %v1600 = vpop.permute.xlu0 %1599
      %1601 = vrot.lane.b32.xlu0 %v735, 12
      %v1602 = vpop.permute.xlu0 %1601
      %1603 = vrot.lane.b32.xlu0 %v737, 12
      %v1604 = vpop.permute.xlu0 %1603
      %1605 = vrot.lane.b32.xlu0 %v740, 12
      %v1606 = vpop.permute.xlu0 %1605
      %1607 = vrot.lane.b32.xlu0 %v742, 12
      %v1608 = vpop.permute.xlu0 %1607
      %1609 = vrot.lane.b32.xlu0 %v745, 12
      %v1610 = vpop.permute.xlu0 %1609
      %1611 = vrot.lane.b32.xlu0 %v747, 12
      %v1612 = vpop.permute.xlu0 %1611
      %1613 = vrot.lane.b32.xlu0 %v750, 12
      %v1614 = vpop.permute.xlu0 %1613
      %1615 = vrot.lane.b32.xlu0 %v752, 12
      %v1616 = vpop.permute.xlu0 %1615
      %1617 = vrot.lane.b32.xlu0 %v755, 12
      %v1618 = vpop.permute.xlu0 %1617
      %1619 = vrot.lane.b32.xlu0 %v757, 12
      %v1620 = vpop.permute.xlu0 %1619
      %1621 = vrot.lane.b32.xlu0 %v760, 12
      %v1622 = vpop.permute.xlu0 %1621
      %1623 = vrot.lane.b32.xlu0 %v762, 12
      %v1624 = vpop.permute.xlu0 %1623
      %1625 = vrot.lane.b32.xlu0 %v765, 12
      %v1626 = vpop.permute.xlu0 %1625
      %1627 = vrot.lane.b32.xlu0 %v767, 12
      %v1628 = vpop.permute.xlu0 %1627
      %1629 = vrot.lane.b32.xlu0 %v770, 12
      %v1630 = vpop.permute.xlu0 %1629
      %1631 = vrot.lane.b32.xlu0 %v772, 12
      %v1632 = vpop.permute.xlu0 %1631
      %1633 = vrot.lane.b32.xlu0 %v775, 12
      %v1634 = vpop.permute.xlu0 %1633
      %1635 = vrot.lane.b32.xlu0 %v777, 12
      %v1636 = vpop.permute.xlu0 %1635
      %1637 = vrot.lane.b32.xlu0 %v780, 12
      %v1638 = vpop.permute.xlu0 %1637
      %1639 = vrot.lane.b32.xlu0 %v782, 12
      %v1640 = vpop.permute.xlu0 %1639
      %1641 = vrot.lane.b32.xlu0 %v1514, 12
      %v1642 = vpop.permute.xlu0 %1641
      %1643 = vrot.lane.b32.xlu0 %v1516, 12
      %v1644 = vpop.permute.xlu0 %1643
      %v1709 = vrot.slane %v515, 2
      %v1710 = vrot.slane %v354, 2
      %v1711 = vsel %vm969, %v1709, %v1710
      %v1712 = vrot.slane %v548, 2
      %v1713 = vsel %vm969, %v1710, %v1712
      %v1714 = vrot.slane %v531, 2
      %v1715 = vrot.slane %v402, 2
      %v1716 = vsel %vm969, %v1714, %v1715
      %v1717 = vrot.slane %v564, 2
      %v1718 = vsel %vm969, %v1715, %v1717
      %1719 = vrot.lane.b32.xlu0 %v977, 15
      %v1720 = vpop.permute.xlu0 %1719
      %1721 = vrot.lane.b32.xlu0 %v979, 15
      %v1722 = vpop.permute.xlu0 %1721
      %1723 = vrot.lane.b32.xlu0 %v982, 15
      %v1724 = vpop.permute.xlu0 %1723
      %1725 = vrot.lane.b32.xlu0 %v984, 15
      %v1726 = vpop.permute.xlu0 %1725
      %1727 = vrot.lane.b32.xlu0 %v987, 15
      %v1728 = vpop.permute.xlu0 %1727
      %1729 = vrot.lane.b32.xlu0 %v989, 15
      %v1730 = vpop.permute.xlu0 %1729
      %1731 = vrot.lane.b32.xlu0 %v992, 15
      %v1732 = vpop.permute.xlu0 %1731
      %1733 = vrot.lane.b32.xlu0 %v994, 15
      %v1734 = vpop.permute.xlu0 %1733
      %1735 = vrot.lane.b32.xlu0 %v997, 15
      %v1736 = vpop.permute.xlu0 %1735
      %1737 = vrot.lane.b32.xlu0 %v999, 15
      %v1738 = vpop.permute.xlu0 %1737
      %1739 = vrot.lane.b32.xlu0 %v1002, 15
      %v1740 = vpop.permute.xlu0 %1739
      %1741 = vrot.lane.b32.xlu0 %v1004, 15
      %v1742 = vpop.permute.xlu0 %1741
      %1743 = vrot.lane.b32.xlu0 %v1007, 15
      %v1744 = vpop.permute.xlu0 %1743
      %1745 = vrot.lane.b32.xlu0 %v1009, 15
      %v1746 = vpop.permute.xlu0 %1745
      %1747 = vrot.lane.b32.xlu0 %v1012, 15
      %v1748 = vpop.permute.xlu0 %1747
      %1749 = vrot.lane.b32.xlu0 %v1014, 15
      %v1750 = vpop.permute.xlu0 %1749
      %1751 = vrot.lane.b32.xlu0 %v1017, 15
      %v1752 = vpop.permute.xlu0 %1751
      %1753 = vrot.lane.b32.xlu0 %v1019, 15
      %v1754 = vpop.permute.xlu0 %1753
      %1755 = vrot.lane.b32.xlu0 %v1022, 15
      %v1756 = vpop.permute.xlu0 %1755
      %1757 = vrot.lane.b32.xlu0 %v1024, 15
      %v1758 = vpop.permute.xlu0 %1757
      %1759 = vrot.lane.b32.xlu0 %v1027, 15
      %v1760 = vpop.permute.xlu0 %1759
      %1761 = vrot.lane.b32.xlu0 %v1029, 15
      %v1762 = vpop.permute.xlu0 %1761
      %1763 = vrot.lane.b32.xlu0 %v1032, 15
      %v1764 = vpop.permute.xlu0 %1763
      %1765 = vrot.lane.b32.xlu0 %v1034, 15
      %v1766 = vpop.permute.xlu0 %1765
      %1767 = vrot.lane.b32.xlu0 %v1037, 15
      %v1768 = vpop.permute.xlu0 %1767
      %1769 = vrot.lane.b32.xlu0 %v1039, 15
      %v1770 = vpop.permute.xlu0 %1769
      %1771 = vrot.lane.b32.xlu0 %v1042, 15
      %v1772 = vpop.permute.xlu0 %1771
      %1773 = vrot.lane.b32.xlu0 %v1044, 15
      %v1774 = vpop.permute.xlu0 %1773
      %1775 = vrot.lane.b32.xlu0 %v1047, 15
      %v1776 = vpop.permute.xlu0 %1775
      %1777 = vrot.lane.b32.xlu0 %v1049, 15
      %v1778 = vpop.permute.xlu0 %1777
      %1779 = vrot.lane.b32.xlu0 %v1711, 15
      %v1780 = vpop.permute.xlu0 %1779
      %1781 = vrot.lane.b32.xlu0 %v1713, 15
      %v1782 = vpop.permute.xlu0 %1781
      %1783 = vrot.lane.b32.xlu0 %v1052, 15
      %v1784 = vpop.permute.xlu0 %1783
      %1785 = vrot.lane.b32.xlu0 %v1054, 15
      %v1786 = vpop.permute.xlu0 %1785
      %1787 = vrot.lane.b32.xlu0 %v1057, 15
      %v1788 = vpop.permute.xlu0 %1787
      %1789 = vrot.lane.b32.xlu0 %v1059, 15
      %v1790 = vpop.permute.xlu0 %1789
      %1791 = vrot.lane.b32.xlu0 %v1062, 15
      %v1792 = vpop.permute.xlu0 %1791
      %1793 = vrot.lane.b32.xlu0 %v1064, 15
      %v1794 = vpop.permute.xlu0 %1793
      %1795 = vrot.lane.b32.xlu0 %v1067, 15
      %v1796 = vpop.permute.xlu0 %1795
      %1797 = vrot.lane.b32.xlu0 %v1069, 15
      %v1798 = vpop.permute.xlu0 %1797
      %1799 = vrot.lane.b32.xlu0 %v1072, 15
      %v1800 = vpop.permute.xlu0 %1799
      %1801 = vrot.lane.b32.xlu0 %v1074, 15
      %v1802 = vpop.permute.xlu0 %1801
      %1803 = vrot.lane.b32.xlu0 %v1077, 15
      %v1804 = vpop.permute.xlu0 %1803
      %1805 = vrot.lane.b32.xlu0 %v1079, 15
      %v1806 = vpop.permute.xlu0 %1805
      %1807 = vrot.lane.b32.xlu0 %v1082, 15
      %v1808 = vpop.permute.xlu0 %1807
      %1809 = vrot.lane.b32.xlu0 %v1084, 15
      %v1810 = vpop.permute.xlu0 %1809
      %1811 = vrot.lane.b32.xlu0 %v1087, 15
      %v1812 = vpop.permute.xlu0 %1811
      %1813 = vrot.lane.b32.xlu0 %v1089, 15
      %v1814 = vpop.permute.xlu0 %1813
      %1815 = vrot.lane.b32.xlu0 %v1092, 15
      %v1816 = vpop.permute.xlu0 %1815
      %1817 = vrot.lane.b32.xlu0 %v1094, 15
      %v1818 = vpop.permute.xlu0 %1817
      %1819 = vrot.lane.b32.xlu0 %v1097, 15
      %v1820 = vpop.permute.xlu0 %1819
      %1821 = vrot.lane.b32.xlu0 %v1099, 15
      %v1822 = vpop.permute.xlu0 %1821
      %1823 = vrot.lane.b32.xlu0 %v1102, 15
      %v1824 = vpop.permute.xlu0 %1823
      %1825 = vrot.lane.b32.xlu0 %v1104, 15
      %v1826 = vpop.permute.xlu0 %1825
      %1827 = vrot.lane.b32.xlu0 %v1107, 15
      %v1828 = vpop.permute.xlu0 %1827
      %1829 = vrot.lane.b32.xlu0 %v1109, 15
      %v1830 = vpop.permute.xlu0 %1829
      %1831 = vrot.lane.b32.xlu0 %v1112, 15
      %v1832 = vpop.permute.xlu0 %1831
      %1833 = vrot.lane.b32.xlu0 %v1114, 15
      %v1834 = vpop.permute.xlu0 %1833
      %1835 = vrot.lane.b32.xlu0 %v1117, 15
      %v1836 = vpop.permute.xlu0 %1835
      %1837 = vrot.lane.b32.xlu0 %v1119, 15
      %v1838 = vpop.permute.xlu0 %1837
      %1839 = vrot.lane.b32.xlu0 %v1122, 15
      %v1840 = vpop.permute.xlu0 %1839
      %1841 = vrot.lane.b32.xlu0 %v1124, 15
      %v1842 = vpop.permute.xlu0 %1841
      %1843 = vrot.lane.b32.xlu0 %v1716, 15
      %v1844 = vpop.permute.xlu0 %1843
      %1845 = vrot.lane.b32.xlu0 %v1718, 15
      %v1846 = vpop.permute.xlu0 %1845
      %1911 = vrot.lane.b32.xlu0 %v501, 18
      %v1912 = vpop.permute.xlu0 %1911
      %1913 = vrot.lane.b32.xlu0 %v312, 18
      %v1914 = vpop.permute.xlu0 %1913
      %1915 = vrot.lane.b32.xlu0 %v502, 18
      %v1916 = vpop.permute.xlu0 %1915
      %1917 = vrot.lane.b32.xlu0 %v315, 18
      %v1918 = vpop.permute.xlu0 %1917
      %1919 = vrot.lane.b32.xlu0 %v503, 18
      %v1920 = vpop.permute.xlu0 %1919
      %1921 = vrot.lane.b32.xlu0 %v318, 18
      %v1922 = vpop.permute.xlu0 %1921
      %1923 = vrot.lane.b32.xlu0 %v504, 18
      %v1924 = vpop.permute.xlu0 %1923
      %1925 = vrot.lane.b32.xlu0 %v321, 18
      %v1926 = vpop.permute.xlu0 %1925
      %1927 = vrot.lane.b32.xlu0 %v505, 18
      %v1928 = vpop.permute.xlu0 %1927
      %1929 = vrot.lane.b32.xlu0 %v324, 18
      %v1930 = vpop.permute.xlu0 %1929
      %1931 = vrot.lane.b32.xlu0 %v506, 18
      %v1932 = vpop.permute.xlu0 %1931
      %1933 = vrot.lane.b32.xlu0 %v327, 18
      %v1934 = vpop.permute.xlu0 %1933
      %1935 = vrot.lane.b32.xlu0 %v507, 18
      %v1936 = vpop.permute.xlu0 %1935
      %1937 = vrot.lane.b32.xlu0 %v330, 18
      %v1938 = vpop.permute.xlu0 %1937
      %1939 = vrot.lane.b32.xlu0 %v508, 18
      %v1940 = vpop.permute.xlu0 %1939
      %1941 = vrot.lane.b32.xlu0 %v333, 18
      %v1942 = vpop.permute.xlu0 %1941
      %1943 = vrot.lane.b32.xlu0 %v509, 18
      %v1944 = vpop.permute.xlu0 %1943
      %1945 = vrot.lane.b32.xlu0 %v336, 18
      %v1946 = vpop.permute.xlu0 %1945
      %1947 = vrot.lane.b32.xlu0 %v510, 18
      %v1948 = vpop.permute.xlu0 %1947
      %1949 = vrot.lane.b32.xlu0 %v339, 18
      %v1950 = vpop.permute.xlu0 %1949
      %1951 = vrot.lane.b32.xlu0 %v511, 18
      %v1952 = vpop.permute.xlu0 %1951
      %1953 = vrot.lane.b32.xlu0 %v342, 18
      %v1954 = vpop.permute.xlu0 %1953
      %1955 = vrot.lane.b32.xlu0 %v512, 18
      %v1956 = vpop.permute.xlu0 %1955
      %1957 = vrot.lane.b32.xlu0 %v345, 18
      %v1958 = vpop.permute.xlu0 %1957
      %1959 = vrot.lane.b32.xlu0 %v513, 18
      %v1960 = vpop.permute.xlu0 %1959
      %1961 = vrot.lane.b32.xlu0 %v348, 18
      %v1962 = vpop.permute.xlu0 %1961
      %1963 = vrot.lane.b32.xlu0 %v514, 18
      %v1964 = vpop.permute.xlu0 %1963
      %1965 = vrot.lane.b32.xlu0 %v351, 18
      %v1966 = vpop.permute.xlu0 %1965
      %1967 = vrot.lane.b32.xlu0 %v515, 18
      %v1968 = vpop.permute.xlu0 %1967
      %1969 = vrot.lane.b32.xlu0 %v354, 18
      %v1970 = vpop.permute.xlu0 %1969
      %1971 = vrot.lane.b32.xlu0 %v499, 18
      %v1972 = vpop.permute.xlu0 %1971
      %1973 = vrot.lane.b32.xlu0 %v306, 18
      %v1974 = vpop.permute.xlu0 %1973
      %1975 = vrot.lane.b32.xlu0 %v517, 18
      %v1976 = vpop.permute.xlu0 %1975
      %1977 = vrot.lane.b32.xlu0 %v360, 18
      %v1978 = vpop.permute.xlu0 %1977
      %1979 = vrot.lane.b32.xlu0 %v518, 18
      %v1980 = vpop.permute.xlu0 %1979
      %1981 = vrot.lane.b32.xlu0 %v363, 18
      %v1982 = vpop.permute.xlu0 %1981
      %1983 = vrot.lane.b32.xlu0 %v519, 18
      %v1984 = vpop.permute.xlu0 %1983
      %1985 = vrot.lane.b32.xlu0 %v366, 18
      %v1986 = vpop.permute.xlu0 %1985
      %1987 = vrot.lane.b32.xlu0 %v520, 18
      %v1988 = vpop.permute.xlu0 %1987
      %1989 = vrot.lane.b32.xlu0 %v369, 18
      %v1990 = vpop.permute.xlu0 %1989
      %1991 = vrot.lane.b32.xlu0 %v521, 18
      %v1992 = vpop.permute.xlu0 %1991
      %1993 = vrot.lane.b32.xlu0 %v372, 18
      %v1994 = vpop.permute.xlu0 %1993
      %1995 = vrot.lane.b32.xlu0 %v522, 18
      %v1996 = vpop.permute.xlu0 %1995
      %1997 = vrot.lane.b32.xlu0 %v375, 18
      %v1998 = vpop.permute.xlu0 %1997
      %1999 = vrot.lane.b32.xlu0 %v523, 18
      %v2000 = vpop.permute.xlu0 %1999
      %2001 = vrot.lane.b32.xlu0 %v378, 18
      %v2002 = vpop.permute.xlu0 %2001
      %2003 = vrot.lane.b32.xlu0 %v524, 18
      %v2004 = vpop.permute.xlu0 %2003
      %2005 = vrot.lane.b32.xlu0 %v381, 18
      %v2006 = vpop.permute.xlu0 %2005
      %2007 = vrot.lane.b32.xlu0 %v525, 18
      %v2008 = vpop.permute.xlu0 %2007
      %2009 = vrot.lane.b32.xlu0 %v384, 18
      %v2010 = vpop.permute.xlu0 %2009
      %2011 = vrot.lane.b32.xlu0 %v526, 18
      %v2012 = vpop.permute.xlu0 %2011
      %2013 = vrot.lane.b32.xlu0 %v387, 18
      %v2014 = vpop.permute.xlu0 %2013
      %2015 = vrot.lane.b32.xlu0 %v527, 18
      %v2016 = vpop.permute.xlu0 %2015
      %2017 = vrot.lane.b32.xlu0 %v390, 18
      %v2018 = vpop.permute.xlu0 %2017
      %2019 = vrot.lane.b32.xlu0 %v528, 18
      %v2020 = vpop.permute.xlu0 %2019
      %2021 = vrot.lane.b32.xlu0 %v393, 18
      %v2022 = vpop.permute.xlu0 %2021
      %2023 = vrot.lane.b32.xlu0 %v529, 18
      %v2024 = vpop.permute.xlu0 %2023
      %2025 = vrot.lane.b32.xlu0 %v396, 18
      %v2026 = vpop.permute.xlu0 %2025
      %2027 = vrot.lane.b32.xlu0 %v530, 18
      %v2028 = vpop.permute.xlu0 %2027
      %2029 = vrot.lane.b32.xlu0 %v399, 18
      %v2030 = vpop.permute.xlu0 %2029
      %2031 = vrot.lane.b32.xlu0 %v531, 18
      %v2032 = vpop.permute.xlu0 %2031
      %2033 = vrot.lane.b32.xlu0 %v402, 18
      %v2034 = vpop.permute.xlu0 %2033
      %2097 = vrot.lane.b32.xlu0 %v640, 21
      %v2098 = vpop.permute.xlu0 %2097
      %2099 = vrot.lane.b32.xlu0 %v642, 21
      %v2100 = vpop.permute.xlu0 %2099
      %2101 = vrot.lane.b32.xlu0 %v645, 21
      %v2102 = vpop.permute.xlu0 %2101
      %2103 = vrot.lane.b32.xlu0 %v647, 21
      %v2104 = vpop.permute.xlu0 %2103
      %2105 = vrot.lane.b32.xlu0 %v650, 21
      %v2106 = vpop.permute.xlu0 %2105
      %2107 = vrot.lane.b32.xlu0 %v652, 21
      %v2108 = vpop.permute.xlu0 %2107
      %2109 = vrot.lane.b32.xlu0 %v655, 21
      %v2110 = vpop.permute.xlu0 %2109
      %2111 = vrot.lane.b32.xlu0 %v657, 21
      %v2112 = vpop.permute.xlu0 %2111
      %2113 = vrot.lane.b32.xlu0 %v660, 21
      %v2114 = vpop.permute.xlu0 %2113
      %2115 = vrot.lane.b32.xlu0 %v662, 21
      %v2116 = vpop.permute.xlu0 %2115
      %2117 = vrot.lane.b32.xlu0 %v665, 21
      %v2118 = vpop.permute.xlu0 %2117
      %2119 = vrot.lane.b32.xlu0 %v667, 21
      %v2120 = vpop.permute.xlu0 %2119
      %2121 = vrot.lane.b32.xlu0 %v670, 21
      %v2122 = vpop.permute.xlu0 %2121
      %2123 = vrot.lane.b32.xlu0 %v672, 21
      %v2124 = vpop.permute.xlu0 %2123
      %2125 = vrot.lane.b32.xlu0 %v675, 21
      %v2126 = vpop.permute.xlu0 %2125
      %2127 = vrot.lane.b32.xlu0 %v677, 21
      %v2128 = vpop.permute.xlu0 %2127
      %2129 = vrot.lane.b32.xlu0 %v680, 21
      %v2130 = vpop.permute.xlu0 %2129
      %2131 = vrot.lane.b32.xlu0 %v682, 21
      %v2132 = vpop.permute.xlu0 %2131
      %2133 = vrot.lane.b32.xlu0 %v685, 21
      %v2134 = vpop.permute.xlu0 %2133
      %2135 = vrot.lane.b32.xlu0 %v687, 21
      %v2136 = vpop.permute.xlu0 %2135
      %2137 = vrot.lane.b32.xlu0 %v690, 21
      %v2138 = vpop.permute.xlu0 %2137
      %2139 = vrot.lane.b32.xlu0 %v692, 21
      %v2140 = vpop.permute.xlu0 %2139
      %2141 = vrot.lane.b32.xlu0 %v695, 21
      %v2142 = vpop.permute.xlu0 %2141
      %2143 = vrot.lane.b32.xlu0 %v697, 21
      %v2144 = vpop.permute.xlu0 %2143
      %2145 = vrot.lane.b32.xlu0 %v700, 21
      %v2146 = vpop.permute.xlu0 %2145
      %2147 = vrot.lane.b32.xlu0 %v702, 21
      %v2148 = vpop.permute.xlu0 %2147
      %2149 = vrot.lane.b32.xlu0 %v705, 21
      %v2150 = vpop.permute.xlu0 %2149
      %2151 = vrot.lane.b32.xlu0 %v707, 21
      %v2152 = vpop.permute.xlu0 %2151
      %2153 = vrot.lane.b32.xlu0 %v1509, 21
      %v2154 = vpop.permute.xlu0 %2153
      %2155 = vrot.lane.b32.xlu0 %v1511, 21
      %v2156 = vpop.permute.xlu0 %2155
      %2157 = vrot.lane.b32.xlu0 %v630, 21
      %v2158 = vpop.permute.xlu0 %2157
      %2159 = vrot.lane.b32.xlu0 %v632, 21
      %v2160 = vpop.permute.xlu0 %2159
      %2161 = vrot.lane.b32.xlu0 %v715, 21
      %v2162 = vpop.permute.xlu0 %2161
      %2163 = vrot.lane.b32.xlu0 %v717, 21
      %v2164 = vpop.permute.xlu0 %2163
      %2165 = vrot.lane.b32.xlu0 %v720, 21
      %v2166 = vpop.permute.xlu0 %2165
      %2167 = vrot.lane.b32.xlu0 %v722, 21
      %v2168 = vpop.permute.xlu0 %2167
      %2169 = vrot.lane.b32.xlu0 %v725, 21
      %v2170 = vpop.permute.xlu0 %2169
      %2171 = vrot.lane.b32.xlu0 %v727, 21
      %v2172 = vpop.permute.xlu0 %2171
      %2173 = vrot.lane.b32.xlu0 %v730, 21
      %v2174 = vpop.permute.xlu0 %2173
      %2175 = vrot.lane.b32.xlu0 %v732, 21
      %v2176 = vpop.permute.xlu0 %2175
      %2177 = vrot.lane.b32.xlu0 %v735, 21
      %v2178 = vpop.permute.xlu0 %2177
      %2179 = vrot.lane.b32.xlu0 %v737, 21
      %v2180 = vpop.permute.xlu0 %2179
      %2181 = vrot.lane.b32.xlu0 %v740, 21
      %v2182 = vpop.permute.xlu0 %2181
      %2183 = vrot.lane.b32.xlu0 %v742, 21
      %v2184 = vpop.permute.xlu0 %2183
      %2185 = vrot.lane.b32.xlu0 %v745, 21
      %v2186 = vpop.permute.xlu0 %2185
      %2187 = vrot.lane.b32.xlu0 %v747, 21
      %v2188 = vpop.permute.xlu0 %2187
      %2189 = vrot.lane.b32.xlu0 %v750, 21
      %v2190 = vpop.permute.xlu0 %2189
      %2191 = vrot.lane.b32.xlu0 %v752, 21
      %v2192 = vpop.permute.xlu0 %2191
      %2193 = vrot.lane.b32.xlu0 %v755, 21
      %v2194 = vpop.permute.xlu0 %2193
      %2195 = vrot.lane.b32.xlu0 %v757, 21
      %v2196 = vpop.permute.xlu0 %2195
      %2197 = vrot.lane.b32.xlu0 %v760, 21
      %v2198 = vpop.permute.xlu0 %2197
      %2199 = vrot.lane.b32.xlu0 %v762, 21
      %v2200 = vpop.permute.xlu0 %2199
      %2201 = vrot.lane.b32.xlu0 %v765, 21
      %v2202 = vpop.permute.xlu0 %2201
      %2203 = vrot.lane.b32.xlu0 %v767, 21
      %v2204 = vpop.permute.xlu0 %2203
      %2205 = vrot.lane.b32.xlu0 %v770, 21
      %v2206 = vpop.permute.xlu0 %2205
      %2207 = vrot.lane.b32.xlu0 %v772, 21
      %v2208 = vpop.permute.xlu0 %2207
      %2209 = vrot.lane.b32.xlu0 %v775, 21
      %v2210 = vpop.permute.xlu0 %2209
      %2211 = vrot.lane.b32.xlu0 %v777, 21
      %v2212 = vpop.permute.xlu0 %2211
      %2213 = vrot.lane.b32.xlu0 %v780, 21
      %v2214 = vpop.permute.xlu0 %2213
      %2215 = vrot.lane.b32.xlu0 %v782, 21
      %v2216 = vpop.permute.xlu0 %2215
      %2217 = vrot.lane.b32.xlu0 %v1514, 21
      %v2218 = vpop.permute.xlu0 %2217
      %2219 = vrot.lane.b32.xlu0 %v1516, 21
      %v2220 = vpop.permute.xlu0 %2219
      %2283 = vrot.lane.b32.xlu0 %v982, 24
      %v2284 = vpop.permute.xlu0 %2283
      %2285 = vrot.lane.b32.xlu0 %v984, 24
      %v2286 = vpop.permute.xlu0 %2285
      %2287 = vrot.lane.b32.xlu0 %v987, 24
      %v2288 = vpop.permute.xlu0 %2287
      %2289 = vrot.lane.b32.xlu0 %v989, 24
      %v2290 = vpop.permute.xlu0 %2289
      %2291 = vrot.lane.b32.xlu0 %v992, 24
      %v2292 = vpop.permute.xlu0 %2291
      %2293 = vrot.lane.b32.xlu0 %v994, 24
      %v2294 = vpop.permute.xlu0 %2293
      %2295 = vrot.lane.b32.xlu0 %v997, 24
      %v2296 = vpop.permute.xlu0 %2295
      %2297 = vrot.lane.b32.xlu0 %v999, 24
      %v2298 = vpop.permute.xlu0 %2297
      %2299 = vrot.lane.b32.xlu0 %v1002, 24
      %v2300 = vpop.permute.xlu0 %2299
      %2301 = vrot.lane.b32.xlu0 %v1004, 24
      %v2302 = vpop.permute.xlu0 %2301
      %2303 = vrot.lane.b32.xlu0 %v1007, 24
      %v2304 = vpop.permute.xlu0 %2303
      %2305 = vrot.lane.b32.xlu0 %v1009, 24
      %v2306 = vpop.permute.xlu0 %2305
      %2307 = vrot.lane.b32.xlu0 %v1012, 24
      %v2308 = vpop.permute.xlu0 %2307
      %2309 = vrot.lane.b32.xlu0 %v1014, 24
      %v2310 = vpop.permute.xlu0 %2309
      %2311 = vrot.lane.b32.xlu0 %v1017, 24
      %v2312 = vpop.permute.xlu0 %2311
      %2313 = vrot.lane.b32.xlu0 %v1019, 24
      %v2314 = vpop.permute.xlu0 %2313
      %2315 = vrot.lane.b32.xlu0 %v1022, 24
      %v2316 = vpop.permute.xlu0 %2315
      %2317 = vrot.lane.b32.xlu0 %v1024, 24
      %v2318 = vpop.permute.xlu0 %2317
      %2319 = vrot.lane.b32.xlu0 %v1027, 24
      %v2320 = vpop.permute.xlu0 %2319
      %2321 = vrot.lane.b32.xlu0 %v1029, 24
      %v2322 = vpop.permute.xlu0 %2321
      %2323 = vrot.lane.b32.xlu0 %v1032, 24
      %v2324 = vpop.permute.xlu0 %2323
      %2325 = vrot.lane.b32.xlu0 %v1034, 24
      %v2326 = vpop.permute.xlu0 %2325
      %2327 = vrot.lane.b32.xlu0 %v1037, 24
      %v2328 = vpop.permute.xlu0 %2327
      %2329 = vrot.lane.b32.xlu0 %v1039, 24
      %v2330 = vpop.permute.xlu0 %2329
      %2331 = vrot.lane.b32.xlu0 %v1042, 24
      %v2332 = vpop.permute.xlu0 %2331
      %2333 = vrot.lane.b32.xlu0 %v1044, 24
      %v2334 = vpop.permute.xlu0 %2333
      %2335 = vrot.lane.b32.xlu0 %v1047, 24
      %v2336 = vpop.permute.xlu0 %2335
      %2337 = vrot.lane.b32.xlu0 %v1049, 24
      %v2338 = vpop.permute.xlu0 %2337
      %2339 = vrot.lane.b32.xlu0 %v1711, 24
      %v2340 = vpop.permute.xlu0 %2339
      %2341 = vrot.lane.b32.xlu0 %v1713, 24
      %v2342 = vpop.permute.xlu0 %2341
      %2343 = vrot.lane.b32.xlu0 %v972, 24
      %v2344 = vpop.permute.xlu0 %2343
      %2345 = vrot.lane.b32.xlu0 %v974, 24
      %v2346 = vpop.permute.xlu0 %2345
      %2347 = vrot.lane.b32.xlu0 %v1057, 24
      %v2348 = vpop.permute.xlu0 %2347
      %2349 = vrot.lane.b32.xlu0 %v1059, 24
      %v2350 = vpop.permute.xlu0 %2349
      %2351 = vrot.lane.b32.xlu0 %v1062, 24
      %v2352 = vpop.permute.xlu0 %2351
      %2353 = vrot.lane.b32.xlu0 %v1064, 24
      %v2354 = vpop.permute.xlu0 %2353
      %2355 = vrot.lane.b32.xlu0 %v1067, 24
      %v2356 = vpop.permute.xlu0 %2355
      %2357 = vrot.lane.b32.xlu0 %v1069, 24
      %v2358 = vpop.permute.xlu0 %2357
      %2359 = vrot.lane.b32.xlu0 %v1072, 24
      %v2360 = vpop.permute.xlu0 %2359
      %2361 = vrot.lane.b32.xlu0 %v1074, 24
      %v2362 = vpop.permute.xlu0 %2361
      %2363 = vrot.lane.b32.xlu0 %v1077, 24
      %v2364 = vpop.permute.xlu0 %2363
      %2365 = vrot.lane.b32.xlu0 %v1079, 24
      %v2366 = vpop.permute.xlu0 %2365
      %2367 = vrot.lane.b32.xlu0 %v1082, 24
      %v2368 = vpop.permute.xlu0 %2367
      %2369 = vrot.lane.b32.xlu0 %v1084, 24
      %v2370 = vpop.permute.xlu0 %2369
      %2371 = vrot.lane.b32.xlu0 %v1087, 24
      %v2372 = vpop.permute.xlu0 %2371
      %2373 = vrot.lane.b32.xlu0 %v1089, 24
      %v2374 = vpop.permute.xlu0 %2373
      %2375 = vrot.lane.b32.xlu0 %v1092, 24
      %v2376 = vpop.permute.xlu0 %2375
      %2377 = vrot.lane.b32.xlu0 %v1094, 24
      %v2378 = vpop.permute.xlu0 %2377
      %2379 = vrot.lane.b32.xlu0 %v1097, 24
      %v2380 = vpop.permute.xlu0 %2379
      %2381 = vrot.lane.b32.xlu0 %v1099, 24
      %v2382 = vpop.permute.xlu0 %2381
      %2383 = vrot.lane.b32.xlu0 %v1102, 24
      %v2384 = vpop.permute.xlu0 %2383
      %2385 = vrot.lane.b32.xlu0 %v1104, 24
      %v2386 = vpop.permute.xlu0 %2385
      %2387 = vrot.lane.b32.xlu0 %v1107, 24
      %v2388 = vpop.permute.xlu0 %2387
      %2389 = vrot.lane.b32.xlu0 %v1109, 24
      %v2390 = vpop.permute.xlu0 %2389
      %2391 = vrot.lane.b32.xlu0 %v1112, 24
      %v2392 = vpop.permute.xlu0 %2391
      %2393 = vrot.lane.b32.xlu0 %v1114, 24
      %v2394 = vpop.permute.xlu0 %2393
      %2395 = vrot.lane.b32.xlu0 %v1117, 24
      %v2396 = vpop.permute.xlu0 %2395
      %2397 = vrot.lane.b32.xlu0 %v1119, 24
      %v2398 = vpop.permute.xlu0 %2397
      %2399 = vrot.lane.b32.xlu0 %v1122, 24
      %v2400 = vpop.permute.xlu0 %2399
      %2401 = vrot.lane.b32.xlu0 %v1124, 24
      %v2402 = vpop.permute.xlu0 %2401
      %2403 = vrot.lane.b32.xlu0 %v1716, 24
      %v2404 = vpop.permute.xlu0 %2403
      %2405 = vrot.lane.b32.xlu0 %v1718, 24
      %v2406 = vpop.permute.xlu0 %2405
      %vm2469 = vcmask 23552
      %v2470 = vsel %vm2469, %v499, %v784
      %v2471 = vsel %vm2469, %v306, %v786
      %v2472 = vsel %vm2469, %v500, %v788
      %v2473 = vsel %vm2469, %v309, %v790
      %v2474 = vsel %vm2469, %v501, %v792
      %v2475 = vsel %vm2469, %v312, %v794
      %v2476 = vsel %vm2469, %v502, %v796
      %v2477 = vsel %vm2469, %v315, %v798
      %v2478 = vsel %vm2469, %v503, %v800
      %v2479 = vsel %vm2469, %v318, %v802
      %v2480 = vsel %vm2469, %v504, %v804
      %v2481 = vsel %vm2469, %v321, %v806
      %v2482 = vsel %vm2469, %v505, %v808
      %v2483 = vsel %vm2469, %v324, %v810
      %v2484 = vsel %vm2469, %v506, %v812
      %v2485 = vsel %vm2469, %v327, %v814
      %v2486 = vsel %vm2469, %v507, %v816
      %v2487 = vsel %vm2469, %v330, %v818
      %v2488 = vsel %vm2469, %v508, %v820
      %v2489 = vsel %vm2469, %v333, %v822
      %v2490 = vsel %vm2469, %v509, %v824
      %v2491 = vsel %vm2469, %v336, %v826
      %v2492 = vsel %vm2469, %v510, %v828
      %v2493 = vsel %vm2469, %v339, %v830
      %v2494 = vsel %vm2469, %v511, %v832
      %v2495 = vsel %vm2469, %v342, %v834
      %v2496 = vsel %vm2469, %v512, %v836
      %v2497 = vsel %vm2469, %v345, %v838
      %v2498 = vsel %vm2469, %v513, %v840
      %v2499 = vsel %vm2469, %v348, %v842
      %v2500 = vsel %vm2469, %v514, %v844
      %v2501 = vsel %vm2469, %v351, %v846
      %v2502 = vsel %vm2469, %v516, %v848
      %v2503 = vsel %vm2469, %v357, %v850
      %v2504 = vsel %vm2469, %v517, %v852
      %v2505 = vsel %vm2469, %v360, %v854
      %v2506 = vsel %vm2469, %v518, %v856
      %v2507 = vsel %vm2469, %v363, %v858
      %v2508 = vsel %vm2469, %v519, %v860
      %v2509 = vsel %vm2469, %v366, %v862
      %v2510 = vsel %vm2469, %v520, %v864
      %v2511 = vsel %vm2469, %v369, %v866
      %v2512 = vsel %vm2469, %v521, %v868
      %v2513 = vsel %vm2469, %v372, %v870
      %v2514 = vsel %vm2469, %v522, %v872
      %v2515 = vsel %vm2469, %v375, %v874
      %v2516 = vsel %vm2469, %v523, %v876
      %v2517 = vsel %vm2469, %v378, %v878
      %v2518 = vsel %vm2469, %v524, %v880
      %v2519 = vsel %vm2469, %v381, %v882
      %v2520 = vsel %vm2469, %v525, %v884
      %v2521 = vsel %vm2469, %v384, %v886
      %v2522 = vsel %vm2469, %v526, %v888
      %v2523 = vsel %vm2469, %v387, %v890
      %v2524 = vsel %vm2469, %v527, %v892
      %v2525 = vsel %vm2469, %v390, %v894
      %v2526 = vsel %vm2469, %v528, %v896
      %v2527 = vsel %vm2469, %v393, %v898
      %v2528 = vsel %vm2469, %v529, %v900
      %v2529 = vsel %vm2469, %v396, %v902
      %v2530 = vsel %vm2469, %v530, %v904
      %v2531 = vsel %vm2469, %v399, %v906
      %vm2532 = vcmask 48128
      %v2533 = vsel %vm2532, %v2470, %v1126
      %v2534 = vsel %vm2532, %v2471, %v1128
      %v2535 = vsel %vm2532, %v2472, %v1130
      %v2536 = vsel %vm2532, %v2473, %v1132
      %v2537 = vsel %vm2532, %v2474, %v1134
      %v2538 = vsel %vm2532, %v2475, %v1136
      %v2539 = vsel %vm2532, %v2476, %v1138
      %v2540 = vsel %vm2532, %v2477, %v1140
      %v2541 = vsel %vm2532, %v2478, %v1142
      %v2542 = vsel %vm2532, %v2479, %v1144
      %v2543 = vsel %vm2532, %v2480, %v1146
      %v2544 = vsel %vm2532, %v2481, %v1148
      %v2545 = vsel %vm2532, %v2482, %v1150
      %v2546 = vsel %vm2532, %v2483, %v1152
      %v2547 = vsel %vm2532, %v2484, %v1154
      %v2548 = vsel %vm2532, %v2485, %v1156
      %v2549 = vsel %vm2532, %v2486, %v1158
      %v2550 = vsel %vm2532, %v2487, %v1160
      %v2551 = vsel %vm2532, %v2488, %v1162
      %v2552 = vsel %vm2532, %v2489, %v1164
      %v2553 = vsel %vm2532, %v2490, %v1166
      %v2554 = vsel %vm2532, %v2491, %v1168
      %v2555 = vsel %vm2532, %v2492, %v1170
      %v2556 = vsel %vm2532, %v2493, %v1172
      %v2557 = vsel %vm2532, %v2494, %v1174
      %v2558 = vsel %vm2532, %v2495, %v1176
      %v2559 = vsel %vm2532, %v2496, %v1178
      %v2560 = vsel %vm2532, %v2497, %v1180
      %v2561 = vsel %vm2532, %v2498, %v1182
      %v2562 = vsel %vm2532, %v2499, %v1184
      %v2563 = vsel %vm2532, %v2500, %v1186
      %v2564 = vsel %vm2532, %v2501, %v1188
      %v2565 = vsel %vm2532, %v2502, %v1190
      %v2566 = vsel %vm2532, %v2503, %v1192
      %v2567 = vsel %vm2532, %v2504, %v1194
      %v2568 = vsel %vm2532, %v2505, %v1196
      %v2569 = vsel %vm2532, %v2506, %v1198
      %v2570 = vsel %vm2532, %v2507, %v1200
      %v2571 = vsel %vm2532, %v2508, %v1202
      %v2572 = vsel %vm2532, %v2509, %v1204
      %v2573 = vsel %vm2532, %v2510, %v1206
      %v2574 = vsel %vm2532, %v2511, %v1208
      %v2575 = vsel %vm2532, %v2512, %v1210
      %v2576 = vsel %vm2532, %v2513, %v1212
      %v2577 = vsel %vm2532, %v2514, %v1214
      %v2578 = vsel %vm2532, %v2515, %v1216
      %v2579 = vsel %vm2532, %v2516, %v1218
      %v2580 = vsel %vm2532, %v2517, %v1220
      %v2581 = vsel %vm2532, %v2518, %v1222
      %v2582 = vsel %vm2532, %v2519, %v1224
      %v2583 = vsel %vm2532, %v2520, %v1226
      %v2584 = vsel %vm2532, %v2521, %v1228
      %v2585 = vsel %vm2532, %v2522, %v1230
      %v2586 = vsel %vm2532, %v2523, %v1232
      %v2587 = vsel %vm2532, %v2524, %v1234
      %v2588 = vsel %vm2532, %v2525, %v1236
      %v2589 = vsel %vm2532, %v2526, %v1238
      %v2590 = vsel %vm2532, %v2527, %v1240
      %v2591 = vsel %vm2532, %v2528, %v1242
      %v2592 = vsel %vm2532, %v2529, %v1244
      %v2593 = vsel %vm2532, %v2530, %v1246
      %v2594 = vsel %vm2532, %v2531, %v1248
      %vm2595 = vcmask 72704
      %v2596 = vsel %vm2595, %v2533, %v1314
      %v2597 = vsel %vm2595, %v2534, %v1316
      %v2598 = vsel %vm2595, %v2535, %v1318
      %v2599 = vsel %vm2595, %v2536, %v1320
      %v2600 = vsel %vm2595, %v2537, %v1322
      %v2601 = vsel %vm2595, %v2538, %v1324
      %v2602 = vsel %vm2595, %v2539, %v1326
      %v2603 = vsel %vm2595, %v2540, %v1328
      %v2604 = vsel %vm2595, %v2541, %v1330
      %v2605 = vsel %vm2595, %v2542, %v1332
      %v2606 = vsel %vm2595, %v2543, %v1334
      %v2607 = vsel %vm2595, %v2544, %v1336
      %v2608 = vsel %vm2595, %v2545, %v1338
      %v2609 = vsel %vm2595, %v2546, %v1340
      %v2610 = vsel %vm2595, %v2547, %v1342
      %v2611 = vsel %vm2595, %v2548, %v1344
      %v2612 = vsel %vm2595, %v2549, %v1346
      %v2613 = vsel %vm2595, %v2550, %v1348
      %v2614 = vsel %vm2595, %v2551, %v1350
      %v2615 = vsel %vm2595, %v2552, %v1352
      %v2616 = vsel %vm2595, %v2553, %v1354
      %v2617 = vsel %vm2595, %v2554, %v1356
      %v2618 = vsel %vm2595, %v2555, %v1358
      %v2619 = vsel %vm2595, %v2556, %v1360
      %v2620 = vsel %vm2595, %v2557, %v1362
      %v2621 = vsel %vm2595, %v2558, %v1364
      %v2622 = vsel %vm2595, %v2559, %v1366
      %v2623 = vsel %vm2595, %v2560, %v1368
      %v2624 = vsel %vm2595, %v2561, %v1370
      %v2625 = vsel %vm2595, %v2562, %v1372
      %v2626 = vsel %vm2595, %v2563, %v1374
      %v2627 = vsel %vm2595, %v2564, %v1376
      %v2628 = vsel %vm2595, %v2533, %v1378
      %v2629 = vsel %vm2595, %v2534, %v1380
      %v2630 = vsel %vm2595, %v2565, %v1382
      %v2631 = vsel %vm2595, %v2566, %v1384
      %v2632 = vsel %vm2595, %v2567, %v1386
      %v2633 = vsel %vm2595, %v2568, %v1388
      %v2634 = vsel %vm2595, %v2569, %v1390
      %v2635 = vsel %vm2595, %v2570, %v1392
      %v2636 = vsel %vm2595, %v2571, %v1394
      %v2637 = vsel %vm2595, %v2572, %v1396
      %v2638 = vsel %vm2595, %v2573, %v1398
      %v2639 = vsel %vm2595, %v2574, %v1400
      %v2640 = vsel %vm2595, %v2575, %v1402
      %v2641 = vsel %vm2595, %v2576, %v1404
      %v2642 = vsel %vm2595, %v2577, %v1406
      %v2643 = vsel %vm2595, %v2578, %v1408
      %v2644 = vsel %vm2595, %v2579, %v1410
      %v2645 = vsel %vm2595, %v2580, %v1412
      %v2646 = vsel %vm2595, %v2581, %v1414
      %v2647 = vsel %vm2595, %v2582, %v1416
      %v2648 = vsel %vm2595, %v2583, %v1418
      %v2649 = vsel %vm2595, %v2584, %v1420
      %v2650 = vsel %vm2595, %v2585, %v1422
      %v2651 = vsel %vm2595, %v2586, %v1424
      %v2652 = vsel %vm2595, %v2587, %v1426
      %v2653 = vsel %vm2595, %v2588, %v1428
      %v2654 = vsel %vm2595, %v2589, %v1430
      %v2655 = vsel %vm2595, %v2590, %v1432
      %v2656 = vsel %vm2595, %v2591, %v1434
      %v2657 = vsel %vm2595, %v2592, %v1436
      %v2658 = vsel %vm2595, %v2593, %v1438
      %v2659 = vsel %vm2595, %v2594, %v1440
      %vm2660 = vcmask 97280
      %v2661 = vsel %vm2660, %v2596, %v1518
      %v2662 = vsel %vm2660, %v2597, %v1520
      %v2663 = vsel %vm2660, %v2598, %v1522
      %v2664 = vsel %vm2660, %v2599, %v1524
      %v2665 = vsel %vm2660, %v2600, %v1526
      %v2666 = vsel %vm2660, %v2601, %v1528
      %v2667 = vsel %vm2660, %v2602, %v1530
      %v2668 = vsel %vm2660, %v2603, %v1532
      %v2669 = vsel %vm2660, %v2604, %v1534
      %v2670 = vsel %vm2660, %v2605, %v1536
      %v2671 = vsel %vm2660, %v2606, %v1538
      %v2672 = vsel %vm2660, %v2607, %v1540
      %v2673 = vsel %vm2660, %v2608, %v1542
      %v2674 = vsel %vm2660, %v2609, %v1544
      %v2675 = vsel %vm2660, %v2610, %v1546
      %v2676 = vsel %vm2660, %v2611, %v1548
      %v2677 = vsel %vm2660, %v2612, %v1550
      %v2678 = vsel %vm2660, %v2613, %v1552
      %v2679 = vsel %vm2660, %v2614, %v1554
      %v2680 = vsel %vm2660, %v2615, %v1556
      %v2681 = vsel %vm2660, %v2616, %v1558
      %v2682 = vsel %vm2660, %v2617, %v1560
      %v2683 = vsel %vm2660, %v2618, %v1562
      %v2684 = vsel %vm2660, %v2619, %v1564
      %v2685 = vsel %vm2660, %v2620, %v1566
      %v2686 = vsel %vm2660, %v2621, %v1568
      %v2687 = vsel %vm2660, %v2622, %v1570
      %v2688 = vsel %vm2660, %v2623, %v1572
      %v2689 = vsel %vm2660, %v2624, %v1574
      %v2690 = vsel %vm2660, %v2625, %v1576
      %v2691 = vsel %vm2660, %v2626, %v1578
      %v2692 = vsel %vm2660, %v2627, %v1580
      %v2693 = vsel %vm2660, %v2628, %v1582
      %v2694 = vsel %vm2660, %v2629, %v1584
      %v2695 = vsel %vm2660, %v2630, %v1586
      %v2696 = vsel %vm2660, %v2631, %v1588
      %v2697 = vsel %vm2660, %v2632, %v1590
      %v2698 = vsel %vm2660, %v2633, %v1592
      %v2699 = vsel %vm2660, %v2634, %v1594
      %v2700 = vsel %vm2660, %v2635, %v1596
      %v2701 = vsel %vm2660, %v2636, %v1598
      %v2702 = vsel %vm2660, %v2637, %v1600
      %v2703 = vsel %vm2660, %v2638, %v1602
      %v2704 = vsel %vm2660, %v2639, %v1604
      %v2705 = vsel %vm2660, %v2640, %v1606
      %v2706 = vsel %vm2660, %v2641, %v1608
      %v2707 = vsel %vm2660, %v2642, %v1610
      %v2708 = vsel %vm2660, %v2643, %v1612
      %v2709 = vsel %vm2660, %v2644, %v1614
      %v2710 = vsel %vm2660, %v2645, %v1616
      %v2711 = vsel %vm2660, %v2646, %v1618
      %v2712 = vsel %vm2660, %v2647, %v1620
      %v2713 = vsel %vm2660, %v2648, %v1622
      %v2714 = vsel %vm2660, %v2649, %v1624
      %v2715 = vsel %vm2660, %v2650, %v1626
      %v2716 = vsel %vm2660, %v2651, %v1628
      %v2717 = vsel %vm2660, %v2652, %v1630
      %v2718 = vsel %vm2660, %v2653, %v1632
      %v2719 = vsel %vm2660, %v2654, %v1634
      %v2720 = vsel %vm2660, %v2655, %v1636
      %v2721 = vsel %vm2660, %v2656, %v1638
      %v2722 = vsel %vm2660, %v2657, %v1640
      %v2723 = vsel %vm2660, %v2658, %v1642
      %v2724 = vsel %vm2660, %v2659, %v1644
      %vm2725 = vcmask 121856
      %v2726 = vsel %vm2725, %v2661, %v1720
      %v2727 = vsel %vm2725, %v2662, %v1722
      %v2728 = vsel %vm2725, %v2663, %v1724
      %v2729 = vsel %vm2725, %v2664, %v1726
      %v2730 = vsel %vm2725, %v2665, %v1728
      %v2731 = vsel %vm2725, %v2666, %v1730
      %v2732 = vsel %vm2725, %v2667, %v1732
      %v2733 = vsel %vm2725, %v2668, %v1734
      %v2734 = vsel %vm2725, %v2669, %v1736
      %v2735 = vsel %vm2725, %v2670, %v1738
      %v2736 = vsel %vm2725, %v2671, %v1740
      %v2737 = vsel %vm2725, %v2672, %v1742
      %v2738 = vsel %vm2725, %v2673, %v1744
      %v2739 = vsel %vm2725, %v2674, %v1746
      %v2740 = vsel %vm2725, %v2675, %v1748
      %v2741 = vsel %vm2725, %v2676, %v1750
      %v2742 = vsel %vm2725, %v2677, %v1752
      %v2743 = vsel %vm2725, %v2678, %v1754
      %v2744 = vsel %vm2725, %v2679, %v1756
      %v2745 = vsel %vm2725, %v2680, %v1758
      %v2746 = vsel %vm2725, %v2681, %v1760
      %v2747 = vsel %vm2725, %v2682, %v1762
      %v2748 = vsel %vm2725, %v2683, %v1764
      %v2749 = vsel %vm2725, %v2684, %v1766
      %v2750 = vsel %vm2725, %v2685, %v1768
      %v2751 = vsel %vm2725, %v2686, %v1770
      %v2752 = vsel %vm2725, %v2687, %v1772
      %v2753 = vsel %vm2725, %v2688, %v1774
      %v2754 = vsel %vm2725, %v2689, %v1776
      %v2755 = vsel %vm2725, %v2690, %v1778
      %v2756 = vsel %vm2725, %v2691, %v1780
      %v2757 = vsel %vm2725, %v2692, %v1782
      %v2758 = vsel %vm2725, %v2693, %v1784
      %v2759 = vsel %vm2725, %v2694, %v1786
      %v2760 = vsel %vm2725, %v2695, %v1788
      %v2761 = vsel %vm2725, %v2696, %v1790
      %v2762 = vsel %vm2725, %v2697, %v1792
      %v2763 = vsel %vm2725, %v2698, %v1794
      %v2764 = vsel %vm2725, %v2699, %v1796
      %v2765 = vsel %vm2725, %v2700, %v1798
      %v2766 = vsel %vm2725, %v2701, %v1800
      %v2767 = vsel %vm2725, %v2702, %v1802
      %v2768 = vsel %vm2725, %v2703, %v1804
      %v2769 = vsel %vm2725, %v2704, %v1806
      %v2770 = vsel %vm2725, %v2705, %v1808
      %v2771 = vsel %vm2725, %v2706, %v1810
      %v2772 = vsel %vm2725, %v2707, %v1812
      %v2773 = vsel %vm2725, %v2708, %v1814
      %v2774 = vsel %vm2725, %v2709, %v1816
      %v2775 = vsel %vm2725, %v2710, %v1818
      %v2776 = vsel %vm2725, %v2711, %v1820
      %v2777 = vsel %vm2725, %v2712, %v1822
      %v2778 = vsel %vm2725, %v2713, %v1824
      %v2779 = vsel %vm2725, %v2714, %v1826
      %v2780 = vsel %vm2725, %v2715, %v1828
      %v2781 = vsel %vm2725, %v2716, %v1830
      %v2782 = vsel %vm2725, %v2717, %v1832
      %v2783 = vsel %vm2725, %v2718, %v1834
      %v2784 = vsel %vm2725, %v2719, %v1836
      %v2785 = vsel %vm2725, %v2720, %v1838
      %v2786 = vsel %vm2725, %v2721, %v1840
      %v2787 = vsel %vm2725, %v2722, %v1842
      %v2788 = vsel %vm2725, %v2723, %v1844
      %v2789 = vsel %vm2725, %v2724, %v1846
      %vm2790 = vcmask 146432
      %v2791 = vsel %vm2790, %v2726, %v1912
      %v2792 = vsel %vm2790, %v2727, %v1914
      %v2793 = vsel %vm2790, %v2728, %v1916
      %v2794 = vsel %vm2790, %v2729, %v1918
      %v2795 = vsel %vm2790, %v2730, %v1920
      %v2796 = vsel %vm2790, %v2731, %v1922
      %v2797 = vsel %vm2790, %v2732, %v1924
      %v2798 = vsel %vm2790, %v2733, %v1926
      %v2799 = vsel %vm2790, %v2734, %v1928
      %v2800 = vsel %vm2790, %v2735, %v1930
      %v2801 = vsel %vm2790, %v2736, %v1932
      %v2802 = vsel %vm2790, %v2737, %v1934
      %v2803 = vsel %vm2790, %v2738, %v1936
      %v2804 = vsel %vm2790, %v2739, %v1938
      %v2805 = vsel %vm2790, %v2740, %v1940
      %v2806 = vsel %vm2790, %v2741, %v1942
      %v2807 = vsel %vm2790, %v2742, %v1944
      %v2808 = vsel %vm2790, %v2743, %v1946
      %v2809 = vsel %vm2790, %v2744, %v1948
      %v2810 = vsel %vm2790, %v2745, %v1950
      %v2811 = vsel %vm2790, %v2746, %v1952
      %v2812 = vsel %vm2790, %v2747, %v1954
      %v2813 = vsel %vm2790, %v2748, %v1956
      %v2814 = vsel %vm2790, %v2749, %v1958
      %v2815 = vsel %vm2790, %v2750, %v1960
      %v2816 = vsel %vm2790, %v2751, %v1962
      %v2817 = vsel %vm2790, %v2752, %v1964
      %v2818 = vsel %vm2790, %v2753, %v1966
      %v2819 = vsel %vm2790, %v2754, %v1968
      %v2820 = vsel %vm2790, %v2755, %v1970
      %v2821 = vsel %vm2790, %v2756, %v1972
      %v2822 = vsel %vm2790, %v2757, %v1974
      %v2823 = vsel %vm2790, %v2758, %v1976
      %v2824 = vsel %vm2790, %v2759, %v1978
      %v2825 = vsel %vm2790, %v2760, %v1980
      %v2826 = vsel %vm2790, %v2761, %v1982
      %v2827 = vsel %vm2790, %v2762, %v1984
      %v2828 = vsel %vm2790, %v2763, %v1986
      %v2829 = vsel %vm2790, %v2764, %v1988
      %v2830 = vsel %vm2790, %v2765, %v1990
      %v2831 = vsel %vm2790, %v2766, %v1992
      %v2832 = vsel %vm2790, %v2767, %v1994
      %v2833 = vsel %vm2790, %v2768, %v1996
      %v2834 = vsel %vm2790, %v2769, %v1998
      %v2835 = vsel %vm2790, %v2770, %v2000
      %v2836 = vsel %vm2790, %v2771, %v2002
      %v2837 = vsel %vm2790, %v2772, %v2004
      %v2838 = vsel %vm2790, %v2773, %v2006
      %v2839 = vsel %vm2790, %v2774, %v2008
      %v2840 = vsel %vm2790, %v2775, %v2010
      %v2841 = vsel %vm2790, %v2776, %v2012
      %v2842 = vsel %vm2790, %v2777, %v2014
      %v2843 = vsel %vm2790, %v2778, %v2016
      %v2844 = vsel %vm2790, %v2779, %v2018
      %v2845 = vsel %vm2790, %v2780, %v2020
      %v2846 = vsel %vm2790, %v2781, %v2022
      %v2847 = vsel %vm2790, %v2782, %v2024
      %v2848 = vsel %vm2790, %v2783, %v2026
      %v2849 = vsel %vm2790, %v2784, %v2028
      %v2850 = vsel %vm2790, %v2785, %v2030
      %v2851 = vsel %vm2790, %v2786, %v2032
      %v2852 = vsel %vm2790, %v2787, %v2034
      %v2853 = vsel %vm2790, %v2788, %v1972
      %v2854 = vsel %vm2790, %v2789, %v1974
      %vm2855 = vcmask 171008
      %v2856 = vsel %vm2855, %v2791, %v2098
      %v2857 = vsel %vm2855, %v2792, %v2100
      %v2858 = vsel %vm2855, %v2793, %v2102
      %v2859 = vsel %vm2855, %v2794, %v2104
      %v2860 = vsel %vm2855, %v2795, %v2106
      %v2861 = vsel %vm2855, %v2796, %v2108
      %v2862 = vsel %vm2855, %v2797, %v2110
      %v2863 = vsel %vm2855, %v2798, %v2112
      %v2864 = vsel %vm2855, %v2799, %v2114
      %v2865 = vsel %vm2855, %v2800, %v2116
      %v2866 = vsel %vm2855, %v2801, %v2118
      %v2867 = vsel %vm2855, %v2802, %v2120
      %v2868 = vsel %vm2855, %v2803, %v2122
      %v2869 = vsel %vm2855, %v2804, %v2124
      %v2870 = vsel %vm2855, %v2805, %v2126
      %v2871 = vsel %vm2855, %v2806, %v2128
      %v2872 = vsel %vm2855, %v2807, %v2130
      %v2873 = vsel %vm2855, %v2808, %v2132
      %v2874 = vsel %vm2855, %v2809, %v2134
      %v2875 = vsel %vm2855, %v2810, %v2136
      %v2876 = vsel %vm2855, %v2811, %v2138
      %v2877 = vsel %vm2855, %v2812, %v2140
      %v2878 = vsel %vm2855, %v2813, %v2142
      %v2879 = vsel %vm2855, %v2814, %v2144
      %v2880 = vsel %vm2855, %v2815, %v2146
      %v2881 = vsel %vm2855, %v2816, %v2148
      %v2882 = vsel %vm2855, %v2817, %v2150
      %v2883 = vsel %vm2855, %v2818, %v2152
      %v2884 = vsel %vm2855, %v2819, %v2154
      %v2885 = vsel %vm2855, %v2820, %v2156
      %v2886 = vsel %vm2855, %v2821, %v2158
      %v2887 = vsel %vm2855, %v2822, %v2160
      %v2888 = vsel %vm2855, %v2823, %v2162
      %v2889 = vsel %vm2855, %v2824, %v2164
      %v2890 = vsel %vm2855, %v2825, %v2166
      %v2891 = vsel %vm2855, %v2826, %v2168
      %v2892 = vsel %vm2855, %v2827, %v2170
      %v2893 = vsel %vm2855, %v2828, %v2172
      %v2894 = vsel %vm2855, %v2829, %v2174
      %v2895 = vsel %vm2855, %v2830, %v2176
      %v2896 = vsel %vm2855, %v2831, %v2178
      %v2897 = vsel %vm2855, %v2832, %v2180
      %v2898 = vsel %vm2855, %v2833, %v2182
      %v2899 = vsel %vm2855, %v2834, %v2184
      %v2900 = vsel %vm2855, %v2835, %v2186
      %v2901 = vsel %vm2855, %v2836, %v2188
      %v2902 = vsel %vm2855, %v2837, %v2190
      %v2903 = vsel %vm2855, %v2838, %v2192
      %v2904 = vsel %vm2855, %v2839, %v2194
      %v2905 = vsel %vm2855, %v2840, %v2196
      %v2906 = vsel %vm2855, %v2841, %v2198
      %v2907 = vsel %vm2855, %v2842, %v2200
      %v2908 = vsel %vm2855, %v2843, %v2202
      %v2909 = vsel %vm2855, %v2844, %v2204
      %v2910 = vsel %vm2855, %v2845, %v2206
      %v2911 = vsel %vm2855, %v2846, %v2208
      %v2912 = vsel %vm2855, %v2847, %v2210
      %v2913 = vsel %vm2855, %v2848, %v2212
      %v2914 = vsel %vm2855, %v2849, %v2214
      %v2915 = vsel %vm2855, %v2850, %v2216
      %v2916 = vsel %vm2855, %v2851, %v2218
      %v2917 = vsel %vm2855, %v2852, %v2220
      %v2918 = vsel %vm2855, %v2853, %v2158
      %v2919 = vsel %vm2855, %v2854, %v2160
      %vm2920 = vcmask 195584
      %v2921 = vsel %vm2920, %v2856, %v2284
      %v2922 = vsel %vm2920, %v2857, %v2286
      %v2923 = vsel %vm2920, %v2858, %v2288
      %v2924 = vsel %vm2920, %v2859, %v2290
      %v2925 = vsel %vm2920, %v2860, %v2292
      %v2926 = vsel %vm2920, %v2861, %v2294
      %v2927 = vsel %vm2920, %v2862, %v2296
      %v2928 = vsel %vm2920, %v2863, %v2298
      %v2929 = vsel %vm2920, %v2864, %v2300
      %v2930 = vsel %vm2920, %v2865, %v2302
      %v2931 = vsel %vm2920, %v2866, %v2304
      %v2932 = vsel %vm2920, %v2867, %v2306
      %v2933 = vsel %vm2920, %v2868, %v2308
      %v2934 = vsel %vm2920, %v2869, %v2310
      %v2935 = vsel %vm2920, %v2870, %v2312
      %v2936 = vsel %vm2920, %v2871, %v2314
      %v2937 = vsel %vm2920, %v2872, %v2316
      %v2938 = vsel %vm2920, %v2873, %v2318
      %v2939 = vsel %vm2920, %v2874, %v2320
      %v2940 = vsel %vm2920, %v2875, %v2322
      %v2941 = vsel %vm2920, %v2876, %v2324
      %v2942 = vsel %vm2920, %v2877, %v2326
      %v2943 = vsel %vm2920, %v2878, %v2328
      %v2944 = vsel %vm2920, %v2879, %v2330
      %v2945 = vsel %vm2920, %v2880, %v2332
      %v2946 = vsel %vm2920, %v2881, %v2334
      %v2947 = vsel %vm2920, %v2882, %v2336
      %v2948 = vsel %vm2920, %v2883, %v2338
      %v2949 = vsel %vm2920, %v2884, %v2340
      %v2950 = vsel %vm2920, %v2885, %v2342
      %v2951 = vsel %vm2920, %v2886, %v2344
      %v2952 = vsel %vm2920, %v2887, %v2346
      %v2953 = vsel %vm2920, %v2888, %v2348
      %v2954 = vsel %vm2920, %v2889, %v2350
      %v2955 = vsel %vm2920, %v2890, %v2352
      %v2956 = vsel %vm2920, %v2891, %v2354
      %v2957 = vsel %vm2920, %v2892, %v2356
      %v2958 = vsel %vm2920, %v2893, %v2358
      %v2959 = vsel %vm2920, %v2894, %v2360
      %v2960 = vsel %vm2920, %v2895, %v2362
      %v2961 = vsel %vm2920, %v2896, %v2364
      %v2962 = vsel %vm2920, %v2897, %v2366
      %v2963 = vsel %vm2920, %v2898, %v2368
      %v2964 = vsel %vm2920, %v2899, %v2370
      %v2965 = vsel %vm2920, %v2900, %v2372
      %v2966 = vsel %vm2920, %v2901, %v2374
      %v2967 = vsel %vm2920, %v2902, %v2376
      %v2968 = vsel %vm2920, %v2903, %v2378
      %v2969 = vsel %vm2920, %v2904, %v2380
      %v2970 = vsel %vm2920, %v2905, %v2382
      %v2971 = vsel %vm2920, %v2906, %v2384
      %v2972 = vsel %vm2920, %v2907, %v2386
      %v2973 = vsel %vm2920, %v2908, %v2388
      %v2974 = vsel %vm2920, %v2909, %v2390
      %v2975 = vsel %vm2920, %v2910, %v2392
      %v2976 = vsel %vm2920, %v2911, %v2394
      %v2977 = vsel %vm2920, %v2912, %v2396
      %v2978 = vsel %vm2920, %v2913, %v2398
      %v2979 = vsel %vm2920, %v2914, %v2400
      %v2980 = vsel %vm2920, %v2915, %v2402
      %v2981 = vsel %vm2920, %v2916, %v2404
      %v2982 = vsel %vm2920, %v2917, %v2406
      %v2983 = vsel %vm2920, %v2918, %v2344
      %v2984 = vsel %vm2920, %v2919, %v2346
      %v2985 = vpack.c.bf16 %v2922, %v2921
      %v2986 = vpack.c.bf16 %v2924, %v2923
      %v2987 = vpack.c.bf16 %v2926, %v2925
      %v2988 = vpack.c.bf16 %v2928, %v2927
      %v2989 = vpack.c.bf16 %v2930, %v2929
      %v2990 = vpack.c.bf16 %v2932, %v2931
      %v2991 = vpack.c.bf16 %v2934, %v2933
      %v2992 = vpack.c.bf16 %v2936, %v2935
      %v2993 = vpack.c.bf16 %v2938, %v2937
      %v2994 = vpack.c.bf16 %v2940, %v2939
      %v2995 = vpack.c.bf16 %v2942, %v2941
      %v2996 = vpack.c.bf16 %v2944, %v2943
      %v2997 = vpack.c.bf16 %v2946, %v2945
      %v2998 = vpack.c.bf16 %v2948, %v2947
      %v2999 = vpack.c.bf16 %v2950, %v2949
      %v3000 = vpack.c.bf16 %v2952, %v2951
      %v3001 = vpack.c.bf16 %v2954, %v2953
      %v3002 = vpack.c.bf16 %v2956, %v2955
      %v3003 = vpack.c.bf16 %v2958, %v2957
      %v3004 = vpack.c.bf16 %v2960, %v2959
      %v3005 = vpack.c.bf16 %v2962, %v2961
      %v3006 = vpack.c.bf16 %v2964, %v2963
      %v3007 = vpack.c.bf16 %v2966, %v2965
      %v3008 = vpack.c.bf16 %v2968, %v2967
      %v3009 = vpack.c.bf16 %v2970, %v2969
      %v3010 = vpack.c.bf16 %v2972, %v2971
      %v3011 = vpack.c.bf16 %v2974, %v2973
      %v3012 = vpack.c.bf16 %v2976, %v2975
      %v3013 = vpack.c.bf16 %v2978, %v2977
      %v3014 = vpack.c.bf16 %v2980, %v2979
      %v3015 = vpack.c.bf16 %v2982, %v2981
      %v3016 = vpack.c.bf16 %v2984, %v2983
      %v3017 = vld [vmem:[%s1] sm:$0xf]
      %v3018 = vld [vmem:[%s1 + $0x4] sm:$0xf]
      %v3019 = vld [vmem:[%s1 + $0x8] sm:$0xf]
      %v3020 = vld [vmem:[%s1 + $0xc] sm:$0x3]
      %v3025 = vunpack.c.l.b16 %v3017
      %v3026 = vunpack.c.l.b16 %v3018
      %v3027 = vunpack.c.l.b16 %v3019
      %v3028 = vunpack.c.l.b16 %v3020
      %v3029 = vpack.c.b16 %v3026, %v3025
      %v3030 = vpack.c.b16 %v3028, %v3027
      %vm3032 = vcmask 220160
      %v3034 = vsel %vm3032, %v2985, 0
      %v3037 = vsel %vm3032, %v2986, 0
      %v3040 = vsel %vm3032, %v2987, 0
      %v3043 = vsel %vm3032, %v2988, 0
      %v3046 = vsel %vm3032, %v2989, 0
      %v3049 = vsel %vm3032, %v2990, 0
      %v3052 = vsel %vm3032, %v2991, 0
      %v3055 = vsel %vm3032, %v2992, 0
      %v3058 = vsel %vm3032, %v2993, 0
      %v3061 = vsel %vm3032, %v2994, 0
      %v3064 = vsel %vm3032, %v2995, 0
      %v3067 = vsel %vm3032, %v2996, 0
      %v3070 = vsel %vm3032, %v2997, 0
      %v3073 = vsel %vm3032, %v2998, 0
      %v3076 = vsel %vm3032, %v2999, 0
      %v3079 = vsel %vm3032, %v3000, 0
      %v3082 = vsel %vm3032, %v3001, 0
      %v3085 = vsel %vm3032, %v3002, 0
      %v3088 = vsel %vm3032, %v3003, 0
      %v3091 = vsel %vm3032, %v3004, 0
      %v3094 = vsel %vm3032, %v3005, 0
      %v3097 = vsel %vm3032, %v3006, 0
      %v3100 = vsel %vm3032, %v3007, 0
      %v3103 = vsel %vm3032, %v3008, 0
      %v3106 = vsel %vm3032, %v3009, 0
      %v3109 = vsel %vm3032, %v3010, 0
      %v3112 = vsel %vm3032, %v3011, 0
      %v3115 = vsel %vm3032, %v3012, 0
      %v3118 = vsel %vm3032, %v3013, 0
      %v3121 = vsel %vm3032, %v3014, 0
      %v3124 = vsel %vm3032, %v3015, 0
      %v3127 = vsel %vm3032, %v3016, 0
      %vm3129 = vcmask 1044480
      %v3130 = vsel %vm3129, 4294967295, 65535
      %v3131 = vsel %vm969, %v3130, 0
      %v3133 = vand.u32 %v3030, %v3131
      %3135 = vmatpush.bf16.msra.mxu0 0
      %3136 = vmatpush.bf16.msra.mxu0 0
      %3137 = vmatpush.bf16.msra.mxu0 0
      %3138 = vmatpush.bf16.msra.mxu0 0
      %3139 = vmatpush.bf16.msra.mxu0 0
      %3140 = vmatpush.bf16.msra.mxu0 0
      %3141 = vmatpush.bf16.msra.mxu0 %v3133
      %3142 = vmatpush.bf16.msra.mxu0 %v3029
      %3143 = vmatmul.bf16.gmra.mxu0 %v3034
      %v3144 = vpop.f32.mrf.mxu0
      %v3145 = vadd.f32 0.0, %v3144
      %v3146 = vpop.f32.mrf.mxu0
      %v3147 = vadd.f32 0.0, %v3146
      %3148 = vmatmul.bf16.gmra.mxu0 %v3037
      %v3149 = vpop.f32.mrf.mxu0
      %v3150 = vadd.f32 0.0, %v3149
      %v3151 = vpop.f32.mrf.mxu0
      %v3152 = vadd.f32 0.0, %v3151
      %3153 = vmatmul.bf16.gmra.mxu0 %v3040
      %v3154 = vpop.f32.mrf.mxu0
      %v3155 = vadd.f32 0.0, %v3154
      %v3156 = vpop.f32.mrf.mxu0
      %v3157 = vadd.f32 0.0, %v3156
      %3158 = vmatmul.bf16.gmra.mxu0 %v3043
      %v3159 = vpop.f32.mrf.mxu0
      %v3160 = vadd.f32 0.0, %v3159
      %v3161 = vpop.f32.mrf.mxu0
      %v3162 = vadd.f32 0.0, %v3161
      %3163 = vmatmul.bf16.gmra.mxu0 %v3046
      %v3164 = vpop.f32.mrf.mxu0
      %v3165 = vadd.f32 0.0, %v3164
      %v3166 = vpop.f32.mrf.mxu0
      %v3167 = vadd.f32 0.0, %v3166
      %3168 = vmatmul.bf16.gmra.mxu0 %v3049
      %v3169 = vpop.f32.mrf.mxu0
      %v3170 = vadd.f32 0.0, %v3169
      %v3171 = vpop.f32.mrf.mxu0
      %v3172 = vadd.f32 0.0, %v3171
      %3173 = vmatmul.bf16.gmra.mxu0 %v3052
      %v3174 = vpop.f32.mrf.mxu0
      %v3175 = vadd.f32 0.0, %v3174
      %v3176 = vpop.f32.mrf.mxu0
      %v3177 = vadd.f32 0.0, %v3176
      %3178 = vmatmul.bf16.gmra.mxu0 %v3055
      %v3179 = vpop.f32.mrf.mxu0
      %v3180 = vadd.f32 0.0, %v3179
      %v3181 = vpop.f32.mrf.mxu0
      %v3182 = vadd.f32 0.0, %v3181
      %3183 = vmatmul.bf16.gmra.mxu0 %v3058
      %v3184 = vpop.f32.mrf.mxu0
      %v3185 = vadd.f32 0.0, %v3184
      %v3186 = vpop.f32.mrf.mxu0
      %v3187 = vadd.f32 0.0, %v3186
      %3188 = vmatmul.bf16.gmra.mxu0 %v3061
      %v3189 = vpop.f32.mrf.mxu0
      %v3190 = vadd.f32 0.0, %v3189
      %v3191 = vpop.f32.mrf.mxu0
      %v3192 = vadd.f32 0.0, %v3191
      %3193 = vmatmul.bf16.gmra.mxu0 %v3064
      %v3194 = vpop.f32.mrf.mxu0
      %v3195 = vadd.f32 0.0, %v3194
      %v3196 = vpop.f32.mrf.mxu0
      %v3197 = vadd.f32 0.0, %v3196
      %3198 = vmatmul.bf16.gmra.mxu0 %v3067
      %v3199 = vpop.f32.mrf.mxu0
      %v3200 = vadd.f32 0.0, %v3199
      %v3201 = vpop.f32.mrf.mxu0
      %v3202 = vadd.f32 0.0, %v3201
      %3203 = vmatmul.bf16.gmra.mxu0 %v3070
      %v3204 = vpop.f32.mrf.mxu0
      %v3205 = vadd.f32 0.0, %v3204
      %v3206 = vpop.f32.mrf.mxu0
      %v3207 = vadd.f32 0.0, %v3206
      %3208 = vmatmul.bf16.gmra.mxu0 %v3073
      %v3209 = vpop.f32.mrf.mxu0
      %v3210 = vadd.f32 0.0, %v3209
      %v3211 = vpop.f32.mrf.mxu0
      %v3212 = vadd.f32 0.0, %v3211
      %3213 = vmatmul.bf16.gmra.mxu0 %v3076
      %v3214 = vpop.f32.mrf.mxu0
      %v3215 = vadd.f32 0.0, %v3214
      %v3216 = vpop.f32.mrf.mxu0
      %v3217 = vadd.f32 0.0, %v3216
      %3218 = vmatmul.bf16.gmra.mxu0 %v3079
      %v3219 = vpop.f32.mrf.mxu0
      %v3220 = vadd.f32 0.0, %v3219
      %v3221 = vpop.f32.mrf.mxu0
      %v3222 = vadd.f32 0.0, %v3221
      %3223 = vmatmul.bf16.gmra.mxu0 %v3082
      %v3224 = vpop.f32.mrf.mxu0
      %v3225 = vadd.f32 0.0, %v3224
      %v3226 = vpop.f32.mrf.mxu0
      %v3227 = vadd.f32 0.0, %v3226
      %3228 = vmatmul.bf16.gmra.mxu0 %v3085
      %v3229 = vpop.f32.mrf.mxu0
      %v3230 = vadd.f32 0.0, %v3229
      %v3231 = vpop.f32.mrf.mxu0
      %v3232 = vadd.f32 0.0, %v3231
      %3233 = vmatmul.bf16.gmra.mxu0 %v3088
      %v3234 = vpop.f32.mrf.mxu0
      %v3235 = vadd.f32 0.0, %v3234
      %v3236 = vpop.f32.mrf.mxu0
      %v3237 = vadd.f32 0.0, %v3236
      %3238 = vmatmul.bf16.gmra.mxu0 %v3091
      %v3239 = vpop.f32.mrf.mxu0
      %v3240 = vadd.f32 0.0, %v3239
      %v3241 = vpop.f32.mrf.mxu0
      %v3242 = vadd.f32 0.0, %v3241
      %3243 = vmatmul.bf16.gmra.mxu0 %v3094
      %v3244 = vpop.f32.mrf.mxu0
      %v3245 = vadd.f32 0.0, %v3244
      %v3246 = vpop.f32.mrf.mxu0
      %v3247 = vadd.f32 0.0, %v3246
      %3248 = vmatmul.bf16.gmra.mxu0 %v3097
      %v3249 = vpop.f32.mrf.mxu0
      %v3250 = vadd.f32 0.0, %v3249
      %v3251 = vpop.f32.mrf.mxu0
      %v3252 = vadd.f32 0.0, %v3251
      %3253 = vmatmul.bf16.gmra.mxu0 %v3100
      %v3254 = vpop.f32.mrf.mxu0
      %v3255 = vadd.f32 0.0, %v3254
      %v3256 = vpop.f32.mrf.mxu0
      %v3257 = vadd.f32 0.0, %v3256
      %3258 = vmatmul.bf16.gmra.mxu0 %v3103
      %v3259 = vpop.f32.mrf.mxu0
      %v3260 = vadd.f32 0.0, %v3259
      %v3261 = vpop.f32.mrf.mxu0
      %v3262 = vadd.f32 0.0, %v3261
      %3263 = vmatmul.bf16.gmra.mxu0 %v3106
      %v3264 = vpop.f32.mrf.mxu0
      %v3265 = vadd.f32 0.0, %v3264
      %v3266 = vpop.f32.mrf.mxu0
      %v3267 = vadd.f32 0.0, %v3266
      %3268 = vmatmul.bf16.gmra.mxu0 %v3109
      %v3269 = vpop.f32.mrf.mxu0
      %v3270 = vadd.f32 0.0, %v3269
      %v3271 = vpop.f32.mrf.mxu0
      %v3272 = vadd.f32 0.0, %v3271
      %3273 = vmatmul.bf16.gmra.mxu0 %v3112
      %v3274 = vpop.f32.mrf.mxu0
      %v3275 = vadd.f32 0.0, %v3274
      %v3276 = vpop.f32.mrf.mxu0
      %v3277 = vadd.f32 0.0, %v3276
      %3278 = vmatmul.bf16.gmra.mxu0 %v3115
      %v3279 = vpop.f32.mrf.mxu0
      %v3280 = vadd.f32 0.0, %v3279
      %v3281 = vpop.f32.mrf.mxu0
      %v3282 = vadd.f32 0.0, %v3281
      %3283 = vmatmul.bf16.gmra.mxu0 %v3118
      %v3284 = vpop.f32.mrf.mxu0
      %v3285 = vadd.f32 0.0, %v3284
      %v3286 = vpop.f32.mrf.mxu0
      %v3287 = vadd.f32 0.0, %v3286
      %3288 = vmatmul.bf16.gmra.mxu0 %v3121
      %v3289 = vpop.f32.mrf.mxu0
      %v3290 = vadd.f32 0.0, %v3289
      %v3291 = vpop.f32.mrf.mxu0
      %v3292 = vadd.f32 0.0, %v3291
      %3293 = vmatmul.bf16.gmra.mxu0 %v3124
      %v3294 = vpop.f32.mrf.mxu0
      %v3295 = vadd.f32 0.0, %v3294
      %v3296 = vpop.f32.mrf.mxu0
      %v3297 = vadd.f32 0.0, %v3296
      %3298 = vmatmul.bf16.gmra.mxu0 %v3127
      %v3299 = vpop.f32.mrf.mxu0
      %v3300 = vadd.f32 0.0, %v3299
      %v3301 = vpop.f32.mrf.mxu0
      %v3302 = vadd.f32 0.0, %v3301
      %3303 = vdwg.mxu0
      %v3304 = vld [vmem:[%s2] sm:$0x1]
      %v3305 = vperm.slane %v3304, 0
      %v3306 = vmul.f32 %v3145, %v3305
      %v3307 = vmul.f32 %v3147, %v3305
      %v3308 = vmul.f32 %v3150, %v3305
      %v3309 = vmul.f32 %v3152, %v3305
      %v3310 = vmul.f32 %v3155, %v3305
      %v3311 = vmul.f32 %v3157, %v3305
      %v3312 = vmul.f32 %v3160, %v3305
      %v3313 = vmul.f32 %v3162, %v3305
      %v3314 = vmul.f32 %v3165, %v3305
      %v3315 = vmul.f32 %v3167, %v3305
      %v3316 = vmul.f32 %v3170, %v3305
      %v3317 = vmul.f32 %v3172, %v3305
      %v3318 = vmul.f32 %v3175, %v3305
      %v3319 = vmul.f32 %v3177, %v3305
      %v3320 = vmul.f32 %v3180, %v3305
      %v3321 = vmul.f32 %v3182, %v3305
      %v3322 = vmul.f32 %v3185, %v3305
      %v3323 = vmul.f32 %v3187, %v3305
      %v3324 = vmul.f32 %v3190, %v3305
      %v3325 = vmul.f32 %v3192, %v3305
      %v3326 = vmul.f32 %v3195, %v3305
      %v3327 = vmul.f32 %v3197, %v3305
      %v3328 = vmul.f32 %v3200, %v3305
      %v3329 = vmul.f32 %v3202, %v3305
      %v3330 = vmul.f32 %v3205, %v3305
      %v3331 = vmul.f32 %v3207, %v3305
      %v3332 = vmul.f32 %v3210, %v3305
      %v3333 = vmul.f32 %v3212, %v3305
      %v3334 = vmul.f32 %v3215, %v3305
      %v3335 = vmul.f32 %v3217, %v3305
      %v3336 = vmul.f32 %v3220, %v3305
      %v3337 = vmul.f32 %v3222, %v3305
      %v3338 = vmul.f32 %v3225, %v3305
      %v3339 = vmul.f32 %v3227, %v3305
      %v3340 = vmul.f32 %v3230, %v3305
      %v3341 = vmul.f32 %v3232, %v3305
      %v3342 = vmul.f32 %v3235, %v3305
      %v3343 = vmul.f32 %v3237, %v3305
      %v3344 = vmul.f32 %v3240, %v3305
      %v3345 = vmul.f32 %v3242, %v3305
      %v3346 = vmul.f32 %v3245, %v3305
      %v3347 = vmul.f32 %v3247, %v3305
      %v3348 = vmul.f32 %v3250, %v3305
      %v3349 = vmul.f32 %v3252, %v3305
      %v3350 = vmul.f32 %v3255, %v3305
      %v3351 = vmul.f32 %v3257, %v3305
      %v3352 = vmul.f32 %v3260, %v3305
      %v3353 = vmul.f32 %v3262, %v3305
      %v3354 = vmul.f32 %v3265, %v3305
      %v3355 = vmul.f32 %v3267, %v3305
      %v3356 = vmul.f32 %v3270, %v3305
      %v3357 = vmul.f32 %v3272, %v3305
      %v3358 = vmul.f32 %v3275, %v3305
      %v3359 = vmul.f32 %v3277, %v3305
      %v3360 = vmul.f32 %v3280, %v3305
      %v3361 = vmul.f32 %v3282, %v3305
      %v3362 = vmul.f32 %v3285, %v3305
      %v3363 = vmul.f32 %v3287, %v3305
      %v3364 = vmul.f32 %v3290, %v3305
      %v3365 = vmul.f32 %v3292, %v3305
      %v3366 = vmul.f32 %v3295, %v3305
      %v3367 = vmul.f32 %v3297, %v3305
      %v3368 = vmul.f32 %v3300, %v3305
      %v3369 = vmul.f32 %v3302, %v3305
      %v3370 = vld [vmem:[%s2 + $0x1] sm:$0x1]
      %v3371 = vperm.slane %v3370, 0
      %v3372 = vadd.f32 %v3306, %v3371
      %v3373 = vadd.f32 %v3307, %v3371
      %v3374 = vadd.f32 %v3308, %v3371
      %v3375 = vadd.f32 %v3309, %v3371
      %v3376 = vadd.f32 %v3310, %v3371
      %v3377 = vadd.f32 %v3311, %v3371
      %v3378 = vadd.f32 %v3312, %v3371
      %v3379 = vadd.f32 %v3313, %v3371
      %v3380 = vadd.f32 %v3314, %v3371
      %v3381 = vadd.f32 %v3315, %v3371
      %v3382 = vadd.f32 %v3316, %v3371
      %v3383 = vadd.f32 %v3317, %v3371
      %v3384 = vadd.f32 %v3318, %v3371
      %v3385 = vadd.f32 %v3319, %v3371
      %v3386 = vadd.f32 %v3320, %v3371
      %v3387 = vadd.f32 %v3321, %v3371
      %v3388 = vadd.f32 %v3322, %v3371
      %v3389 = vadd.f32 %v3323, %v3371
      %v3390 = vadd.f32 %v3324, %v3371
      %v3391 = vadd.f32 %v3325, %v3371
      %v3392 = vadd.f32 %v3326, %v3371
      %v3393 = vadd.f32 %v3327, %v3371
      %v3394 = vadd.f32 %v3328, %v3371
      %v3395 = vadd.f32 %v3329, %v3371
      %v3396 = vadd.f32 %v3330, %v3371
      %v3397 = vadd.f32 %v3331, %v3371
      %v3398 = vadd.f32 %v3332, %v3371
      %v3399 = vadd.f32 %v3333, %v3371
      %v3400 = vadd.f32 %v3334, %v3371
      %v3401 = vadd.f32 %v3335, %v3371
      %v3402 = vadd.f32 %v3336, %v3371
      %v3403 = vadd.f32 %v3337, %v3371
      %v3404 = vadd.f32 %v3338, %v3371
      %v3405 = vadd.f32 %v3339, %v3371
      %v3406 = vadd.f32 %v3340, %v3371
      %v3407 = vadd.f32 %v3341, %v3371
      %v3408 = vadd.f32 %v3342, %v3371
      %v3409 = vadd.f32 %v3343, %v3371
      %v3410 = vadd.f32 %v3344, %v3371
      %v3411 = vadd.f32 %v3345, %v3371
      %v3412 = vadd.f32 %v3346, %v3371
      %v3413 = vadd.f32 %v3347, %v3371
      %v3414 = vadd.f32 %v3348, %v3371
      %v3415 = vadd.f32 %v3349, %v3371
      %v3416 = vadd.f32 %v3350, %v3371
      %v3417 = vadd.f32 %v3351, %v3371
      %v3418 = vadd.f32 %v3352, %v3371
      %v3419 = vadd.f32 %v3353, %v3371
      %v3420 = vadd.f32 %v3354, %v3371
      %v3421 = vadd.f32 %v3355, %v3371
      %v3422 = vadd.f32 %v3356, %v3371
      %v3423 = vadd.f32 %v3357, %v3371
      %v3424 = vadd.f32 %v3358, %v3371
      %v3425 = vadd.f32 %v3359, %v3371
      %v3426 = vadd.f32 %v3360, %v3371
      %v3427 = vadd.f32 %v3361, %v3371
      %v3428 = vadd.f32 %v3362, %v3371
      %v3429 = vadd.f32 %v3363, %v3371
      %v3430 = vadd.f32 %v3364, %v3371
      %v3431 = vadd.f32 %v3365, %v3371
      %v3432 = vadd.f32 %v3366, %v3371
      %v3433 = vadd.f32 %v3367, %v3371
      %v3434 = vadd.f32 %v3368, %v3371
      %v3435 = vadd.f32 %v3369, %v3371
      %v3436 = vmax.f32 %v3372, 0.0
      %v3437 = vmax.f32 %v3373, 0.0
      %v3438 = vmax.f32 %v3374, 0.0
      %v3439 = vmax.f32 %v3375, 0.0
      %v3440 = vmax.f32 %v3376, 0.0
      %v3441 = vmax.f32 %v3377, 0.0
      %v3442 = vmax.f32 %v3378, 0.0
      %v3443 = vmax.f32 %v3379, 0.0
      %v3444 = vmax.f32 %v3380, 0.0
      %v3445 = vmax.f32 %v3381, 0.0
      %v3446 = vmax.f32 %v3382, 0.0
      %v3447 = vmax.f32 %v3383, 0.0
      %v3448 = vmax.f32 %v3384, 0.0
      %v3449 = vmax.f32 %v3385, 0.0
      %v3450 = vmax.f32 %v3386, 0.0
      %v3451 = vmax.f32 %v3387, 0.0
      %v3452 = vmax.f32 %v3388, 0.0
      %v3453 = vmax.f32 %v3389, 0.0
      %v3454 = vmax.f32 %v3390, 0.0
      %v3455 = vmax.f32 %v3391, 0.0
      %v3456 = vmax.f32 %v3392, 0.0
      %v3457 = vmax.f32 %v3393, 0.0
      %v3458 = vmax.f32 %v3394, 0.0
      %v3459 = vmax.f32 %v3395, 0.0
      %v3460 = vmax.f32 %v3396, 0.0
      %v3461 = vmax.f32 %v3397, 0.0
      %v3462 = vmax.f32 %v3398, 0.0
      %v3463 = vmax.f32 %v3399, 0.0
      %v3464 = vmax.f32 %v3400, 0.0
      %v3465 = vmax.f32 %v3401, 0.0
      %v3466 = vmax.f32 %v3402, 0.0
      %v3467 = vmax.f32 %v3403, 0.0
      %v3468 = vmax.f32 %v3404, 0.0
      %v3469 = vmax.f32 %v3405, 0.0
      %v3470 = vmax.f32 %v3406, 0.0
      %v3471 = vmax.f32 %v3407, 0.0
      %v3472 = vmax.f32 %v3408, 0.0
      %v3473 = vmax.f32 %v3409, 0.0
      %v3474 = vmax.f32 %v3410, 0.0
      %v3475 = vmax.f32 %v3411, 0.0
      %v3476 = vmax.f32 %v3412, 0.0
      %v3477 = vmax.f32 %v3413, 0.0
      %v3478 = vmax.f32 %v3414, 0.0
      %v3479 = vmax.f32 %v3415, 0.0
      %v3480 = vmax.f32 %v3416, 0.0
      %v3481 = vmax.f32 %v3417, 0.0
      %v3482 = vmax.f32 %v3418, 0.0
      %v3483 = vmax.f32 %v3419, 0.0
      %v3484 = vmax.f32 %v3420, 0.0
      %v3485 = vmax.f32 %v3421, 0.0
      %v3486 = vmax.f32 %v3422, 0.0
      %v3487 = vmax.f32 %v3423, 0.0
      %v3488 = vmax.f32 %v3424, 0.0
      %v3489 = vmax.f32 %v3425, 0.0
      %v3490 = vmax.f32 %v3426, 0.0
      %v3491 = vmax.f32 %v3427, 0.0
      %v3492 = vmax.f32 %v3428, 0.0
      %v3493 = vmax.f32 %v3429, 0.0
      %v3494 = vmax.f32 %v3430, 0.0
      %v3495 = vmax.f32 %v3431, 0.0
      %v3496 = vmax.f32 %v3432, 0.0
      %v3497 = vmax.f32 %v3433, 0.0
      %v3498 = vmax.f32 %v3434, 0.0
      %v3499 = vmax.f32 %v3435, 0.0
      %vm3500 = vcmask 523264
      %v3501 = vsel %vm3500, %v3436, 0.0
      %v3502 = vsel %vm3500, %v3437, 0.0
      %v3503 = vadd.f32 %v3501, %v3502
      %v3504 = vsel %vm3500, %v3438, 0.0
      %v3505 = vadd.f32 %v3503, %v3504
      %v3506 = vsel %vm3500, %v3439, 0.0
      %v3507 = vadd.f32 %v3505, %v3506
      %v3508 = vsel %vm3500, %v3440, 0.0
      %v3509 = vadd.f32 %v3507, %v3508
      %v3510 = vsel %vm3500, %v3441, 0.0
      %v3511 = vadd.f32 %v3509, %v3510
      %v3512 = vsel %vm3500, %v3442, 0.0
      %v3513 = vadd.f32 %v3511, %v3512
      %v3514 = vsel %vm3500, %v3443, 0.0
      %v3515 = vadd.f32 %v3513, %v3514
      %v3516 = vsel %vm3500, %v3444, 0.0
      %v3517 = vadd.f32 %v3515, %v3516
      %v3518 = vsel %vm3500, %v3445, 0.0
      %v3519 = vadd.f32 %v3517, %v3518
      %v3520 = vsel %vm3500, %v3446, 0.0
      %v3521 = vadd.f32 %v3519, %v3520
      %v3522 = vsel %vm3500, %v3447, 0.0
      %v3523 = vadd.f32 %v3521, %v3522
      %v3524 = vsel %vm3500, %v3448, 0.0
      %v3525 = vadd.f32 %v3523, %v3524
      %v3526 = vsel %vm3500, %v3449, 0.0
      %v3527 = vadd.f32 %v3525, %v3526
      %v3528 = vsel %vm3500, %v3450, 0.0
      %v3529 = vadd.f32 %v3527, %v3528
      %v3530 = vsel %vm3500, %v3451, 0.0
      %v3531 = vadd.f32 %v3529, %v3530
      %v3532 = vsel %vm3500, %v3452, 0.0
      %v3533 = vadd.f32 %v3531, %v3532
      %v3534 = vsel %vm3500, %v3453, 0.0
      %v3535 = vadd.f32 %v3533, %v3534
      %v3536 = vsel %vm3500, %v3454, 0.0
      %v3537 = vadd.f32 %v3535, %v3536
      %v3538 = vsel %vm3500, %v3455, 0.0
      %v3539 = vadd.f32 %v3537, %v3538
      %v3540 = vsel %vm3500, %v3456, 0.0
      %v3541 = vadd.f32 %v3539, %v3540
      %v3542 = vsel %vm3500, %v3457, 0.0
      %v3543 = vadd.f32 %v3541, %v3542
      %v3544 = vsel %vm3500, %v3458, 0.0
      %v3545 = vadd.f32 %v3543, %v3544
      %v3546 = vsel %vm3500, %v3459, 0.0
      %v3547 = vadd.f32 %v3545, %v3546
      %v3548 = vsel %vm3500, %v3460, 0.0
      %v3549 = vadd.f32 %v3547, %v3548
      %v3550 = vsel %vm3500, %v3461, 0.0
      %v3551 = vadd.f32 %v3549, %v3550
      %v3552 = vsel %vm3500, %v3462, 0.0
      %v3553 = vadd.f32 %v3551, %v3552
      %v3554 = vsel %vm3500, %v3463, 0.0
      %v3555 = vadd.f32 %v3553, %v3554
      %v3556 = vsel %vm3500, %v3464, 0.0
      %v3557 = vadd.f32 %v3555, %v3556
      %v3558 = vsel %vm3500, %v3465, 0.0
      %v3559 = vadd.f32 %v3557, %v3558
      %v3560 = vsel %vm3500, %v3466, 0.0
      %v3561 = vadd.f32 %v3559, %v3560
      %v3562 = vsel %vm3500, %v3467, 0.0
      %v3563 = vadd.f32 %v3561, %v3562
      %v3564 = vrot.slane %v3563, 4
      %v3565 = vadd.f32 %v3563, %v3564
      %v3566 = vrot.slane %v3565, 2
      %v3567 = vadd.f32 %v3565, %v3566
      %v3568 = vrot.slane %v3567, 1
      %v3569 = vadd.f32 %v3567, %v3568
      %v3570 = vsel %vm3500, %v3468, 0.0
      %v3571 = vsel %vm3500, %v3469, 0.0
      %v3572 = vadd.f32 %v3570, %v3571
      %v3573 = vsel %vm3500, %v3470, 0.0
      %v3574 = vadd.f32 %v3572, %v3573
      %v3575 = vsel %vm3500, %v3471, 0.0
      %v3576 = vadd.f32 %v3574, %v3575
      %v3577 = vsel %vm3500, %v3472, 0.0
      %v3578 = vadd.f32 %v3576, %v3577
      %v3579 = vsel %vm3500, %v3473, 0.0
      %v3580 = vadd.f32 %v3578, %v3579
      %v3581 = vsel %vm3500, %v3474, 0.0
      %v3582 = vadd.f32 %v3580, %v3581
      %v3583 = vsel %vm3500, %v3475, 0.0
      %v3584 = vadd.f32 %v3582, %v3583
      %v3585 = vsel %vm3500, %v3476, 0.0
      %v3586 = vadd.f32 %v3584, %v3585
      %v3587 = vsel %vm3500, %v3477, 0.0
      %v3588 = vadd.f32 %v3586, %v3587
      %v3589 = vsel %vm3500, %v3478, 0.0
      %v3590 = vadd.f32 %v3588, %v3589
      %v3591 = vsel %vm3500, %v3479, 0.0
      %v3592 = vadd.f32 %v3590, %v3591
      %v3593 = vsel %vm3500, %v3480, 0.0
      %v3594 = vadd.f32 %v3592, %v3593
      %v3595 = vsel %vm3500, %v3481, 0.0
      %v3596 = vadd.f32 %v3594, %v3595
      %v3597 = vsel %vm3500, %v3482, 0.0
      %v3598 = vadd.f32 %v3596, %v3597
      %v3599 = vsel %vm3500, %v3483, 0.0
      %v3600 = vadd.f32 %v3598, %v3599
      %v3601 = vsel %vm3500, %v3484, 0.0
      %v3602 = vadd.f32 %v3600, %v3601
      %v3603 = vsel %vm3500, %v3485, 0.0
      %v3604 = vadd.f32 %v3602, %v3603
      %v3605 = vsel %vm3500, %v3486, 0.0
      %v3606 = vadd.f32 %v3604, %v3605
      %v3607 = vsel %vm3500, %v3487, 0.0
      %v3608 = vadd.f32 %v3606, %v3607
      %v3609 = vsel %vm3500, %v3488, 0.0
      %v3610 = vadd.f32 %v3608, %v3609
      %v3611 = vsel %vm3500, %v3489, 0.0
      %v3612 = vadd.f32 %v3610, %v3611
      %v3613 = vsel %vm3500, %v3490, 0.0
      %v3614 = vadd.f32 %v3612, %v3613
      %v3615 = vsel %vm3500, %v3491, 0.0
      %v3616 = vadd.f32 %v3614, %v3615
      %v3617 = vsel %vm3500, %v3492, 0.0
      %v3618 = vadd.f32 %v3616, %v3617
      %v3619 = vsel %vm3500, %v3493, 0.0
      %v3620 = vadd.f32 %v3618, %v3619
      %v3621 = vsel %vm3500, %v3494, 0.0
      %v3622 = vadd.f32 %v3620, %v3621
      %v3623 = vsel %vm3500, %v3495, 0.0
      %v3624 = vadd.f32 %v3622, %v3623
      %v3625 = vsel %vm3500, %v3496, 0.0
      %v3626 = vadd.f32 %v3624, %v3625
      %v3627 = vsel %vm3500, %v3497, 0.0
      %v3628 = vadd.f32 %v3626, %v3627
      %v3629 = vsel %vm3500, %v3498, 0.0
      %v3630 = vadd.f32 %v3628, %v3629
      %v3631 = vsel %vm3500, %v3499, 0.0
      %v3632 = vadd.f32 %v3630, %v3631
      %v3633 = vrot.slane %v3632, 4
      %v3634 = vadd.f32 %v3632, %v3633
      %v3635 = vrot.slane %v3634, 2
      %v3636 = vadd.f32 %v3634, %v3635
      %v3637 = vrot.slane %v3636, 1
      %v3638 = vadd.f32 %v3636, %v3637
      %v3639 = vrcp.pop 256.0
      %v3640 = vmul.f32 256.0, %v3639
      %v3641 = vsub.f32 1.0, %v3640
      %v3642 = vmul.f32 %v3639, %v3641
      %v3643 = vadd.f32 %v3639, %v3642
      %vm3644 = vweird.f32 %v3639
      %v3645 = vsel %vm3644, %v3639, %v3643
      %v3646 = vmul.f32 %v3569, %v3645
      %v3647 = vmul.f32 %v3638, %v3645
      %vm3650 = vcmask 1041409
      %v3651 = vsel %vm3650, %v3647, %v3646
      %vm3653 = vcmask 517120
      %3654 = vst.msk [vmem:[%s173] sm:$0x3] %vm3653, %v3651
      %p3655 = scmp.lt.s32.totalorder %s14, 1
      %s3656 = scalar_select %p3655, %s14, 1
      %s3657 = smul.addr %s3656, 2
      %s3658 = scalar_lea.vmem %s3, %s3657
      // Predicated region
      $region33: #{encoder_decoder_forward.4} parent=31 // pred_check
        %p3659 = pneg %p100
      $region34: #{encoder_decoder_forward.4} parent=31 // pred_check_branch
        %3661 = sbr.rel (%p3659) target = $region36
      $region35: #{encoder_decoder_forward.4} parent=31 // pred_region
        _
      $region36: #{encoder_decoder_forward.4} parent=31 // pred_fallthru
        _
    $region32: #{encoder_decoder_forward.4} parent=5 // pred_fallthru
      _
    %p3662 = scmp.le.s32.totalorder 2, %s9
    // Predicated region
    $region37: #{encoder_decoder_forward.4} parent=5 // pred_check
      %p3663 = pneg %p3662
    $region38: #{encoder_decoder_forward.4} parent=5 // pred_check_branch
      %3665 = sbr.rel (%p3663) target = $region40
    $region39: #{encoder_decoder_forward.4} parent=5 // pred_region
      %s3666 = ssub.s32 %s9, 2
      // Predicated region
      $region41: #{encoder_decoder_forward.4} parent=39 // pred_check
        %p3667 = pneg %p106
      $region42: #{encoder_decoder_forward.4} parent=39 // pred_check_branch
        %3669 = sbr.rel (%p3667) target = $region44
      $region43: #{encoder_decoder_forward.4} parent=39 // pred_region
        %p3670 = scmp.lt.s32.totalorder %s15, 1
        %s3671 = scalar_select %p3670, %s15, 1
        %s3672 = smul.addr %s3671, 2
        %s3673 = scalar_lea.vmem %s3, %s3672
      $region44: #{encoder_decoder_forward.4} parent=39 // pred_fallthru
        _
    $region40: #{encoder_decoder_forward.4} parent=5 // pred_fallthru
      _
  $region6: #{encoder_decoder_forward.4} parent=0 // loop_footer
    %s13 = sadd.s32 1, %s9
  $region7: #{encoder_decoder_forward.4} parent=0 // loop_footer_branch
    %8 = sbr.rel target = $region3
  $region8: #{encoder_decoder_forward.4} parent=0 // loop_exit
    _

// kernel: encoder_decoder_forward.3
$region0: #{encoder_decoder_forward.3}
  #allocation0 [shape = 'u32[]', space=smem, size = 0x4, offset = 0x4, fixed_abs, tag = 'smem constant byte address 0x4 - core index']
  #allocation1 [shape = 'u32[72,128]{1,0:T(1,128)}', space=vmem, size = 0x9000, scoped, tag = 'internal scratch']
  %s0 = inlined_call_operand.vmem [shape: f32[2,16,16,3], index: 0, kind: input, shape index: {}]
  %s1 = inlined_call_operand.vmem [shape: f32[2,8], index: 1, kind: input, shape index: {}]
  %s2 = inlined_call_operand.vmem [shape: bf16[27,16], index: 2, kind: input, shape index: {}]
  %s3 = inlined_call_operand.vmem [shape: f32[2,16], index: 3, kind: input, shape index: {}]
  %s4 = inlined_call_operand.vmem [shape: bf16[144,16], index: 4, kind: input, shape index: {}]
  %s5 = inlined_call_operand.vmem [shape: f32[2,16], index: 5, kind: input, shape index: {}]
  %s6 = inlined_call_operand.vmem [shape: bf16[243,16], index: 6, kind: input, shape index: {}]
  %s7 = inlined_call_operand.vmem [shape: f32[2,16], index: 7, kind: input, shape index: {}]
  %s8 = inlined_call_operand.vmem [shape: bf16[16,3], index: 8, kind: input, shape index: {}]
  %s9 = inlined_call_operand.vmem [shape: f32[2,3], index: 9, kind: input, shape index: {}]
  %s10 = inlined_call_operand.vmem [shape: f32[512,3], index: 10, kind: output, shape index: {}]
  %s11 = sld [smem:[#allocation0]]
  $region50: #{encoder_decoder_forward.3} parent=0
    _
  %s13 = ssub.s32 1, %s11
  %s14 = scalar_select 0, %s13, %s11
  // Predicated region
  $region2: #{encoder_decoder_forward.3} parent=0 // pred_check
    _
  $region3: #{encoder_decoder_forward.3} parent=0 // pred_check_branch
    %16 = sbr.rel (0) target = $region5
  $region4: #{encoder_decoder_forward.3} parent=0 // pred_region
    _
  $region5: #{encoder_decoder_forward.3} parent=0 // pred_fallthru
    _
  // Predicated region
  $region6: #{encoder_decoder_forward.3} parent=0 // pred_check
    _
  $region7: #{encoder_decoder_forward.3} parent=0 // pred_check_branch
    %18 = sbr.rel (0) target = $region9
  $region8: #{encoder_decoder_forward.3} parent=0 // pred_region
    _
  $region9: #{encoder_decoder_forward.3} parent=0 // pred_fallthru
    _
  // Predicated region
  $region10: #{encoder_decoder_forward.3} parent=0 // pred_check
    _
  $region11: #{encoder_decoder_forward.3} parent=0 // pred_check_branch
    %20 = sbr.rel (0) target = $region13
  $region12: #{encoder_decoder_forward.3} parent=0 // pred_region
    _
  $region13: #{encoder_decoder_forward.3} parent=0 // pred_fallthru
    _
  // Predicated region
  $region14: #{encoder_decoder_forward.3} parent=0 // pred_check
    _
  $region15: #{encoder_decoder_forward.3} parent=0 // pred_check_branch
    %22 = sbr.rel (0) target = $region17
  $region16: #{encoder_decoder_forward.3} parent=0 // pred_region
    _
  $region17: #{encoder_decoder_forward.3} parent=0 // pred_fallthru
    _
  // Predicated region
  $region18: #{encoder_decoder_forward.3} parent=0 // pred_check
    _
  $region19: #{encoder_decoder_forward.3} parent=0 // pred_check_branch
    %24 = sbr.rel (0) target = $region21
  $region20: #{encoder_decoder_forward.3} parent=0 // pred_region
    _
  $region21: #{encoder_decoder_forward.3} parent=0 // pred_fallthru
    _
  // Predicated region
  $region22: #{encoder_decoder_forward.3} parent=0 // pred_check
    _
  $region23: #{encoder_decoder_forward.3} parent=0 // pred_check_branch
    %26 = sbr.rel (0) target = $region25
  $region24: #{encoder_decoder_forward.3} parent=0 // pred_region
    _
  $region25: #{encoder_decoder_forward.3} parent=0 // pred_fallthru
    _
  // Predicated region
  $region26: #{encoder_decoder_forward.3} parent=0 // pred_check
    _
  $region27: #{encoder_decoder_forward.3} parent=0 // pred_check_branch
    %28 = sbr.rel (0) target = $region29
  $region28: #{encoder_decoder_forward.3} parent=0 // pred_region
    _
  $region29: #{encoder_decoder_forward.3} parent=0 // pred_fallthru
    _
  // Predicated region
  $region30: #{encoder_decoder_forward.3} parent=0 // pred_check
    _
  $region31: #{encoder_decoder_forward.3} parent=0 // pred_check_branch
    %30 = sbr.rel (0) target = $region33
  $region32: #{encoder_decoder_forward.3} parent=0 // pred_region
    _
  $region33: #{encoder_decoder_forward.3} parent=0 // pred_fallthru
    _
  // Predicated region
  $region34: #{encoder_decoder_forward.3} parent=0 // pred_check
    _
  $region35: #{encoder_decoder_forward.3} parent=0 // pred_check_branch
    %32 = sbr.rel (0) target = $region37
  $region36: #{encoder_decoder_forward.3} parent=0 // pred_region
    _
  $region37: #{encoder_decoder_forward.3} parent=0 // pred_fallthru
    _
  // Predicated region
  $region38: #{encoder_decoder_forward.3} parent=0 // pred_check
    _
  $region39: #{encoder_decoder_forward.3} parent=0 // pred_check_branch
    %34 = sbr.rel (0) target = $region41
  $region40: #{encoder_decoder_forward.3} parent=0 // pred_region
    _
  $region41: #{encoder_decoder_forward.3} parent=0 // pred_fallthru
    _
  %v36 = vld [vmem:[%s0] sm:$0xff]
  %v37 = vld [vmem:[%s0 + $0x8] sm:$0xff]
  %v38 = vld [vmem:[%s0 + $0x10] sm:$0xff]
  %v39 = vld [vmem:[%s0 + $0x18] sm:$0xff]
  %v40 = vld [vmem:[%s0 + $0x20] sm:$0xff]
  %v41 = vld [vmem:[%s0 + $0x28] sm:$0xff]
  %v42 = vld [vmem:[%s0 + $0x30] sm:$0xff]
  %v43 = vld [vmem:[%s0 + $0x38] sm:$0xff]
  %v44 = vld [vmem:[%s0 + $0x40] sm:$0xff]
  %v45 = vld [vmem:[%s0 + $0x48] sm:$0xff]
  %v46 = vld [vmem:[%s0 + $0x50] sm:$0xff]
  %v47 = vld [vmem:[%s0 + $0x58] sm:$0xff]
  %v48 = vld [vmem:[%s0 + $0x60] sm:$0xff]
  %v49 = vld [vmem:[%s0 + $0x68] sm:$0xff]
  %v50 = vld [vmem:[%s0 + $0x70] sm:$0xff]
  %v51 = vld [vmem:[%s0 + $0x78] sm:$0xff]
  %v52 = vld [vmem:[%s0 + $0x80] sm:$0xff]
  %v53 = vld [vmem:[%s0 + $0x88] sm:$0xff]
  %v54 = vld [vmem:[%s0 + $0x90] sm:$0xff]
  %v55 = vld [vmem:[%s0 + $0x98] sm:$0xff]
  %v56 = vld [vmem:[%s0 + $0xa0] sm:$0xff]
  %v57 = vld [vmem:[%s0 + $0xa8] sm:$0xff]
  %v58 = vld [vmem:[%s0 + $0xb0] sm:$0xff]
  %v59 = vld [vmem:[%s0 + $0xb8] sm:$0xff]
  %v60 = vld [vmem:[%s0 + $0xc0] sm:$0xff]
  %v61 = vld [vmem:[%s0 + $0xc8] sm:$0xff]
  %v62 = vld [vmem:[%s0 + $0xd0] sm:$0xff]
  %v63 = vld [vmem:[%s0 + $0xd8] sm:$0xff]
  %v64 = vld [vmem:[%s0 + $0xe0] sm:$0xff]
  %v65 = vld [vmem:[%s0 + $0xe8] sm:$0xff]
  %v66 = vld [vmem:[%s0 + $0xf0] sm:$0xff]
  %v67 = vld [vmem:[%s0 + $0xf8] sm:$0xff]
  %v68 = vld [vmem:[%s0 + $0x100] sm:$0xff]
  %v69 = vld [vmem:[%s0 + $0x108] sm:$0xff]
  %v70 = vld [vmem:[%s0 + $0x110] sm:$0xff]
  %v71 = vld [vmem:[%s0 + $0x118] sm:$0xff]
  %v72 = vld [vmem:[%s0 + $0x120] sm:$0xff]
  %v73 = vld [vmem:[%s0 + $0x128] sm:$0xff]
  %v74 = vld [vmem:[%s0 + $0x130] sm:$0xff]
  %v75 = vld [vmem:[%s0 + $0x138] sm:$0xff]
  %v76 = vld [vmem:[%s0 + $0x140] sm:$0xff]
  %v77 = vld [vmem:[%s0 + $0x148] sm:$0xff]
  %v78 = vld [vmem:[%s0 + $0x150] sm:$0xff]
  %v79 = vld [vmem:[%s0 + $0x158] sm:$0xff]
  %v80 = vld [vmem:[%s0 + $0x160] sm:$0xff]
  %v81 = vld [vmem:[%s0 + $0x168] sm:$0xff]
  %v82 = vld [vmem:[%s0 + $0x170] sm:$0xff]
  %v83 = vld [vmem:[%s0 + $0x178] sm:$0xff]
  %v84 = vld [vmem:[%s0 + $0x180] sm:$0xff]
  %v85 = vld [vmem:[%s0 + $0x188] sm:$0xff]
  %v86 = vld [vmem:[%s0 + $0x190] sm:$0xff]
  %v87 = vld [vmem:[%s0 + $0x198] sm:$0xff]
  %v88 = vld [vmem:[%s0 + $0x1a0] sm:$0xff]
  %v89 = vld [vmem:[%s0 + $0x1a8] sm:$0xff]
  %v90 = vld [vmem:[%s0 + $0x1b0] sm:$0xff]
  %v91 = vld [vmem:[%s0 + $0x1b8] sm:$0xff]
  %v92 = vld [vmem:[%s0 + $0x1c0] sm:$0xff]
  %v93 = vld [vmem:[%s0 + $0x1c8] sm:$0xff]
  %v94 = vld [vmem:[%s0 + $0x1d0] sm:$0xff]
  %v95 = vld [vmem:[%s0 + $0x1d8] sm:$0xff]
  %v96 = vld [vmem:[%s0 + $0x1e0] sm:$0xff]
  %v97 = vld [vmem:[%s0 + $0x1e8] sm:$0xff]
  %v98 = vld [vmem:[%s0 + $0x1f0] sm:$0xff]
  %v99 = vld [vmem:[%s0 + $0x1f8] sm:$0xff]
  %vm165 = vcmask 1040384
  %v166 = vrot.slane 0.0, 7
  %v167 = vsel %vm165, %v166, %v166
  %v168 = vrot.slane %v36, 7
  %v169 = vrot.slane %v37, 7
  %v170 = vsel %vm165, %v168, %v169
  %v171 = vrot.slane %v38, 7
  %v172 = vrot.slane %v39, 7
  %v173 = vsel %vm165, %v171, %v172
  %v174 = vrot.slane %v40, 7
  %v175 = vrot.slane %v41, 7
  %v176 = vsel %vm165, %v174, %v175
  %v177 = vrot.slane %v42, 7
  %v178 = vrot.slane %v43, 7
  %v179 = vsel %vm165, %v177, %v178
  %v180 = vrot.slane %v44, 7
  %v181 = vrot.slane %v45, 7
  %v182 = vsel %vm165, %v180, %v181
  %v183 = vrot.slane %v46, 7
  %v184 = vrot.slane %v47, 7
  %v185 = vsel %vm165, %v183, %v184
  %v186 = vrot.slane %v48, 7
  %v187 = vrot.slane %v49, 7
  %v188 = vsel %vm165, %v186, %v187
  %v189 = vrot.slane %v50, 7
  %v190 = vrot.slane %v51, 7
  %v191 = vsel %vm165, %v189, %v190
  %v192 = vrot.slane %v52, 7
  %v193 = vrot.slane %v53, 7
  %v194 = vsel %vm165, %v192, %v193
  %v195 = vrot.slane %v54, 7
  %v196 = vrot.slane %v55, 7
  %v197 = vsel %vm165, %v195, %v196
  %v198 = vrot.slane %v56, 7
  %v199 = vrot.slane %v57, 7
  %v200 = vsel %vm165, %v198, %v199
  %v201 = vrot.slane %v58, 7
  %v202 = vrot.slane %v59, 7
  %v203 = vsel %vm165, %v201, %v202
  %v204 = vrot.slane %v60, 7
  %v205 = vrot.slane %v61, 7
  %v206 = vsel %vm165, %v204, %v205
  %v207 = vrot.slane %v62, 7
  %v208 = vrot.slane %v63, 7
  %v209 = vsel %vm165, %v207, %v208
  %v210 = vrot.slane %v64, 7
  %v211 = vrot.slane %v65, 7
  %v212 = vsel %vm165, %v210, %v211
  %v213 = vrot.slane %v66, 7
  %v214 = vrot.slane %v67, 7
  %v215 = vsel %vm165, %v213, %v214
  %v216 = vrot.slane %v68, 7
  %v217 = vrot.slane %v69, 7
  %v218 = vsel %vm165, %v216, %v217
  %v219 = vrot.slane %v70, 7
  %v220 = vrot.slane %v71, 7
  %v221 = vsel %vm165, %v219, %v220
  %v222 = vrot.slane %v72, 7
  %v223 = vrot.slane %v73, 7
  %v224 = vsel %vm165, %v222, %v223
  %v225 = vrot.slane %v74, 7
  %v226 = vrot.slane %v75, 7
  %v227 = vsel %vm165, %v225, %v226
  %v228 = vrot.slane %v76, 7
  %v229 = vrot.slane %v77, 7
  %v230 = vsel %vm165, %v228, %v229
  %v231 = vrot.slane %v78, 7
  %v232 = vrot.slane %v79, 7
  %v233 = vsel %vm165, %v231, %v232
  %v234 = vrot.slane %v80, 7
  %v235 = vrot.slane %v81, 7
  %v236 = vsel %vm165, %v234, %v235
  %v237 = vrot.slane %v82, 7
  %v238 = vrot.slane %v83, 7
  %v239 = vsel %vm165, %v237, %v238
  %v240 = vrot.slane %v84, 7
  %v241 = vrot.slane %v85, 7
  %v242 = vsel %vm165, %v240, %v241
  %v243 = vrot.slane %v86, 7
  %v244 = vrot.slane %v87, 7
  %v245 = vsel %vm165, %v243, %v244
  %v246 = vrot.slane %v88, 7
  %v247 = vrot.slane %v89, 7
  %v248 = vsel %vm165, %v246, %v247
  %v249 = vrot.slane %v90, 7
  %v250 = vrot.slane %v91, 7
  %v251 = vsel %vm165, %v249, %v250
  %v252 = vrot.slane %v92, 7
  %v253 = vrot.slane %v93, 7
  %v254 = vsel %vm165, %v252, %v253
  %v255 = vrot.slane %v94, 7
  %v256 = vrot.slane %v95, 7
  %v257 = vsel %vm165, %v255, %v256
  %v258 = vrot.slane %v96, 7
  %v259 = vrot.slane %v97, 7
  %v260 = vsel %vm165, %v258, %v259
  %v261 = vrot.slane %v98, 7
  %v262 = vrot.slane %v99, 7
  %v263 = vsel %vm165, %v261, %v262
  %v360 = vsel %vm165, 0.0, %v166
  %v361 = vsel %vm165, 0.0, %v168
  %v362 = vsel %vm165, 0.0, %v171
  %v363 = vsel %vm165, 0.0, %v174
  %v364 = vsel %vm165, 0.0, %v177
  %v365 = vsel %vm165, 0.0, %v180
  %v366 = vsel %vm165, 0.0, %v183
  %v367 = vsel %vm165, 0.0, %v186
  %v368 = vsel %vm165, 0.0, %v189
  %v369 = vsel %vm165, 0.0, %v192
  %v370 = vsel %vm165, 0.0, %v195
  %v371 = vsel %vm165, 0.0, %v198
  %v372 = vsel %vm165, 0.0, %v201
  %v373 = vsel %vm165, 0.0, %v204
  %v374 = vsel %vm165, 0.0, %v207
  %v375 = vsel %vm165, 0.0, %v210
  %v376 = vsel %vm165, 0.0, %v213
  %v377 = vsel %vm165, 0.0, %v216
  %v378 = vsel %vm165, 0.0, %v219
  %v379 = vsel %vm165, 0.0, %v222
  %v380 = vsel %vm165, 0.0, %v225
  %v381 = vsel %vm165, 0.0, %v228
  %v382 = vsel %vm165, 0.0, %v231
  %v383 = vsel %vm165, 0.0, %v234
  %v384 = vsel %vm165, 0.0, %v237
  %v385 = vsel %vm165, 0.0, %v240
  %v386 = vsel %vm165, 0.0, %v243
  %v387 = vsel %vm165, 0.0, %v246
  %v388 = vsel %vm165, 0.0, %v249
  %v389 = vsel %vm165, 0.0, %v252
  %v390 = vsel %vm165, 0.0, %v255
  %v391 = vsel %vm165, 0.0, %v258
  %v392 = vsel %vm165, 0.0, %v261
  %v393 = vsel %vm165, %v166, 0.0
  %v394 = vsel %vm165, %v169, 0.0
  %v395 = vsel %vm165, %v172, 0.0
  %v396 = vsel %vm165, %v175, 0.0
  %v397 = vsel %vm165, %v178, 0.0
  %v398 = vsel %vm165, %v181, 0.0
  %v399 = vsel %vm165, %v184, 0.0
  %v400 = vsel %vm165, %v187, 0.0
  %v401 = vsel %vm165, %v190, 0.0
  %v402 = vsel %vm165, %v193, 0.0
  %v403 = vsel %vm165, %v196, 0.0
  %v404 = vsel %vm165, %v199, 0.0
  %v405 = vsel %vm165, %v202, 0.0
  %v406 = vsel %vm165, %v205, 0.0
  %v407 = vsel %vm165, %v208, 0.0
  %v408 = vsel %vm165, %v211, 0.0
  %v409 = vsel %vm165, %v214, 0.0
  %v410 = vsel %vm165, %v217, 0.0
  %v411 = vsel %vm165, %v220, 0.0
  %v412 = vsel %vm165, %v223, 0.0
  %v413 = vsel %vm165, %v226, 0.0
  %v414 = vsel %vm165, %v229, 0.0
  %v415 = vsel %vm165, %v232, 0.0
  %v416 = vsel %vm165, %v235, 0.0
  %v417 = vsel %vm165, %v238, 0.0
  %v418 = vsel %vm165, %v241, 0.0
  %v419 = vsel %vm165, %v244, 0.0
  %v420 = vsel %vm165, %v247, 0.0
  %v421 = vsel %vm165, %v250, 0.0
  %v422 = vsel %vm165, %v253, 0.0
  %v423 = vsel %vm165, %v256, 0.0
  %v424 = vsel %vm165, %v259, 0.0
  %v425 = vsel %vm165, %v262, 0.0
  %vm488 = vcmask 1046528
  %v489 = vrot.slane %v360, 1
  %v490 = vrot.slane %v167, 1
  %v491 = vsel %vm488, %v489, %v490
  %v492 = vrot.slane %v393, 1
  %v493 = vsel %vm488, %v490, %v492
  %v494 = vrot.slane %v361, 1
  %v495 = vrot.slane %v170, 1
  %v496 = vsel %vm488, %v494, %v495
  %v497 = vrot.slane %v394, 1
  %v498 = vsel %vm488, %v495, %v497
  %v499 = vrot.slane %v362, 1
  %v500 = vrot.slane %v173, 1
  %v501 = vsel %vm488, %v499, %v500
  %v502 = vrot.slane %v395, 1
  %v503 = vsel %vm488, %v500, %v502
  %v504 = vrot.slane %v363, 1
  %v505 = vrot.slane %v176, 1
  %v506 = vsel %vm488, %v504, %v505
  %v507 = vrot.slane %v396, 1
  %v508 = vsel %vm488, %v505, %v507
  %v509 = vrot.slane %v364, 1
  %v510 = vrot.slane %v179, 1
  %v511 = vsel %vm488, %v509, %v510
  %v512 = vrot.slane %v397, 1
  %v513 = vsel %vm488, %v510, %v512
  %v514 = vrot.slane %v365, 1
  %v515 = vrot.slane %v182, 1
  %v516 = vsel %vm488, %v514, %v515
  %v517 = vrot.slane %v398, 1
  %v518 = vsel %vm488, %v515, %v517
  %v519 = vrot.slane %v366, 1
  %v520 = vrot.slane %v185, 1
  %v521 = vsel %vm488, %v519, %v520
  %v522 = vrot.slane %v399, 1
  %v523 = vsel %vm488, %v520, %v522
  %v524 = vrot.slane %v367, 1
  %v525 = vrot.slane %v188, 1
  %v526 = vsel %vm488, %v524, %v525
  %v527 = vrot.slane %v400, 1
  %v528 = vsel %vm488, %v525, %v527
  %v529 = vrot.slane %v368, 1
  %v530 = vrot.slane %v191, 1
  %v531 = vsel %vm488, %v529, %v530
  %v532 = vrot.slane %v401, 1
  %v533 = vsel %vm488, %v530, %v532
  %v534 = vrot.slane %v369, 1
  %v535 = vrot.slane %v194, 1
  %v536 = vsel %vm488, %v534, %v535
  %v537 = vrot.slane %v402, 1
  %v538 = vsel %vm488, %v535, %v537
  %v539 = vrot.slane %v370, 1
  %v540 = vrot.slane %v197, 1
  %v541 = vsel %vm488, %v539, %v540
  %v542 = vrot.slane %v403, 1
  %v543 = vsel %vm488, %v540, %v542
  %v544 = vrot.slane %v371, 1
  %v545 = vrot.slane %v200, 1
  %v546 = vsel %vm488, %v544, %v545
  %v547 = vrot.slane %v404, 1
  %v548 = vsel %vm488, %v545, %v547
  %v549 = vrot.slane %v372, 1
  %v550 = vrot.slane %v203, 1
  %v551 = vsel %vm488, %v549, %v550
  %v552 = vrot.slane %v405, 1
  %v553 = vsel %vm488, %v550, %v552
  %v554 = vrot.slane %v373, 1
  %v555 = vrot.slane %v206, 1
  %v556 = vsel %vm488, %v554, %v555
  %v557 = vrot.slane %v406, 1
  %v558 = vsel %vm488, %v555, %v557
  %v559 = vrot.slane %v374, 1
  %v560 = vrot.slane %v209, 1
  %v561 = vsel %vm488, %v559, %v560
  %v562 = vrot.slane %v407, 1
  %v563 = vsel %vm488, %v560, %v562
  %v564 = vrot.slane %v375, 1
  %v565 = vrot.slane %v212, 1
  %v566 = vsel %vm488, %v564, %v565
  %v567 = vrot.slane %v408, 1
  %v568 = vsel %vm488, %v565, %v567
  %v569 = vrot.slane %v377, 1
  %v570 = vrot.slane %v218, 1
  %v571 = vsel %vm488, %v569, %v570
  %v572 = vrot.slane %v410, 1
  %v573 = vsel %vm488, %v570, %v572
  %v574 = vrot.slane %v378, 1
  %v575 = vrot.slane %v221, 1
  %v576 = vsel %vm488, %v574, %v575
  %v577 = vrot.slane %v411, 1
  %v578 = vsel %vm488, %v575, %v577
  %v579 = vrot.slane %v379, 1
  %v580 = vrot.slane %v224, 1
  %v581 = vsel %vm488, %v579, %v580
  %v582 = vrot.slane %v412, 1
  %v583 = vsel %vm488, %v580, %v582
  %v584 = vrot.slane %v380, 1
  %v585 = vrot.slane %v227, 1
  %v586 = vsel %vm488, %v584, %v585
  %v587 = vrot.slane %v413, 1
  %v588 = vsel %vm488, %v585, %v587
  %v589 = vrot.slane %v381, 1
  %v590 = vrot.slane %v230, 1
  %v591 = vsel %vm488, %v589, %v590
  %v592 = vrot.slane %v414, 1
  %v593 = vsel %vm488, %v590, %v592
  %v594 = vrot.slane %v382, 1
  %v595 = vrot.slane %v233, 1
  %v596 = vsel %vm488, %v594, %v595
  %v597 = vrot.slane %v415, 1
  %v598 = vsel %vm488, %v595, %v597
  %v599 = vrot.slane %v383, 1
  %v600 = vrot.slane %v236, 1
  %v601 = vsel %vm488, %v599, %v600
  %v602 = vrot.slane %v416, 1
  %v603 = vsel %vm488, %v600, %v602
  %v604 = vrot.slane %v384, 1
  %v605 = vrot.slane %v239, 1
  %v606 = vsel %vm488, %v604, %v605
  %v607 = vrot.slane %v417, 1
  %v608 = vsel %vm488, %v605, %v607
  %v609 = vrot.slane %v385, 1
  %v610 = vrot.slane %v242, 1
  %v611 = vsel %vm488, %v609, %v610
  %v612 = vrot.slane %v418, 1
  %v613 = vsel %vm488, %v610, %v612
  %v614 = vrot.slane %v386, 1
  %v615 = vrot.slane %v245, 1
  %v616 = vsel %vm488, %v614, %v615
  %v617 = vrot.slane %v419, 1
  %v618 = vsel %vm488, %v615, %v617
  %v619 = vrot.slane %v387, 1
  %v620 = vrot.slane %v248, 1
  %v621 = vsel %vm488, %v619, %v620
  %v622 = vrot.slane %v420, 1
  %v623 = vsel %vm488, %v620, %v622
  %v624 = vrot.slane %v388, 1
  %v625 = vrot.slane %v251, 1
  %v626 = vsel %vm488, %v624, %v625
  %v627 = vrot.slane %v421, 1
  %v628 = vsel %vm488, %v625, %v627
  %v629 = vrot.slane %v389, 1
  %v630 = vrot.slane %v254, 1
  %v631 = vsel %vm488, %v629, %v630
  %v632 = vrot.slane %v422, 1
  %v633 = vsel %vm488, %v630, %v632
  %v634 = vrot.slane %v390, 1
  %v635 = vrot.slane %v257, 1
  %v636 = vsel %vm488, %v634, %v635
  %v637 = vrot.slane %v423, 1
  %v638 = vsel %vm488, %v635, %v637
  %v639 = vrot.slane %v391, 1
  %v640 = vrot.slane %v260, 1
  %v641 = vsel %vm488, %v639, %v640
  %v642 = vrot.slane %v424, 1
  %v643 = vsel %vm488, %v640, %v642
  %644 = vrot.lane.b32.xlu0 %v491, 3
  %v645 = vpop.permute.xlu0 %644
  %646 = vrot.lane.b32.xlu0 %v493, 3
  %v647 = vpop.permute.xlu0 %646
  %648 = vrot.lane.b32.xlu0 %v496, 3
  %v649 = vpop.permute.xlu0 %648
  %650 = vrot.lane.b32.xlu0 %v498, 3
  %v651 = vpop.permute.xlu0 %650
  %652 = vrot.lane.b32.xlu0 %v501, 3
  %v653 = vpop.permute.xlu0 %652
  %654 = vrot.lane.b32.xlu0 %v503, 3
  %v655 = vpop.permute.xlu0 %654
  %656 = vrot.lane.b32.xlu0 %v506, 3
  %v657 = vpop.permute.xlu0 %656
  %658 = vrot.lane.b32.xlu0 %v508, 3
  %v659 = vpop.permute.xlu0 %658
  %660 = vrot.lane.b32.xlu0 %v511, 3
  %v661 = vpop.permute.xlu0 %660
  %662 = vrot.lane.b32.xlu0 %v513, 3
  %v663 = vpop.permute.xlu0 %662
  %664 = vrot.lane.b32.xlu0 %v516, 3
  %v665 = vpop.permute.xlu0 %664
  %666 = vrot.lane.b32.xlu0 %v518, 3
  %v667 = vpop.permute.xlu0 %666
  %668 = vrot.lane.b32.xlu0 %v521, 3
  %v669 = vpop.permute.xlu0 %668
  %670 = vrot.lane.b32.xlu0 %v523, 3
  %v671 = vpop.permute.xlu0 %670
  %672 = vrot.lane.b32.xlu0 %v526, 3
  %v673 = vpop.permute.xlu0 %672
  %674 = vrot.lane.b32.xlu0 %v528, 3
  %v675 = vpop.permute.xlu0 %674
  %676 = vrot.lane.b32.xlu0 %v531, 3
  %v677 = vpop.permute.xlu0 %676
  %678 = vrot.lane.b32.xlu0 %v533, 3
  %v679 = vpop.permute.xlu0 %678
  %680 = vrot.lane.b32.xlu0 %v536, 3
  %v681 = vpop.permute.xlu0 %680
  %682 = vrot.lane.b32.xlu0 %v538, 3
  %v683 = vpop.permute.xlu0 %682
  %684 = vrot.lane.b32.xlu0 %v541, 3
  %v685 = vpop.permute.xlu0 %684
  %686 = vrot.lane.b32.xlu0 %v543, 3
  %v687 = vpop.permute.xlu0 %686
  %688 = vrot.lane.b32.xlu0 %v546, 3
  %v689 = vpop.permute.xlu0 %688
  %690 = vrot.lane.b32.xlu0 %v548, 3
  %v691 = vpop.permute.xlu0 %690
  %692 = vrot.lane.b32.xlu0 %v551, 3
  %v693 = vpop.permute.xlu0 %692
  %694 = vrot.lane.b32.xlu0 %v553, 3
  %v695 = vpop.permute.xlu0 %694
  %696 = vrot.lane.b32.xlu0 %v556, 3
  %v697 = vpop.permute.xlu0 %696
  %698 = vrot.lane.b32.xlu0 %v558, 3
  %v699 = vpop.permute.xlu0 %698
  %700 = vrot.lane.b32.xlu0 %v561, 3
  %v701 = vpop.permute.xlu0 %700
  %702 = vrot.lane.b32.xlu0 %v563, 3
  %v703 = vpop.permute.xlu0 %702
  %704 = vrot.lane.b32.xlu0 %v566, 3
  %v705 = vpop.permute.xlu0 %704
  %706 = vrot.lane.b32.xlu0 %v568, 3
  %v707 = vpop.permute.xlu0 %706
  %708 = vrot.lane.b32.xlu0 %v571, 3
  %v709 = vpop.permute.xlu0 %708
  %710 = vrot.lane.b32.xlu0 %v573, 3
  %v711 = vpop.permute.xlu0 %710
  %712 = vrot.lane.b32.xlu0 %v576, 3
  %v713 = vpop.permute.xlu0 %712
  %714 = vrot.lane.b32.xlu0 %v578, 3
  %v715 = vpop.permute.xlu0 %714
  %716 = vrot.lane.b32.xlu0 %v581, 3
  %v717 = vpop.permute.xlu0 %716
  %718 = vrot.lane.b32.xlu0 %v583, 3
  %v719 = vpop.permute.xlu0 %718
  %720 = vrot.lane.b32.xlu0 %v586, 3
  %v721 = vpop.permute.xlu0 %720
  %722 = vrot.lane.b32.xlu0 %v588, 3
  %v723 = vpop.permute.xlu0 %722
  %724 = vrot.lane.b32.xlu0 %v591, 3
  %v725 = vpop.permute.xlu0 %724
  %726 = vrot.lane.b32.xlu0 %v593, 3
  %v727 = vpop.permute.xlu0 %726
  %728 = vrot.lane.b32.xlu0 %v596, 3
  %v729 = vpop.permute.xlu0 %728
  %730 = vrot.lane.b32.xlu0 %v598, 3
  %v731 = vpop.permute.xlu0 %730
  %732 = vrot.lane.b32.xlu0 %v601, 3
  %v733 = vpop.permute.xlu0 %732
  %734 = vrot.lane.b32.xlu0 %v603, 3
  %v735 = vpop.permute.xlu0 %734
  %736 = vrot.lane.b32.xlu0 %v606, 3
  %v737 = vpop.permute.xlu0 %736
  %738 = vrot.lane.b32.xlu0 %v608, 3
  %v739 = vpop.permute.xlu0 %738
  %740 = vrot.lane.b32.xlu0 %v611, 3
  %v741 = vpop.permute.xlu0 %740
  %742 = vrot.lane.b32.xlu0 %v613, 3
  %v743 = vpop.permute.xlu0 %742
  %744 = vrot.lane.b32.xlu0 %v616, 3
  %v745 = vpop.permute.xlu0 %744
  %746 = vrot.lane.b32.xlu0 %v618, 3
  %v747 = vpop.permute.xlu0 %746
  %748 = vrot.lane.b32.xlu0 %v621, 3
  %v749 = vpop.permute.xlu0 %748
  %750 = vrot.lane.b32.xlu0 %v623, 3
  %v751 = vpop.permute.xlu0 %750
  %752 = vrot.lane.b32.xlu0 %v626, 3
  %v753 = vpop.permute.xlu0 %752
  %754 = vrot.lane.b32.xlu0 %v628, 3
  %v755 = vpop.permute.xlu0 %754
  %756 = vrot.lane.b32.xlu0 %v631, 3
  %v757 = vpop.permute.xlu0 %756
  %758 = vrot.lane.b32.xlu0 %v633, 3
  %v759 = vpop.permute.xlu0 %758
  %760 = vrot.lane.b32.xlu0 %v636, 3
  %v761 = vpop.permute.xlu0 %760
  %762 = vrot.lane.b32.xlu0 %v638, 3
  %v763 = vpop.permute.xlu0 %762
  %764 = vrot.lane.b32.xlu0 %v641, 3
  %v765 = vpop.permute.xlu0 %764
  %766 = vrot.lane.b32.xlu0 %v643, 3
  %v767 = vpop.permute.xlu0 %766
  %vm830 = vcmask 1045504
  %v831 = vrot.slane %v360, 2
  %v832 = vrot.slane %v167, 2
  %v833 = vsel %vm830, %v831, %v832
  %v834 = vrot.slane %v393, 2
  %v835 = vsel %vm830, %v832, %v834
  %v836 = vrot.slane %v361, 2
  %v837 = vrot.slane %v170, 2
  %v838 = vsel %vm830, %v836, %v837
  %v839 = vrot.slane %v394, 2
  %v840 = vsel %vm830, %v837, %v839
  %v841 = vrot.slane %v362, 2
  %v842 = vrot.slane %v173, 2
  %v843 = vsel %vm830, %v841, %v842
  %v844 = vrot.slane %v395, 2
  %v845 = vsel %vm830, %v842, %v844
  %v846 = vrot.slane %v363, 2
  %v847 = vrot.slane %v176, 2
  %v848 = vsel %vm830, %v846, %v847
  %v849 = vrot.slane %v396, 2
  %v850 = vsel %vm830, %v847, %v849
  %v851 = vrot.slane %v364, 2
  %v852 = vrot.slane %v179, 2
  %v853 = vsel %vm830, %v851, %v852
  %v854 = vrot.slane %v397, 2
  %v855 = vsel %vm830, %v852, %v854
  %v856 = vrot.slane %v365, 2
  %v857 = vrot.slane %v182, 2
  %v858 = vsel %vm830, %v856, %v857
  %v859 = vrot.slane %v398, 2
  %v860 = vsel %vm830, %v857, %v859
  %v861 = vrot.slane %v366, 2
  %v862 = vrot.slane %v185, 2
  %v863 = vsel %vm830, %v861, %v862
  %v864 = vrot.slane %v399, 2
  %v865 = vsel %vm830, %v862, %v864
  %v866 = vrot.slane %v367, 2
  %v867 = vrot.slane %v188, 2
  %v868 = vsel %vm830, %v866, %v867
  %v869 = vrot.slane %v400, 2
  %v870 = vsel %vm830, %v867, %v869
  %v871 = vrot.slane %v368, 2
  %v872 = vrot.slane %v191, 2
  %v873 = vsel %vm830, %v871, %v872
  %v874 = vrot.slane %v401, 2
  %v875 = vsel %vm830, %v872, %v874
  %v876 = vrot.slane %v369, 2
  %v877 = vrot.slane %v194, 2
  %v878 = vsel %vm830, %v876, %v877
  %v879 = vrot.slane %v402, 2
  %v880 = vsel %vm830, %v877, %v879
  %v881 = vrot.slane %v370, 2
  %v882 = vrot.slane %v197, 2
  %v883 = vsel %vm830, %v881, %v882
  %v884 = vrot.slane %v403, 2
  %v885 = vsel %vm830, %v882, %v884
  %v886 = vrot.slane %v371, 2
  %v887 = vrot.slane %v200, 2
  %v888 = vsel %vm830, %v886, %v887
  %v889 = vrot.slane %v404, 2
  %v890 = vsel %vm830, %v887, %v889
  %v891 = vrot.slane %v372, 2
  %v892 = vrot.slane %v203, 2
  %v893 = vsel %vm830, %v891, %v892
  %v894 = vrot.slane %v405, 2
  %v895 = vsel %vm830, %v892, %v894
  %v896 = vrot.slane %v373, 2
  %v897 = vrot.slane %v206, 2
  %v898 = vsel %vm830, %v896, %v897
  %v899 = vrot.slane %v406, 2
  %v900 = vsel %vm830, %v897, %v899
  %v901 = vrot.slane %v374, 2
  %v902 = vrot.slane %v209, 2
  %v903 = vsel %vm830, %v901, %v902
  %v904 = vrot.slane %v407, 2
  %v905 = vsel %vm830, %v902, %v904
  %v906 = vrot.slane %v375, 2
  %v907 = vrot.slane %v212, 2
  %v908 = vsel %vm830, %v906, %v907
  %v909 = vrot.slane %v408, 2
  %v910 = vsel %vm830, %v907, %v909
  %v911 = vrot.slane %v377, 2
  %v912 = vrot.slane %v218, 2
  %v913 = vsel %vm830, %v911, %v912
  %v914 = vrot.slane %v410, 2
  %v915 = vsel %vm830, %v912, %v914
  %v916 = vrot.slane %v378, 2
  %v917 = vrot.slane %v221, 2
  %v918 = vsel %vm830, %v916, %v917
  %v919 = vrot.slane %v411, 2
  %v920 = vsel %vm830, %v917, %v919
  %v921 = vrot.slane %v379, 2
  %v922 = vrot.slane %v224, 2
  %v923 = vsel %vm830, %v921, %v922
  %v924 = vrot.slane %v412, 2
  %v925 = vsel %vm830, %v922, %v924
  %v926 = vrot.slane %v380, 2
  %v927 = vrot.slane %v227, 2
  %v928 = vsel %vm830, %v926, %v927
  %v929 = vrot.slane %v413, 2
  %v930 = vsel %vm830, %v927, %v929
  %v931 = vrot.slane %v381, 2
  %v932 = vrot.slane %v230, 2
  %v933 = vsel %vm830, %v931, %v932
  %v934 = vrot.slane %v414, 2
  %v935 = vsel %vm830, %v932, %v934
  %v936 = vrot.slane %v382, 2
  %v937 = vrot.slane %v233, 2
  %v938 = vsel %vm830, %v936, %v937
  %v939 = vrot.slane %v415, 2
  %v940 = vsel %vm830, %v937, %v939
  %v941 = vrot.slane %v383, 2
  %v942 = vrot.slane %v236, 2
  %v943 = vsel %vm830, %v941, %v942
  %v944 = vrot.slane %v416, 2
  %v945 = vsel %vm830, %v942, %v944
  %v946 = vrot.slane %v384, 2
  %v947 = vrot.slane %v239, 2
  %v948 = vsel %vm830, %v946, %v947
  %v949 = vrot.slane %v417, 2
  %v950 = vsel %vm830, %v947, %v949
  %v951 = vrot.slane %v385, 2
  %v952 = vrot.slane %v242, 2
  %v953 = vsel %vm830, %v951, %v952
  %v954 = vrot.slane %v418, 2
  %v955 = vsel %vm830, %v952, %v954
  %v956 = vrot.slane %v386, 2
  %v957 = vrot.slane %v245, 2
  %v958 = vsel %vm830, %v956, %v957
  %v959 = vrot.slane %v419, 2
  %v960 = vsel %vm830, %v957, %v959
  %v961 = vrot.slane %v387, 2
  %v962 = vrot.slane %v248, 2
  %v963 = vsel %vm830, %v961, %v962
  %v964 = vrot.slane %v420, 2
  %v965 = vsel %vm830, %v962, %v964
  %v966 = vrot.slane %v388, 2
  %v967 = vrot.slane %v251, 2
  %v968 = vsel %vm830, %v966, %v967
  %v969 = vrot.slane %v421, 2
  %v970 = vsel %vm830, %v967, %v969
  %v971 = vrot.slane %v389, 2
  %v972 = vrot.slane %v254, 2
  %v973 = vsel %vm830, %v971, %v972
  %v974 = vrot.slane %v422, 2
  %v975 = vsel %vm830, %v972, %v974
  %v976 = vrot.slane %v390, 2
  %v977 = vrot.slane %v257, 2
  %v978 = vsel %vm830, %v976, %v977
  %v979 = vrot.slane %v423, 2
  %v980 = vsel %vm830, %v977, %v979
  %v981 = vrot.slane %v391, 2
  %v982 = vrot.slane %v260, 2
  %v983 = vsel %vm830, %v981, %v982
  %v984 = vrot.slane %v424, 2
  %v985 = vsel %vm830, %v982, %v984
  %986 = vrot.lane.b32.xlu0 %v833, 6
  %v987 = vpop.permute.xlu0 %986
  %988 = vrot.lane.b32.xlu0 %v835, 6
  %v989 = vpop.permute.xlu0 %988
  %990 = vrot.lane.b32.xlu0 %v838, 6
  %v991 = vpop.permute.xlu0 %990
  %992 = vrot.lane.b32.xlu0 %v840, 6
  %v993 = vpop.permute.xlu0 %992
  %994 = vrot.lane.b32.xlu0 %v843, 6
  %v995 = vpop.permute.xlu0 %994
  %996 = vrot.lane.b32.xlu0 %v845, 6
  %v997 = vpop.permute.xlu0 %996
  %998 = vrot.lane.b32.xlu0 %v848, 6
  %v999 = vpop.permute.xlu0 %998
  %1000 = vrot.lane.b32.xlu0 %v850, 6
  %v1001 = vpop.permute.xlu0 %1000
  %1002 = vrot.lane.b32.xlu0 %v853, 6
  %v1003 = vpop.permute.xlu0 %1002
  %1004 = vrot.lane.b32.xlu0 %v855, 6
  %v1005 = vpop.permute.xlu0 %1004
  %1006 = vrot.lane.b32.xlu0 %v858, 6
  %v1007 = vpop.permute.xlu0 %1006
  %1008 = vrot.lane.b32.xlu0 %v860, 6
  %v1009 = vpop.permute.xlu0 %1008
  %1010 = vrot.lane.b32.xlu0 %v863, 6
  %v1011 = vpop.permute.xlu0 %1010
  %1012 = vrot.lane.b32.xlu0 %v865, 6
  %v1013 = vpop.permute.xlu0 %1012
  %1014 = vrot.lane.b32.xlu0 %v868, 6
  %v1015 = vpop.permute.xlu0 %1014
  %1016 = vrot.lane.b32.xlu0 %v870, 6
  %v1017 = vpop.permute.xlu0 %1016
  %1018 = vrot.lane.b32.xlu0 %v873, 6
  %v1019 = vpop.permute.xlu0 %1018
  %1020 = vrot.lane.b32.xlu0 %v875, 6
  %v1021 = vpop.permute.xlu0 %1020
  %1022 = vrot.lane.b32.xlu0 %v878, 6
  %v1023 = vpop.permute.xlu0 %1022
  %1024 = vrot.lane.b32.xlu0 %v880, 6
  %v1025 = vpop.permute.xlu0 %1024
  %1026 = vrot.lane.b32.xlu0 %v883, 6
  %v1027 = vpop.permute.xlu0 %1026
  %1028 = vrot.lane.b32.xlu0 %v885, 6
  %v1029 = vpop.permute.xlu0 %1028
  %1030 = vrot.lane.b32.xlu0 %v888, 6
  %v1031 = vpop.permute.xlu0 %1030
  %1032 = vrot.lane.b32.xlu0 %v890, 6
  %v1033 = vpop.permute.xlu0 %1032
  %1034 = vrot.lane.b32.xlu0 %v893, 6
  %v1035 = vpop.permute.xlu0 %1034
  %1036 = vrot.lane.b32.xlu0 %v895, 6
  %v1037 = vpop.permute.xlu0 %1036
  %1038 = vrot.lane.b32.xlu0 %v898, 6
  %v1039 = vpop.permute.xlu0 %1038
  %1040 = vrot.lane.b32.xlu0 %v900, 6
  %v1041 = vpop.permute.xlu0 %1040
  %1042 = vrot.lane.b32.xlu0 %v903, 6
  %v1043 = vpop.permute.xlu0 %1042
  %1044 = vrot.lane.b32.xlu0 %v905, 6
  %v1045 = vpop.permute.xlu0 %1044
  %1046 = vrot.lane.b32.xlu0 %v908, 6
  %v1047 = vpop.permute.xlu0 %1046
  %1048 = vrot.lane.b32.xlu0 %v910, 6
  %v1049 = vpop.permute.xlu0 %1048
  %1050 = vrot.lane.b32.xlu0 %v913, 6
  %v1051 = vpop.permute.xlu0 %1050
  %1052 = vrot.lane.b32.xlu0 %v915, 6
  %v1053 = vpop.permute.xlu0 %1052
  %1054 = vrot.lane.b32.xlu0 %v918, 6
  %v1055 = vpop.permute.xlu0 %1054
  %1056 = vrot.lane.b32.xlu0 %v920, 6
  %v1057 = vpop.permute.xlu0 %1056
  %1058 = vrot.lane.b32.xlu0 %v923, 6
  %v1059 = vpop.permute.xlu0 %1058
  %1060 = vrot.lane.b32.xlu0 %v925, 6
  %v1061 = vpop.permute.xlu0 %1060
  %1062 = vrot.lane.b32.xlu0 %v928, 6
  %v1063 = vpop.permute.xlu0 %1062
  %1064 = vrot.lane.b32.xlu0 %v930, 6
  %v1065 = vpop.permute.xlu0 %1064
  %1066 = vrot.lane.b32.xlu0 %v933, 6
  %v1067 = vpop.permute.xlu0 %1066
  %1068 = vrot.lane.b32.xlu0 %v935, 6
  %v1069 = vpop.permute.xlu0 %1068
  %1070 = vrot.lane.b32.xlu0 %v938, 6
  %v1071 = vpop.permute.xlu0 %1070
  %1072 = vrot.lane.b32.xlu0 %v940, 6
  %v1073 = vpop.permute.xlu0 %1072
  %1074 = vrot.lane.b32.xlu0 %v943, 6
  %v1075 = vpop.permute.xlu0 %1074
  %1076 = vrot.lane.b32.xlu0 %v945, 6
  %v1077 = vpop.permute.xlu0 %1076
  %1078 = vrot.lane.b32.xlu0 %v948, 6
  %v1079 = vpop.permute.xlu0 %1078
  %1080 = vrot.lane.b32.xlu0 %v950, 6
  %v1081 = vpop.permute.xlu0 %1080
  %1082 = vrot.lane.b32.xlu0 %v953, 6
  %v1083 = vpop.permute.xlu0 %1082
  %1084 = vrot.lane.b32.xlu0 %v955, 6
  %v1085 = vpop.permute.xlu0 %1084
  %1086 = vrot.lane.b32.xlu0 %v958, 6
  %v1087 = vpop.permute.xlu0 %1086
  %1088 = vrot.lane.b32.xlu0 %v960, 6
  %v1089 = vpop.permute.xlu0 %1088
  %1090 = vrot.lane.b32.xlu0 %v963, 6
  %v1091 = vpop.permute.xlu0 %1090
  %1092 = vrot.lane.b32.xlu0 %v965, 6
  %v1093 = vpop.permute.xlu0 %1092
  %1094 = vrot.lane.b32.xlu0 %v968, 6
  %v1095 = vpop.permute.xlu0 %1094
  %1096 = vrot.lane.b32.xlu0 %v970, 6
  %v1097 = vpop.permute.xlu0 %1096
  %1098 = vrot.lane.b32.xlu0 %v973, 6
  %v1099 = vpop.permute.xlu0 %1098
  %1100 = vrot.lane.b32.xlu0 %v975, 6
  %v1101 = vpop.permute.xlu0 %1100
  %1102 = vrot.lane.b32.xlu0 %v978, 6
  %v1103 = vpop.permute.xlu0 %1102
  %1104 = vrot.lane.b32.xlu0 %v980, 6
  %v1105 = vpop.permute.xlu0 %1104
  %1106 = vrot.lane.b32.xlu0 %v983, 6
  %v1107 = vpop.permute.xlu0 %1106
  %1108 = vrot.lane.b32.xlu0 %v985, 6
  %v1109 = vpop.permute.xlu0 %1108
  %1174 = vrot.lane.b32.xlu0 %v361, 9
  %v1175 = vpop.permute.xlu0 %1174
  %1176 = vrot.lane.b32.xlu0 %v170, 9
  %v1177 = vpop.permute.xlu0 %1176
  %1178 = vrot.lane.b32.xlu0 %v362, 9
  %v1179 = vpop.permute.xlu0 %1178
  %1180 = vrot.lane.b32.xlu0 %v173, 9
  %v1181 = vpop.permute.xlu0 %1180
  %1182 = vrot.lane.b32.xlu0 %v363, 9
  %v1183 = vpop.permute.xlu0 %1182
  %1184 = vrot.lane.b32.xlu0 %v176, 9
  %v1185 = vpop.permute.xlu0 %1184
  %1186 = vrot.lane.b32.xlu0 %v364, 9
  %v1187 = vpop.permute.xlu0 %1186
  %1188 = vrot.lane.b32.xlu0 %v179, 9
  %v1189 = vpop.permute.xlu0 %1188
  %1190 = vrot.lane.b32.xlu0 %v365, 9
  %v1191 = vpop.permute.xlu0 %1190
  %1192 = vrot.lane.b32.xlu0 %v182, 9
  %v1193 = vpop.permute.xlu0 %1192
  %1194 = vrot.lane.b32.xlu0 %v366, 9
  %v1195 = vpop.permute.xlu0 %1194
  %1196 = vrot.lane.b32.xlu0 %v185, 9
  %v1197 = vpop.permute.xlu0 %1196
  %1198 = vrot.lane.b32.xlu0 %v367, 9
  %v1199 = vpop.permute.xlu0 %1198
  %1200 = vrot.lane.b32.xlu0 %v188, 9
  %v1201 = vpop.permute.xlu0 %1200
  %1202 = vrot.lane.b32.xlu0 %v368, 9
  %v1203 = vpop.permute.xlu0 %1202
  %1204 = vrot.lane.b32.xlu0 %v191, 9
  %v1205 = vpop.permute.xlu0 %1204
  %1206 = vrot.lane.b32.xlu0 %v369, 9
  %v1207 = vpop.permute.xlu0 %1206
  %1208 = vrot.lane.b32.xlu0 %v194, 9
  %v1209 = vpop.permute.xlu0 %1208
  %1210 = vrot.lane.b32.xlu0 %v370, 9
  %v1211 = vpop.permute.xlu0 %1210
  %1212 = vrot.lane.b32.xlu0 %v197, 9
  %v1213 = vpop.permute.xlu0 %1212
  %1214 = vrot.lane.b32.xlu0 %v371, 9
  %v1215 = vpop.permute.xlu0 %1214
  %1216 = vrot.lane.b32.xlu0 %v200, 9
  %v1217 = vpop.permute.xlu0 %1216
  %1218 = vrot.lane.b32.xlu0 %v372, 9
  %v1219 = vpop.permute.xlu0 %1218
  %1220 = vrot.lane.b32.xlu0 %v203, 9
  %v1221 = vpop.permute.xlu0 %1220
  %1222 = vrot.lane.b32.xlu0 %v373, 9
  %v1223 = vpop.permute.xlu0 %1222
  %1224 = vrot.lane.b32.xlu0 %v206, 9
  %v1225 = vpop.permute.xlu0 %1224
  %1226 = vrot.lane.b32.xlu0 %v374, 9
  %v1227 = vpop.permute.xlu0 %1226
  %1228 = vrot.lane.b32.xlu0 %v209, 9
  %v1229 = vpop.permute.xlu0 %1228
  %1230 = vrot.lane.b32.xlu0 %v375, 9
  %v1231 = vpop.permute.xlu0 %1230
  %1232 = vrot.lane.b32.xlu0 %v212, 9
  %v1233 = vpop.permute.xlu0 %1232
  %1234 = vrot.lane.b32.xlu0 %v376, 9
  %v1235 = vpop.permute.xlu0 %1234
  %1236 = vrot.lane.b32.xlu0 %v215, 9
  %v1237 = vpop.permute.xlu0 %1236
  %1238 = vrot.lane.b32.xlu0 %v377, 9
  %v1239 = vpop.permute.xlu0 %1238
  %1240 = vrot.lane.b32.xlu0 %v218, 9
  %v1241 = vpop.permute.xlu0 %1240
  %1242 = vrot.lane.b32.xlu0 %v378, 9
  %v1243 = vpop.permute.xlu0 %1242
  %1244 = vrot.lane.b32.xlu0 %v221, 9
  %v1245 = vpop.permute.xlu0 %1244
  %1246 = vrot.lane.b32.xlu0 %v379, 9
  %v1247 = vpop.permute.xlu0 %1246
  %1248 = vrot.lane.b32.xlu0 %v224, 9
  %v1249 = vpop.permute.xlu0 %1248
  %1250 = vrot.lane.b32.xlu0 %v380, 9
  %v1251 = vpop.permute.xlu0 %1250
  %1252 = vrot.lane.b32.xlu0 %v227, 9
  %v1253 = vpop.permute.xlu0 %1252
  %1254 = vrot.lane.b32.xlu0 %v381, 9
  %v1255 = vpop.permute.xlu0 %1254
  %1256 = vrot.lane.b32.xlu0 %v230, 9
  %v1257 = vpop.permute.xlu0 %1256
  %1258 = vrot.lane.b32.xlu0 %v382, 9
  %v1259 = vpop.permute.xlu0 %1258
  %1260 = vrot.lane.b32.xlu0 %v233, 9
  %v1261 = vpop.permute.xlu0 %1260
  %1262 = vrot.lane.b32.xlu0 %v383, 9
  %v1263 = vpop.permute.xlu0 %1262
  %1264 = vrot.lane.b32.xlu0 %v236, 9
  %v1265 = vpop.permute.xlu0 %1264
  %1266 = vrot.lane.b32.xlu0 %v384, 9
  %v1267 = vpop.permute.xlu0 %1266
  %1268 = vrot.lane.b32.xlu0 %v239, 9
  %v1269 = vpop.permute.xlu0 %1268
  %1270 = vrot.lane.b32.xlu0 %v385, 9
  %v1271 = vpop.permute.xlu0 %1270
  %1272 = vrot.lane.b32.xlu0 %v242, 9
  %v1273 = vpop.permute.xlu0 %1272
  %1274 = vrot.lane.b32.xlu0 %v386, 9
  %v1275 = vpop.permute.xlu0 %1274
  %1276 = vrot.lane.b32.xlu0 %v245, 9
  %v1277 = vpop.permute.xlu0 %1276
  %1278 = vrot.lane.b32.xlu0 %v387, 9
  %v1279 = vpop.permute.xlu0 %1278
  %1280 = vrot.lane.b32.xlu0 %v248, 9
  %v1281 = vpop.permute.xlu0 %1280
  %1282 = vrot.lane.b32.xlu0 %v388, 9
  %v1283 = vpop.permute.xlu0 %1282
  %1284 = vrot.lane.b32.xlu0 %v251, 9
  %v1285 = vpop.permute.xlu0 %1284
  %1286 = vrot.lane.b32.xlu0 %v389, 9
  %v1287 = vpop.permute.xlu0 %1286
  %1288 = vrot.lane.b32.xlu0 %v254, 9
  %v1289 = vpop.permute.xlu0 %1288
  %1290 = vrot.lane.b32.xlu0 %v390, 9
  %v1291 = vpop.permute.xlu0 %1290
  %1292 = vrot.lane.b32.xlu0 %v257, 9
  %v1293 = vpop.permute.xlu0 %1292
  %1294 = vrot.lane.b32.xlu0 %v391, 9
  %v1295 = vpop.permute.xlu0 %1294
  %1296 = vrot.lane.b32.xlu0 %v260, 9
  %v1297 = vpop.permute.xlu0 %1296
  %1298 = vrot.lane.b32.xlu0 %v392, 9
  %v1299 = vpop.permute.xlu0 %1298
  %1300 = vrot.lane.b32.xlu0 %v263, 9
  %v1301 = vpop.permute.xlu0 %1300
  %v1368 = vrot.slane %v376, 1
  %v1369 = vrot.slane %v215, 1
  %v1370 = vsel %vm488, %v1368, %v1369
  %v1371 = vrot.slane %v409, 1
  %v1372 = vsel %vm488, %v1369, %v1371
  %v1373 = vrot.slane %v392, 1
  %v1374 = vrot.slane %v263, 1
  %v1375 = vsel %vm488, %v1373, %v1374
  %v1376 = vrot.slane %v425, 1
  %v1377 = vsel %vm488, %v1374, %v1376
  %1378 = vrot.lane.b32.xlu0 %v496, 12
  %v1379 = vpop.permute.xlu0 %1378
  %1380 = vrot.lane.b32.xlu0 %v498, 12
  %v1381 = vpop.permute.xlu0 %1380
  %1382 = vrot.lane.b32.xlu0 %v501, 12
  %v1383 = vpop.permute.xlu0 %1382
  %1384 = vrot.lane.b32.xlu0 %v503, 12
  %v1385 = vpop.permute.xlu0 %1384
  %1386 = vrot.lane.b32.xlu0 %v506, 12
  %v1387 = vpop.permute.xlu0 %1386
  %1388 = vrot.lane.b32.xlu0 %v508, 12
  %v1389 = vpop.permute.xlu0 %1388
  %1390 = vrot.lane.b32.xlu0 %v511, 12
  %v1391 = vpop.permute.xlu0 %1390
  %1392 = vrot.lane.b32.xlu0 %v513, 12
  %v1393 = vpop.permute.xlu0 %1392
  %1394 = vrot.lane.b32.xlu0 %v516, 12
  %v1395 = vpop.permute.xlu0 %1394
  %1396 = vrot.lane.b32.xlu0 %v518, 12
  %v1397 = vpop.permute.xlu0 %1396
  %1398 = vrot.lane.b32.xlu0 %v521, 12
  %v1399 = vpop.permute.xlu0 %1398
  %1400 = vrot.lane.b32.xlu0 %v523, 12
  %v1401 = vpop.permute.xlu0 %1400
  %1402 = vrot.lane.b32.xlu0 %v526, 12
  %v1403 = vpop.permute.xlu0 %1402
  %1404 = vrot.lane.b32.xlu0 %v528, 12
  %v1405 = vpop.permute.xlu0 %1404
  %1406 = vrot.lane.b32.xlu0 %v531, 12
  %v1407 = vpop.permute.xlu0 %1406
  %1408 = vrot.lane.b32.xlu0 %v533, 12
  %v1409 = vpop.permute.xlu0 %1408
  %1410 = vrot.lane.b32.xlu0 %v536, 12
  %v1411 = vpop.permute.xlu0 %1410
  %1412 = vrot.lane.b32.xlu0 %v538, 12
  %v1413 = vpop.permute.xlu0 %1412
  %1414 = vrot.lane.b32.xlu0 %v541, 12
  %v1415 = vpop.permute.xlu0 %1414
  %1416 = vrot.lane.b32.xlu0 %v543, 12
  %v1417 = vpop.permute.xlu0 %1416
  %1418 = vrot.lane.b32.xlu0 %v546, 12
  %v1419 = vpop.permute.xlu0 %1418
  %1420 = vrot.lane.b32.xlu0 %v548, 12
  %v1421 = vpop.permute.xlu0 %1420
  %1422 = vrot.lane.b32.xlu0 %v551, 12
  %v1423 = vpop.permute.xlu0 %1422
  %1424 = vrot.lane.b32.xlu0 %v553, 12
  %v1425 = vpop.permute.xlu0 %1424
  %1426 = vrot.lane.b32.xlu0 %v556, 12
  %v1427 = vpop.permute.xlu0 %1426
  %1428 = vrot.lane.b32.xlu0 %v558, 12
  %v1429 = vpop.permute.xlu0 %1428
  %1430 = vrot.lane.b32.xlu0 %v561, 12
  %v1431 = vpop.permute.xlu0 %1430
  %1432 = vrot.lane.b32.xlu0 %v563, 12
  %v1433 = vpop.permute.xlu0 %1432
  %1434 = vrot.lane.b32.xlu0 %v566, 12
  %v1435 = vpop.permute.xlu0 %1434
  %1436 = vrot.lane.b32.xlu0 %v568, 12
  %v1437 = vpop.permute.xlu0 %1436
  %1438 = vrot.lane.b32.xlu0 %v1370, 12
  %v1439 = vpop.permute.xlu0 %1438
  %1440 = vrot.lane.b32.xlu0 %v1372, 12
  %v1441 = vpop.permute.xlu0 %1440
  %1442 = vrot.lane.b32.xlu0 %v571, 12
  %v1443 = vpop.permute.xlu0 %1442
  %1444 = vrot.lane.b32.xlu0 %v573, 12
  %v1445 = vpop.permute.xlu0 %1444
  %1446 = vrot.lane.b32.xlu0 %v576, 12
  %v1447 = vpop.permute.xlu0 %1446
  %1448 = vrot.lane.b32.xlu0 %v578, 12
  %v1449 = vpop.permute.xlu0 %1448
  %1450 = vrot.lane.b32.xlu0 %v581, 12
  %v1451 = vpop.permute.xlu0 %1450
  %1452 = vrot.lane.b32.xlu0 %v583, 12
  %v1453 = vpop.permute.xlu0 %1452
  %1454 = vrot.lane.b32.xlu0 %v586, 12
  %v1455 = vpop.permute.xlu0 %1454
  %1456 = vrot.lane.b32.xlu0 %v588, 12
  %v1457 = vpop.permute.xlu0 %1456
  %1458 = vrot.lane.b32.xlu0 %v591, 12
  %v1459 = vpop.permute.xlu0 %1458
  %1460 = vrot.lane.b32.xlu0 %v593, 12
  %v1461 = vpop.permute.xlu0 %1460
  %1462 = vrot.lane.b32.xlu0 %v596, 12
  %v1463 = vpop.permute.xlu0 %1462
  %1464 = vrot.lane.b32.xlu0 %v598, 12
  %v1465 = vpop.permute.xlu0 %1464
  %1466 = vrot.lane.b32.xlu0 %v601, 12
  %v1467 = vpop.permute.xlu0 %1466
  %1468 = vrot.lane.b32.xlu0 %v603, 12
  %v1469 = vpop.permute.xlu0 %1468
  %1470 = vrot.lane.b32.xlu0 %v606, 12
  %v1471 = vpop.permute.xlu0 %1470
  %1472 = vrot.lane.b32.xlu0 %v608, 12
  %v1473 = vpop.permute.xlu0 %1472
  %1474 = vrot.lane.b32.xlu0 %v611, 12
  %v1475 = vpop.permute.xlu0 %1474
  %1476 = vrot.lane.b32.xlu0 %v613, 12
  %v1477 = vpop.permute.xlu0 %1476
  %1478 = vrot.lane.b32.xlu0 %v616, 12
  %v1479 = vpop.permute.xlu0 %1478
  %1480 = vrot.lane.b32.xlu0 %v618, 12
  %v1481 = vpop.permute.xlu0 %1480
  %1482 = vrot.lane.b32.xlu0 %v621, 12
  %v1483 = vpop.permute.xlu0 %1482
  %1484 = vrot.lane.b32.xlu0 %v623, 12
  %v1485 = vpop.permute.xlu0 %1484
  %1486 = vrot.lane.b32.xlu0 %v626, 12
  %v1487 = vpop.permute.xlu0 %1486
  %1488 = vrot.lane.b32.xlu0 %v628, 12
  %v1489 = vpop.permute.xlu0 %1488
  %1490 = vrot.lane.b32.xlu0 %v631, 12
  %v1491 = vpop.permute.xlu0 %1490
  %1492 = vrot.lane.b32.xlu0 %v633, 12
  %v1493 = vpop.permute.xlu0 %1492
  %1494 = vrot.lane.b32.xlu0 %v636, 12
  %v1495 = vpop.permute.xlu0 %1494
  %1496 = vrot.lane.b32.xlu0 %v638, 12
  %v1497 = vpop.permute.xlu0 %1496
  %1498 = vrot.lane.b32.xlu0 %v641, 12
  %v1499 = vpop.permute.xlu0 %1498
  %1500 = vrot.lane.b32.xlu0 %v643, 12
  %v1501 = vpop.permute.xlu0 %1500
  %1502 = vrot.lane.b32.xlu0 %v1375, 12
  %v1503 = vpop.permute.xlu0 %1502
  %1504 = vrot.lane.b32.xlu0 %v1377, 12
  %v1505 = vpop.permute.xlu0 %1504
  %v1570 = vrot.slane %v376, 2
  %v1571 = vrot.slane %v215, 2
  %v1572 = vsel %vm830, %v1570, %v1571
  %v1573 = vrot.slane %v409, 2
  %v1574 = vsel %vm830, %v1571, %v1573
  %v1575 = vrot.slane %v392, 2
  %v1576 = vrot.slane %v263, 2
  %v1577 = vsel %vm830, %v1575, %v1576
  %v1578 = vrot.slane %v425, 2
  %v1579 = vsel %vm830, %v1576, %v1578
  %1580 = vrot.lane.b32.xlu0 %v838, 15
  %v1581 = vpop.permute.xlu0 %1580
  %1582 = vrot.lane.b32.xlu0 %v840, 15
  %v1583 = vpop.permute.xlu0 %1582
  %1584 = vrot.lane.b32.xlu0 %v843, 15
  %v1585 = vpop.permute.xlu0 %1584
  %1586 = vrot.lane.b32.xlu0 %v845, 15
  %v1587 = vpop.permute.xlu0 %1586
  %1588 = vrot.lane.b32.xlu0 %v848, 15
  %v1589 = vpop.permute.xlu0 %1588
  %1590 = vrot.lane.b32.xlu0 %v850, 15
  %v1591 = vpop.permute.xlu0 %1590
  %1592 = vrot.lane.b32.xlu0 %v853, 15
  %v1593 = vpop.permute.xlu0 %1592
  %1594 = vrot.lane.b32.xlu0 %v855, 15
  %v1595 = vpop.permute.xlu0 %1594
  %1596 = vrot.lane.b32.xlu0 %v858, 15
  %v1597 = vpop.permute.xlu0 %1596
  %1598 = vrot.lane.b32.xlu0 %v860, 15
  %v1599 = vpop.permute.xlu0 %1598
  %1600 = vrot.lane.b32.xlu0 %v863, 15
  %v1601 = vpop.permute.xlu0 %1600
  %1602 = vrot.lane.b32.xlu0 %v865, 15
  %v1603 = vpop.permute.xlu0 %1602
  %1604 = vrot.lane.b32.xlu0 %v868, 15
  %v1605 = vpop.permute.xlu0 %1604
  %1606 = vrot.lane.b32.xlu0 %v870, 15
  %v1607 = vpop.permute.xlu0 %1606
  %1608 = vrot.lane.b32.xlu0 %v873, 15
  %v1609 = vpop.permute.xlu0 %1608
  %1610 = vrot.lane.b32.xlu0 %v875, 15
  %v1611 = vpop.permute.xlu0 %1610
  %1612 = vrot.lane.b32.xlu0 %v878, 15
  %v1613 = vpop.permute.xlu0 %1612
  %1614 = vrot.lane.b32.xlu0 %v880, 15
  %v1615 = vpop.permute.xlu0 %1614
  %1616 = vrot.lane.b32.xlu0 %v883, 15
  %v1617 = vpop.permute.xlu0 %1616
  %1618 = vrot.lane.b32.xlu0 %v885, 15
  %v1619 = vpop.permute.xlu0 %1618
  %1620 = vrot.lane.b32.xlu0 %v888, 15
  %v1621 = vpop.permute.xlu0 %1620
  %1622 = vrot.lane.b32.xlu0 %v890, 15
  %v1623 = vpop.permute.xlu0 %1622
  %1624 = vrot.lane.b32.xlu0 %v893, 15
  %v1625 = vpop.permute.xlu0 %1624
  %1626 = vrot.lane.b32.xlu0 %v895, 15
  %v1627 = vpop.permute.xlu0 %1626
  %1628 = vrot.lane.b32.xlu0 %v898, 15
  %v1629 = vpop.permute.xlu0 %1628
  %1630 = vrot.lane.b32.xlu0 %v900, 15
  %v1631 = vpop.permute.xlu0 %1630
  %1632 = vrot.lane.b32.xlu0 %v903, 15
  %v1633 = vpop.permute.xlu0 %1632
  %1634 = vrot.lane.b32.xlu0 %v905, 15
  %v1635 = vpop.permute.xlu0 %1634
  %1636 = vrot.lane.b32.xlu0 %v908, 15
  %v1637 = vpop.permute.xlu0 %1636
  %1638 = vrot.lane.b32.xlu0 %v910, 15
  %v1639 = vpop.permute.xlu0 %1638
  %1640 = vrot.lane.b32.xlu0 %v1572, 15
  %v1641 = vpop.permute.xlu0 %1640
  %1642 = vrot.lane.b32.xlu0 %v1574, 15
  %v1643 = vpop.permute.xlu0 %1642
  %1644 = vrot.lane.b32.xlu0 %v913, 15
  %v1645 = vpop.permute.xlu0 %1644
  %1646 = vrot.lane.b32.xlu0 %v915, 15
  %v1647 = vpop.permute.xlu0 %1646
  %1648 = vrot.lane.b32.xlu0 %v918, 15
  %v1649 = vpop.permute.xlu0 %1648
  %1650 = vrot.lane.b32.xlu0 %v920, 15
  %v1651 = vpop.permute.xlu0 %1650
  %1652 = vrot.lane.b32.xlu0 %v923, 15
  %v1653 = vpop.permute.xlu0 %1652
  %1654 = vrot.lane.b32.xlu0 %v925, 15
  %v1655 = vpop.permute.xlu0 %1654
  %1656 = vrot.lane.b32.xlu0 %v928, 15
  %v1657 = vpop.permute.xlu0 %1656
  %1658 = vrot.lane.b32.xlu0 %v930, 15
  %v1659 = vpop.permute.xlu0 %1658
  %1660 = vrot.lane.b32.xlu0 %v933, 15
  %v1661 = vpop.permute.xlu0 %1660
  %1662 = vrot.lane.b32.xlu0 %v935, 15
  %v1663 = vpop.permute.xlu0 %1662
  %1664 = vrot.lane.b32.xlu0 %v938, 15
  %v1665 = vpop.permute.xlu0 %1664
  %1666 = vrot.lane.b32.xlu0 %v940, 15
  %v1667 = vpop.permute.xlu0 %1666
  %1668 = vrot.lane.b32.xlu0 %v943, 15
  %v1669 = vpop.permute.xlu0 %1668
  %1670 = vrot.lane.b32.xlu0 %v945, 15
  %v1671 = vpop.permute.xlu0 %1670
  %1672 = vrot.lane.b32.xlu0 %v948, 15
  %v1673 = vpop.permute.xlu0 %1672
  %1674 = vrot.lane.b32.xlu0 %v950, 15
  %v1675 = vpop.permute.xlu0 %1674
  %1676 = vrot.lane.b32.xlu0 %v953, 15
  %v1677 = vpop.permute.xlu0 %1676
  %1678 = vrot.lane.b32.xlu0 %v955, 15
  %v1679 = vpop.permute.xlu0 %1678
  %1680 = vrot.lane.b32.xlu0 %v958, 15
  %v1681 = vpop.permute.xlu0 %1680
  %1682 = vrot.lane.b32.xlu0 %v960, 15
  %v1683 = vpop.permute.xlu0 %1682
  %1684 = vrot.lane.b32.xlu0 %v963, 15
  %v1685 = vpop.permute.xlu0 %1684
  %1686 = vrot.lane.b32.xlu0 %v965, 15
  %v1687 = vpop.permute.xlu0 %1686
  %1688 = vrot.lane.b32.xlu0 %v968, 15
  %v1689 = vpop.permute.xlu0 %1688
  %1690 = vrot.lane.b32.xlu0 %v970, 15
  %v1691 = vpop.permute.xlu0 %1690
  %1692 = vrot.lane.b32.xlu0 %v973, 15
  %v1693 = vpop.permute.xlu0 %1692
  %1694 = vrot.lane.b32.xlu0 %v975, 15
  %v1695 = vpop.permute.xlu0 %1694
  %1696 = vrot.lane.b32.xlu0 %v978, 15
  %v1697 = vpop.permute.xlu0 %1696
  %1698 = vrot.lane.b32.xlu0 %v980, 15
  %v1699 = vpop.permute.xlu0 %1698
  %1700 = vrot.lane.b32.xlu0 %v983, 15
  %v1701 = vpop.permute.xlu0 %1700
  %1702 = vrot.lane.b32.xlu0 %v985, 15
  %v1703 = vpop.permute.xlu0 %1702
  %1704 = vrot.lane.b32.xlu0 %v1577, 15
  %v1705 = vpop.permute.xlu0 %1704
  %1706 = vrot.lane.b32.xlu0 %v1579, 15
  %v1707 = vpop.permute.xlu0 %1706
  %1772 = vrot.lane.b32.xlu0 %v362, 18
  %v1773 = vpop.permute.xlu0 %1772
  %1774 = vrot.lane.b32.xlu0 %v173, 18
  %v1775 = vpop.permute.xlu0 %1774
  %1776 = vrot.lane.b32.xlu0 %v363, 18
  %v1777 = vpop.permute.xlu0 %1776
  %1778 = vrot.lane.b32.xlu0 %v176, 18
  %v1779 = vpop.permute.xlu0 %1778
  %1780 = vrot.lane.b32.xlu0 %v364, 18
  %v1781 = vpop.permute.xlu0 %1780
  %1782 = vrot.lane.b32.xlu0 %v179, 18
  %v1783 = vpop.permute.xlu0 %1782
  %1784 = vrot.lane.b32.xlu0 %v365, 18
  %v1785 = vpop.permute.xlu0 %1784
  %1786 = vrot.lane.b32.xlu0 %v182, 18
  %v1787 = vpop.permute.xlu0 %1786
  %1788 = vrot.lane.b32.xlu0 %v366, 18
  %v1789 = vpop.permute.xlu0 %1788
  %1790 = vrot.lane.b32.xlu0 %v185, 18
  %v1791 = vpop.permute.xlu0 %1790
  %1792 = vrot.lane.b32.xlu0 %v367, 18
  %v1793 = vpop.permute.xlu0 %1792
  %1794 = vrot.lane.b32.xlu0 %v188, 18
  %v1795 = vpop.permute.xlu0 %1794
  %1796 = vrot.lane.b32.xlu0 %v368, 18
  %v1797 = vpop.permute.xlu0 %1796
  %1798 = vrot.lane.b32.xlu0 %v191, 18
  %v1799 = vpop.permute.xlu0 %1798
  %1800 = vrot.lane.b32.xlu0 %v369, 18
  %v1801 = vpop.permute.xlu0 %1800
  %1802 = vrot.lane.b32.xlu0 %v194, 18
  %v1803 = vpop.permute.xlu0 %1802
  %1804 = vrot.lane.b32.xlu0 %v370, 18
  %v1805 = vpop.permute.xlu0 %1804
  %1806 = vrot.lane.b32.xlu0 %v197, 18
  %v1807 = vpop.permute.xlu0 %1806
  %1808 = vrot.lane.b32.xlu0 %v371, 18
  %v1809 = vpop.permute.xlu0 %1808
  %1810 = vrot.lane.b32.xlu0 %v200, 18
  %v1811 = vpop.permute.xlu0 %1810
  %1812 = vrot.lane.b32.xlu0 %v372, 18
  %v1813 = vpop.permute.xlu0 %1812
  %1814 = vrot.lane.b32.xlu0 %v203, 18
  %v1815 = vpop.permute.xlu0 %1814
  %1816 = vrot.lane.b32.xlu0 %v373, 18
  %v1817 = vpop.permute.xlu0 %1816
  %1818 = vrot.lane.b32.xlu0 %v206, 18
  %v1819 = vpop.permute.xlu0 %1818
  %1820 = vrot.lane.b32.xlu0 %v374, 18
  %v1821 = vpop.permute.xlu0 %1820
  %1822 = vrot.lane.b32.xlu0 %v209, 18
  %v1823 = vpop.permute.xlu0 %1822
  %1824 = vrot.lane.b32.xlu0 %v375, 18
  %v1825 = vpop.permute.xlu0 %1824
  %1826 = vrot.lane.b32.xlu0 %v212, 18
  %v1827 = vpop.permute.xlu0 %1826
  %1828 = vrot.lane.b32.xlu0 %v376, 18
  %v1829 = vpop.permute.xlu0 %1828
  %1830 = vrot.lane.b32.xlu0 %v215, 18
  %v1831 = vpop.permute.xlu0 %1830
  %1832 = vrot.lane.b32.xlu0 %v360, 18
  %v1833 = vpop.permute.xlu0 %1832
  %1834 = vrot.lane.b32.xlu0 %v167, 18
  %v1835 = vpop.permute.xlu0 %1834
  %1836 = vrot.lane.b32.xlu0 %v378, 18
  %v1837 = vpop.permute.xlu0 %1836
  %1838 = vrot.lane.b32.xlu0 %v221, 18
  %v1839 = vpop.permute.xlu0 %1838
  %1840 = vrot.lane.b32.xlu0 %v379, 18
  %v1841 = vpop.permute.xlu0 %1840
  %1842 = vrot.lane.b32.xlu0 %v224, 18
  %v1843 = vpop.permute.xlu0 %1842
  %1844 = vrot.lane.b32.xlu0 %v380, 18
  %v1845 = vpop.permute.xlu0 %1844
  %1846 = vrot.lane.b32.xlu0 %v227, 18
  %v1847 = vpop.permute.xlu0 %1846
  %1848 = vrot.lane.b32.xlu0 %v381, 18
  %v1849 = vpop.permute.xlu0 %1848
  %1850 = vrot.lane.b32.xlu0 %v230, 18
  %v1851 = vpop.permute.xlu0 %1850
  %1852 = vrot.lane.b32.xlu0 %v382, 18
  %v1853 = vpop.permute.xlu0 %1852
  %1854 = vrot.lane.b32.xlu0 %v233, 18
  %v1855 = vpop.permute.xlu0 %1854
  %1856 = vrot.lane.b32.xlu0 %v383, 18
  %v1857 = vpop.permute.xlu0 %1856
  %1858 = vrot.lane.b32.xlu0 %v236, 18
  %v1859 = vpop.permute.xlu0 %1858
  %1860 = vrot.lane.b32.xlu0 %v384, 18
  %v1861 = vpop.permute.xlu0 %1860
  %1862 = vrot.lane.b32.xlu0 %v239, 18
  %v1863 = vpop.permute.xlu0 %1862
  %1864 = vrot.lane.b32.xlu0 %v385, 18
  %v1865 = vpop.permute.xlu0 %1864
  %1866 = vrot.lane.b32.xlu0 %v242, 18
  %v1867 = vpop.permute.xlu0 %1866
  %1868 = vrot.lane.b32.xlu0 %v386, 18
  %v1869 = vpop.permute.xlu0 %1868
  %1870 = vrot.lane.b32.xlu0 %v245, 18
  %v1871 = vpop.permute.xlu0 %1870
  %1872 = vrot.lane.b32.xlu0 %v387, 18
  %v1873 = vpop.permute.xlu0 %1872
  %1874 = vrot.lane.b32.xlu0 %v248, 18
  %v1875 = vpop.permute.xlu0 %1874
  %1876 = vrot.lane.b32.xlu0 %v388, 18
  %v1877 = vpop.permute.xlu0 %1876
  %1878 = vrot.lane.b32.xlu0 %v251, 18
  %v1879 = vpop.permute.xlu0 %1878
  %1880 = vrot.lane.b32.xlu0 %v389, 18
  %v1881 = vpop.permute.xlu0 %1880
  %1882 = vrot.lane.b32.xlu0 %v254, 18
  %v1883 = vpop.permute.xlu0 %1882
  %1884 = vrot.lane.b32.xlu0 %v390, 18
  %v1885 = vpop.permute.xlu0 %1884
  %1886 = vrot.lane.b32.xlu0 %v257, 18
  %v1887 = vpop.permute.xlu0 %1886
  %1888 = vrot.lane.b32.xlu0 %v391, 18
  %v1889 = vpop.permute.xlu0 %1888
  %1890 = vrot.lane.b32.xlu0 %v260, 18
  %v1891 = vpop.permute.xlu0 %1890
  %1892 = vrot.lane.b32.xlu0 %v392, 18
  %v1893 = vpop.permute.xlu0 %1892
  %1894 = vrot.lane.b32.xlu0 %v263, 18
  %v1895 = vpop.permute.xlu0 %1894
  %1958 = vrot.lane.b32.xlu0 %v501, 21
  %v1959 = vpop.permute.xlu0 %1958
  %1960 = vrot.lane.b32.xlu0 %v503, 21
  %v1961 = vpop.permute.xlu0 %1960
  %1962 = vrot.lane.b32.xlu0 %v506, 21
  %v1963 = vpop.permute.xlu0 %1962
  %1964 = vrot.lane.b32.xlu0 %v508, 21
  %v1965 = vpop.permute.xlu0 %1964
  %1966 = vrot.lane.b32.xlu0 %v511, 21
  %v1967 = vpop.permute.xlu0 %1966
  %1968 = vrot.lane.b32.xlu0 %v513, 21
  %v1969 = vpop.permute.xlu0 %1968
  %1970 = vrot.lane.b32.xlu0 %v516, 21
  %v1971 = vpop.permute.xlu0 %1970
  %1972 = vrot.lane.b32.xlu0 %v518, 21
  %v1973 = vpop.permute.xlu0 %1972
  %1974 = vrot.lane.b32.xlu0 %v521, 21
  %v1975 = vpop.permute.xlu0 %1974
  %1976 = vrot.lane.b32.xlu0 %v523, 21
  %v1977 = vpop.permute.xlu0 %1976
  %1978 = vrot.lane.b32.xlu0 %v526, 21
  %v1979 = vpop.permute.xlu0 %1978
  %1980 = vrot.lane.b32.xlu0 %v528, 21
  %v1981 = vpop.permute.xlu0 %1980
  %1982 = vrot.lane.b32.xlu0 %v531, 21
  %v1983 = vpop.permute.xlu0 %1982
  %1984 = vrot.lane.b32.xlu0 %v533, 21
  %v1985 = vpop.permute.xlu0 %1984
  %1986 = vrot.lane.b32.xlu0 %v536, 21
  %v1987 = vpop.permute.xlu0 %1986
  %1988 = vrot.lane.b32.xlu0 %v538, 21
  %v1989 = vpop.permute.xlu0 %1988
  %1990 = vrot.lane.b32.xlu0 %v541, 21
  %v1991 = vpop.permute.xlu0 %1990
  %1992 = vrot.lane.b32.xlu0 %v543, 21
  %v1993 = vpop.permute.xlu0 %1992
  %1994 = vrot.lane.b32.xlu0 %v546, 21
  %v1995 = vpop.permute.xlu0 %1994
  %1996 = vrot.lane.b32.xlu0 %v548, 21
  %v1997 = vpop.permute.xlu0 %1996
  %1998 = vrot.lane.b32.xlu0 %v551, 21
  %v1999 = vpop.permute.xlu0 %1998
  %2000 = vrot.lane.b32.xlu0 %v553, 21
  %v2001 = vpop.permute.xlu0 %2000
  %2002 = vrot.lane.b32.xlu0 %v556, 21
  %v2003 = vpop.permute.xlu0 %2002
  %2004 = vrot.lane.b32.xlu0 %v558, 21
  %v2005 = vpop.permute.xlu0 %2004
  %2006 = vrot.lane.b32.xlu0 %v561, 21
  %v2007 = vpop.permute.xlu0 %2006
  %2008 = vrot.lane.b32.xlu0 %v563, 21
  %v2009 = vpop.permute.xlu0 %2008
  %2010 = vrot.lane.b32.xlu0 %v566, 21
  %v2011 = vpop.permute.xlu0 %2010
  %2012 = vrot.lane.b32.xlu0 %v568, 21
  %v2013 = vpop.permute.xlu0 %2012
  %2014 = vrot.lane.b32.xlu0 %v1370, 21
  %v2015 = vpop.permute.xlu0 %2014
  %2016 = vrot.lane.b32.xlu0 %v1372, 21
  %v2017 = vpop.permute.xlu0 %2016
  %2018 = vrot.lane.b32.xlu0 %v491, 21
  %v2019 = vpop.permute.xlu0 %2018
  %2020 = vrot.lane.b32.xlu0 %v493, 21
  %v2021 = vpop.permute.xlu0 %2020
  %2022 = vrot.lane.b32.xlu0 %v576, 21
  %v2023 = vpop.permute.xlu0 %2022
  %2024 = vrot.lane.b32.xlu0 %v578, 21
  %v2025 = vpop.permute.xlu0 %2024
  %2026 = vrot.lane.b32.xlu0 %v581, 21
  %v2027 = vpop.permute.xlu0 %2026
  %2028 = vrot.lane.b32.xlu0 %v583, 21
  %v2029 = vpop.permute.xlu0 %2028
  %2030 = vrot.lane.b32.xlu0 %v586, 21
  %v2031 = vpop.permute.xlu0 %2030
  %2032 = vrot.lane.b32.xlu0 %v588, 21
  %v2033 = vpop.permute.xlu0 %2032
  %2034 = vrot.lane.b32.xlu0 %v591, 21
  %v2035 = vpop.permute.xlu0 %2034
  %2036 = vrot.lane.b32.xlu0 %v593, 21
  %v2037 = vpop.permute.xlu0 %2036
  %2038 = vrot.lane.b32.xlu0 %v596, 21
  %v2039 = vpop.permute.xlu0 %2038
  %2040 = vrot.lane.b32.xlu0 %v598, 21
  %v2041 = vpop.permute.xlu0 %2040
  %2042 = vrot.lane.b32.xlu0 %v601, 21
  %v2043 = vpop.permute.xlu0 %2042
  %2044 = vrot.lane.b32.xlu0 %v603, 21
  %v2045 = vpop.permute.xlu0 %2044
  %2046 = vrot.lane.b32.xlu0 %v606, 21
  %v2047 = vpop.permute.xlu0 %2046
  %2048 = vrot.lane.b32.xlu0 %v608, 21
  %v2049 = vpop.permute.xlu0 %2048
  %2050 = vrot.lane.b32.xlu0 %v611, 21
  %v2051 = vpop.permute.xlu0 %2050
  %2052 = vrot.lane.b32.xlu0 %v613, 21
  %v2053 = vpop.permute.xlu0 %2052
  %2054 = vrot.lane.b32.xlu0 %v616, 21
  %v2055 = vpop.permute.xlu0 %2054
  %2056 = vrot.lane.b32.xlu0 %v618, 21
  %v2057 = vpop.permute.xlu0 %2056
  %2058 = vrot.lane.b32.xlu0 %v621, 21
  %v2059 = vpop.permute.xlu0 %2058
  %2060 = vrot.lane.b32.xlu0 %v623, 21
  %v2061 = vpop.permute.xlu0 %2060
  %2062 = vrot.lane.b32.xlu0 %v626, 21
  %v2063 = vpop.permute.xlu0 %2062
  %2064 = vrot.lane.b32.xlu0 %v628, 21
  %v2065 = vpop.permute.xlu0 %2064
  %2066 = vrot.lane.b32.xlu0 %v631, 21
  %v2067 = vpop.permute.xlu0 %2066
  %2068 = vrot.lane.b32.xlu0 %v633, 21
  %v2069 = vpop.permute.xlu0 %2068
  %2070 = vrot.lane.b32.xlu0 %v636, 21
  %v2071 = vpop.permute.xlu0 %2070
  %2072 = vrot.lane.b32.xlu0 %v638, 21
  %v2073 = vpop.permute.xlu0 %2072
  %2074 = vrot.lane.b32.xlu0 %v641, 21
  %v2075 = vpop.permute.xlu0 %2074
  %2076 = vrot.lane.b32.xlu0 %v643, 21
  %v2077 = vpop.permute.xlu0 %2076
  %2078 = vrot.lane.b32.xlu0 %v1375, 21
  %v2079 = vpop.permute.xlu0 %2078
  %2080 = vrot.lane.b32.xlu0 %v1377, 21
  %v2081 = vpop.permute.xlu0 %2080
  %2144 = vrot.lane.b32.xlu0 %v843, 24
  %v2145 = vpop.permute.xlu0 %2144
  %2146 = vrot.lane.b32.xlu0 %v845, 24
  %v2147 = vpop.permute.xlu0 %2146
  %2148 = vrot.lane.b32.xlu0 %v848, 24
  %v2149 = vpop.permute.xlu0 %2148
  %2150 = vrot.lane.b32.xlu0 %v850, 24
  %v2151 = vpop.permute.xlu0 %2150
  %2152 = vrot.lane.b32.xlu0 %v853, 24
  %v2153 = vpop.permute.xlu0 %2152
  %2154 = vrot.lane.b32.xlu0 %v855, 24
  %v2155 = vpop.permute.xlu0 %2154
  %2156 = vrot.lane.b32.xlu0 %v858, 24
  %v2157 = vpop.permute.xlu0 %2156
  %2158 = vrot.lane.b32.xlu0 %v860, 24
  %v2159 = vpop.permute.xlu0 %2158
  %2160 = vrot.lane.b32.xlu0 %v863, 24
  %v2161 = vpop.permute.xlu0 %2160
  %2162 = vrot.lane.b32.xlu0 %v865, 24
  %v2163 = vpop.permute.xlu0 %2162
  %2164 = vrot.lane.b32.xlu0 %v868, 24
  %v2165 = vpop.permute.xlu0 %2164
  %2166 = vrot.lane.b32.xlu0 %v870, 24
  %v2167 = vpop.permute.xlu0 %2166
  %2168 = vrot.lane.b32.xlu0 %v873, 24
  %v2169 = vpop.permute.xlu0 %2168
  %2170 = vrot.lane.b32.xlu0 %v875, 24
  %v2171 = vpop.permute.xlu0 %2170
  %2172 = vrot.lane.b32.xlu0 %v878, 24
  %v2173 = vpop.permute.xlu0 %2172
  %2174 = vrot.lane.b32.xlu0 %v880, 24
  %v2175 = vpop.permute.xlu0 %2174
  %2176 = vrot.lane.b32.xlu0 %v883, 24
  %v2177 = vpop.permute.xlu0 %2176
  %2178 = vrot.lane.b32.xlu0 %v885, 24
  %v2179 = vpop.permute.xlu0 %2178
  %2180 = vrot.lane.b32.xlu0 %v888, 24
  %v2181 = vpop.permute.xlu0 %2180
  %2182 = vrot.lane.b32.xlu0 %v890, 24
  %v2183 = vpop.permute.xlu0 %2182
  %2184 = vrot.lane.b32.xlu0 %v893, 24
  %v2185 = vpop.permute.xlu0 %2184
  %2186 = vrot.lane.b32.xlu0 %v895, 24
  %v2187 = vpop.permute.xlu0 %2186
  %2188 = vrot.lane.b32.xlu0 %v898, 24
  %v2189 = vpop.permute.xlu0 %2188
  %2190 = vrot.lane.b32.xlu0 %v900, 24
  %v2191 = vpop.permute.xlu0 %2190
  %2192 = vrot.lane.b32.xlu0 %v903, 24
  %v2193 = vpop.permute.xlu0 %2192
  %2194 = vrot.lane.b32.xlu0 %v905, 24
  %v2195 = vpop.permute.xlu0 %2194
  %2196 = vrot.lane.b32.xlu0 %v908, 24
  %v2197 = vpop.permute.xlu0 %2196
  %2198 = vrot.lane.b32.xlu0 %v910, 24
  %v2199 = vpop.permute.xlu0 %2198
  %2200 = vrot.lane.b32.xlu0 %v1572, 24
  %v2201 = vpop.permute.xlu0 %2200
  %2202 = vrot.lane.b32.xlu0 %v1574, 24
  %v2203 = vpop.permute.xlu0 %2202
  %2204 = vrot.lane.b32.xlu0 %v833, 24
  %v2205 = vpop.permute.xlu0 %2204
  %2206 = vrot.lane.b32.xlu0 %v835, 24
  %v2207 = vpop.permute.xlu0 %2206
  %2208 = vrot.lane.b32.xlu0 %v918, 24
  %v2209 = vpop.permute.xlu0 %2208
  %2210 = vrot.lane.b32.xlu0 %v920, 24
  %v2211 = vpop.permute.xlu0 %2210
  %2212 = vrot.lane.b32.xlu0 %v923, 24
  %v2213 = vpop.permute.xlu0 %2212
  %2214 = vrot.lane.b32.xlu0 %v925, 24
  %v2215 = vpop.permute.xlu0 %2214
  %2216 = vrot.lane.b32.xlu0 %v928, 24
  %v2217 = vpop.permute.xlu0 %2216
  %2218 = vrot.lane.b32.xlu0 %v930, 24
  %v2219 = vpop.permute.xlu0 %2218
  %2220 = vrot.lane.b32.xlu0 %v933, 24
  %v2221 = vpop.permute.xlu0 %2220
  %2222 = vrot.lane.b32.xlu0 %v935, 24
  %v2223 = vpop.permute.xlu0 %2222
  %2224 = vrot.lane.b32.xlu0 %v938, 24
  %v2225 = vpop.permute.xlu0 %2224
  %2226 = vrot.lane.b32.xlu0 %v940, 24
  %v2227 = vpop.permute.xlu0 %2226
  %2228 = vrot.lane.b32.xlu0 %v943, 24
  %v2229 = vpop.permute.xlu0 %2228
  %2230 = vrot.lane.b32.xlu0 %v945, 24
  %v2231 = vpop.permute.xlu0 %2230
  %2232 = vrot.lane.b32.xlu0 %v948, 24
  %v2233 = vpop.permute.xlu0 %2232
  %2234 = vrot.lane.b32.xlu0 %v950, 24
  %v2235 = vpop.permute.xlu0 %2234
  %2236 = vrot.lane.b32.xlu0 %v953, 24
  %v2237 = vpop.permute.xlu0 %2236
  %2238 = vrot.lane.b32.xlu0 %v955, 24
  %v2239 = vpop.permute.xlu0 %2238
  %2240 = vrot.lane.b32.xlu0 %v958, 24
  %v2241 = vpop.permute.xlu0 %2240
  %2242 = vrot.lane.b32.xlu0 %v960, 24
  %v2243 = vpop.permute.xlu0 %2242
  %2244 = vrot.lane.b32.xlu0 %v963, 24
  %v2245 = vpop.permute.xlu0 %2244
  %2246 = vrot.lane.b32.xlu0 %v965, 24
  %v2247 = vpop.permute.xlu0 %2246
  %2248 = vrot.lane.b32.xlu0 %v968, 24
  %v2249 = vpop.permute.xlu0 %2248
  %2250 = vrot.lane.b32.xlu0 %v970, 24
  %v2251 = vpop.permute.xlu0 %2250
  %2252 = vrot.lane.b32.xlu0 %v973, 24
  %v2253 = vpop.permute.xlu0 %2252
  %2254 = vrot.lane.b32.xlu0 %v975, 24
  %v2255 = vpop.permute.xlu0 %2254
  %2256 = vrot.lane.b32.xlu0 %v978, 24
  %v2257 = vpop.permute.xlu0 %2256
  %2258 = vrot.lane.b32.xlu0 %v980, 24
  %v2259 = vpop.permute.xlu0 %2258
  %2260 = vrot.lane.b32.xlu0 %v983, 24
  %v2261 = vpop.permute.xlu0 %2260
  %2262 = vrot.lane.b32.xlu0 %v985, 24
  %v2263 = vpop.permute.xlu0 %2262
  %2264 = vrot.lane.b32.xlu0 %v1577, 24
  %v2265 = vpop.permute.xlu0 %2264
  %2266 = vrot.lane.b32.xlu0 %v1579, 24
  %v2267 = vpop.permute.xlu0 %2266
  %vm2330 = vcmask 23552
  %v2331 = vsel %vm2330, %v360, %v645
  %v2332 = vsel %vm2330, %v167, %v647
  %v2333 = vsel %vm2330, %v361, %v649
  %v2334 = vsel %vm2330, %v170, %v651
  %v2335 = vsel %vm2330, %v362, %v653
  %v2336 = vsel %vm2330, %v173, %v655
  %v2337 = vsel %vm2330, %v363, %v657
  %v2338 = vsel %vm2330, %v176, %v659
  %v2339 = vsel %vm2330, %v364, %v661
  %v2340 = vsel %vm2330, %v179, %v663
  %v2341 = vsel %vm2330, %v365, %v665
  %v2342 = vsel %vm2330, %v182, %v667
  %v2343 = vsel %vm2330, %v366, %v669
  %v2344 = vsel %vm2330, %v185, %v671
  %v2345 = vsel %vm2330, %v367, %v673
  %v2346 = vsel %vm2330, %v188, %v675
  %v2347 = vsel %vm2330, %v368, %v677
  %v2348 = vsel %vm2330, %v191, %v679
  %v2349 = vsel %vm2330, %v369, %v681
  %v2350 = vsel %vm2330, %v194, %v683
  %v2351 = vsel %vm2330, %v370, %v685
  %v2352 = vsel %vm2330, %v197, %v687
  %v2353 = vsel %vm2330, %v371, %v689
  %v2354 = vsel %vm2330, %v200, %v691
  %v2355 = vsel %vm2330, %v372, %v693
  %v2356 = vsel %vm2330, %v203, %v695
  %v2357 = vsel %vm2330, %v373, %v697
  %v2358 = vsel %vm2330, %v206, %v699
  %v2359 = vsel %vm2330, %v374, %v701
  %v2360 = vsel %vm2330, %v209, %v703
  %v2361 = vsel %vm2330, %v375, %v705
  %v2362 = vsel %vm2330, %v212, %v707
  %v2363 = vsel %vm2330, %v377, %v709
  %v2364 = vsel %vm2330, %v218, %v711
  %v2365 = vsel %vm2330, %v378, %v713
  %v2366 = vsel %vm2330, %v221, %v715
  %v2367 = vsel %vm2330, %v379, %v717
  %v2368 = vsel %vm2330, %v224, %v719
  %v2369 = vsel %vm2330, %v380, %v721
  %v2370 = vsel %vm2330, %v227, %v723
  %v2371 = vsel %vm2330, %v381, %v725
  %v2372 = vsel %vm2330, %v230, %v727
  %v2373 = vsel %vm2330, %v382, %v729
  %v2374 = vsel %vm2330, %v233, %v731
  %v2375 = vsel %vm2330, %v383, %v733
  %v2376 = vsel %vm2330, %v236, %v735
  %v2377 = vsel %vm2330, %v384, %v737
  %v2378 = vsel %vm2330, %v239, %v739
  %v2379 = vsel %vm2330, %v385, %v741
  %v2380 = vsel %vm2330, %v242, %v743
  %v2381 = vsel %vm2330, %v386, %v745
  %v2382 = vsel %vm2330, %v245, %v747
  %v2383 = vsel %vm2330, %v387, %v749
  %v2384 = vsel %vm2330, %v248, %v751
  %v2385 = vsel %vm2330, %v388, %v753
  %v2386 = vsel %vm2330, %v251, %v755
  %v2387 = vsel %vm2330, %v389, %v757
  %v2388 = vsel %vm2330, %v254, %v759
  %v2389 = vsel %vm2330, %v390, %v761
  %v2390 = vsel %vm2330, %v257, %v763
  %v2391 = vsel %vm2330, %v391, %v765
  %v2392 = vsel %vm2330, %v260, %v767
  %vm2393 = vcmask 48128
  %v2394 = vsel %vm2393, %v2331, %v987
  %v2395 = vsel %vm2393, %v2332, %v989
  %v2396 = vsel %vm2393, %v2333, %v991
  %v2397 = vsel %vm2393, %v2334, %v993
  %v2398 = vsel %vm2393, %v2335, %v995
  %v2399 = vsel %vm2393, %v2336, %v997
  %v2400 = vsel %vm2393, %v2337, %v999
  %v2401 = vsel %vm2393, %v2338, %v1001
  %v2402 = vsel %vm2393, %v2339, %v1003
  %v2403 = vsel %vm2393, %v2340, %v1005
  %v2404 = vsel %vm2393, %v2341, %v1007
  %v2405 = vsel %vm2393, %v2342, %v1009
  %v2406 = vsel %vm2393, %v2343, %v1011
  %v2407 = vsel %vm2393, %v2344, %v1013
  %v2408 = vsel %vm2393, %v2345, %v1015
  %v2409 = vsel %vm2393, %v2346, %v1017
  %v2410 = vsel %vm2393, %v2347, %v1019
  %v2411 = vsel %vm2393, %v2348, %v1021
  %v2412 = vsel %vm2393, %v2349, %v1023
  %v2413 = vsel %vm2393, %v2350, %v1025
  %v2414 = vsel %vm2393, %v2351, %v1027
  %v2415 = vsel %vm2393, %v2352, %v1029
  %v2416 = vsel %vm2393, %v2353, %v1031
  %v2417 = vsel %vm2393, %v2354, %v1033
  %v2418 = vsel %vm2393, %v2355, %v1035
  %v2419 = vsel %vm2393, %v2356, %v1037
  %v2420 = vsel %vm2393, %v2357, %v1039
  %v2421 = vsel %vm2393, %v2358, %v1041
  %v2422 = vsel %vm2393, %v2359, %v1043
  %v2423 = vsel %vm2393, %v2360, %v1045
  %v2424 = vsel %vm2393, %v2361, %v1047
  %v2425 = vsel %vm2393, %v2362, %v1049
  %v2426 = vsel %vm2393, %v2363, %v1051
  %v2427 = vsel %vm2393, %v2364, %v1053
  %v2428 = vsel %vm2393, %v2365, %v1055
  %v2429 = vsel %vm2393, %v2366, %v1057
  %v2430 = vsel %vm2393, %v2367, %v1059
  %v2431 = vsel %vm2393, %v2368, %v1061
  %v2432 = vsel %vm2393, %v2369, %v1063
  %v2433 = vsel %vm2393, %v2370, %v1065
  %v2434 = vsel %vm2393, %v2371, %v1067
  %v2435 = vsel %vm2393, %v2372, %v1069
  %v2436 = vsel %vm2393, %v2373, %v1071
  %v2437 = vsel %vm2393, %v2374, %v1073
  %v2438 = vsel %vm2393, %v2375, %v1075
  %v2439 = vsel %vm2393, %v2376, %v1077
  %v2440 = vsel %vm2393, %v2377, %v1079
  %v2441 = vsel %vm2393, %v2378, %v1081
  %v2442 = vsel %vm2393, %v2379, %v1083
  %v2443 = vsel %vm2393, %v2380, %v1085
  %v2444 = vsel %vm2393, %v2381, %v1087
  %v2445 = vsel %vm2393, %v2382, %v1089
  %v2446 = vsel %vm2393, %v2383, %v1091
  %v2447 = vsel %vm2393, %v2384, %v1093
  %v2448 = vsel %vm2393, %v2385, %v1095
  %v2449 = vsel %vm2393, %v2386, %v1097
  %v2450 = vsel %vm2393, %v2387, %v1099
  %v2451 = vsel %vm2393, %v2388, %v1101
  %v2452 = vsel %vm2393, %v2389, %v1103
  %v2453 = vsel %vm2393, %v2390, %v1105
  %v2454 = vsel %vm2393, %v2391, %v1107
  %v2455 = vsel %vm2393, %v2392, %v1109
  %vm2456 = vcmask 72704
  %v2457 = vsel %vm2456, %v2394, %v1175
  %v2458 = vsel %vm2456, %v2395, %v1177
  %v2459 = vsel %vm2456, %v2396, %v1179
  %v2460 = vsel %vm2456, %v2397, %v1181
  %v2461 = vsel %vm2456, %v2398, %v1183
  %v2462 = vsel %vm2456, %v2399, %v1185
  %v2463 = vsel %vm2456, %v2400, %v1187
  %v2464 = vsel %vm2456, %v2401, %v1189
  %v2465 = vsel %vm2456, %v2402, %v1191
  %v2466 = vsel %vm2456, %v2403, %v1193
  %v2467 = vsel %vm2456, %v2404, %v1195
  %v2468 = vsel %vm2456, %v2405, %v1197
  %v2469 = vsel %vm2456, %v2406, %v1199
  %v2470 = vsel %vm2456, %v2407, %v1201
  %v2471 = vsel %vm2456, %v2408, %v1203
  %v2472 = vsel %vm2456, %v2409, %v1205
  %v2473 = vsel %vm2456, %v2410, %v1207
  %v2474 = vsel %vm2456, %v2411, %v1209
  %v2475 = vsel %vm2456, %v2412, %v1211
  %v2476 = vsel %vm2456, %v2413, %v1213
  %v2477 = vsel %vm2456, %v2414, %v1215
  %v2478 = vsel %vm2456, %v2415, %v1217
  %v2479 = vsel %vm2456, %v2416, %v1219
  %v2480 = vsel %vm2456, %v2417, %v1221
  %v2481 = vsel %vm2456, %v2418, %v1223
  %v2482 = vsel %vm2456, %v2419, %v1225
  %v2483 = vsel %vm2456, %v2420, %v1227
  %v2484 = vsel %vm2456, %v2421, %v1229
  %v2485 = vsel %vm2456, %v2422, %v1231
  %v2486 = vsel %vm2456, %v2423, %v1233
  %v2487 = vsel %vm2456, %v2424, %v1235
  %v2488 = vsel %vm2456, %v2425, %v1237
  %v2489 = vsel %vm2456, %v2394, %v1239
  %v2490 = vsel %vm2456, %v2395, %v1241
  %v2491 = vsel %vm2456, %v2426, %v1243
  %v2492 = vsel %vm2456, %v2427, %v1245
  %v2493 = vsel %vm2456, %v2428, %v1247
  %v2494 = vsel %vm2456, %v2429, %v1249
  %v2495 = vsel %vm2456, %v2430, %v1251
  %v2496 = vsel %vm2456, %v2431, %v1253
  %v2497 = vsel %vm2456, %v2432, %v1255
  %v2498 = vsel %vm2456, %v2433, %v1257
  %v2499 = vsel %vm2456, %v2434, %v1259
  %v2500 = vsel %vm2456, %v2435, %v1261
  %v2501 = vsel %vm2456, %v2436, %v1263
  %v2502 = vsel %vm2456, %v2437, %v1265
  %v2503 = vsel %vm2456, %v2438, %v1267
  %v2504 = vsel %vm2456, %v2439, %v1269
  %v2505 = vsel %vm2456, %v2440, %v1271
  %v2506 = vsel %vm2456, %v2441, %v1273
  %v2507 = vsel %vm2456, %v2442, %v1275
  %v2508 = vsel %vm2456, %v2443, %v1277
  %v2509 = vsel %vm2456, %v2444, %v1279
  %v2510 = vsel %vm2456, %v2445, %v1281
  %v2511 = vsel %vm2456, %v2446, %v1283
  %v2512 = vsel %vm2456, %v2447, %v1285
  %v2513 = vsel %vm2456, %v2448, %v1287
  %v2514 = vsel %vm2456, %v2449, %v1289
  %v2515 = vsel %vm2456, %v2450, %v1291
  %v2516 = vsel %vm2456, %v2451, %v1293
  %v2517 = vsel %vm2456, %v2452, %v1295
  %v2518 = vsel %vm2456, %v2453, %v1297
  %v2519 = vsel %vm2456, %v2454, %v1299
  %v2520 = vsel %vm2456, %v2455, %v1301
  %vm2521 = vcmask 97280
  %v2522 = vsel %vm2521, %v2457, %v1379
  %v2523 = vsel %vm2521, %v2458, %v1381
  %v2524 = vsel %vm2521, %v2459, %v1383
  %v2525 = vsel %vm2521, %v2460, %v1385
  %v2526 = vsel %vm2521, %v2461, %v1387
  %v2527 = vsel %vm2521, %v2462, %v1389
  %v2528 = vsel %vm2521, %v2463, %v1391
  %v2529 = vsel %vm2521, %v2464, %v1393
  %v2530 = vsel %vm2521, %v2465, %v1395
  %v2531 = vsel %vm2521, %v2466, %v1397
  %v2532 = vsel %vm2521, %v2467, %v1399
  %v2533 = vsel %vm2521, %v2468, %v1401
  %v2534 = vsel %vm2521, %v2469, %v1403
  %v2535 = vsel %vm2521, %v2470, %v1405
  %v2536 = vsel %vm2521, %v2471, %v1407
  %v2537 = vsel %vm2521, %v2472, %v1409
  %v2538 = vsel %vm2521, %v2473, %v1411
  %v2539 = vsel %vm2521, %v2474, %v1413
  %v2540 = vsel %vm2521, %v2475, %v1415
  %v2541 = vsel %vm2521, %v2476, %v1417
  %v2542 = vsel %vm2521, %v2477, %v1419
  %v2543 = vsel %vm2521, %v2478, %v1421
  %v2544 = vsel %vm2521, %v2479, %v1423
  %v2545 = vsel %vm2521, %v2480, %v1425
  %v2546 = vsel %vm2521, %v2481, %v1427
  %v2547 = vsel %vm2521, %v2482, %v1429
  %v2548 = vsel %vm2521, %v2483, %v1431
  %v2549 = vsel %vm2521, %v2484, %v1433
  %v2550 = vsel %vm2521, %v2485, %v1435
  %v2551 = vsel %vm2521, %v2486, %v1437
  %v2552 = vsel %vm2521, %v2487, %v1439
  %v2553 = vsel %vm2521, %v2488, %v1441
  %v2554 = vsel %vm2521, %v2489, %v1443
  %v2555 = vsel %vm2521, %v2490, %v1445
  %v2556 = vsel %vm2521, %v2491, %v1447
  %v2557 = vsel %vm2521, %v2492, %v1449
  %v2558 = vsel %vm2521, %v2493, %v1451
  %v2559 = vsel %vm2521, %v2494, %v1453
  %v2560 = vsel %vm2521, %v2495, %v1455
  %v2561 = vsel %vm2521, %v2496, %v1457
  %v2562 = vsel %vm2521, %v2497, %v1459
  %v2563 = vsel %vm2521, %v2498, %v1461
  %v2564 = vsel %vm2521, %v2499, %v1463
  %v2565 = vsel %vm2521, %v2500, %v1465
  %v2566 = vsel %vm2521, %v2501, %v1467
  %v2567 = vsel %vm2521, %v2502, %v1469
  %v2568 = vsel %vm2521, %v2503, %v1471
  %v2569 = vsel %vm2521, %v2504, %v1473
  %v2570 = vsel %vm2521, %v2505, %v1475
  %v2571 = vsel %vm2521, %v2506, %v1477
  %v2572 = vsel %vm2521, %v2507, %v1479
  %v2573 = vsel %vm2521, %v2508, %v1481
  %v2574 = vsel %vm2521, %v2509, %v1483
  %v2575 = vsel %vm2521, %v2510, %v1485
  %v2576 = vsel %vm2521, %v2511, %v1487
  %v2577 = vsel %vm2521, %v2512, %v1489
  %v2578 = vsel %vm2521, %v2513, %v1491
  %v2579 = vsel %vm2521, %v2514, %v1493
  %v2580 = vsel %vm2521, %v2515, %v1495
  %v2581 = vsel %vm2521, %v2516, %v1497
  %v2582 = vsel %vm2521, %v2517, %v1499
  %v2583 = vsel %vm2521, %v2518, %v1501
  %v2584 = vsel %vm2521, %v2519, %v1503
  %v2585 = vsel %vm2521, %v2520, %v1505
  %vm2586 = vcmask 121856
  %v2587 = vsel %vm2586, %v2522, %v1581
  %v2588 = vsel %vm2586, %v2523, %v1583
  %v2589 = vsel %vm2586, %v2524, %v1585
  %v2590 = vsel %vm2586, %v2525, %v1587
  %v2591 = vsel %vm2586, %v2526, %v1589
  %v2592 = vsel %vm2586, %v2527, %v1591
  %v2593 = vsel %vm2586, %v2528, %v1593
  %v2594 = vsel %vm2586, %v2529, %v1595
  %v2595 = vsel %vm2586, %v2530, %v1597
  %v2596 = vsel %vm2586, %v2531, %v1599
  %v2597 = vsel %vm2586, %v2532, %v1601
  %v2598 = vsel %vm2586, %v2533, %v1603
  %v2599 = vsel %vm2586, %v2534, %v1605
  %v2600 = vsel %vm2586, %v2535, %v1607
  %v2601 = vsel %vm2586, %v2536, %v1609
  %v2602 = vsel %vm2586, %v2537, %v1611
  %v2603 = vsel %vm2586, %v2538, %v1613
  %v2604 = vsel %vm2586, %v2539, %v1615
  %v2605 = vsel %vm2586, %v2540, %v1617
  %v2606 = vsel %vm2586, %v2541, %v1619
  %v2607 = vsel %vm2586, %v2542, %v1621
  %v2608 = vsel %vm2586, %v2543, %v1623
  %v2609 = vsel %vm2586, %v2544, %v1625
  %v2610 = vsel %vm2586, %v2545, %v1627
  %v2611 = vsel %vm2586, %v2546, %v1629
  %v2612 = vsel %vm2586, %v2547, %v1631
  %v2613 = vsel %vm2586, %v2548, %v1633
  %v2614 = vsel %vm2586, %v2549, %v1635
  %v2615 = vsel %vm2586, %v2550, %v1637
  %v2616 = vsel %vm2586, %v2551, %v1639
  %v2617 = vsel %vm2586, %v2552, %v1641
  %v2618 = vsel %vm2586, %v2553, %v1643
  %v2619 = vsel %vm2586, %v2554, %v1645
  %v2620 = vsel %vm2586, %v2555, %v1647
  %v2621 = vsel %vm2586, %v2556, %v1649
  %v2622 = vsel %vm2586, %v2557, %v1651
  %v2623 = vsel %vm2586, %v2558, %v1653
  %v2624 = vsel %vm2586, %v2559, %v1655
  %v2625 = vsel %vm2586, %v2560, %v1657
  %v2626 = vsel %vm2586, %v2561, %v1659
  %v2627 = vsel %vm2586, %v2562, %v1661
  %v2628 = vsel %vm2586, %v2563, %v1663
  %v2629 = vsel %vm2586, %v2564, %v1665
  %v2630 = vsel %vm2586, %v2565, %v1667
  %v2631 = vsel %vm2586, %v2566, %v1669
  %v2632 = vsel %vm2586, %v2567, %v1671
  %v2633 = vsel %vm2586, %v2568, %v1673
  %v2634 = vsel %vm2586, %v2569, %v1675
  %v2635 = vsel %vm2586, %v2570, %v1677
  %v2636 = vsel %vm2586, %v2571, %v1679
  %v2637 = vsel %vm2586, %v2572, %v1681
  %v2638 = vsel %vm2586, %v2573, %v1683
  %v2639 = vsel %vm2586, %v2574, %v1685
  %v2640 = vsel %vm2586, %v2575, %v1687
  %v2641 = vsel %vm2586, %v2576, %v1689
  %v2642 = vsel %vm2586, %v2577, %v1691
  %v2643 = vsel %vm2586, %v2578, %v1693
  %v2644 = vsel %vm2586, %v2579, %v1695
  %v2645 = vsel %vm2586, %v2580, %v1697
  %v2646 = vsel %vm2586, %v2581, %v1699
  %v2647 = vsel %vm2586, %v2582, %v1701
  %v2648 = vsel %vm2586, %v2583, %v1703
  %v2649 = vsel %vm2586, %v2584, %v1705
  %v2650 = vsel %vm2586, %v2585, %v1707
  %vm2651 = vcmask 146432
  %v2652 = vsel %vm2651, %v2587, %v1773
  %v2653 = vsel %vm2651, %v2588, %v1775
  %v2654 = vsel %vm2651, %v2589, %v1777
  %v2655 = vsel %vm2651, %v2590, %v1779
  %v2656 = vsel %vm2651, %v2591, %v1781
  %v2657 = vsel %vm2651, %v2592, %v1783
  %v2658 = vsel %vm2651, %v2593, %v1785
  %v2659 = vsel %vm2651, %v2594, %v1787
  %v2660 = vsel %vm2651, %v2595, %v1789
  %v2661 = vsel %vm2651, %v2596, %v1791
  %v2662 = vsel %vm2651, %v2597, %v1793
  %v2663 = vsel %vm2651, %v2598, %v1795
  %v2664 = vsel %vm2651, %v2599, %v1797
  %v2665 = vsel %vm2651, %v2600, %v1799
  %v2666 = vsel %vm2651, %v2601, %v1801
  %v2667 = vsel %vm2651, %v2602, %v1803
  %v2668 = vsel %vm2651, %v2603, %v1805
  %v2669 = vsel %vm2651, %v2604, %v1807
  %v2670 = vsel %vm2651, %v2605, %v1809
  %v2671 = vsel %vm2651, %v2606, %v1811
  %v2672 = vsel %vm2651, %v2607, %v1813
  %v2673 = vsel %vm2651, %v2608, %v1815
  %v2674 = vsel %vm2651, %v2609, %v1817
  %v2675 = vsel %vm2651, %v2610, %v1819
  %v2676 = vsel %vm2651, %v2611, %v1821
  %v2677 = vsel %vm2651, %v2612, %v1823
  %v2678 = vsel %vm2651, %v2613, %v1825
  %v2679 = vsel %vm2651, %v2614, %v1827
  %v2680 = vsel %vm2651, %v2615, %v1829
  %v2681 = vsel %vm2651, %v2616, %v1831
  %v2682 = vsel %vm2651, %v2617, %v1833
  %v2683 = vsel %vm2651, %v2618, %v1835
  %v2684 = vsel %vm2651, %v2619, %v1837
  %v2685 = vsel %vm2651, %v2620, %v1839
  %v2686 = vsel %vm2651, %v2621, %v1841
  %v2687 = vsel %vm2651, %v2622, %v1843
  %v2688 = vsel %vm2651, %v2623, %v1845
  %v2689 = vsel %vm2651, %v2624, %v1847
  %v2690 = vsel %vm2651, %v2625, %v1849
  %v2691 = vsel %vm2651, %v2626, %v1851
  %v2692 = vsel %vm2651, %v2627, %v1853
  %v2693 = vsel %vm2651, %v2628, %v1855
  %v2694 = vsel %vm2651, %v2629, %v1857
  %v2695 = vsel %vm2651, %v2630, %v1859
  %v2696 = vsel %vm2651, %v2631, %v1861
  %v2697 = vsel %vm2651, %v2632, %v1863
  %v2698 = vsel %vm2651, %v2633, %v1865
  %v2699 = vsel %vm2651, %v2634, %v1867
  %v2700 = vsel %vm2651, %v2635, %v1869
  %v2701 = vsel %vm2651, %v2636, %v1871
  %v2702 = vsel %vm2651, %v2637, %v1873
  %v2703 = vsel %vm2651, %v2638, %v1875
  %v2704 = vsel %vm2651, %v2639, %v1877
  %v2705 = vsel %vm2651, %v2640, %v1879
  %v2706 = vsel %vm2651, %v2641, %v1881
  %v2707 = vsel %vm2651, %v2642, %v1883
  %v2708 = vsel %vm2651, %v2643, %v1885
  %v2709 = vsel %vm2651, %v2644, %v1887
  %v2710 = vsel %vm2651, %v2645, %v1889
  %v2711 = vsel %vm2651, %v2646, %v1891
  %v2712 = vsel %vm2651, %v2647, %v1893
  %v2713 = vsel %vm2651, %v2648, %v1895
  %v2714 = vsel %vm2651, %v2649, %v1833
  %v2715 = vsel %vm2651, %v2650, %v1835
  %vm2716 = vcmask 171008
  %v2717 = vsel %vm2716, %v2652, %v1959
  %v2718 = vsel %vm2716, %v2653, %v1961
  %v2719 = vsel %vm2716, %v2654, %v1963
  %v2720 = vsel %vm2716, %v2655, %v1965
  %v2721 = vsel %vm2716, %v2656, %v1967
  %v2722 = vsel %vm2716, %v2657, %v1969
  %v2723 = vsel %vm2716, %v2658, %v1971
  %v2724 = vsel %vm2716, %v2659, %v1973
  %v2725 = vsel %vm2716, %v2660, %v1975
  %v2726 = vsel %vm2716, %v2661, %v1977
  %v2727 = vsel %vm2716, %v2662, %v1979
  %v2728 = vsel %vm2716, %v2663, %v1981
  %v2729 = vsel %vm2716, %v2664, %v1983
  %v2730 = vsel %vm2716, %v2665, %v1985
  %v2731 = vsel %vm2716, %v2666, %v1987
  %v2732 = vsel %vm2716, %v2667, %v1989
  %v2733 = vsel %vm2716, %v2668, %v1991
  %v2734 = vsel %vm2716, %v2669, %v1993
  %v2735 = vsel %vm2716, %v2670, %v1995
  %v2736 = vsel %vm2716, %v2671, %v1997
  %v2737 = vsel %vm2716, %v2672, %v1999
  %v2738 = vsel %vm2716, %v2673, %v2001
  %v2739 = vsel %vm2716, %v2674, %v2003
  %v2740 = vsel %vm2716, %v2675, %v2005
  %v2741 = vsel %vm2716, %v2676, %v2007
  %v2742 = vsel %vm2716, %v2677, %v2009
  %v2743 = vsel %vm2716, %v2678, %v2011
  %v2744 = vsel %vm2716, %v2679, %v2013
  %v2745 = vsel %vm2716, %v2680, %v2015
  %v2746 = vsel %vm2716, %v2681, %v2017
  %v2747 = vsel %vm2716, %v2682, %v2019
  %v2748 = vsel %vm2716, %v2683, %v2021
  %v2749 = vsel %vm2716, %v2684, %v2023
  %v2750 = vsel %vm2716, %v2685, %v2025
  %v2751 = vsel %vm2716, %v2686, %v2027
  %v2752 = vsel %vm2716, %v2687, %v2029
  %v2753 = vsel %vm2716, %v2688, %v2031
  %v2754 = vsel %vm2716, %v2689, %v2033
  %v2755 = vsel %vm2716, %v2690, %v2035
  %v2756 = vsel %vm2716, %v2691, %v2037
  %v2757 = vsel %vm2716, %v2692, %v2039
  %v2758 = vsel %vm2716, %v2693, %v2041
  %v2759 = vsel %vm2716, %v2694, %v2043
  %v2760 = vsel %vm2716, %v2695, %v2045
  %v2761 = vsel %vm2716, %v2696, %v2047
  %v2762 = vsel %vm2716, %v2697, %v2049
  %v2763 = vsel %vm2716, %v2698, %v2051
  %v2764 = vsel %vm2716, %v2699, %v2053
  %v2765 = vsel %vm2716, %v2700, %v2055
  %v2766 = vsel %vm2716, %v2701, %v2057
  %v2767 = vsel %vm2716, %v2702, %v2059
  %v2768 = vsel %vm2716, %v2703, %v2061
  %v2769 = vsel %vm2716, %v2704, %v2063
  %v2770 = vsel %vm2716, %v2705, %v2065
  %v2771 = vsel %vm2716, %v2706, %v2067
  %v2772 = vsel %vm2716, %v2707, %v2069
  %v2773 = vsel %vm2716, %v2708, %v2071
  %v2774 = vsel %vm2716, %v2709, %v2073
  %v2775 = vsel %vm2716, %v2710, %v2075
  %v2776 = vsel %vm2716, %v2711, %v2077
  %v2777 = vsel %vm2716, %v2712, %v2079
  %v2778 = vsel %vm2716, %v2713, %v2081
  %v2779 = vsel %vm2716, %v2714, %v2019
  %v2780 = vsel %vm2716, %v2715, %v2021
  %vm2781 = vcmask 195584
  %v2782 = vsel %vm2781, %v2717, %v2145
  %v2783 = vsel %vm2781, %v2718, %v2147
  %v2784 = vsel %vm2781, %v2719, %v2149
  %v2785 = vsel %vm2781, %v2720, %v2151
  %v2786 = vsel %vm2781, %v2721, %v2153
  %v2787 = vsel %vm2781, %v2722, %v2155
  %v2788 = vsel %vm2781, %v2723, %v2157
  %v2789 = vsel %vm2781, %v2724, %v2159
  %v2790 = vsel %vm2781, %v2725, %v2161
  %v2791 = vsel %vm2781, %v2726, %v2163
  %v2792 = vsel %vm2781, %v2727, %v2165
  %v2793 = vsel %vm2781, %v2728, %v2167
  %v2794 = vsel %vm2781, %v2729, %v2169
  %v2795 = vsel %vm2781, %v2730, %v2171
  %v2796 = vsel %vm2781, %v2731, %v2173
  %v2797 = vsel %vm2781, %v2732, %v2175
  %v2798 = vsel %vm2781, %v2733, %v2177
  %v2799 = vsel %vm2781, %v2734, %v2179
  %v2800 = vsel %vm2781, %v2735, %v2181
  %v2801 = vsel %vm2781, %v2736, %v2183
  %v2802 = vsel %vm2781, %v2737, %v2185
  %v2803 = vsel %vm2781, %v2738, %v2187
  %v2804 = vsel %vm2781, %v2739, %v2189
  %v2805 = vsel %vm2781, %v2740, %v2191
  %v2806 = vsel %vm2781, %v2741, %v2193
  %v2807 = vsel %vm2781, %v2742, %v2195
  %v2808 = vsel %vm2781, %v2743, %v2197
  %v2809 = vsel %vm2781, %v2744, %v2199
  %v2810 = vsel %vm2781, %v2745, %v2201
  %v2811 = vsel %vm2781, %v2746, %v2203
  %v2812 = vsel %vm2781, %v2747, %v2205
  %v2813 = vsel %vm2781, %v2748, %v2207
  %v2814 = vsel %vm2781, %v2749, %v2209
  %v2815 = vsel %vm2781, %v2750, %v2211
  %v2816 = vsel %vm2781, %v2751, %v2213
  %v2817 = vsel %vm2781, %v2752, %v2215
  %v2818 = vsel %vm2781, %v2753, %v2217
  %v2819 = vsel %vm2781, %v2754, %v2219
  %v2820 = vsel %vm2781, %v2755, %v2221
  %v2821 = vsel %vm2781, %v2756, %v2223
  %v2822 = vsel %vm2781, %v2757, %v2225
  %v2823 = vsel %vm2781, %v2758, %v2227
  %v2824 = vsel %vm2781, %v2759, %v2229
  %v2825 = vsel %vm2781, %v2760, %v2231
  %v2826 = vsel %vm2781, %v2761, %v2233
  %v2827 = vsel %vm2781, %v2762, %v2235
  %v2828 = vsel %vm2781, %v2763, %v2237
  %v2829 = vsel %vm2781, %v2764, %v2239
  %v2830 = vsel %vm2781, %v2765, %v2241
  %v2831 = vsel %vm2781, %v2766, %v2243
  %v2832 = vsel %vm2781, %v2767, %v2245
  %v2833 = vsel %vm2781, %v2768, %v2247
  %v2834 = vsel %vm2781, %v2769, %v2249
  %v2835 = vsel %vm2781, %v2770, %v2251
  %v2836 = vsel %vm2781, %v2771, %v2253
  %v2837 = vsel %vm2781, %v2772, %v2255
  %v2838 = vsel %vm2781, %v2773, %v2257
  %v2839 = vsel %vm2781, %v2774, %v2259
  %v2840 = vsel %vm2781, %v2775, %v2261
  %v2841 = vsel %vm2781, %v2776, %v2263
  %v2842 = vsel %vm2781, %v2777, %v2265
  %v2843 = vsel %vm2781, %v2778, %v2267
  %v2844 = vsel %vm2781, %v2779, %v2205
  %v2845 = vsel %vm2781, %v2780, %v2207
  %v2846 = vpack.c.bf16 %v2783, %v2782
  %v2847 = vpack.c.bf16 %v2785, %v2784
  %v2848 = vpack.c.bf16 %v2787, %v2786
  %v2849 = vpack.c.bf16 %v2789, %v2788
  %v2850 = vpack.c.bf16 %v2791, %v2790
  %v2851 = vpack.c.bf16 %v2793, %v2792
  %v2852 = vpack.c.bf16 %v2795, %v2794
  %v2853 = vpack.c.bf16 %v2797, %v2796
  %v2854 = vpack.c.bf16 %v2799, %v2798
  %v2855 = vpack.c.bf16 %v2801, %v2800
  %v2856 = vpack.c.bf16 %v2803, %v2802
  %v2857 = vpack.c.bf16 %v2805, %v2804
  %v2858 = vpack.c.bf16 %v2807, %v2806
  %v2859 = vpack.c.bf16 %v2809, %v2808
  %v2860 = vpack.c.bf16 %v2811, %v2810
  %v2861 = vpack.c.bf16 %v2813, %v2812
  %v2862 = vpack.c.bf16 %v2815, %v2814
  %v2863 = vpack.c.bf16 %v2817, %v2816
  %v2864 = vpack.c.bf16 %v2819, %v2818
  %v2865 = vpack.c.bf16 %v2821, %v2820
  %v2866 = vpack.c.bf16 %v2823, %v2822
  %v2867 = vpack.c.bf16 %v2825, %v2824
  %v2868 = vpack.c.bf16 %v2827, %v2826
  %v2869 = vpack.c.bf16 %v2829, %v2828
  %v2870 = vpack.c.bf16 %v2831, %v2830
  %v2871 = vpack.c.bf16 %v2833, %v2832
  %v2872 = vpack.c.bf16 %v2835, %v2834
  %v2873 = vpack.c.bf16 %v2837, %v2836
  %v2874 = vpack.c.bf16 %v2839, %v2838
  %v2875 = vpack.c.bf16 %v2841, %v2840
  %v2876 = vpack.c.bf16 %v2843, %v2842
  %v2877 = vpack.c.bf16 %v2845, %v2844
  %v2878 = vld [vmem:[%s2] sm:$0xf]
  %v2879 = vld [vmem:[%s2 + $0x4] sm:$0xf]
  %v2880 = vld [vmem:[%s2 + $0x8] sm:$0xf]
  %v2881 = vld [vmem:[%s2 + $0xc] sm:$0x3]
  %v2886 = vunpack.c.l.b16 %v2878
  %v2887 = vunpack.c.l.b16 %v2879
  %v2888 = vunpack.c.l.b16 %v2880
  %v2889 = vunpack.c.l.b16 %v2881
  %v2890 = vpack.c.b16 %v2887, %v2886
  %v2891 = vpack.c.b16 %v2889, %v2888
  %vm2893 = vcmask 220160
  %v2895 = vsel %vm2893, %v2846, 0
  %v2898 = vsel %vm2893, %v2847, 0
  %v2901 = vsel %vm2893, %v2848, 0
  %v2904 = vsel %vm2893, %v2849, 0
  %v2907 = vsel %vm2893, %v2850, 0
  %v2910 = vsel %vm2893, %v2851, 0
  %v2913 = vsel %vm2893, %v2852, 0
  %v2916 = vsel %vm2893, %v2853, 0
  %v2919 = vsel %vm2893, %v2854, 0
  %v2922 = vsel %vm2893, %v2855, 0
  %v2925 = vsel %vm2893, %v2856, 0
  %v2928 = vsel %vm2893, %v2857, 0
  %v2931 = vsel %vm2893, %v2858, 0
  %v2934 = vsel %vm2893, %v2859, 0
  %v2937 = vsel %vm2893, %v2860, 0
  %v2940 = vsel %vm2893, %v2861, 0
  %v2943 = vsel %vm2893, %v2862, 0
  %v2946 = vsel %vm2893, %v2863, 0
  %v2949 = vsel %vm2893, %v2864, 0
  %v2952 = vsel %vm2893, %v2865, 0
  %v2955 = vsel %vm2893, %v2866, 0
  %v2958 = vsel %vm2893, %v2867, 0
  %v2961 = vsel %vm2893, %v2868, 0
  %v2964 = vsel %vm2893, %v2869, 0
  %v2967 = vsel %vm2893, %v2870, 0
  %v2970 = vsel %vm2893, %v2871, 0
  %v2973 = vsel %vm2893, %v2872, 0
  %v2976 = vsel %vm2893, %v2873, 0
  %v2979 = vsel %vm2893, %v2874, 0
  %v2982 = vsel %vm2893, %v2875, 0
  %v2985 = vsel %vm2893, %v2876, 0
  %v2988 = vsel %vm2893, %v2877, 0
  %vm2990 = vcmask 1044480
  %v2991 = vsel %vm2990, 4294967295, 65535
  %v2992 = vsel %vm830, %v2991, 0
  %v2994 = vand.u32 %v2891, %v2992
  %2996 = vmatpush.bf16.msra.mxu0 0
  %2997 = vmatpush.bf16.msra.mxu0 0
  %2998 = vmatpush.bf16.msra.mxu0 0
  %2999 = vmatpush.bf16.msra.mxu0 0
  %3000 = vmatpush.bf16.msra.mxu0 0
  %3001 = vmatpush.bf16.msra.mxu0 0
  %3002 = vmatpush.bf16.msra.mxu0 %v2994
  %3003 = vmatpush.bf16.msra.mxu0 %v2890
  %3004 = vmatmul.bf16.gmra.mxu0 %v2895
  %v3005 = vpop.f32.mrf.mxu0
  %v3006 = vadd.f32 0.0, %v3005
  %v3007 = vpop.f32.mrf.mxu0
  %v3008 = vadd.f32 0.0, %v3007
  %3009 = vmatmul.bf16.gmra.mxu0 %v2898
  %v3010 = vpop.f32.mrf.mxu0
  %v3011 = vadd.f32 0.0, %v3010
  %v3012 = vpop.f32.mrf.mxu0
  %v3013 = vadd.f32 0.0, %v3012
  %3014 = vmatmul.bf16.gmra.mxu0 %v2901
  %v3015 = vpop.f32.mrf.mxu0
  %v3016 = vadd.f32 0.0, %v3015
  %v3017 = vpop.f32.mrf.mxu0
  %v3018 = vadd.f32 0.0, %v3017
  %3019 = vmatmul.bf16.gmra.mxu0 %v2904
  %v3020 = vpop.f32.mrf.mxu0
  %v3021 = vadd.f32 0.0, %v3020
  %v3022 = vpop.f32.mrf.mxu0
  %v3023 = vadd.f32 0.0, %v3022
  %3024 = vmatmul.bf16.gmra.mxu0 %v2907
  %v3025 = vpop.f32.mrf.mxu0
  %v3026 = vadd.f32 0.0, %v3025
  %v3027 = vpop.f32.mrf.mxu0
  %v3028 = vadd.f32 0.0, %v3027
  %3029 = vmatmul.bf16.gmra.mxu0 %v2910
  %v3030 = vpop.f32.mrf.mxu0
  %v3031 = vadd.f32 0.0, %v3030
  %v3032 = vpop.f32.mrf.mxu0
  %v3033 = vadd.f32 0.0, %v3032
  %3034 = vmatmul.bf16.gmra.mxu0 %v2913
  %v3035 = vpop.f32.mrf.mxu0
  %v3036 = vadd.f32 0.0, %v3035
  %v3037 = vpop.f32.mrf.mxu0
  %v3038 = vadd.f32 0.0, %v3037
  %3039 = vmatmul.bf16.gmra.mxu0 %v2916
  %v3040 = vpop.f32.mrf.mxu0
  %v3041 = vadd.f32 0.0, %v3040
  %v3042 = vpop.f32.mrf.mxu0
  %v3043 = vadd.f32 0.0, %v3042
  %3044 = vmatmul.bf16.gmra.mxu0 %v2919
  %v3045 = vpop.f32.mrf.mxu0
  %v3046 = vadd.f32 0.0, %v3045
  %v3047 = vpop.f32.mrf.mxu0
  %v3048 = vadd.f32 0.0, %v3047
  %3049 = vmatmul.bf16.gmra.mxu0 %v2922
  %v3050 = vpop.f32.mrf.mxu0
  %v3051 = vadd.f32 0.0, %v3050
  %v3052 = vpop.f32.mrf.mxu0
  %v3053 = vadd.f32 0.0, %v3052
  %3054 = vmatmul.bf16.gmra.mxu0 %v2925
  %v3055 = vpop.f32.mrf.mxu0
  %v3056 = vadd.f32 0.0, %v3055
  %v3057 = vpop.f32.mrf.mxu0
  %v3058 = vadd.f32 0.0, %v3057
  %3059 = vmatmul.bf16.gmra.mxu0 %v2928
  %v3060 = vpop.f32.mrf.mxu0
  %v3061 = vadd.f32 0.0, %v3060
  %v3062 = vpop.f32.mrf.mxu0
  %v3063 = vadd.f32 0.0, %v3062
  %3064 = vmatmul.bf16.gmra.mxu0 %v2931
  %v3065 = vpop.f32.mrf.mxu0
  %v3066 = vadd.f32 0.0, %v3065
  %v3067 = vpop.f32.mrf.mxu0
  %v3068 = vadd.f32 0.0, %v3067
  %3069 = vmatmul.bf16.gmra.mxu0 %v2934
  %v3070 = vpop.f32.mrf.mxu0
  %v3071 = vadd.f32 0.0, %v3070
  %v3072 = vpop.f32.mrf.mxu0
  %v3073 = vadd.f32 0.0, %v3072
  %3074 = vmatmul.bf16.gmra.mxu0 %v2937
  %v3075 = vpop.f32.mrf.mxu0
  %v3076 = vadd.f32 0.0, %v3075
  %v3077 = vpop.f32.mrf.mxu0
  %v3078 = vadd.f32 0.0, %v3077
  %3079 = vmatmul.bf16.gmra.mxu0 %v2940
  %v3080 = vpop.f32.mrf.mxu0
  %v3081 = vadd.f32 0.0, %v3080
  %v3082 = vpop.f32.mrf.mxu0
  %v3083 = vadd.f32 0.0, %v3082
  %3084 = vmatmul.bf16.gmra.mxu0 %v2943
  %v3085 = vpop.f32.mrf.mxu0
  %v3086 = vadd.f32 0.0, %v3085
  %v3087 = vpop.f32.mrf.mxu0
  %v3088 = vadd.f32 0.0, %v3087
  %3089 = vmatmul.bf16.gmra.mxu0 %v2946
  %v3090 = vpop.f32.mrf.mxu0
  %v3091 = vadd.f32 0.0, %v3090
  %v3092 = vpop.f32.mrf.mxu0
  %v3093 = vadd.f32 0.0, %v3092
  %3094 = vmatmul.bf16.gmra.mxu0 %v2949
  %v3095 = vpop.f32.mrf.mxu0
  %v3096 = vadd.f32 0.0, %v3095
  %v3097 = vpop.f32.mrf.mxu0
  %v3098 = vadd.f32 0.0, %v3097
  %3099 = vmatmul.bf16.gmra.mxu0 %v2952
  %v3100 = vpop.f32.mrf.mxu0
  %v3101 = vadd.f32 0.0, %v3100
  %v3102 = vpop.f32.mrf.mxu0
  %v3103 = vadd.f32 0.0, %v3102
  %3104 = vmatmul.bf16.gmra.mxu0 %v2955
  %v3105 = vpop.f32.mrf.mxu0
  %v3106 = vadd.f32 0.0, %v3105
  %v3107 = vpop.f32.mrf.mxu0
  %v3108 = vadd.f32 0.0, %v3107
  %3109 = vmatmul.bf16.gmra.mxu0 %v2958
  %v3110 = vpop.f32.mrf.mxu0
  %v3111 = vadd.f32 0.0, %v3110
  %v3112 = vpop.f32.mrf.mxu0
  %v3113 = vadd.f32 0.0, %v3112
  %3114 = vmatmul.bf16.gmra.mxu0 %v2961
  %v3115 = vpop.f32.mrf.mxu0
  %v3116 = vadd.f32 0.0, %v3115
  %v3117 = vpop.f32.mrf.mxu0
  %v3118 = vadd.f32 0.0, %v3117
  %3119 = vmatmul.bf16.gmra.mxu0 %v2964
  %v3120 = vpop.f32.mrf.mxu0
  %v3121 = vadd.f32 0.0, %v3120
  %v3122 = vpop.f32.mrf.mxu0
  %v3123 = vadd.f32 0.0, %v3122
  %3124 = vmatmul.bf16.gmra.mxu0 %v2967
  %v3125 = vpop.f32.mrf.mxu0
  %v3126 = vadd.f32 0.0, %v3125
  %v3127 = vpop.f32.mrf.mxu0
  %v3128 = vadd.f32 0.0, %v3127
  %3129 = vmatmul.bf16.gmra.mxu0 %v2970
  %v3130 = vpop.f32.mrf.mxu0
  %v3131 = vadd.f32 0.0, %v3130
  %v3132 = vpop.f32.mrf.mxu0
  %v3133 = vadd.f32 0.0, %v3132
  %3134 = vmatmul.bf16.gmra.mxu0 %v2973
  %v3135 = vpop.f32.mrf.mxu0
  %v3136 = vadd.f32 0.0, %v3135
  %v3137 = vpop.f32.mrf.mxu0
  %v3138 = vadd.f32 0.0, %v3137
  %3139 = vmatmul.bf16.gmra.mxu0 %v2976
  %v3140 = vpop.f32.mrf.mxu0
  %v3141 = vadd.f32 0.0, %v3140
  %v3142 = vpop.f32.mrf.mxu0
  %v3143 = vadd.f32 0.0, %v3142
  %3144 = vmatmul.bf16.gmra.mxu0 %v2979
  %v3145 = vpop.f32.mrf.mxu0
  %v3146 = vadd.f32 0.0, %v3145
  %v3147 = vpop.f32.mrf.mxu0
  %v3148 = vadd.f32 0.0, %v3147
  %3149 = vmatmul.bf16.gmra.mxu0 %v2982
  %v3150 = vpop.f32.mrf.mxu0
  %v3151 = vadd.f32 0.0, %v3150
  %v3152 = vpop.f32.mrf.mxu0
  %v3153 = vadd.f32 0.0, %v3152
  %3154 = vmatmul.bf16.gmra.mxu0 %v2985
  %v3155 = vpop.f32.mrf.mxu0
  %v3156 = vadd.f32 0.0, %v3155
  %v3157 = vpop.f32.mrf.mxu0
  %v3158 = vadd.f32 0.0, %v3157
  %3159 = vmatmul.bf16.gmra.mxu0 %v2988
  %v3160 = vpop.f32.mrf.mxu0
  %v3161 = vadd.f32 0.0, %v3160
  %v3162 = vpop.f32.mrf.mxu0
  %v3163 = vadd.f32 0.0, %v3162
  %3164 = vdwg.mxu0
  %v3165 = vld [vmem:[%s3] sm:$0x1]
  %v3166 = vperm.slane %v3165, 0
  %v3167 = vmul.f32 %v3006, %v3166
  %v3168 = vmul.f32 %v3008, %v3166
  %v3169 = vmul.f32 %v3011, %v3166
  %v3170 = vmul.f32 %v3013, %v3166
  %v3171 = vmul.f32 %v3016, %v3166
  %v3172 = vmul.f32 %v3018, %v3166
  %v3173 = vmul.f32 %v3021, %v3166
  %v3174 = vmul.f32 %v3023, %v3166
  %v3175 = vmul.f32 %v3026, %v3166
  %v3176 = vmul.f32 %v3028, %v3166
  %v3177 = vmul.f32 %v3031, %v3166
  %v3178 = vmul.f32 %v3033, %v3166
  %v3179 = vmul.f32 %v3036, %v3166
  %v3180 = vmul.f32 %v3038, %v3166
  %v3181 = vmul.f32 %v3041, %v3166
  %v3182 = vmul.f32 %v3043, %v3166
  %v3183 = vmul.f32 %v3046, %v3166
  %v3184 = vmul.f32 %v3048, %v3166
  %v3185 = vmul.f32 %v3051, %v3166
  %v3186 = vmul.f32 %v3053, %v3166
  %v3187 = vmul.f32 %v3056, %v3166
  %v3188 = vmul.f32 %v3058, %v3166
  %v3189 = vmul.f32 %v3061, %v3166
  %v3190 = vmul.f32 %v3063, %v3166
  %v3191 = vmul.f32 %v3066, %v3166
  %v3192 = vmul.f32 %v3068, %v3166
  %v3193 = vmul.f32 %v3071, %v3166
  %v3194 = vmul.f32 %v3073, %v3166
  %v3195 = vmul.f32 %v3076, %v3166
  %v3196 = vmul.f32 %v3078, %v3166
  %v3197 = vmul.f32 %v3081, %v3166
  %v3198 = vmul.f32 %v3083, %v3166
  %v3199 = vmul.f32 %v3086, %v3166
  %v3200 = vmul.f32 %v3088, %v3166
  %v3201 = vmul.f32 %v3091, %v3166
  %v3202 = vmul.f32 %v3093, %v3166
  %v3203 = vmul.f32 %v3096, %v3166
  %v3204 = vmul.f32 %v3098, %v3166
  %v3205 = vmul.f32 %v3101, %v3166
  %v3206 = vmul.f32 %v3103, %v3166
  %v3207 = vmul.f32 %v3106, %v3166
  %v3208 = vmul.f32 %v3108, %v3166
  %v3209 = vmul.f32 %v3111, %v3166
  %v3210 = vmul.f32 %v3113, %v3166
  %v3211 = vmul.f32 %v3116, %v3166
  %v3212 = vmul.f32 %v3118, %v3166
  %v3213 = vmul.f32 %v3121, %v3166
  %v3214 = vmul.f32 %v3123, %v3166
  %v3215 = vmul.f32 %v3126, %v3166
  %v3216 = vmul.f32 %v3128, %v3166
  %v3217 = vmul.f32 %v3131, %v3166
  %v3218 = vmul.f32 %v3133, %v3166
  %v3219 = vmul.f32 %v3136, %v3166
  %v3220 = vmul.f32 %v3138, %v3166
  %v3221 = vmul.f32 %v3141, %v3166
  %v3222 = vmul.f32 %v3143, %v3166
  %v3223 = vmul.f32 %v3146, %v3166
  %v3224 = vmul.f32 %v3148, %v3166
  %v3225 = vmul.f32 %v3151, %v3166
  %v3226 = vmul.f32 %v3153, %v3166
  %v3227 = vmul.f32 %v3156, %v3166
  %v3228 = vmul.f32 %v3158, %v3166
  %v3229 = vmul.f32 %v3161, %v3166
  %v3230 = vmul.f32 %v3163, %v3166
  %v3231 = vld [vmem:[%s3 + $0x1] sm:$0x1]
  %v3232 = vperm.slane %v3231, 0
  %v3233 = vadd.f32 %v3167, %v3232
  %v3234 = vadd.f32 %v3168, %v3232
  %v3235 = vadd.f32 %v3169, %v3232
  %v3236 = vadd.f32 %v3170, %v3232
  %v3237 = vadd.f32 %v3171, %v3232
  %v3238 = vadd.f32 %v3172, %v3232
  %v3239 = vadd.f32 %v3173, %v3232
  %v3240 = vadd.f32 %v3174, %v3232
  %v3241 = vadd.f32 %v3175, %v3232
  %v3242 = vadd.f32 %v3176, %v3232
  %v3243 = vadd.f32 %v3177, %v3232
  %v3244 = vadd.f32 %v3178, %v3232
  %v3245 = vadd.f32 %v3179, %v3232
  %v3246 = vadd.f32 %v3180, %v3232
  %v3247 = vadd.f32 %v3181, %v3232
  %v3248 = vadd.f32 %v3182, %v3232
  %v3249 = vadd.f32 %v3183, %v3232
  %v3250 = vadd.f32 %v3184, %v3232
  %v3251 = vadd.f32 %v3185, %v3232
  %v3252 = vadd.f32 %v3186, %v3232
  %v3253 = vadd.f32 %v3187, %v3232
  %v3254 = vadd.f32 %v3188, %v3232
  %v3255 = vadd.f32 %v3189, %v3232
  %v3256 = vadd.f32 %v3190, %v3232
  %v3257 = vadd.f32 %v3191, %v3232
  %v3258 = vadd.f32 %v3192, %v3232
  %v3259 = vadd.f32 %v3193, %v3232
  %v3260 = vadd.f32 %v3194, %v3232
  %v3261 = vadd.f32 %v3195, %v3232
  %v3262 = vadd.f32 %v3196, %v3232
  %v3263 = vadd.f32 %v3197, %v3232
  %v3264 = vadd.f32 %v3198, %v3232
  %v3265 = vadd.f32 %v3199, %v3232
  %v3266 = vadd.f32 %v3200, %v3232
  %v3267 = vadd.f32 %v3201, %v3232
  %v3268 = vadd.f32 %v3202, %v3232
  %v3269 = vadd.f32 %v3203, %v3232
  %v3270 = vadd.f32 %v3204, %v3232
  %v3271 = vadd.f32 %v3205, %v3232
  %v3272 = vadd.f32 %v3206, %v3232
  %v3273 = vadd.f32 %v3207, %v3232
  %v3274 = vadd.f32 %v3208, %v3232
  %v3275 = vadd.f32 %v3209, %v3232
  %v3276 = vadd.f32 %v3210, %v3232
  %v3277 = vadd.f32 %v3211, %v3232
  %v3278 = vadd.f32 %v3212, %v3232
  %v3279 = vadd.f32 %v3213, %v3232
  %v3280 = vadd.f32 %v3214, %v3232
  %v3281 = vadd.f32 %v3215, %v3232
  %v3282 = vadd.f32 %v3216, %v3232
  %v3283 = vadd.f32 %v3217, %v3232
  %v3284 = vadd.f32 %v3218, %v3232
  %v3285 = vadd.f32 %v3219, %v3232
  %v3286 = vadd.f32 %v3220, %v3232
  %v3287 = vadd.f32 %v3221, %v3232
  %v3288 = vadd.f32 %v3222, %v3232
  %v3289 = vadd.f32 %v3223, %v3232
  %v3290 = vadd.f32 %v3224, %v3232
  %v3291 = vadd.f32 %v3225, %v3232
  %v3292 = vadd.f32 %v3226, %v3232
  %v3293 = vadd.f32 %v3227, %v3232
  %v3294 = vadd.f32 %v3228, %v3232
  %v3295 = vadd.f32 %v3229, %v3232
  %v3296 = vadd.f32 %v3230, %v3232
  %v3297 = vmax.f32 %v3233, 0.0
  %v3298 = vmax.f32 %v3234, 0.0
  %v3299 = vmax.f32 %v3235, 0.0
  %v3300 = vmax.f32 %v3236, 0.0
  %v3301 = vmax.f32 %v3237, 0.0
  %v3302 = vmax.f32 %v3238, 0.0
  %v3303 = vmax.f32 %v3239, 0.0
  %v3304 = vmax.f32 %v3240, 0.0
  %v3305 = vmax.f32 %v3241, 0.0
  %v3306 = vmax.f32 %v3242, 0.0
  %v3307 = vmax.f32 %v3243, 0.0
  %v3308 = vmax.f32 %v3244, 0.0
  %v3309 = vmax.f32 %v3245, 0.0
  %v3310 = vmax.f32 %v3246, 0.0
  %v3311 = vmax.f32 %v3247, 0.0
  %v3312 = vmax.f32 %v3248, 0.0
  %v3313 = vmax.f32 %v3249, 0.0
  %v3314 = vmax.f32 %v3250, 0.0
  %v3315 = vmax.f32 %v3251, 0.0
  %v3316 = vmax.f32 %v3252, 0.0
  %v3317 = vmax.f32 %v3253, 0.0
  %v3318 = vmax.f32 %v3254, 0.0
  %v3319 = vmax.f32 %v3255, 0.0
  %v3320 = vmax.f32 %v3256, 0.0
  %v3321 = vmax.f32 %v3257, 0.0
  %v3322 = vmax.f32 %v3258, 0.0
  %v3323 = vmax.f32 %v3259, 0.0
  %v3324 = vmax.f32 %v3260, 0.0
  %v3325 = vmax.f32 %v3261, 0.0
  %v3326 = vmax.f32 %v3262, 0.0
  %v3327 = vmax.f32 %v3263, 0.0
  %v3328 = vmax.f32 %v3264, 0.0
  %v3329 = vmax.f32 %v3265, 0.0
  %v3330 = vmax.f32 %v3266, 0.0
  %v3331 = vmax.f32 %v3267, 0.0
  %v3332 = vmax.f32 %v3268, 0.0
  %v3333 = vmax.f32 %v3269, 0.0
  %v3334 = vmax.f32 %v3270, 0.0
  %v3335 = vmax.f32 %v3271, 0.0
  %v3336 = vmax.f32 %v3272, 0.0
  %v3337 = vmax.f32 %v3273, 0.0
  %v3338 = vmax.f32 %v3274, 0.0
  %v3339 = vmax.f32 %v3275, 0.0
  %v3340 = vmax.f32 %v3276, 0.0
  %v3341 = vmax.f32 %v3277, 0.0
  %v3342 = vmax.f32 %v3278, 0.0
  %v3343 = vmax.f32 %v3279, 0.0
  %v3344 = vmax.f32 %v3280, 0.0
  %v3345 = vmax.f32 %v3281, 0.0
  %v3346 = vmax.f32 %v3282, 0.0
  %v3347 = vmax.f32 %v3283, 0.0
  %v3348 = vmax.f32 %v3284, 0.0
  %v3349 = vmax.f32 %v3285, 0.0
  %v3350 = vmax.f32 %v3286, 0.0
  %v3351 = vmax.f32 %v3287, 0.0
  %v3352 = vmax.f32 %v3288, 0.0
  %v3353 = vmax.f32 %v3289, 0.0
  %v3354 = vmax.f32 %v3290, 0.0
  %v3355 = vmax.f32 %v3291, 0.0
  %v3356 = vmax.f32 %v3292, 0.0
  %v3357 = vmax.f32 %v3293, 0.0
  %v3358 = vmax.f32 %v3294, 0.0
  %v3359 = vmax.f32 %v3295, 0.0
  %v3360 = vmax.f32 %v3296, 0.0
  %v3425 = vrot.slane %v3297, 7
  %v3426 = vrot.slane %v3298, 7
  %v3427 = vsel %vm165, %v3425, %v3426
  %v3428 = vrot.slane %v3299, 7
  %v3429 = vrot.slane %v3300, 7
  %v3430 = vsel %vm165, %v3428, %v3429
  %v3431 = vrot.slane %v3301, 7
  %v3432 = vrot.slane %v3302, 7
  %v3433 = vsel %vm165, %v3431, %v3432
  %v3434 = vrot.slane %v3303, 7
  %v3435 = vrot.slane %v3304, 7
  %v3436 = vsel %vm165, %v3434, %v3435
  %v3437 = vrot.slane %v3305, 7
  %v3438 = vrot.slane %v3306, 7
  %v3439 = vsel %vm165, %v3437, %v3438
  %v3440 = vrot.slane %v3307, 7
  %v3441 = vrot.slane %v3308, 7
  %v3442 = vsel %vm165, %v3440, %v3441
  %v3443 = vrot.slane %v3309, 7
  %v3444 = vrot.slane %v3310, 7
  %v3445 = vsel %vm165, %v3443, %v3444
  %v3446 = vrot.slane %v3311, 7
  %v3447 = vrot.slane %v3312, 7
  %v3448 = vsel %vm165, %v3446, %v3447
  %v3449 = vrot.slane %v3313, 7
  %v3450 = vrot.slane %v3314, 7
  %v3451 = vsel %vm165, %v3449, %v3450
  %v3452 = vrot.slane %v3315, 7
  %v3453 = vrot.slane %v3316, 7
  %v3454 = vsel %vm165, %v3452, %v3453
  %v3455 = vrot.slane %v3317, 7
  %v3456 = vrot.slane %v3318, 7
  %v3457 = vsel %vm165, %v3455, %v3456
  %v3458 = vrot.slane %v3319, 7
  %v3459 = vrot.slane %v3320, 7
  %v3460 = vsel %vm165, %v3458, %v3459
  %v3461 = vrot.slane %v3321, 7
  %v3462 = vrot.slane %v3322, 7
  %v3463 = vsel %vm165, %v3461, %v3462
  %v3464 = vrot.slane %v3323, 7
  %v3465 = vrot.slane %v3324, 7
  %v3466 = vsel %vm165, %v3464, %v3465
  %v3467 = vrot.slane %v3325, 7
  %v3468 = vrot.slane %v3326, 7
  %v3469 = vsel %vm165, %v3467, %v3468
  %v3470 = vrot.slane %v3327, 7
  %v3471 = vrot.slane %v3328, 7
  %v3472 = vsel %vm165, %v3470, %v3471
  %v3473 = vrot.slane %v3329, 7
  %v3474 = vrot.slane %v3330, 7
  %v3475 = vsel %vm165, %v3473, %v3474
  %v3476 = vrot.slane %v3331, 7
  %v3477 = vrot.slane %v3332, 7
  %v3478 = vsel %vm165, %v3476, %v3477
  %v3479 = vrot.slane %v3333, 7
  %v3480 = vrot.slane %v3334, 7
  %v3481 = vsel %vm165, %v3479, %v3480
  %v3482 = vrot.slane %v3335, 7
  %v3483 = vrot.slane %v3336, 7
  %v3484 = vsel %vm165, %v3482, %v3483
  %v3485 = vrot.slane %v3337, 7
  %v3486 = vrot.slane %v3338, 7
  %v3487 = vsel %vm165, %v3485, %v3486
  %v3488 = vrot.slane %v3339, 7
  %v3489 = vrot.slane %v3340, 7
  %v3490 = vsel %vm165, %v3488, %v3489
  %v3491 = vrot.slane %v3341, 7
  %v3492 = vrot.slane %v3342, 7
  %v3493 = vsel %vm165, %v3491, %v3492
  %v3494 = vrot.slane %v3343, 7
  %v3495 = vrot.slane %v3344, 7
  %v3496 = vsel %vm165, %v3494, %v3495
  %v3497 = vrot.slane %v3345, 7
  %v3498 = vrot.slane %v3346, 7
  %v3499 = vsel %vm165, %v3497, %v3498
  %v3500 = vrot.slane %v3347, 7
  %v3501 = vrot.slane %v3348, 7
  %v3502 = vsel %vm165, %v3500, %v3501
  %v3503 = vrot.slane %v3349, 7
  %v3504 = vrot.slane %v3350, 7
  %v3505 = vsel %vm165, %v3503, %v3504
  %v3506 = vrot.slane %v3351, 7
  %v3507 = vrot.slane %v3352, 7
  %v3508 = vsel %vm165, %v3506, %v3507
  %v3509 = vrot.slane %v3353, 7
  %v3510 = vrot.slane %v3354, 7
  %v3511 = vsel %vm165, %v3509, %v3510
  %v3512 = vrot.slane %v3355, 7
  %v3513 = vrot.slane %v3356, 7
  %v3514 = vsel %vm165, %v3512, %v3513
  %v3515 = vrot.slane %v3357, 7
  %v3516 = vrot.slane %v3358, 7
  %v3517 = vsel %vm165, %v3515, %v3516
  %v3518 = vrot.slane %v3359, 7
  %v3519 = vrot.slane %v3360, 7
  %v3520 = vsel %vm165, %v3518, %v3519
  %v3615 = vsel %vm165, 0.0, %v3425
  %v3616 = vsel %vm165, 0.0, %v3428
  %v3617 = vsel %vm165, 0.0, %v3431
  %v3618 = vsel %vm165, 0.0, %v3434
  %v3619 = vsel %vm165, 0.0, %v3437
  %v3620 = vsel %vm165, 0.0, %v3440
  %v3621 = vsel %vm165, 0.0, %v3443
  %v3622 = vsel %vm165, 0.0, %v3446
  %v3623 = vsel %vm165, 0.0, %v3449
  %v3624 = vsel %vm165, 0.0, %v3452
  %v3625 = vsel %vm165, 0.0, %v3455
  %v3626 = vsel %vm165, 0.0, %v3458
  %v3627 = vsel %vm165, 0.0, %v3461
  %v3628 = vsel %vm165, 0.0, %v3464
  %v3629 = vsel %vm165, 0.0, %v3467
  %v3630 = vsel %vm165, 0.0, %v3470
  %v3631 = vsel %vm165, 0.0, %v3473
  %v3632 = vsel %vm165, 0.0, %v3476
  %v3633 = vsel %vm165, 0.0, %v3479
  %v3634 = vsel %vm165, 0.0, %v3482
  %v3635 = vsel %vm165, 0.0, %v3485
  %v3636 = vsel %vm165, 0.0, %v3488
  %v3637 = vsel %vm165, 0.0, %v3491
  %v3638 = vsel %vm165, 0.0, %v3494
  %v3639 = vsel %vm165, 0.0, %v3497
  %v3640 = vsel %vm165, 0.0, %v3500
  %v3641 = vsel %vm165, 0.0, %v3503
  %v3642 = vsel %vm165, 0.0, %v3506
  %v3643 = vsel %vm165, 0.0, %v3509
  %v3644 = vsel %vm165, 0.0, %v3512
  %v3645 = vsel %vm165, 0.0, %v3515
  %v3646 = vsel %vm165, 0.0, %v3518
  %v3647 = vsel %vm165, %v3426, 0.0
  %v3648 = vsel %vm165, %v3429, 0.0
  %v3649 = vsel %vm165, %v3432, 0.0
  %v3650 = vsel %vm165, %v3435, 0.0
  %v3651 = vsel %vm165, %v3438, 0.0
  %v3652 = vsel %vm165, %v3441, 0.0
  %v3653 = vsel %vm165, %v3444, 0.0
  %v3654 = vsel %vm165, %v3447, 0.0
  %v3655 = vsel %vm165, %v3450, 0.0
  %v3656 = vsel %vm165, %v3453, 0.0
  %v3657 = vsel %vm165, %v3456, 0.0
  %v3658 = vsel %vm165, %v3459, 0.0
  %v3659 = vsel %vm165, %v3462, 0.0
  %v3660 = vsel %vm165, %v3465, 0.0
  %v3661 = vsel %vm165, %v3468, 0.0
  %v3662 = vsel %vm165, %v3471, 0.0
  %v3663 = vsel %vm165, %v3474, 0.0
  %v3664 = vsel %vm165, %v3477, 0.0
  %v3665 = vsel %vm165, %v3480, 0.0
  %v3666 = vsel %vm165, %v3483, 0.0
  %v3667 = vsel %vm165, %v3486, 0.0
  %v3668 = vsel %vm165, %v3489, 0.0
  %v3669 = vsel %vm165, %v3492, 0.0
  %v3670 = vsel %vm165, %v3495, 0.0
  %v3671 = vsel %vm165, %v3498, 0.0
  %v3672 = vsel %vm165, %v3501, 0.0
  %v3673 = vsel %vm165, %v3504, 0.0
  %v3674 = vsel %vm165, %v3507, 0.0
  %v3675 = vsel %vm165, %v3510, 0.0
  %v3676 = vsel %vm165, %v3513, 0.0
  %v3677 = vsel %vm165, %v3516, 0.0
  %v3678 = vsel %vm165, %v3519, 0.0
  %v3739 = vrot.slane %v3615, 1
  %v3740 = vrot.slane %v3427, 1
  %v3741 = vsel %vm488, %v3739, %v3740
  %v3742 = vrot.slane %v3647, 1
  %v3743 = vsel %vm488, %v3740, %v3742
  %v3744 = vrot.slane %v3616, 1
  %v3745 = vrot.slane %v3430, 1
  %v3746 = vsel %vm488, %v3744, %v3745
  %v3747 = vrot.slane %v3648, 1
  %v3748 = vsel %vm488, %v3745, %v3747
  %v3749 = vrot.slane %v3617, 1
  %v3750 = vrot.slane %v3433, 1
  %v3751 = vsel %vm488, %v3749, %v3750
  %v3752 = vrot.slane %v3649, 1
  %v3753 = vsel %vm488, %v3750, %v3752
  %v3754 = vrot.slane %v3618, 1
  %v3755 = vrot.slane %v3436, 1
  %v3756 = vsel %vm488, %v3754, %v3755
  %v3757 = vrot.slane %v3650, 1
  %v3758 = vsel %vm488, %v3755, %v3757
  %v3759 = vrot.slane %v3619, 1
  %v3760 = vrot.slane %v3439, 1
  %v3761 = vsel %vm488, %v3759, %v3760
  %v3762 = vrot.slane %v3651, 1
  %v3763 = vsel %vm488, %v3760, %v3762
  %v3764 = vrot.slane %v3620, 1
  %v3765 = vrot.slane %v3442, 1
  %v3766 = vsel %vm488, %v3764, %v3765
  %v3767 = vrot.slane %v3652, 1
  %v3768 = vsel %vm488, %v3765, %v3767
  %v3769 = vrot.slane %v3621, 1
  %v3770 = vrot.slane %v3445, 1
  %v3771 = vsel %vm488, %v3769, %v3770
  %v3772 = vrot.slane %v3653, 1
  %v3773 = vsel %vm488, %v3770, %v3772
  %v3774 = vrot.slane %v3622, 1
  %v3775 = vrot.slane %v3448, 1
  %v3776 = vsel %vm488, %v3774, %v3775
  %v3777 = vrot.slane %v3654, 1
  %v3778 = vsel %vm488, %v3775, %v3777
  %v3779 = vrot.slane %v3623, 1
  %v3780 = vrot.slane %v3451, 1
  %v3781 = vsel %vm488, %v3779, %v3780
  %v3782 = vrot.slane %v3655, 1
  %v3783 = vsel %vm488, %v3780, %v3782
  %v3784 = vrot.slane %v3624, 1
  %v3785 = vrot.slane %v3454, 1
  %v3786 = vsel %vm488, %v3784, %v3785
  %v3787 = vrot.slane %v3656, 1
  %v3788 = vsel %vm488, %v3785, %v3787
  %v3789 = vrot.slane %v3625, 1
  %v3790 = vrot.slane %v3457, 1
  %v3791 = vsel %vm488, %v3789, %v3790
  %v3792 = vrot.slane %v3657, 1
  %v3793 = vsel %vm488, %v3790, %v3792
  %v3794 = vrot.slane %v3626, 1
  %v3795 = vrot.slane %v3460, 1
  %v3796 = vsel %vm488, %v3794, %v3795
  %v3797 = vrot.slane %v3658, 1
  %v3798 = vsel %vm488, %v3795, %v3797
  %v3799 = vrot.slane %v3627, 1
  %v3800 = vrot.slane %v3463, 1
  %v3801 = vsel %vm488, %v3799, %v3800
  %v3802 = vrot.slane %v3659, 1
  %v3803 = vsel %vm488, %v3800, %v3802
  %v3804 = vrot.slane %v3628, 1
  %v3805 = vrot.slane %v3466, 1
  %v3806 = vsel %vm488, %v3804, %v3805
  %v3807 = vrot.slane %v3660, 1
  %v3808 = vsel %vm488, %v3805, %v3807
  %v3809 = vrot.slane %v3629, 1
  %v3810 = vrot.slane %v3469, 1
  %v3811 = vsel %vm488, %v3809, %v3810
  %v3812 = vrot.slane %v3661, 1
  %v3813 = vsel %vm488, %v3810, %v3812
  %v3814 = vrot.slane %v3631, 1
  %v3815 = vrot.slane %v3475, 1
  %v3816 = vsel %vm488, %v3814, %v3815
  %v3817 = vrot.slane %v3663, 1
  %v3818 = vsel %vm488, %v3815, %v3817
  %v3819 = vrot.slane %v3632, 1
  %v3820 = vrot.slane %v3478, 1
  %v3821 = vsel %vm488, %v3819, %v3820
  %v3822 = vrot.slane %v3664, 1
  %v3823 = vsel %vm488, %v3820, %v3822
  %v3824 = vrot.slane %v3633, 1
  %v3825 = vrot.slane %v3481, 1
  %v3826 = vsel %vm488, %v3824, %v3825
  %v3827 = vrot.slane %v3665, 1
  %v3828 = vsel %vm488, %v3825, %v3827
  %v3829 = vrot.slane %v3634, 1
  %v3830 = vrot.slane %v3484, 1
  %v3831 = vsel %vm488, %v3829, %v3830
  %v3832 = vrot.slane %v3666, 1
  %v3833 = vsel %vm488, %v3830, %v3832
  %v3834 = vrot.slane %v3635, 1
  %v3835 = vrot.slane %v3487, 1
  %v3836 = vsel %vm488, %v3834, %v3835
  %v3837 = vrot.slane %v3667, 1
  %v3838 = vsel %vm488, %v3835, %v3837
  %v3839 = vrot.slane %v3636, 1
  %v3840 = vrot.slane %v3490, 1
  %v3841 = vsel %vm488, %v3839, %v3840
  %v3842 = vrot.slane %v3668, 1
  %v3843 = vsel %vm488, %v3840, %v3842
  %v3844 = vrot.slane %v3637, 1
  %v3845 = vrot.slane %v3493, 1
  %v3846 = vsel %vm488, %v3844, %v3845
  %v3847 = vrot.slane %v3669, 1
  %v3848 = vsel %vm488, %v3845, %v3847
  %v3849 = vrot.slane %v3638, 1
  %v3850 = vrot.slane %v3496, 1
  %v3851 = vsel %vm488, %v3849, %v3850
  %v3852 = vrot.slane %v3670, 1
  %v3853 = vsel %vm488, %v3850, %v3852
  %v3854 = vrot.slane %v3639, 1
  %v3855 = vrot.slane %v3499, 1
  %v3856 = vsel %vm488, %v3854, %v3855
  %v3857 = vrot.slane %v3671, 1
  %v3858 = vsel %vm488, %v3855, %v3857
  %v3859 = vrot.slane %v3640, 1
  %v3860 = vrot.slane %v3502, 1
  %v3861 = vsel %vm488, %v3859, %v3860
  %v3862 = vrot.slane %v3672, 1
  %v3863 = vsel %vm488, %v3860, %v3862
  %v3864 = vrot.slane %v3641, 1
  %v3865 = vrot.slane %v3505, 1
  %v3866 = vsel %vm488, %v3864, %v3865
  %v3867 = vrot.slane %v3673, 1
  %v3868 = vsel %vm488, %v3865, %v3867
  %v3869 = vrot.slane %v3642, 1
  %v3870 = vrot.slane %v3508, 1
  %v3871 = vsel %vm488, %v3869, %v3870
  %v3872 = vrot.slane %v3674, 1
  %v3873 = vsel %vm488, %v3870, %v3872
  %v3874 = vrot.slane %v3643, 1
  %v3875 = vrot.slane %v3511, 1
  %v3876 = vsel %vm488, %v3874, %v3875
  %v3877 = vrot.slane %v3675, 1
  %v3878 = vsel %vm488, %v3875, %v3877
  %v3879 = vrot.slane %v3644, 1
  %v3880 = vrot.slane %v3514, 1
  %v3881 = vsel %vm488, %v3879, %v3880
  %v3882 = vrot.slane %v3676, 1
  %v3883 = vsel %vm488, %v3880, %v3882
  %v3884 = vrot.slane %v3645, 1
  %v3885 = vrot.slane %v3517, 1
  %v3886 = vsel %vm488, %v3884, %v3885
  %v3887 = vrot.slane %v3677, 1
  %v3888 = vsel %vm488, %v3885, %v3887
  %3889 = vrot.lane.b32.xlu0 %v491, 16
  %v3890 = vpop.permute.xlu0 %3889
  %3891 = vrot.lane.b32.xlu0 %v493, 16
  %v3892 = vpop.permute.xlu0 %3891
  %3893 = vrot.lane.b32.xlu0 %v3741, 16
  %v3894 = vpop.permute.xlu0 %3893
  %3895 = vrot.lane.b32.xlu0 %v3743, 16
  %v3896 = vpop.permute.xlu0 %3895
  %3897 = vrot.lane.b32.xlu0 %v3746, 16
  %v3898 = vpop.permute.xlu0 %3897
  %3899 = vrot.lane.b32.xlu0 %v3748, 16
  %v3900 = vpop.permute.xlu0 %3899
  %3901 = vrot.lane.b32.xlu0 %v3751, 16
  %v3902 = vpop.permute.xlu0 %3901
  %3903 = vrot.lane.b32.xlu0 %v3753, 16
  %v3904 = vpop.permute.xlu0 %3903
  %3905 = vrot.lane.b32.xlu0 %v3756, 16
  %v3906 = vpop.permute.xlu0 %3905
  %3907 = vrot.lane.b32.xlu0 %v3758, 16
  %v3908 = vpop.permute.xlu0 %3907
  %3909 = vrot.lane.b32.xlu0 %v3761, 16
  %v3910 = vpop.permute.xlu0 %3909
  %3911 = vrot.lane.b32.xlu0 %v3763, 16
  %v3912 = vpop.permute.xlu0 %3911
  %3913 = vrot.lane.b32.xlu0 %v3766, 16
  %v3914 = vpop.permute.xlu0 %3913
  %3915 = vrot.lane.b32.xlu0 %v3768, 16
  %v3916 = vpop.permute.xlu0 %3915
  %3917 = vrot.lane.b32.xlu0 %v3771, 16
  %v3918 = vpop.permute.xlu0 %3917
  %3919 = vrot.lane.b32.xlu0 %v3773, 16
  %v3920 = vpop.permute.xlu0 %3919
  %3921 = vrot.lane.b32.xlu0 %v3776, 16
  %v3922 = vpop.permute.xlu0 %3921
  %3923 = vrot.lane.b32.xlu0 %v3778, 16
  %v3924 = vpop.permute.xlu0 %3923
  %3925 = vrot.lane.b32.xlu0 %v3781, 16
  %v3926 = vpop.permute.xlu0 %3925
  %3927 = vrot.lane.b32.xlu0 %v3783, 16
  %v3928 = vpop.permute.xlu0 %3927
  %3929 = vrot.lane.b32.xlu0 %v3786, 16
  %v3930 = vpop.permute.xlu0 %3929
  %3931 = vrot.lane.b32.xlu0 %v3788, 16
  %v3932 = vpop.permute.xlu0 %3931
  %3933 = vrot.lane.b32.xlu0 %v3791, 16
  %v3934 = vpop.permute.xlu0 %3933
  %3935 = vrot.lane.b32.xlu0 %v3793, 16
  %v3936 = vpop.permute.xlu0 %3935
  %3937 = vrot.lane.b32.xlu0 %v3796, 16
  %v3938 = vpop.permute.xlu0 %3937
  %3939 = vrot.lane.b32.xlu0 %v3798, 16
  %v3940 = vpop.permute.xlu0 %3939
  %3941 = vrot.lane.b32.xlu0 %v3801, 16
  %v3942 = vpop.permute.xlu0 %3941
  %3943 = vrot.lane.b32.xlu0 %v3803, 16
  %v3944 = vpop.permute.xlu0 %3943
  %3945 = vrot.lane.b32.xlu0 %v3806, 16
  %v3946 = vpop.permute.xlu0 %3945
  %3947 = vrot.lane.b32.xlu0 %v3808, 16
  %v3948 = vpop.permute.xlu0 %3947
  %3949 = vrot.lane.b32.xlu0 %v3811, 16
  %v3950 = vpop.permute.xlu0 %3949
  %3951 = vrot.lane.b32.xlu0 %v3813, 16
  %v3952 = vpop.permute.xlu0 %3951
  %3953 = vrot.lane.b32.xlu0 %v3816, 16
  %v3954 = vpop.permute.xlu0 %3953
  %3955 = vrot.lane.b32.xlu0 %v3818, 16
  %v3956 = vpop.permute.xlu0 %3955
  %3957 = vrot.lane.b32.xlu0 %v3821, 16
  %v3958 = vpop.permute.xlu0 %3957
  %3959 = vrot.lane.b32.xlu0 %v3823, 16
  %v3960 = vpop.permute.xlu0 %3959
  %3961 = vrot.lane.b32.xlu0 %v3826, 16
  %v3962 = vpop.permute.xlu0 %3961
  %3963 = vrot.lane.b32.xlu0 %v3828, 16
  %v3964 = vpop.permute.xlu0 %3963
  %3965 = vrot.lane.b32.xlu0 %v3831, 16
  %v3966 = vpop.permute.xlu0 %3965
  %3967 = vrot.lane.b32.xlu0 %v3833, 16
  %v3968 = vpop.permute.xlu0 %3967
  %3969 = vrot.lane.b32.xlu0 %v3836, 16
  %v3970 = vpop.permute.xlu0 %3969
  %3971 = vrot.lane.b32.xlu0 %v3838, 16
  %v3972 = vpop.permute.xlu0 %3971
  %3973 = vrot.lane.b32.xlu0 %v3841, 16
  %v3974 = vpop.permute.xlu0 %3973
  %3975 = vrot.lane.b32.xlu0 %v3843, 16
  %v3976 = vpop.permute.xlu0 %3975
  %3977 = vrot.lane.b32.xlu0 %v3846, 16
  %v3978 = vpop.permute.xlu0 %3977
  %3979 = vrot.lane.b32.xlu0 %v3848, 16
  %v3980 = vpop.permute.xlu0 %3979
  %3981 = vrot.lane.b32.xlu0 %v3851, 16
  %v3982 = vpop.permute.xlu0 %3981
  %3983 = vrot.lane.b32.xlu0 %v3853, 16
  %v3984 = vpop.permute.xlu0 %3983
  %3985 = vrot.lane.b32.xlu0 %v3856, 16
  %v3986 = vpop.permute.xlu0 %3985
  %3987 = vrot.lane.b32.xlu0 %v3858, 16
  %v3988 = vpop.permute.xlu0 %3987
  %3989 = vrot.lane.b32.xlu0 %v3861, 16
  %v3990 = vpop.permute.xlu0 %3989
  %3991 = vrot.lane.b32.xlu0 %v3863, 16
  %v3992 = vpop.permute.xlu0 %3991
  %3993 = vrot.lane.b32.xlu0 %v3866, 16
  %v3994 = vpop.permute.xlu0 %3993
  %3995 = vrot.lane.b32.xlu0 %v3868, 16
  %v3996 = vpop.permute.xlu0 %3995
  %3997 = vrot.lane.b32.xlu0 %v3871, 16
  %v3998 = vpop.permute.xlu0 %3997
  %3999 = vrot.lane.b32.xlu0 %v3873, 16
  %v4000 = vpop.permute.xlu0 %3999
  %4001 = vrot.lane.b32.xlu0 %v3876, 16
  %v4002 = vpop.permute.xlu0 %4001
  %4003 = vrot.lane.b32.xlu0 %v3878, 16
  %v4004 = vpop.permute.xlu0 %4003
  %4005 = vrot.lane.b32.xlu0 %v3881, 16
  %v4006 = vpop.permute.xlu0 %4005
  %4007 = vrot.lane.b32.xlu0 %v3883, 16
  %v4008 = vpop.permute.xlu0 %4007
  %4009 = vrot.lane.b32.xlu0 %v3886, 16
  %v4010 = vpop.permute.xlu0 %4009
  %4011 = vrot.lane.b32.xlu0 %v3888, 16
  %v4012 = vpop.permute.xlu0 %4011
  %v4075 = vrot.slane %v3615, 2
  %v4076 = vrot.slane %v3427, 2
  %v4077 = vsel %vm830, %v4075, %v4076
  %v4078 = vrot.slane %v3647, 2
  %v4079 = vsel %vm830, %v4076, %v4078
  %v4080 = vrot.slane %v3616, 2
  %v4081 = vrot.slane %v3430, 2
  %v4082 = vsel %vm830, %v4080, %v4081
  %v4083 = vrot.slane %v3648, 2
  %v4084 = vsel %vm830, %v4081, %v4083
  %v4085 = vrot.slane %v3617, 2
  %v4086 = vrot.slane %v3433, 2
  %v4087 = vsel %vm830, %v4085, %v4086
  %v4088 = vrot.slane %v3649, 2
  %v4089 = vsel %vm830, %v4086, %v4088
  %v4090 = vrot.slane %v3618, 2
  %v4091 = vrot.slane %v3436, 2
  %v4092 = vsel %vm830, %v4090, %v4091
  %v4093 = vrot.slane %v3650, 2
  %v4094 = vsel %vm830, %v4091, %v4093
  %v4095 = vrot.slane %v3619, 2
  %v4096 = vrot.slane %v3439, 2
  %v4097 = vsel %vm830, %v4095, %v4096
  %v4098 = vrot.slane %v3651, 2
  %v4099 = vsel %vm830, %v4096, %v4098
  %v4100 = vrot.slane %v3620, 2
  %v4101 = vrot.slane %v3442, 2
  %v4102 = vsel %vm830, %v4100, %v4101
  %v4103 = vrot.slane %v3652, 2
  %v4104 = vsel %vm830, %v4101, %v4103
  %v4105 = vrot.slane %v3621, 2
  %v4106 = vrot.slane %v3445, 2
  %v4107 = vsel %vm830, %v4105, %v4106
  %v4108 = vrot.slane %v3653, 2
  %v4109 = vsel %vm830, %v4106, %v4108
  %v4110 = vrot.slane %v3622, 2
  %v4111 = vrot.slane %v3448, 2
  %v4112 = vsel %vm830, %v4110, %v4111
  %v4113 = vrot.slane %v3654, 2
  %v4114 = vsel %vm830, %v4111, %v4113
  %v4115 = vrot.slane %v3623, 2
  %v4116 = vrot.slane %v3451, 2
  %v4117 = vsel %vm830, %v4115, %v4116
  %v4118 = vrot.slane %v3655, 2
  %v4119 = vsel %vm830, %v4116, %v4118
  %v4120 = vrot.slane %v3624, 2
  %v4121 = vrot.slane %v3454, 2
  %v4122 = vsel %vm830, %v4120, %v4121
  %v4123 = vrot.slane %v3656, 2
  %v4124 = vsel %vm830, %v4121, %v4123
  %v4125 = vrot.slane %v3625, 2
  %v4126 = vrot.slane %v3457, 2
  %v4127 = vsel %vm830, %v4125, %v4126
  %v4128 = vrot.slane %v3657, 2
  %v4129 = vsel %vm830, %v4126, %v4128
  %v4130 = vrot.slane %v3626, 2
  %v4131 = vrot.slane %v3460, 2
  %v4132 = vsel %vm830, %v4130, %v4131
  %v4133 = vrot.slane %v3658, 2
  %v4134 = vsel %vm830, %v4131, %v4133
  %v4135 = vrot.slane %v3627, 2
  %v4136 = vrot.slane %v3463, 2
  %v4137 = vsel %vm830, %v4135, %v4136
  %v4138 = vrot.slane %v3659, 2
  %v4139 = vsel %vm830, %v4136, %v4138
  %v4140 = vrot.slane %v3628, 2
  %v4141 = vrot.slane %v3466, 2
  %v4142 = vsel %vm830, %v4140, %v4141
  %v4143 = vrot.slane %v3660, 2
  %v4144 = vsel %vm830, %v4141, %v4143
  %v4145 = vrot.slane %v3629, 2
  %v4146 = vrot.slane %v3469, 2
  %v4147 = vsel %vm830, %v4145, %v4146
  %v4148 = vrot.slane %v3661, 2
  %v4149 = vsel %vm830, %v4146, %v4148
  %v4150 = vrot.slane %v3631, 2
  %v4151 = vrot.slane %v3475, 2
  %v4152 = vsel %vm830, %v4150, %v4151
  %v4153 = vrot.slane %v3663, 2
  %v4154 = vsel %vm830, %v4151, %v4153
  %v4155 = vrot.slane %v3632, 2
  %v4156 = vrot.slane %v3478, 2
  %v4157 = vsel %vm830, %v4155, %v4156
  %v4158 = vrot.slane %v3664, 2
  %v4159 = vsel %vm830, %v4156, %v4158
  %v4160 = vrot.slane %v3633, 2
  %v4161 = vrot.slane %v3481, 2
  %v4162 = vsel %vm830, %v4160, %v4161
  %v4163 = vrot.slane %v3665, 2
  %v4164 = vsel %vm830, %v4161, %v4163
  %v4165 = vrot.slane %v3634, 2
  %v4166 = vrot.slane %v3484, 2
  %v4167 = vsel %vm830, %v4165, %v4166
  %v4168 = vrot.slane %v3666, 2
  %v4169 = vsel %vm830, %v4166, %v4168
  %v4170 = vrot.slane %v3635, 2
  %v4171 = vrot.slane %v3487, 2
  %v4172 = vsel %vm830, %v4170, %v4171
  %v4173 = vrot.slane %v3667, 2
  %v4174 = vsel %vm830, %v4171, %v4173
  %v4175 = vrot.slane %v3636, 2
  %v4176 = vrot.slane %v3490, 2
  %v4177 = vsel %vm830, %v4175, %v4176
  %v4178 = vrot.slane %v3668, 2
  %v4179 = vsel %vm830, %v4176, %v4178
  %v4180 = vrot.slane %v3637, 2
  %v4181 = vrot.slane %v3493, 2
  %v4182 = vsel %vm830, %v4180, %v4181
  %v4183 = vrot.slane %v3669, 2
  %v4184 = vsel %vm830, %v4181, %v4183
  %v4185 = vrot.slane %v3638, 2
  %v4186 = vrot.slane %v3496, 2
  %v4187 = vsel %vm830, %v4185, %v4186
  %v4188 = vrot.slane %v3670, 2
  %v4189 = vsel %vm830, %v4186, %v4188
  %v4190 = vrot.slane %v3639, 2
  %v4191 = vrot.slane %v3499, 2
  %v4192 = vsel %vm830, %v4190, %v4191
  %v4193 = vrot.slane %v3671, 2
  %v4194 = vsel %vm830, %v4191, %v4193
  %v4195 = vrot.slane %v3640, 2
  %v4196 = vrot.slane %v3502, 2
  %v4197 = vsel %vm830, %v4195, %v4196
  %v4198 = vrot.slane %v3672, 2
  %v4199 = vsel %vm830, %v4196, %v4198
  %v4200 = vrot.slane %v3641, 2
  %v4201 = vrot.slane %v3505, 2
  %v4202 = vsel %vm830, %v4200, %v4201
  %v4203 = vrot.slane %v3673, 2
  %v4204 = vsel %vm830, %v4201, %v4203
  %v4205 = vrot.slane %v3642, 2
  %v4206 = vrot.slane %v3508, 2
  %v4207 = vsel %vm830, %v4205, %v4206
  %v4208 = vrot.slane %v3674, 2
  %v4209 = vsel %vm830, %v4206, %v4208
  %v4210 = vrot.slane %v3643, 2
  %v4211 = vrot.slane %v3511, 2
  %v4212 = vsel %vm830, %v4210, %v4211
  %v4213 = vrot.slane %v3675, 2
  %v4214 = vsel %vm830, %v4211, %v4213
  %v4215 = vrot.slane %v3644, 2
  %v4216 = vrot.slane %v3514, 2
  %v4217 = vsel %vm830, %v4215, %v4216
  %v4218 = vrot.slane %v3676, 2
  %v4219 = vsel %vm830, %v4216, %v4218
  %v4220 = vrot.slane %v3645, 2
  %v4221 = vrot.slane %v3517, 2
  %v4222 = vsel %vm830, %v4220, %v4221
  %v4223 = vrot.slane %v3677, 2
  %v4224 = vsel %vm830, %v4221, %v4223
  %4225 = vrot.lane.b32.xlu0 %v833, 32
  %v4226 = vpop.permute.xlu0 %4225
  %4227 = vrot.lane.b32.xlu0 %v835, 32
  %v4228 = vpop.permute.xlu0 %4227
  %4229 = vrot.lane.b32.xlu0 %v4077, 32
  %v4230 = vpop.permute.xlu0 %4229
  %4231 = vrot.lane.b32.xlu0 %v4079, 32
  %v4232 = vpop.permute.xlu0 %4231
  %4233 = vrot.lane.b32.xlu0 %v4082, 32
  %v4234 = vpop.permute.xlu0 %4233
  %4235 = vrot.lane.b32.xlu0 %v4084, 32
  %v4236 = vpop.permute.xlu0 %4235
  %4237 = vrot.lane.b32.xlu0 %v4087, 32
  %v4238 = vpop.permute.xlu0 %4237
  %4239 = vrot.lane.b32.xlu0 %v4089, 32
  %v4240 = vpop.permute.xlu0 %4239
  %4241 = vrot.lane.b32.xlu0 %v4092, 32
  %v4242 = vpop.permute.xlu0 %4241
  %4243 = vrot.lane.b32.xlu0 %v4094, 32
  %v4244 = vpop.permute.xlu0 %4243
  %4245 = vrot.lane.b32.xlu0 %v4097, 32
  %v4246 = vpop.permute.xlu0 %4245
  %4247 = vrot.lane.b32.xlu0 %v4099, 32
  %v4248 = vpop.permute.xlu0 %4247
  %4249 = vrot.lane.b32.xlu0 %v4102, 32
  %v4250 = vpop.permute.xlu0 %4249
  %4251 = vrot.lane.b32.xlu0 %v4104, 32
  %v4252 = vpop.permute.xlu0 %4251
  %4253 = vrot.lane.b32.xlu0 %v4107, 32
  %v4254 = vpop.permute.xlu0 %4253
  %4255 = vrot.lane.b32.xlu0 %v4109, 32
  %v4256 = vpop.permute.xlu0 %4255
  %4257 = vrot.lane.b32.xlu0 %v4112, 32
  %v4258 = vpop.permute.xlu0 %4257
  %4259 = vrot.lane.b32.xlu0 %v4114, 32
  %v4260 = vpop.permute.xlu0 %4259
  %4261 = vrot.lane.b32.xlu0 %v4117, 32
  %v4262 = vpop.permute.xlu0 %4261
  %4263 = vrot.lane.b32.xlu0 %v4119, 32
  %v4264 = vpop.permute.xlu0 %4263
  %4265 = vrot.lane.b32.xlu0 %v4122, 32
  %v4266 = vpop.permute.xlu0 %4265
  %4267 = vrot.lane.b32.xlu0 %v4124, 32
  %v4268 = vpop.permute.xlu0 %4267
  %4269 = vrot.lane.b32.xlu0 %v4127, 32
  %v4270 = vpop.permute.xlu0 %4269
  %4271 = vrot.lane.b32.xlu0 %v4129, 32
  %v4272 = vpop.permute.xlu0 %4271
  %4273 = vrot.lane.b32.xlu0 %v4132, 32
  %v4274 = vpop.permute.xlu0 %4273
  %4275 = vrot.lane.b32.xlu0 %v4134, 32
  %v4276 = vpop.permute.xlu0 %4275
  %4277 = vrot.lane.b32.xlu0 %v4137, 32
  %v4278 = vpop.permute.xlu0 %4277
  %4279 = vrot.lane.b32.xlu0 %v4139, 32
  %v4280 = vpop.permute.xlu0 %4279
  %4281 = vrot.lane.b32.xlu0 %v4142, 32
  %v4282 = vpop.permute.xlu0 %4281
  %4283 = vrot.lane.b32.xlu0 %v4144, 32
  %v4284 = vpop.permute.xlu0 %4283
  %4285 = vrot.lane.b32.xlu0 %v4147, 32
  %v4286 = vpop.permute.xlu0 %4285
  %4287 = vrot.lane.b32.xlu0 %v4149, 32
  %v4288 = vpop.permute.xlu0 %4287
  %4289 = vrot.lane.b32.xlu0 %v4152, 32
  %v4290 = vpop.permute.xlu0 %4289
  %4291 = vrot.lane.b32.xlu0 %v4154, 32
  %v4292 = vpop.permute.xlu0 %4291
  %4293 = vrot.lane.b32.xlu0 %v4157, 32
  %v4294 = vpop.permute.xlu0 %4293
  %4295 = vrot.lane.b32.xlu0 %v4159, 32
  %v4296 = vpop.permute.xlu0 %4295
  %4297 = vrot.lane.b32.xlu0 %v4162, 32
  %v4298 = vpop.permute.xlu0 %4297
  %4299 = vrot.lane.b32.xlu0 %v4164, 32
  %v4300 = vpop.permute.xlu0 %4299
  %4301 = vrot.lane.b32.xlu0 %v4167, 32
  %v4302 = vpop.permute.xlu0 %4301
  %4303 = vrot.lane.b32.xlu0 %v4169, 32
  %v4304 = vpop.permute.xlu0 %4303
  %4305 = vrot.lane.b32.xlu0 %v4172, 32
  %v4306 = vpop.permute.xlu0 %4305
  %4307 = vrot.lane.b32.xlu0 %v4174, 32
  %v4308 = vpop.permute.xlu0 %4307
  %4309 = vrot.lane.b32.xlu0 %v4177, 32
  %v4310 = vpop.permute.xlu0 %4309
  %4311 = vrot.lane.b32.xlu0 %v4179, 32
  %v4312 = vpop.permute.xlu0 %4311
  %4313 = vrot.lane.b32.xlu0 %v4182, 32
  %v4314 = vpop.permute.xlu0 %4313
  %4315 = vrot.lane.b32.xlu0 %v4184, 32
  %v4316 = vpop.permute.xlu0 %4315
  %4317 = vrot.lane.b32.xlu0 %v4187, 32
  %v4318 = vpop.permute.xlu0 %4317
  %4319 = vrot.lane.b32.xlu0 %v4189, 32
  %v4320 = vpop.permute.xlu0 %4319
  %4321 = vrot.lane.b32.xlu0 %v4192, 32
  %v4322 = vpop.permute.xlu0 %4321
  %4323 = vrot.lane.b32.xlu0 %v4194, 32
  %v4324 = vpop.permute.xlu0 %4323
  %4325 = vrot.lane.b32.xlu0 %v4197, 32
  %v4326 = vpop.permute.xlu0 %4325
  %4327 = vrot.lane.b32.xlu0 %v4199, 32
  %v4328 = vpop.permute.xlu0 %4327
  %4329 = vrot.lane.b32.xlu0 %v4202, 32
  %v4330 = vpop.permute.xlu0 %4329
  %4331 = vrot.lane.b32.xlu0 %v4204, 32
  %v4332 = vpop.permute.xlu0 %4331
  %4333 = vrot.lane.b32.xlu0 %v4207, 32
  %v4334 = vpop.permute.xlu0 %4333
  %4335 = vrot.lane.b32.xlu0 %v4209, 32
  %v4336 = vpop.permute.xlu0 %4335
  %4337 = vrot.lane.b32.xlu0 %v4212, 32
  %v4338 = vpop.permute.xlu0 %4337
  %4339 = vrot.lane.b32.xlu0 %v4214, 32
  %v4340 = vpop.permute.xlu0 %4339
  %4341 = vrot.lane.b32.xlu0 %v4217, 32
  %v4342 = vpop.permute.xlu0 %4341
  %4343 = vrot.lane.b32.xlu0 %v4219, 32
  %v4344 = vpop.permute.xlu0 %4343
  %4345 = vrot.lane.b32.xlu0 %v4222, 32
  %v4346 = vpop.permute.xlu0 %4345
  %4347 = vrot.lane.b32.xlu0 %v4224, 32
  %v4348 = vpop.permute.xlu0 %4347
  %4413 = vrot.lane.b32.xlu0 %v3615, 48
  %v4414 = vpop.permute.xlu0 %4413
  %4415 = vrot.lane.b32.xlu0 %v3427, 48
  %v4416 = vpop.permute.xlu0 %4415
  %4417 = vrot.lane.b32.xlu0 %v3616, 48
  %v4418 = vpop.permute.xlu0 %4417
  %4419 = vrot.lane.b32.xlu0 %v3430, 48
  %v4420 = vpop.permute.xlu0 %4419
  %4421 = vrot.lane.b32.xlu0 %v3617, 48
  %v4422 = vpop.permute.xlu0 %4421
  %4423 = vrot.lane.b32.xlu0 %v3433, 48
  %v4424 = vpop.permute.xlu0 %4423
  %4425 = vrot.lane.b32.xlu0 %v3618, 48
  %v4426 = vpop.permute.xlu0 %4425
  %4427 = vrot.lane.b32.xlu0 %v3436, 48
  %v4428 = vpop.permute.xlu0 %4427
  %4429 = vrot.lane.b32.xlu0 %v3619, 48
  %v4430 = vpop.permute.xlu0 %4429
  %4431 = vrot.lane.b32.xlu0 %v3439, 48
  %v4432 = vpop.permute.xlu0 %4431
  %4433 = vrot.lane.b32.xlu0 %v3620, 48
  %v4434 = vpop.permute.xlu0 %4433
  %4435 = vrot.lane.b32.xlu0 %v3442, 48
  %v4436 = vpop.permute.xlu0 %4435
  %4437 = vrot.lane.b32.xlu0 %v3621, 48
  %v4438 = vpop.permute.xlu0 %4437
  %4439 = vrot.lane.b32.xlu0 %v3445, 48
  %v4440 = vpop.permute.xlu0 %4439
  %4441 = vrot.lane.b32.xlu0 %v3622, 48
  %v4442 = vpop.permute.xlu0 %4441
  %4443 = vrot.lane.b32.xlu0 %v3448, 48
  %v4444 = vpop.permute.xlu0 %4443
  %4445 = vrot.lane.b32.xlu0 %v3623, 48
  %v4446 = vpop.permute.xlu0 %4445
  %4447 = vrot.lane.b32.xlu0 %v3451, 48
  %v4448 = vpop.permute.xlu0 %4447
  %4449 = vrot.lane.b32.xlu0 %v3624, 48
  %v4450 = vpop.permute.xlu0 %4449
  %4451 = vrot.lane.b32.xlu0 %v3454, 48
  %v4452 = vpop.permute.xlu0 %4451
  %4453 = vrot.lane.b32.xlu0 %v3625, 48
  %v4454 = vpop.permute.xlu0 %4453
  %4455 = vrot.lane.b32.xlu0 %v3457, 48
  %v4456 = vpop.permute.xlu0 %4455
  %4457 = vrot.lane.b32.xlu0 %v3626, 48
  %v4458 = vpop.permute.xlu0 %4457
  %4459 = vrot.lane.b32.xlu0 %v3460, 48
  %v4460 = vpop.permute.xlu0 %4459
  %4461 = vrot.lane.b32.xlu0 %v3627, 48
  %v4462 = vpop.permute.xlu0 %4461
  %4463 = vrot.lane.b32.xlu0 %v3463, 48
  %v4464 = vpop.permute.xlu0 %4463
  %4465 = vrot.lane.b32.xlu0 %v3628, 48
  %v4466 = vpop.permute.xlu0 %4465
  %4467 = vrot.lane.b32.xlu0 %v3466, 48
  %v4468 = vpop.permute.xlu0 %4467
  %4469 = vrot.lane.b32.xlu0 %v3629, 48
  %v4470 = vpop.permute.xlu0 %4469
  %4471 = vrot.lane.b32.xlu0 %v3469, 48
  %v4472 = vpop.permute.xlu0 %4471
  %4473 = vrot.lane.b32.xlu0 %v3630, 48
  %v4474 = vpop.permute.xlu0 %4473
  %4475 = vrot.lane.b32.xlu0 %v3472, 48
  %v4476 = vpop.permute.xlu0 %4475
  %4477 = vrot.lane.b32.xlu0 %v3631, 48
  %v4478 = vpop.permute.xlu0 %4477
  %4479 = vrot.lane.b32.xlu0 %v3475, 48
  %v4480 = vpop.permute.xlu0 %4479
  %4481 = vrot.lane.b32.xlu0 %v3632, 48
  %v4482 = vpop.permute.xlu0 %4481
  %4483 = vrot.lane.b32.xlu0 %v3478, 48
  %v4484 = vpop.permute.xlu0 %4483
  %4485 = vrot.lane.b32.xlu0 %v3633, 48
  %v4486 = vpop.permute.xlu0 %4485
  %4487 = vrot.lane.b32.xlu0 %v3481, 48
  %v4488 = vpop.permute.xlu0 %4487
  %4489 = vrot.lane.b32.xlu0 %v3634, 48
  %v4490 = vpop.permute.xlu0 %4489
  %4491 = vrot.lane.b32.xlu0 %v3484, 48
  %v4492 = vpop.permute.xlu0 %4491
  %4493 = vrot.lane.b32.xlu0 %v3635, 48
  %v4494 = vpop.permute.xlu0 %4493
  %4495 = vrot.lane.b32.xlu0 %v3487, 48
  %v4496 = vpop.permute.xlu0 %4495
  %4497 = vrot.lane.b32.xlu0 %v3636, 48
  %v4498 = vpop.permute.xlu0 %4497
  %4499 = vrot.lane.b32.xlu0 %v3490, 48
  %v4500 = vpop.permute.xlu0 %4499
  %4501 = vrot.lane.b32.xlu0 %v3637, 48
  %v4502 = vpop.permute.xlu0 %4501
  %4503 = vrot.lane.b32.xlu0 %v3493, 48
  %v4504 = vpop.permute.xlu0 %4503
  %4505 = vrot.lane.b32.xlu0 %v3638, 48
  %v4506 = vpop.permute.xlu0 %4505
  %4507 = vrot.lane.b32.xlu0 %v3496, 48
  %v4508 = vpop.permute.xlu0 %4507
  %4509 = vrot.lane.b32.xlu0 %v3639, 48
  %v4510 = vpop.permute.xlu0 %4509
  %4511 = vrot.lane.b32.xlu0 %v3499, 48
  %v4512 = vpop.permute.xlu0 %4511
  %4513 = vrot.lane.b32.xlu0 %v3640, 48
  %v4514 = vpop.permute.xlu0 %4513
  %4515 = vrot.lane.b32.xlu0 %v3502, 48
  %v4516 = vpop.permute.xlu0 %4515
  %4517 = vrot.lane.b32.xlu0 %v3641, 48
  %v4518 = vpop.permute.xlu0 %4517
  %4519 = vrot.lane.b32.xlu0 %v3505, 48
  %v4520 = vpop.permute.xlu0 %4519
  %4521 = vrot.lane.b32.xlu0 %v3642, 48
  %v4522 = vpop.permute.xlu0 %4521
  %4523 = vrot.lane.b32.xlu0 %v3508, 48
  %v4524 = vpop.permute.xlu0 %4523
  %4525 = vrot.lane.b32.xlu0 %v3643, 48
  %v4526 = vpop.permute.xlu0 %4525
  %4527 = vrot.lane.b32.xlu0 %v3511, 48
  %v4528 = vpop.permute.xlu0 %4527
  %4529 = vrot.lane.b32.xlu0 %v3644, 48
  %v4530 = vpop.permute.xlu0 %4529
  %4531 = vrot.lane.b32.xlu0 %v3514, 48
  %v4532 = vpop.permute.xlu0 %4531
  %4533 = vrot.lane.b32.xlu0 %v3645, 48
  %v4534 = vpop.permute.xlu0 %4533
  %4535 = vrot.lane.b32.xlu0 %v3517, 48
  %v4536 = vpop.permute.xlu0 %4535
  %4537 = vrot.lane.b32.xlu0 %v3646, 48
  %v4538 = vpop.permute.xlu0 %4537
  %4539 = vrot.lane.b32.xlu0 %v3520, 48
  %v4540 = vpop.permute.xlu0 %4539
  %v4607 = vrot.slane %v3630, 1
  %v4608 = vrot.slane %v3472, 1
  %v4609 = vsel %vm488, %v4607, %v4608
  %v4610 = vrot.slane %v3662, 1
  %v4611 = vsel %vm488, %v4608, %v4610
  %v4612 = vrot.slane %v3646, 1
  %v4613 = vrot.slane %v3520, 1
  %v4614 = vsel %vm488, %v4612, %v4613
  %v4615 = vrot.slane %v3678, 1
  %v4616 = vsel %vm488, %v4613, %v4615
  %4617 = vrot.lane.b32.xlu0 %v3741, 64
  %v4618 = vpop.permute.xlu0 %4617
  %4619 = vrot.lane.b32.xlu0 %v3743, 64
  %v4620 = vpop.permute.xlu0 %4619
  %4621 = vrot.lane.b32.xlu0 %v3746, 64
  %v4622 = vpop.permute.xlu0 %4621
  %4623 = vrot.lane.b32.xlu0 %v3748, 64
  %v4624 = vpop.permute.xlu0 %4623
  %4625 = vrot.lane.b32.xlu0 %v3751, 64
  %v4626 = vpop.permute.xlu0 %4625
  %4627 = vrot.lane.b32.xlu0 %v3753, 64
  %v4628 = vpop.permute.xlu0 %4627
  %4629 = vrot.lane.b32.xlu0 %v3756, 64
  %v4630 = vpop.permute.xlu0 %4629
  %4631 = vrot.lane.b32.xlu0 %v3758, 64
  %v4632 = vpop.permute.xlu0 %4631
  %4633 = vrot.lane.b32.xlu0 %v3761, 64
  %v4634 = vpop.permute.xlu0 %4633
  %4635 = vrot.lane.b32.xlu0 %v3763, 64
  %v4636 = vpop.permute.xlu0 %4635
  %4637 = vrot.lane.b32.xlu0 %v3766, 64
  %v4638 = vpop.permute.xlu0 %4637
  %4639 = vrot.lane.b32.xlu0 %v3768, 64
  %v4640 = vpop.permute.xlu0 %4639
  %4641 = vrot.lane.b32.xlu0 %v3771, 64
  %v4642 = vpop.permute.xlu0 %4641
  %4643 = vrot.lane.b32.xlu0 %v3773, 64
  %v4644 = vpop.permute.xlu0 %4643
  %4645 = vrot.lane.b32.xlu0 %v3776, 64
  %v4646 = vpop.permute.xlu0 %4645
  %4647 = vrot.lane.b32.xlu0 %v3778, 64
  %v4648 = vpop.permute.xlu0 %4647
  %4649 = vrot.lane.b32.xlu0 %v3781, 64
  %v4650 = vpop.permute.xlu0 %4649
  %4651 = vrot.lane.b32.xlu0 %v3783, 64
  %v4652 = vpop.permute.xlu0 %4651
  %4653 = vrot.lane.b32.xlu0 %v3786, 64
  %v4654 = vpop.permute.xlu0 %4653
  %4655 = vrot.lane.b32.xlu0 %v3788, 64
  %v4656 = vpop.permute.xlu0 %4655
  %4657 = vrot.lane.b32.xlu0 %v3791, 64
  %v4658 = vpop.permute.xlu0 %4657
  %4659 = vrot.lane.b32.xlu0 %v3793, 64
  %v4660 = vpop.permute.xlu0 %4659
  %4661 = vrot.lane.b32.xlu0 %v3796, 64
  %v4662 = vpop.permute.xlu0 %4661
  %4663 = vrot.lane.b32.xlu0 %v3798, 64
  %v4664 = vpop.permute.xlu0 %4663
  %4665 = vrot.lane.b32.xlu0 %v3801, 64
  %v4666 = vpop.permute.xlu0 %4665
  %4667 = vrot.lane.b32.xlu0 %v3803, 64
  %v4668 = vpop.permute.xlu0 %4667
  %4669 = vrot.lane.b32.xlu0 %v3806, 64
  %v4670 = vpop.permute.xlu0 %4669
  %4671 = vrot.lane.b32.xlu0 %v3808, 64
  %v4672 = vpop.permute.xlu0 %4671
  %4673 = vrot.lane.b32.xlu0 %v3811, 64
  %v4674 = vpop.permute.xlu0 %4673
  %4675 = vrot.lane.b32.xlu0 %v3813, 64
  %v4676 = vpop.permute.xlu0 %4675
  %4677 = vrot.lane.b32.xlu0 %v4609, 64
  %v4678 = vpop.permute.xlu0 %4677
  %4679 = vrot.lane.b32.xlu0 %v4611, 64
  %v4680 = vpop.permute.xlu0 %4679
  %4681 = vrot.lane.b32.xlu0 %v3816, 64
  %v4682 = vpop.permute.xlu0 %4681
  %4683 = vrot.lane.b32.xlu0 %v3818, 64
  %v4684 = vpop.permute.xlu0 %4683
  %4685 = vrot.lane.b32.xlu0 %v3821, 64
  %v4686 = vpop.permute.xlu0 %4685
  %4687 = vrot.lane.b32.xlu0 %v3823, 64
  %v4688 = vpop.permute.xlu0 %4687
  %4689 = vrot.lane.b32.xlu0 %v3826, 64
  %v4690 = vpop.permute.xlu0 %4689
  %4691 = vrot.lane.b32.xlu0 %v3828, 64
  %v4692 = vpop.permute.xlu0 %4691
  %4693 = vrot.lane.b32.xlu0 %v3831, 64
  %v4694 = vpop.permute.xlu0 %4693
  %4695 = vrot.lane.b32.xlu0 %v3833, 64
  %v4696 = vpop.permute.xlu0 %4695
  %4697 = vrot.lane.b32.xlu0 %v3836, 64
  %v4698 = vpop.permute.xlu0 %4697
  %4699 = vrot.lane.b32.xlu0 %v3838, 64
  %v4700 = vpop.permute.xlu0 %4699
  %4701 = vrot.lane.b32.xlu0 %v3841, 64
  %v4702 = vpop.permute.xlu0 %4701
  %4703 = vrot.lane.b32.xlu0 %v3843, 64
  %v4704 = vpop.permute.xlu0 %4703
  %4705 = vrot.lane.b32.xlu0 %v3846, 64
  %v4706 = vpop.permute.xlu0 %4705
  %4707 = vrot.lane.b32.xlu0 %v3848, 64
  %v4708 = vpop.permute.xlu0 %4707
  %4709 = vrot.lane.b32.xlu0 %v3851, 64
  %v4710 = vpop.permute.xlu0 %4709
  %4711 = vrot.lane.b32.xlu0 %v3853, 64
  %v4712 = vpop.permute.xlu0 %4711
  %4713 = vrot.lane.b32.xlu0 %v3856, 64
  %v4714 = vpop.permute.xlu0 %4713
  %4715 = vrot.lane.b32.xlu0 %v3858, 64
  %v4716 = vpop.permute.xlu0 %4715
  %4717 = vrot.lane.b32.xlu0 %v3861, 64
  %v4718 = vpop.permute.xlu0 %4717
  %4719 = vrot.lane.b32.xlu0 %v3863, 64
  %v4720 = vpop.permute.xlu0 %4719
  %4721 = vrot.lane.b32.xlu0 %v3866, 64
  %v4722 = vpop.permute.xlu0 %4721
  %4723 = vrot.lane.b32.xlu0 %v3868, 64
  %v4724 = vpop.permute.xlu0 %4723
  %4725 = vrot.lane.b32.xlu0 %v3871, 64
  %v4726 = vpop.permute.xlu0 %4725
  %4727 = vrot.lane.b32.xlu0 %v3873, 64
  %v4728 = vpop.permute.xlu0 %4727
  %4729 = vrot.lane.b32.xlu0 %v3876, 64
  %v4730 = vpop.permute.xlu0 %4729
  %4731 = vrot.lane.b32.xlu0 %v3878, 64
  %v4732 = vpop.permute.xlu0 %4731
  %4733 = vrot.lane.b32.xlu0 %v3881, 64
  %v4734 = vpop.permute.xlu0 %4733
  %4735 = vrot.lane.b32.xlu0 %v3883, 64
  %v4736 = vpop.permute.xlu0 %4735
  %4737 = vrot.lane.b32.xlu0 %v3886, 64
  %v4738 = vpop.permute.xlu0 %4737
  %4739 = vrot.lane.b32.xlu0 %v3888, 64
  %v4740 = vpop.permute.xlu0 %4739
  %4741 = vrot.lane.b32.xlu0 %v4614, 64
  %v4742 = vpop.permute.xlu0 %4741
  %4743 = vrot.lane.b32.xlu0 %v4616, 64
  %v4744 = vpop.permute.xlu0 %4743
  %v4809 = vrot.slane %v3630, 2
  %v4810 = vrot.slane %v3472, 2
  %v4811 = vsel %vm830, %v4809, %v4810
  %v4812 = vrot.slane %v3662, 2
  %v4813 = vsel %vm830, %v4810, %v4812
  %v4814 = vrot.slane %v3646, 2
  %v4815 = vrot.slane %v3520, 2
  %v4816 = vsel %vm830, %v4814, %v4815
  %v4817 = vrot.slane %v3678, 2
  %v4818 = vsel %vm830, %v4815, %v4817
  %4819 = vrot.lane.b32.xlu0 %v4077, 80
  %v4820 = vpop.permute.xlu0 %4819
  %4821 = vrot.lane.b32.xlu0 %v4079, 80
  %v4822 = vpop.permute.xlu0 %4821
  %4823 = vrot.lane.b32.xlu0 %v4082, 80
  %v4824 = vpop.permute.xlu0 %4823
  %4825 = vrot.lane.b32.xlu0 %v4084, 80
  %v4826 = vpop.permute.xlu0 %4825
  %4827 = vrot.lane.b32.xlu0 %v4087, 80
  %v4828 = vpop.permute.xlu0 %4827
  %4829 = vrot.lane.b32.xlu0 %v4089, 80
  %v4830 = vpop.permute.xlu0 %4829
  %4831 = vrot.lane.b32.xlu0 %v4092, 80
  %v4832 = vpop.permute.xlu0 %4831
  %4833 = vrot.lane.b32.xlu0 %v4094, 80
  %v4834 = vpop.permute.xlu0 %4833
  %4835 = vrot.lane.b32.xlu0 %v4097, 80
  %v4836 = vpop.permute.xlu0 %4835
  %4837 = vrot.lane.b32.xlu0 %v4099, 80
  %v4838 = vpop.permute.xlu0 %4837
  %4839 = vrot.lane.b32.xlu0 %v4102, 80
  %v4840 = vpop.permute.xlu0 %4839
  %4841 = vrot.lane.b32.xlu0 %v4104, 80
  %v4842 = vpop.permute.xlu0 %4841
  %4843 = vrot.lane.b32.xlu0 %v4107, 80
  %v4844 = vpop.permute.xlu0 %4843
  %4845 = vrot.lane.b32.xlu0 %v4109, 80
  %v4846 = vpop.permute.xlu0 %4845
  %4847 = vrot.lane.b32.xlu0 %v4112, 80
  %v4848 = vpop.permute.xlu0 %4847
  %4849 = vrot.lane.b32.xlu0 %v4114, 80
  %v4850 = vpop.permute.xlu0 %4849
  %4851 = vrot.lane.b32.xlu0 %v4117, 80
  %v4852 = vpop.permute.xlu0 %4851
  %4853 = vrot.lane.b32.xlu0 %v4119, 80
  %v4854 = vpop.permute.xlu0 %4853
  %4855 = vrot.lane.b32.xlu0 %v4122, 80
  %v4856 = vpop.permute.xlu0 %4855
  %4857 = vrot.lane.b32.xlu0 %v4124, 80
  %v4858 = vpop.permute.xlu0 %4857
  %4859 = vrot.lane.b32.xlu0 %v4127, 80
  %v4860 = vpop.permute.xlu0 %4859
  %4861 = vrot.lane.b32.xlu0 %v4129, 80
  %v4862 = vpop.permute.xlu0 %4861
  %4863 = vrot.lane.b32.xlu0 %v4132, 80
  %v4864 = vpop.permute.xlu0 %4863
  %4865 = vrot.lane.b32.xlu0 %v4134, 80
  %v4866 = vpop.permute.xlu0 %4865
  %4867 = vrot.lane.b32.xlu0 %v4137, 80
  %v4868 = vpop.permute.xlu0 %4867
  %4869 = vrot.lane.b32.xlu0 %v4139, 80
  %v4870 = vpop.permute.xlu0 %4869
  %4871 = vrot.lane.b32.xlu0 %v4142, 80
  %v4872 = vpop.permute.xlu0 %4871
  %4873 = vrot.lane.b32.xlu0 %v4144, 80
  %v4874 = vpop.permute.xlu0 %4873
  %4875 = vrot.lane.b32.xlu0 %v4147, 80
  %v4876 = vpop.permute.xlu0 %4875
  %4877 = vrot.lane.b32.xlu0 %v4149, 80
  %v4878 = vpop.permute.xlu0 %4877
  %4879 = vrot.lane.b32.xlu0 %v4811, 80
  %v4880 = vpop.permute.xlu0 %4879
  %4881 = vrot.lane.b32.xlu0 %v4813, 80
  %v4882 = vpop.permute.xlu0 %4881
  %4883 = vrot.lane.b32.xlu0 %v4152, 80
  %v4884 = vpop.permute.xlu0 %4883
  %4885 = vrot.lane.b32.xlu0 %v4154, 80
  %v4886 = vpop.permute.xlu0 %4885
  %4887 = vrot.lane.b32.xlu0 %v4157, 80
  %v4888 = vpop.permute.xlu0 %4887
  %4889 = vrot.lane.b32.xlu0 %v4159, 80
  %v4890 = vpop.permute.xlu0 %4889
  %4891 = vrot.lane.b32.xlu0 %v4162, 80
  %v4892 = vpop.permute.xlu0 %4891
  %4893 = vrot.lane.b32.xlu0 %v4164, 80
  %v4894 = vpop.permute.xlu0 %4893
  %4895 = vrot.lane.b32.xlu0 %v4167, 80
  %v4896 = vpop.permute.xlu0 %4895
  %4897 = vrot.lane.b32.xlu0 %v4169, 80
  %v4898 = vpop.permute.xlu0 %4897
  %4899 = vrot.lane.b32.xlu0 %v4172, 80
  %v4900 = vpop.permute.xlu0 %4899
  %4901 = vrot.lane.b32.xlu0 %v4174, 80
  %v4902 = vpop.permute.xlu0 %4901
  %4903 = vrot.lane.b32.xlu0 %v4177, 80
  %v4904 = vpop.permute.xlu0 %4903
  %4905 = vrot.lane.b32.xlu0 %v4179, 80
  %v4906 = vpop.permute.xlu0 %4905
  %4907 = vrot.lane.b32.xlu0 %v4182, 80
  %v4908 = vpop.permute.xlu0 %4907
  %4909 = vrot.lane.b32.xlu0 %v4184, 80
  %v4910 = vpop.permute.xlu0 %4909
  %4911 = vrot.lane.b32.xlu0 %v4187, 80
  %v4912 = vpop.permute.xlu0 %4911
  %4913 = vrot.lane.b32.xlu0 %v4189, 80
  %v4914 = vpop.permute.xlu0 %4913
  %4915 = vrot.lane.b32.xlu0 %v4192, 80
  %v4916 = vpop.permute.xlu0 %4915
  %4917 = vrot.lane.b32.xlu0 %v4194, 80
  %v4918 = vpop.permute.xlu0 %4917
  %4919 = vrot.lane.b32.xlu0 %v4197, 80
  %v4920 = vpop.permute.xlu0 %4919
  %4921 = vrot.lane.b32.xlu0 %v4199, 80
  %v4922 = vpop.permute.xlu0 %4921
  %4923 = vrot.lane.b32.xlu0 %v4202, 80
  %v4924 = vpop.permute.xlu0 %4923
  %4925 = vrot.lane.b32.xlu0 %v4204, 80
  %v4926 = vpop.permute.xlu0 %4925
  %4927 = vrot.lane.b32.xlu0 %v4207, 80
  %v4928 = vpop.permute.xlu0 %4927
  %4929 = vrot.lane.b32.xlu0 %v4209, 80
  %v4930 = vpop.permute.xlu0 %4929
  %4931 = vrot.lane.b32.xlu0 %v4212, 80
  %v4932 = vpop.permute.xlu0 %4931
  %4933 = vrot.lane.b32.xlu0 %v4214, 80
  %v4934 = vpop.permute.xlu0 %4933
  %4935 = vrot.lane.b32.xlu0 %v4217, 80
  %v4936 = vpop.permute.xlu0 %4935
  %4937 = vrot.lane.b32.xlu0 %v4219, 80
  %v4938 = vpop.permute.xlu0 %4937
  %4939 = vrot.lane.b32.xlu0 %v4222, 80
  %v4940 = vpop.permute.xlu0 %4939
  %4941 = vrot.lane.b32.xlu0 %v4224, 80
  %v4942 = vpop.permute.xlu0 %4941
  %4943 = vrot.lane.b32.xlu0 %v4816, 80
  %v4944 = vpop.permute.xlu0 %4943
  %4945 = vrot.lane.b32.xlu0 %v4818, 80
  %v4946 = vpop.permute.xlu0 %4945
  %5011 = vrot.lane.b32.xlu0 %v3616, 96
  %v5012 = vpop.permute.xlu0 %5011
  %5013 = vrot.lane.b32.xlu0 %v3430, 96
  %v5014 = vpop.permute.xlu0 %5013
  %5015 = vrot.lane.b32.xlu0 %v3617, 96
  %v5016 = vpop.permute.xlu0 %5015
  %5017 = vrot.lane.b32.xlu0 %v3433, 96
  %v5018 = vpop.permute.xlu0 %5017
  %5019 = vrot.lane.b32.xlu0 %v3618, 96
  %v5020 = vpop.permute.xlu0 %5019
  %5021 = vrot.lane.b32.xlu0 %v3436, 96
  %v5022 = vpop.permute.xlu0 %5021
  %5023 = vrot.lane.b32.xlu0 %v3619, 96
  %v5024 = vpop.permute.xlu0 %5023
  %5025 = vrot.lane.b32.xlu0 %v3439, 96
  %v5026 = vpop.permute.xlu0 %5025
  %5027 = vrot.lane.b32.xlu0 %v3620, 96
  %v5028 = vpop.permute.xlu0 %5027
  %5029 = vrot.lane.b32.xlu0 %v3442, 96
  %v5030 = vpop.permute.xlu0 %5029
  %5031 = vrot.lane.b32.xlu0 %v3621, 96
  %v5032 = vpop.permute.xlu0 %5031
  %5033 = vrot.lane.b32.xlu0 %v3445, 96
  %v5034 = vpop.permute.xlu0 %5033
  %5035 = vrot.lane.b32.xlu0 %v3622, 96
  %v5036 = vpop.permute.xlu0 %5035
  %5037 = vrot.lane.b32.xlu0 %v3448, 96
  %v5038 = vpop.permute.xlu0 %5037
  %5039 = vrot.lane.b32.xlu0 %v3623, 96
  %v5040 = vpop.permute.xlu0 %5039
  %5041 = vrot.lane.b32.xlu0 %v3451, 96
  %v5042 = vpop.permute.xlu0 %5041
  %5043 = vrot.lane.b32.xlu0 %v3624, 96
  %v5044 = vpop.permute.xlu0 %5043
  %5045 = vrot.lane.b32.xlu0 %v3454, 96
  %v5046 = vpop.permute.xlu0 %5045
  %5047 = vrot.lane.b32.xlu0 %v3625, 96
  %v5048 = vpop.permute.xlu0 %5047
  %5049 = vrot.lane.b32.xlu0 %v3457, 96
  %v5050 = vpop.permute.xlu0 %5049
  %5051 = vrot.lane.b32.xlu0 %v3626, 96
  %v5052 = vpop.permute.xlu0 %5051
  %5053 = vrot.lane.b32.xlu0 %v3460, 96
  %v5054 = vpop.permute.xlu0 %5053
  %5055 = vrot.lane.b32.xlu0 %v3627, 96
  %v5056 = vpop.permute.xlu0 %5055
  %5057 = vrot.lane.b32.xlu0 %v3463, 96
  %v5058 = vpop.permute.xlu0 %5057
  %5059 = vrot.lane.b32.xlu0 %v3628, 96
  %v5060 = vpop.permute.xlu0 %5059
  %5061 = vrot.lane.b32.xlu0 %v3466, 96
  %v5062 = vpop.permute.xlu0 %5061
  %5063 = vrot.lane.b32.xlu0 %v3629, 96
  %v5064 = vpop.permute.xlu0 %5063
  %5065 = vrot.lane.b32.xlu0 %v3469, 96
  %v5066 = vpop.permute.xlu0 %5065
  %5067 = vrot.lane.b32.xlu0 %v3630, 96
  %v5068 = vpop.permute.xlu0 %5067
  %5069 = vrot.lane.b32.xlu0 %v3472, 96
  %v5070 = vpop.permute.xlu0 %5069
  %5071 = vrot.lane.b32.xlu0 %v360, 96
  %v5072 = vpop.permute.xlu0 %5071
  %5073 = vrot.lane.b32.xlu0 %v167, 96
  %v5074 = vpop.permute.xlu0 %5073
  %5075 = vrot.lane.b32.xlu0 %v3632, 96
  %v5076 = vpop.permute.xlu0 %5075
  %5077 = vrot.lane.b32.xlu0 %v3478, 96
  %v5078 = vpop.permute.xlu0 %5077
  %5079 = vrot.lane.b32.xlu0 %v3633, 96
  %v5080 = vpop.permute.xlu0 %5079
  %5081 = vrot.lane.b32.xlu0 %v3481, 96
  %v5082 = vpop.permute.xlu0 %5081
  %5083 = vrot.lane.b32.xlu0 %v3634, 96
  %v5084 = vpop.permute.xlu0 %5083
  %5085 = vrot.lane.b32.xlu0 %v3484, 96
  %v5086 = vpop.permute.xlu0 %5085
  %5087 = vrot.lane.b32.xlu0 %v3635, 96
  %v5088 = vpop.permute.xlu0 %5087
  %5089 = vrot.lane.b32.xlu0 %v3487, 96
  %v5090 = vpop.permute.xlu0 %5089
  %5091 = vrot.lane.b32.xlu0 %v3636, 96
  %v5092 = vpop.permute.xlu0 %5091
  %5093 = vrot.lane.b32.xlu0 %v3490, 96
  %v5094 = vpop.permute.xlu0 %5093
  %5095 = vrot.lane.b32.xlu0 %v3637, 96
  %v5096 = vpop.permute.xlu0 %5095
  %5097 = vrot.lane.b32.xlu0 %v3493, 96
  %v5098 = vpop.permute.xlu0 %5097
  %5099 = vrot.lane.b32.xlu0 %v3638, 96
  %v5100 = vpop.permute.xlu0 %5099
  %5101 = vrot.lane.b32.xlu0 %v3496, 96
  %v5102 = vpop.permute.xlu0 %5101
  %5103 = vrot.lane.b32.xlu0 %v3639, 96
  %v5104 = vpop.permute.xlu0 %5103
  %5105 = vrot.lane.b32.xlu0 %v3499, 96
  %v5106 = vpop.permute.xlu0 %5105
  %5107 = vrot.lane.b32.xlu0 %v3640, 96
  %v5108 = vpop.permute.xlu0 %5107
  %5109 = vrot.lane.b32.xlu0 %v3502, 96
  %v5110 = vpop.permute.xlu0 %5109
  %5111 = vrot.lane.b32.xlu0 %v3641, 96
  %v5112 = vpop.permute.xlu0 %5111
  %5113 = vrot.lane.b32.xlu0 %v3505, 96
  %v5114 = vpop.permute.xlu0 %5113
  %5115 = vrot.lane.b32.xlu0 %v3642, 96
  %v5116 = vpop.permute.xlu0 %5115
  %5117 = vrot.lane.b32.xlu0 %v3508, 96
  %v5118 = vpop.permute.xlu0 %5117
  %5119 = vrot.lane.b32.xlu0 %v3643, 96
  %v5120 = vpop.permute.xlu0 %5119
  %5121 = vrot.lane.b32.xlu0 %v3511, 96
  %v5122 = vpop.permute.xlu0 %5121
  %5123 = vrot.lane.b32.xlu0 %v3644, 96
  %v5124 = vpop.permute.xlu0 %5123
  %5125 = vrot.lane.b32.xlu0 %v3514, 96
  %v5126 = vpop.permute.xlu0 %5125
  %5127 = vrot.lane.b32.xlu0 %v3645, 96
  %v5128 = vpop.permute.xlu0 %5127
  %5129 = vrot.lane.b32.xlu0 %v3517, 96
  %v5130 = vpop.permute.xlu0 %5129
  %5131 = vrot.lane.b32.xlu0 %v3646, 96
  %v5132 = vpop.permute.xlu0 %5131
  %5133 = vrot.lane.b32.xlu0 %v3520, 96
  %v5134 = vpop.permute.xlu0 %5133
  %5197 = vrot.lane.b32.xlu0 %v3746, 112
  %v5198 = vpop.permute.xlu0 %5197
  %5199 = vrot.lane.b32.xlu0 %v3748, 112
  %v5200 = vpop.permute.xlu0 %5199
  %5201 = vrot.lane.b32.xlu0 %v3751, 112
  %v5202 = vpop.permute.xlu0 %5201
  %5203 = vrot.lane.b32.xlu0 %v3753, 112
  %v5204 = vpop.permute.xlu0 %5203
  %5205 = vrot.lane.b32.xlu0 %v3756, 112
  %v5206 = vpop.permute.xlu0 %5205
  %5207 = vrot.lane.b32.xlu0 %v3758, 112
  %v5208 = vpop.permute.xlu0 %5207
  %5209 = vrot.lane.b32.xlu0 %v3761, 112
  %v5210 = vpop.permute.xlu0 %5209
  %5211 = vrot.lane.b32.xlu0 %v3763, 112
  %v5212 = vpop.permute.xlu0 %5211
  %5213 = vrot.lane.b32.xlu0 %v3766, 112
  %v5214 = vpop.permute.xlu0 %5213
  %5215 = vrot.lane.b32.xlu0 %v3768, 112
  %v5216 = vpop.permute.xlu0 %5215
  %5217 = vrot.lane.b32.xlu0 %v3771, 112
  %v5218 = vpop.permute.xlu0 %5217
  %5219 = vrot.lane.b32.xlu0 %v3773, 112
  %v5220 = vpop.permute.xlu0 %5219
  %5221 = vrot.lane.b32.xlu0 %v3776, 112
  %v5222 = vpop.permute.xlu0 %5221
  %5223 = vrot.lane.b32.xlu0 %v3778, 112
  %v5224 = vpop.permute.xlu0 %5223
  %5225 = vrot.lane.b32.xlu0 %v3781, 112
  %v5226 = vpop.permute.xlu0 %5225
  %5227 = vrot.lane.b32.xlu0 %v3783, 112
  %v5228 = vpop.permute.xlu0 %5227
  %5229 = vrot.lane.b32.xlu0 %v3786, 112
  %v5230 = vpop.permute.xlu0 %5229
  %5231 = vrot.lane.b32.xlu0 %v3788, 112
  %v5232 = vpop.permute.xlu0 %5231
  %5233 = vrot.lane.b32.xlu0 %v3791, 112
  %v5234 = vpop.permute.xlu0 %5233
  %5235 = vrot.lane.b32.xlu0 %v3793, 112
  %v5236 = vpop.permute.xlu0 %5235
  %5237 = vrot.lane.b32.xlu0 %v3796, 112
  %v5238 = vpop.permute.xlu0 %5237
  %5239 = vrot.lane.b32.xlu0 %v3798, 112
  %v5240 = vpop.permute.xlu0 %5239
  %5241 = vrot.lane.b32.xlu0 %v3801, 112
  %v5242 = vpop.permute.xlu0 %5241
  %5243 = vrot.lane.b32.xlu0 %v3803, 112
  %v5244 = vpop.permute.xlu0 %5243
  %5245 = vrot.lane.b32.xlu0 %v3806, 112
  %v5246 = vpop.permute.xlu0 %5245
  %5247 = vrot.lane.b32.xlu0 %v3808, 112
  %v5248 = vpop.permute.xlu0 %5247
  %5249 = vrot.lane.b32.xlu0 %v3811, 112
  %v5250 = vpop.permute.xlu0 %5249
  %5251 = vrot.lane.b32.xlu0 %v3813, 112
  %v5252 = vpop.permute.xlu0 %5251
  %5253 = vrot.lane.b32.xlu0 %v4609, 112
  %v5254 = vpop.permute.xlu0 %5253
  %5255 = vrot.lane.b32.xlu0 %v4611, 112
  %v5256 = vpop.permute.xlu0 %5255
  %5257 = vrot.lane.b32.xlu0 %v491, 112
  %v5258 = vpop.permute.xlu0 %5257
  %5259 = vrot.lane.b32.xlu0 %v493, 112
  %v5260 = vpop.permute.xlu0 %5259
  %5261 = vrot.lane.b32.xlu0 %v3821, 112
  %v5262 = vpop.permute.xlu0 %5261
  %5263 = vrot.lane.b32.xlu0 %v3823, 112
  %v5264 = vpop.permute.xlu0 %5263
  %5265 = vrot.lane.b32.xlu0 %v3826, 112
  %v5266 = vpop.permute.xlu0 %5265
  %5267 = vrot.lane.b32.xlu0 %v3828, 112
  %v5268 = vpop.permute.xlu0 %5267
  %5269 = vrot.lane.b32.xlu0 %v3831, 112
  %v5270 = vpop.permute.xlu0 %5269
  %5271 = vrot.lane.b32.xlu0 %v3833, 112
  %v5272 = vpop.permute.xlu0 %5271
  %5273 = vrot.lane.b32.xlu0 %v3836, 112
  %v5274 = vpop.permute.xlu0 %5273
  %5275 = vrot.lane.b32.xlu0 %v3838, 112
  %v5276 = vpop.permute.xlu0 %5275
  %5277 = vrot.lane.b32.xlu0 %v3841, 112
  %v5278 = vpop.permute.xlu0 %5277
  %5279 = vrot.lane.b32.xlu0 %v3843, 112
  %v5280 = vpop.permute.xlu0 %5279
  %5281 = vrot.lane.b32.xlu0 %v3846, 112
  %v5282 = vpop.permute.xlu0 %5281
  %5283 = vrot.lane.b32.xlu0 %v3848, 112
  %v5284 = vpop.permute.xlu0 %5283
  %5285 = vrot.lane.b32.xlu0 %v3851, 112
  %v5286 = vpop.permute.xlu0 %5285
  %5287 = vrot.lane.b32.xlu0 %v3853, 112
  %v5288 = vpop.permute.xlu0 %5287
  %5289 = vrot.lane.b32.xlu0 %v3856, 112
  %v5290 = vpop.permute.xlu0 %5289
  %5291 = vrot.lane.b32.xlu0 %v3858, 112
  %v5292 = vpop.permute.xlu0 %5291
  %5293 = vrot.lane.b32.xlu0 %v3861, 112
  %v5294 = vpop.permute.xlu0 %5293
  %5295 = vrot.lane.b32.xlu0 %v3863, 112
  %v5296 = vpop.permute.xlu0 %5295
  %5297 = vrot.lane.b32.xlu0 %v3866, 112
  %v5298 = vpop.permute.xlu0 %5297
  %5299 = vrot.lane.b32.xlu0 %v3868, 112
  %v5300 = vpop.permute.xlu0 %5299
  %5301 = vrot.lane.b32.xlu0 %v3871, 112
  %v5302 = vpop.permute.xlu0 %5301
  %5303 = vrot.lane.b32.xlu0 %v3873, 112
  %v5304 = vpop.permute.xlu0 %5303
  %5305 = vrot.lane.b32.xlu0 %v3876, 112
  %v5306 = vpop.permute.xlu0 %5305
  %5307 = vrot.lane.b32.xlu0 %v3878, 112
  %v5308 = vpop.permute.xlu0 %5307
  %5309 = vrot.lane.b32.xlu0 %v3881, 112
  %v5310 = vpop.permute.xlu0 %5309
  %5311 = vrot.lane.b32.xlu0 %v3883, 112
  %v5312 = vpop.permute.xlu0 %5311
  %5313 = vrot.lane.b32.xlu0 %v3886, 112
  %v5314 = vpop.permute.xlu0 %5313
  %5315 = vrot.lane.b32.xlu0 %v3888, 112
  %v5316 = vpop.permute.xlu0 %5315
  %5317 = vrot.lane.b32.xlu0 %v4614, 112
  %v5318 = vpop.permute.xlu0 %5317
  %5319 = vrot.lane.b32.xlu0 %v4616, 112
  %v5320 = vpop.permute.xlu0 %5319
  %vm5445 = vcmask 130048
  %v5446 = vsel %vm5445, %v360, %v3890
  %v5447 = vsel %vm5445, %v167, %v3892
  %v5448 = vsel %vm5445, %v3615, %v3894
  %v5449 = vsel %vm5445, %v3427, %v3896
  %v5450 = vsel %vm5445, %v3616, %v3898
  %v5451 = vsel %vm5445, %v3430, %v3900
  %v5452 = vsel %vm5445, %v3617, %v3902
  %v5453 = vsel %vm5445, %v3433, %v3904
  %v5454 = vsel %vm5445, %v3618, %v3906
  %v5455 = vsel %vm5445, %v3436, %v3908
  %v5456 = vsel %vm5445, %v3619, %v3910
  %v5457 = vsel %vm5445, %v3439, %v3912
  %v5458 = vsel %vm5445, %v3620, %v3914
  %v5459 = vsel %vm5445, %v3442, %v3916
  %v5460 = vsel %vm5445, %v3621, %v3918
  %v5461 = vsel %vm5445, %v3445, %v3920
  %v5462 = vsel %vm5445, %v3622, %v3922
  %v5463 = vsel %vm5445, %v3448, %v3924
  %v5464 = vsel %vm5445, %v3623, %v3926
  %v5465 = vsel %vm5445, %v3451, %v3928
  %v5466 = vsel %vm5445, %v3624, %v3930
  %v5467 = vsel %vm5445, %v3454, %v3932
  %v5468 = vsel %vm5445, %v3625, %v3934
  %v5469 = vsel %vm5445, %v3457, %v3936
  %v5470 = vsel %vm5445, %v3626, %v3938
  %v5471 = vsel %vm5445, %v3460, %v3940
  %v5472 = vsel %vm5445, %v3627, %v3942
  %v5473 = vsel %vm5445, %v3463, %v3944
  %v5474 = vsel %vm5445, %v3628, %v3946
  %v5475 = vsel %vm5445, %v3466, %v3948
  %v5476 = vsel %vm5445, %v3629, %v3950
  %v5477 = vsel %vm5445, %v3469, %v3952
  %v5478 = vsel %vm5445, %v3631, %v3954
  %v5479 = vsel %vm5445, %v3475, %v3956
  %v5480 = vsel %vm5445, %v3632, %v3958
  %v5481 = vsel %vm5445, %v3478, %v3960
  %v5482 = vsel %vm5445, %v3633, %v3962
  %v5483 = vsel %vm5445, %v3481, %v3964
  %v5484 = vsel %vm5445, %v3634, %v3966
  %v5485 = vsel %vm5445, %v3484, %v3968
  %v5486 = vsel %vm5445, %v3635, %v3970
  %v5487 = vsel %vm5445, %v3487, %v3972
  %v5488 = vsel %vm5445, %v3636, %v3974
  %v5489 = vsel %vm5445, %v3490, %v3976
  %v5490 = vsel %vm5445, %v3637, %v3978
  %v5491 = vsel %vm5445, %v3493, %v3980
  %v5492 = vsel %vm5445, %v3638, %v3982
  %v5493 = vsel %vm5445, %v3496, %v3984
  %v5494 = vsel %vm5445, %v3639, %v3986
  %v5495 = vsel %vm5445, %v3499, %v3988
  %v5496 = vsel %vm5445, %v3640, %v3990
  %v5497 = vsel %vm5445, %v3502, %v3992
  %v5498 = vsel %vm5445, %v3641, %v3994
  %v5499 = vsel %vm5445, %v3505, %v3996
  %v5500 = vsel %vm5445, %v3642, %v3998
  %v5501 = vsel %vm5445, %v3508, %v4000
  %v5502 = vsel %vm5445, %v3643, %v4002
  %v5503 = vsel %vm5445, %v3511, %v4004
  %v5504 = vsel %vm5445, %v3644, %v4006
  %v5505 = vsel %vm5445, %v3514, %v4008
  %v5506 = vsel %vm5445, %v3645, %v4010
  %v5507 = vsel %vm5445, %v3517, %v4012
  %vm5508 = vcmask 261120
  %v5509 = vsel %vm5508, %v5446, %v4226
  %v5510 = vsel %vm5508, %v5447, %v4228
  %v5511 = vsel %vm5508, %v5448, %v4230
  %v5512 = vsel %vm5508, %v5449, %v4232
  %v5513 = vsel %vm5508, %v5450, %v4234
  %v5514 = vsel %vm5508, %v5451, %v4236
  %v5515 = vsel %vm5508, %v5452, %v4238
  %v5516 = vsel %vm5508, %v5453, %v4240
  %v5517 = vsel %vm5508, %v5454, %v4242
  %v5518 = vsel %vm5508, %v5455, %v4244
  %v5519 = vsel %vm5508, %v5456, %v4246
  %v5520 = vsel %vm5508, %v5457, %v4248
  %v5521 = vsel %vm5508, %v5458, %v4250
  %v5522 = vsel %vm5508, %v5459, %v4252
  %v5523 = vsel %vm5508, %v5460, %v4254
  %v5524 = vsel %vm5508, %v5461, %v4256
  %v5525 = vsel %vm5508, %v5462, %v4258
  %v5526 = vsel %vm5508, %v5463, %v4260
  %v5527 = vsel %vm5508, %v5464, %v4262
  %v5528 = vsel %vm5508, %v5465, %v4264
  %v5529 = vsel %vm5508, %v5466, %v4266
  %v5530 = vsel %vm5508, %v5467, %v4268
  %v5531 = vsel %vm5508, %v5468, %v4270
  %v5532 = vsel %vm5508, %v5469, %v4272
  %v5533 = vsel %vm5508, %v5470, %v4274
  %v5534 = vsel %vm5508, %v5471, %v4276
  %v5535 = vsel %vm5508, %v5472, %v4278
  %v5536 = vsel %vm5508, %v5473, %v4280
  %v5537 = vsel %vm5508, %v5474, %v4282
  %v5538 = vsel %vm5508, %v5475, %v4284
  %v5539 = vsel %vm5508, %v5476, %v4286
  %v5540 = vsel %vm5508, %v5477, %v4288
  %v5541 = vsel %vm5508, %v5478, %v4290
  %v5542 = vsel %vm5508, %v5479, %v4292
  %v5543 = vsel %vm5508, %v5480, %v4294
  %v5544 = vsel %vm5508, %v5481, %v4296
  %v5545 = vsel %vm5508, %v5482, %v4298
  %v5546 = vsel %vm5508, %v5483, %v4300
  %v5547 = vsel %vm5508, %v5484, %v4302
  %v5548 = vsel %vm5508, %v5485, %v4304
  %v5549 = vsel %vm5508, %v5486, %v4306
  %v5550 = vsel %vm5508, %v5487, %v4308
  %v5551 = vsel %vm5508, %v5488, %v4310
  %v5552 = vsel %vm5508, %v5489, %v4312
  %v5553 = vsel %vm5508, %v5490, %v4314
  %v5554 = vsel %vm5508, %v5491, %v4316
  %v5555 = vsel %vm5508, %v5492, %v4318
  %v5556 = vsel %vm5508, %v5493, %v4320
  %v5557 = vsel %vm5508, %v5494, %v4322
  %v5558 = vsel %vm5508, %v5495, %v4324
  %v5559 = vsel %vm5508, %v5496, %v4326
  %v5560 = vsel %vm5508, %v5497, %v4328
  %v5561 = vsel %vm5508, %v5498, %v4330
  %v5562 = vsel %vm5508, %v5499, %v4332
  %v5563 = vsel %vm5508, %v5500, %v4334
  %v5564 = vsel %vm5508, %v5501, %v4336
  %v5565 = vsel %vm5508, %v5502, %v4338
  %v5566 = vsel %vm5508, %v5503, %v4340
  %v5567 = vsel %vm5508, %v5504, %v4342
  %v5568 = vsel %vm5508, %v5505, %v4344
  %v5569 = vsel %vm5508, %v5506, %v4346
  %v5570 = vsel %vm5508, %v5507, %v4348
  %vm5571 = vcmask 392192
  %v5572 = vsel %vm5571, %v5509, %v4414
  %v5573 = vsel %vm5571, %v5510, %v4416
  %v5574 = vsel %vm5571, %v5511, %v4418
  %v5575 = vsel %vm5571, %v5512, %v4420
  %v5576 = vsel %vm5571, %v5513, %v4422
  %v5577 = vsel %vm5571, %v5514, %v4424
  %v5578 = vsel %vm5571, %v5515, %v4426
  %v5579 = vsel %vm5571, %v5516, %v4428
  %v5580 = vsel %vm5571, %v5517, %v4430
  %v5581 = vsel %vm5571, %v5518, %v4432
  %v5582 = vsel %vm5571, %v5519, %v4434
  %v5583 = vsel %vm5571, %v5520, %v4436
  %v5584 = vsel %vm5571, %v5521, %v4438
  %v5585 = vsel %vm5571, %v5522, %v4440
  %v5586 = vsel %vm5571, %v5523, %v4442
  %v5587 = vsel %vm5571, %v5524, %v4444
  %v5588 = vsel %vm5571, %v5525, %v4446
  %v5589 = vsel %vm5571, %v5526, %v4448
  %v5590 = vsel %vm5571, %v5527, %v4450
  %v5591 = vsel %vm5571, %v5528, %v4452
  %v5592 = vsel %vm5571, %v5529, %v4454
  %v5593 = vsel %vm5571, %v5530, %v4456
  %v5594 = vsel %vm5571, %v5531, %v4458
  %v5595 = vsel %vm5571, %v5532, %v4460
  %v5596 = vsel %vm5571, %v5533, %v4462
  %v5597 = vsel %vm5571, %v5534, %v4464
  %v5598 = vsel %vm5571, %v5535, %v4466
  %v5599 = vsel %vm5571, %v5536, %v4468
  %v5600 = vsel %vm5571, %v5537, %v4470
  %v5601 = vsel %vm5571, %v5538, %v4472
  %v5602 = vsel %vm5571, %v5539, %v4474
  %v5603 = vsel %vm5571, %v5540, %v4476
  %v5604 = vsel %vm5571, %v5509, %v4478
  %v5605 = vsel %vm5571, %v5510, %v4480
  %v5606 = vsel %vm5571, %v5541, %v4482
  %v5607 = vsel %vm5571, %v5542, %v4484
  %v5608 = vsel %vm5571, %v5543, %v4486
  %v5609 = vsel %vm5571, %v5544, %v4488
  %v5610 = vsel %vm5571, %v5545, %v4490
  %v5611 = vsel %vm5571, %v5546, %v4492
  %v5612 = vsel %vm5571, %v5547, %v4494
  %v5613 = vsel %vm5571, %v5548, %v4496
  %v5614 = vsel %vm5571, %v5549, %v4498
  %v5615 = vsel %vm5571, %v5550, %v4500
  %v5616 = vsel %vm5571, %v5551, %v4502
  %v5617 = vsel %vm5571, %v5552, %v4504
  %v5618 = vsel %vm5571, %v5553, %v4506
  %v5619 = vsel %vm5571, %v5554, %v4508
  %v5620 = vsel %vm5571, %v5555, %v4510
  %v5621 = vsel %vm5571, %v5556, %v4512
  %v5622 = vsel %vm5571, %v5557, %v4514
  %v5623 = vsel %vm5571, %v5558, %v4516
  %v5624 = vsel %vm5571, %v5559, %v4518
  %v5625 = vsel %vm5571, %v5560, %v4520
  %v5626 = vsel %vm5571, %v5561, %v4522
  %v5627 = vsel %vm5571, %v5562, %v4524
  %v5628 = vsel %vm5571, %v5563, %v4526
  %v5629 = vsel %vm5571, %v5564, %v4528
  %v5630 = vsel %vm5571, %v5565, %v4530
  %v5631 = vsel %vm5571, %v5566, %v4532
  %v5632 = vsel %vm5571, %v5567, %v4534
  %v5633 = vsel %vm5571, %v5568, %v4536
  %v5634 = vsel %vm5571, %v5569, %v4538
  %v5635 = vsel %vm5571, %v5570, %v4540
  %vm5636 = vcmask 523264
  %v5637 = vsel %vm5636, %v5572, %v4618
  %v5638 = vsel %vm5636, %v5573, %v4620
  %v5639 = vsel %vm5636, %v5574, %v4622
  %v5640 = vsel %vm5636, %v5575, %v4624
  %v5641 = vsel %vm5636, %v5576, %v4626
  %v5642 = vsel %vm5636, %v5577, %v4628
  %v5643 = vsel %vm5636, %v5578, %v4630
  %v5644 = vsel %vm5636, %v5579, %v4632
  %v5645 = vsel %vm5636, %v5580, %v4634
  %v5646 = vsel %vm5636, %v5581, %v4636
  %v5647 = vsel %vm5636, %v5582, %v4638
  %v5648 = vsel %vm5636, %v5583, %v4640
  %v5649 = vsel %vm5636, %v5584, %v4642
  %v5650 = vsel %vm5636, %v5585, %v4644
  %v5651 = vsel %vm5636, %v5586, %v4646
  %v5652 = vsel %vm5636, %v5587, %v4648
  %v5653 = vsel %vm5636, %v5588, %v4650
  %v5654 = vsel %vm5636, %v5589, %v4652
  %v5655 = vsel %vm5636, %v5590, %v4654
  %v5656 = vsel %vm5636, %v5591, %v4656
  %v5657 = vsel %vm5636, %v5592, %v4658
  %v5658 = vsel %vm5636, %v5593, %v4660
  %v5659 = vsel %vm5636, %v5594, %v4662
  %v5660 = vsel %vm5636, %v5595, %v4664
  %v5661 = vsel %vm5636, %v5596, %v4666
  %v5662 = vsel %vm5636, %v5597, %v4668
  %v5663 = vsel %vm5636, %v5598, %v4670
  %v5664 = vsel %vm5636, %v5599, %v4672
  %v5665 = vsel %vm5636, %v5600, %v4674
  %v5666 = vsel %vm5636, %v5601, %v4676
  %v5667 = vsel %vm5636, %v5602, %v4678
  %v5668 = vsel %vm5636, %v5603, %v4680
  %v5669 = vsel %vm5636, %v5604, %v4682
  %v5670 = vsel %vm5636, %v5605, %v4684
  %v5671 = vsel %vm5636, %v5606, %v4686
  %v5672 = vsel %vm5636, %v5607, %v4688
  %v5673 = vsel %vm5636, %v5608, %v4690
  %v5674 = vsel %vm5636, %v5609, %v4692
  %v5675 = vsel %vm5636, %v5610, %v4694
  %v5676 = vsel %vm5636, %v5611, %v4696
  %v5677 = vsel %vm5636, %v5612, %v4698
  %v5678 = vsel %vm5636, %v5613, %v4700
  %v5679 = vsel %vm5636, %v5614, %v4702
  %v5680 = vsel %vm5636, %v5615, %v4704
  %v5681 = vsel %vm5636, %v5616, %v4706
  %v5682 = vsel %vm5636, %v5617, %v4708
  %v5683 = vsel %vm5636, %v5618, %v4710
  %v5684 = vsel %vm5636, %v5619, %v4712
  %v5685 = vsel %vm5636, %v5620, %v4714
  %v5686 = vsel %vm5636, %v5621, %v4716
  %v5687 = vsel %vm5636, %v5622, %v4718
  %v5688 = vsel %vm5636, %v5623, %v4720
  %v5689 = vsel %vm5636, %v5624, %v4722
  %v5690 = vsel %vm5636, %v5625, %v4724
  %v5691 = vsel %vm5636, %v5626, %v4726
  %v5692 = vsel %vm5636, %v5627, %v4728
  %v5693 = vsel %vm5636, %v5628, %v4730
  %v5694 = vsel %vm5636, %v5629, %v4732
  %v5695 = vsel %vm5636, %v5630, %v4734
  %v5696 = vsel %vm5636, %v5631, %v4736
  %v5697 = vsel %vm5636, %v5632, %v4738
  %v5698 = vsel %vm5636, %v5633, %v4740
  %v5699 = vsel %vm5636, %v5634, %v4742
  %v5700 = vsel %vm5636, %v5635, %v4744
  %vm5701 = vcmask 654336
  %v5702 = vsel %vm5701, %v5637, %v4820
  %v5703 = vsel %vm5701, %v5638, %v4822
  %v5704 = vsel %vm5701, %v5639, %v4824
  %v5705 = vsel %vm5701, %v5640, %v4826
  %v5706 = vsel %vm5701, %v5641, %v4828
  %v5707 = vsel %vm5701, %v5642, %v4830
  %v5708 = vsel %vm5701, %v5643, %v4832
  %v5709 = vsel %vm5701, %v5644, %v4834
  %v5710 = vsel %vm5701, %v5645, %v4836
  %v5711 = vsel %vm5701, %v5646, %v4838
  %v5712 = vsel %vm5701, %v5647, %v4840
  %v5713 = vsel %vm5701, %v5648, %v4842
  %v5714 = vsel %vm5701, %v5649, %v4844
  %v5715 = vsel %vm5701, %v5650, %v4846
  %v5716 = vsel %vm5701, %v5651, %v4848
  %v5717 = vsel %vm5701, %v5652, %v4850
  %v5718 = vsel %vm5701, %v5653, %v4852
  %v5719 = vsel %vm5701, %v5654, %v4854
  %v5720 = vsel %vm5701, %v5655, %v4856
  %v5721 = vsel %vm5701, %v5656, %v4858
  %v5722 = vsel %vm5701, %v5657, %v4860
  %v5723 = vsel %vm5701, %v5658, %v4862
  %v5724 = vsel %vm5701, %v5659, %v4864
  %v5725 = vsel %vm5701, %v5660, %v4866
  %v5726 = vsel %vm5701, %v5661, %v4868
  %v5727 = vsel %vm5701, %v5662, %v4870
  %v5728 = vsel %vm5701, %v5663, %v4872
  %v5729 = vsel %vm5701, %v5664, %v4874
  %v5730 = vsel %vm5701, %v5665, %v4876
  %v5731 = vsel %vm5701, %v5666, %v4878
  %v5732 = vsel %vm5701, %v5667, %v4880
  %v5733 = vsel %vm5701, %v5668, %v4882
  %v5734 = vsel %vm5701, %v5669, %v4884
  %v5735 = vsel %vm5701, %v5670, %v4886
  %v5736 = vsel %vm5701, %v5671, %v4888
  %v5737 = vsel %vm5701, %v5672, %v4890
  %v5738 = vsel %vm5701, %v5673, %v4892
  %v5739 = vsel %vm5701, %v5674, %v4894
  %v5740 = vsel %vm5701, %v5675, %v4896
  %v5741 = vsel %vm5701, %v5676, %v4898
  %v5742 = vsel %vm5701, %v5677, %v4900
  %v5743 = vsel %vm5701, %v5678, %v4902
  %v5744 = vsel %vm5701, %v5679, %v4904
  %v5745 = vsel %vm5701, %v5680, %v4906
  %v5746 = vsel %vm5701, %v5681, %v4908
  %v5747 = vsel %vm5701, %v5682, %v4910
  %v5748 = vsel %vm5701, %v5683, %v4912
  %v5749 = vsel %vm5701, %v5684, %v4914
  %v5750 = vsel %vm5701, %v5685, %v4916
  %v5751 = vsel %vm5701, %v5686, %v4918
  %v5752 = vsel %vm5701, %v5687, %v4920
  %v5753 = vsel %vm5701, %v5688, %v4922
  %v5754 = vsel %vm5701, %v5689, %v4924
  %v5755 = vsel %vm5701, %v5690, %v4926
  %v5756 = vsel %vm5701, %v5691, %v4928
  %v5757 = vsel %vm5701, %v5692, %v4930
  %v5758 = vsel %vm5701, %v5693, %v4932
  %v5759 = vsel %vm5701, %v5694, %v4934
  %v5760 = vsel %vm5701, %v5695, %v4936
  %v5761 = vsel %vm5701, %v5696, %v4938
  %v5762 = vsel %vm5701, %v5697, %v4940
  %v5763 = vsel %vm5701, %v5698, %v4942
  %v5764 = vsel %vm5701, %v5699, %v4944
  %v5765 = vsel %vm5701, %v5700, %v4946
  %vm5766 = vcmask 785408
  %v5767 = vsel %vm5766, %v5702, %v5012
  %v5768 = vsel %vm5766, %v5703, %v5014
  %v5769 = vsel %vm5766, %v5704, %v5016
  %v5770 = vsel %vm5766, %v5705, %v5018
  %v5771 = vsel %vm5766, %v5706, %v5020
  %v5772 = vsel %vm5766, %v5707, %v5022
  %v5773 = vsel %vm5766, %v5708, %v5024
  %v5774 = vsel %vm5766, %v5709, %v5026
  %v5775 = vsel %vm5766, %v5710, %v5028
  %v5776 = vsel %vm5766, %v5711, %v5030
  %v5777 = vsel %vm5766, %v5712, %v5032
  %v5778 = vsel %vm5766, %v5713, %v5034
  %v5779 = vsel %vm5766, %v5714, %v5036
  %v5780 = vsel %vm5766, %v5715, %v5038
  %v5781 = vsel %vm5766, %v5716, %v5040
  %v5782 = vsel %vm5766, %v5717, %v5042
  %v5783 = vsel %vm5766, %v5718, %v5044
  %v5784 = vsel %vm5766, %v5719, %v5046
  %v5785 = vsel %vm5766, %v5720, %v5048
  %v5786 = vsel %vm5766, %v5721, %v5050
  %v5787 = vsel %vm5766, %v5722, %v5052
  %v5788 = vsel %vm5766, %v5723, %v5054
  %v5789 = vsel %vm5766, %v5724, %v5056
  %v5790 = vsel %vm5766, %v5725, %v5058
  %v5791 = vsel %vm5766, %v5726, %v5060
  %v5792 = vsel %vm5766, %v5727, %v5062
  %v5793 = vsel %vm5766, %v5728, %v5064
  %v5794 = vsel %vm5766, %v5729, %v5066
  %v5795 = vsel %vm5766, %v5730, %v5068
  %v5796 = vsel %vm5766, %v5731, %v5070
  %v5797 = vsel %vm5766, %v5732, %v5072
  %v5798 = vsel %vm5766, %v5733, %v5074
  %v5799 = vsel %vm5766, %v5734, %v5076
  %v5800 = vsel %vm5766, %v5735, %v5078
  %v5801 = vsel %vm5766, %v5736, %v5080
  %v5802 = vsel %vm5766, %v5737, %v5082
  %v5803 = vsel %vm5766, %v5738, %v5084
  %v5804 = vsel %vm5766, %v5739, %v5086
  %v5805 = vsel %vm5766, %v5740, %v5088
  %v5806 = vsel %vm5766, %v5741, %v5090
  %v5807 = vsel %vm5766, %v5742, %v5092
  %v5808 = vsel %vm5766, %v5743, %v5094
  %v5809 = vsel %vm5766, %v5744, %v5096
  %v5810 = vsel %vm5766, %v5745, %v5098
  %v5811 = vsel %vm5766, %v5746, %v5100
  %v5812 = vsel %vm5766, %v5747, %v5102
  %v5813 = vsel %vm5766, %v5748, %v5104
  %v5814 = vsel %vm5766, %v5749, %v5106
  %v5815 = vsel %vm5766, %v5750, %v5108
  %v5816 = vsel %vm5766, %v5751, %v5110
  %v5817 = vsel %vm5766, %v5752, %v5112
  %v5818 = vsel %vm5766, %v5753, %v5114
  %v5819 = vsel %vm5766, %v5754, %v5116
  %v5820 = vsel %vm5766, %v5755, %v5118
  %v5821 = vsel %vm5766, %v5756, %v5120
  %v5822 = vsel %vm5766, %v5757, %v5122
  %v5823 = vsel %vm5766, %v5758, %v5124
  %v5824 = vsel %vm5766, %v5759, %v5126
  %v5825 = vsel %vm5766, %v5760, %v5128
  %v5826 = vsel %vm5766, %v5761, %v5130
  %v5827 = vsel %vm5766, %v5762, %v5132
  %v5828 = vsel %vm5766, %v5763, %v5134
  %v5829 = vsel %vm5766, %v5764, %v5072
  %v5830 = vsel %vm5766, %v5765, %v5074
  %vm5831 = vcmask 916480
  %v5832 = vsel %vm5831, %v5767, %v5198
  %v5833 = vsel %vm5831, %v5768, %v5200
  %v5834 = vsel %vm5831, %v5769, %v5202
  %v5835 = vsel %vm5831, %v5770, %v5204
  %v5836 = vsel %vm5831, %v5771, %v5206
  %v5837 = vsel %vm5831, %v5772, %v5208
  %v5838 = vsel %vm5831, %v5773, %v5210
  %v5839 = vsel %vm5831, %v5774, %v5212
  %v5840 = vsel %vm5831, %v5775, %v5214
  %v5841 = vsel %vm5831, %v5776, %v5216
  %v5842 = vsel %vm5831, %v5777, %v5218
  %v5843 = vsel %vm5831, %v5778, %v5220
  %v5844 = vsel %vm5831, %v5779, %v5222
  %v5845 = vsel %vm5831, %v5780, %v5224
  %v5846 = vsel %vm5831, %v5781, %v5226
  %v5847 = vsel %vm5831, %v5782, %v5228
  %v5848 = vsel %vm5831, %v5783, %v5230
  %v5849 = vsel %vm5831, %v5784, %v5232
  %v5850 = vsel %vm5831, %v5785, %v5234
  %v5851 = vsel %vm5831, %v5786, %v5236
  %v5852 = vsel %vm5831, %v5787, %v5238
  %v5853 = vsel %vm5831, %v5788, %v5240
  %v5854 = vsel %vm5831, %v5789, %v5242
  %v5855 = vsel %vm5831, %v5790, %v5244
  %v5856 = vsel %vm5831, %v5791, %v5246
  %v5857 = vsel %vm5831, %v5792, %v5248
  %v5858 = vsel %vm5831, %v5793, %v5250
  %v5859 = vsel %vm5831, %v5794, %v5252
  %v5860 = vsel %vm5831, %v5795, %v5254
  %v5861 = vsel %vm5831, %v5796, %v5256
  %v5862 = vsel %vm5831, %v5797, %v5258
  %v5863 = vsel %vm5831, %v5798, %v5260
  %v5864 = vsel %vm5831, %v5799, %v5262
  %v5865 = vsel %vm5831, %v5800, %v5264
  %v5866 = vsel %vm5831, %v5801, %v5266
  %v5867 = vsel %vm5831, %v5802, %v5268
  %v5868 = vsel %vm5831, %v5803, %v5270
  %v5869 = vsel %vm5831, %v5804, %v5272
  %v5870 = vsel %vm5831, %v5805, %v5274
  %v5871 = vsel %vm5831, %v5806, %v5276
  %v5872 = vsel %vm5831, %v5807, %v5278
  %v5873 = vsel %vm5831, %v5808, %v5280
  %v5874 = vsel %vm5831, %v5809, %v5282
  %v5875 = vsel %vm5831, %v5810, %v5284
  %v5876 = vsel %vm5831, %v5811, %v5286
  %v5877 = vsel %vm5831, %v5812, %v5288
  %v5878 = vsel %vm5831, %v5813, %v5290
  %v5879 = vsel %vm5831, %v5814, %v5292
  %v5880 = vsel %vm5831, %v5815, %v5294
  %v5881 = vsel %vm5831, %v5816, %v5296
  %v5882 = vsel %vm5831, %v5817, %v5298
  %v5883 = vsel %vm5831, %v5818, %v5300
  %v5884 = vsel %vm5831, %v5819, %v5302
  %v5885 = vsel %vm5831, %v5820, %v5304
  %v5886 = vsel %vm5831, %v5821, %v5306
  %v5887 = vsel %vm5831, %v5822, %v5308
  %v5888 = vsel %vm5831, %v5823, %v5310
  %v5889 = vsel %vm5831, %v5824, %v5312
  %v5890 = vsel %vm5831, %v5825, %v5314
  %v5891 = vsel %vm5831, %v5826, %v5316
  %v5892 = vsel %vm5831, %v5827, %v5318
  %v5893 = vsel %vm5831, %v5828, %v5320
  %v5894 = vsel %vm5831, %v5829, %v5258
  %v5895 = vsel %vm5831, %v5830, %v5260
  %v5896 = vpack.c.bf16 %v5833, %v5832
  %v5897 = vpack.c.bf16 %v4084, %v4082
  %v5898 = vpack.c.bf16 %v5835, %v5834
  %v5899 = vpack.c.bf16 %v4089, %v4087
  %v5900 = vpack.c.bf16 %v5837, %v5836
  %v5901 = vpack.c.bf16 %v4094, %v4092
  %v5902 = vpack.c.bf16 %v5839, %v5838
  %v5903 = vpack.c.bf16 %v4099, %v4097
  %v5904 = vpack.c.bf16 %v5841, %v5840
  %v5905 = vpack.c.bf16 %v4104, %v4102
  %v5906 = vpack.c.bf16 %v5843, %v5842
  %v5907 = vpack.c.bf16 %v4109, %v4107
  %v5908 = vpack.c.bf16 %v5845, %v5844
  %v5909 = vpack.c.bf16 %v4114, %v4112
  %v5910 = vpack.c.bf16 %v5847, %v5846
  %v5911 = vpack.c.bf16 %v4119, %v4117
  %v5912 = vpack.c.bf16 %v5849, %v5848
  %v5913 = vpack.c.bf16 %v4124, %v4122
  %v5914 = vpack.c.bf16 %v5851, %v5850
  %v5915 = vpack.c.bf16 %v4129, %v4127
  %v5916 = vpack.c.bf16 %v5853, %v5852
  %v5917 = vpack.c.bf16 %v4134, %v4132
  %v5918 = vpack.c.bf16 %v5855, %v5854
  %v5919 = vpack.c.bf16 %v4139, %v4137
  %v5920 = vpack.c.bf16 %v5857, %v5856
  %v5921 = vpack.c.bf16 %v4144, %v4142
  %v5922 = vpack.c.bf16 %v5859, %v5858
  %v5923 = vpack.c.bf16 %v4149, %v4147
  %v5924 = vpack.c.bf16 %v5861, %v5860
  %v5925 = vpack.c.bf16 %v4813, %v4811
  %v5926 = vpack.c.bf16 %v5863, %v5862
  %v5927 = vpack.c.bf16 %v835, %v833
  %v5928 = vpack.c.bf16 %v5865, %v5864
  %v5929 = vpack.c.bf16 %v4159, %v4157
  %v5930 = vpack.c.bf16 %v5867, %v5866
  %v5931 = vpack.c.bf16 %v4164, %v4162
  %v5932 = vpack.c.bf16 %v5869, %v5868
  %v5933 = vpack.c.bf16 %v4169, %v4167
  %v5934 = vpack.c.bf16 %v5871, %v5870
  %v5935 = vpack.c.bf16 %v4174, %v4172
  %v5936 = vpack.c.bf16 %v5873, %v5872
  %v5937 = vpack.c.bf16 %v4179, %v4177
  %v5938 = vpack.c.bf16 %v5875, %v5874
  %v5939 = vpack.c.bf16 %v4184, %v4182
  %v5940 = vpack.c.bf16 %v5877, %v5876
  %v5941 = vpack.c.bf16 %v4189, %v4187
  %v5942 = vpack.c.bf16 %v5879, %v5878
  %v5943 = vpack.c.bf16 %v4194, %v4192
  %v5944 = vpack.c.bf16 %v5881, %v5880
  %v5945 = vpack.c.bf16 %v4199, %v4197
  %v5946 = vpack.c.bf16 %v5883, %v5882
  %v5947 = vpack.c.bf16 %v4204, %v4202
  %v5948 = vpack.c.bf16 %v5885, %v5884
  %v5949 = vpack.c.bf16 %v4209, %v4207
  %v5950 = vpack.c.bf16 %v5887, %v5886
  %v5951 = vpack.c.bf16 %v4214, %v4212
  %v5952 = vpack.c.bf16 %v5889, %v5888
  %v5953 = vpack.c.bf16 %v4219, %v4217
  %v5954 = vpack.c.bf16 %v5891, %v5890
  %v5955 = vpack.c.bf16 %v4224, %v4222
  %v5956 = vpack.c.bf16 %v5893, %v5892
  %v5957 = vpack.c.bf16 %v4818, %v4816
  %v5958 = vpack.c.bf16 %v5895, %v5894
  %v5959 = vld [vmem:[%s4] sm:$0xf]
  %v5960 = vld [vmem:[%s4 + $0x4] sm:$0xf]
  %v5961 = vld [vmem:[%s4 + $0x8] sm:$0xf]
  %v5962 = vld [vmem:[%s4 + $0xc] sm:$0xf]
  %v5963 = vld [vmem:[%s4 + $0x10] sm:$0xf]
  %v5964 = vld [vmem:[%s4 + $0x14] sm:$0xf]
  %v5965 = vld [vmem:[%s4 + $0x18] sm:$0xf]
  %v5966 = vld [vmem:[%s4 + $0x1c] sm:$0xf]
  %v5967 = vld [vmem:[%s4 + $0x20] sm:$0xf]
  %v5968 = vld [vmem:[%s4 + $0x24] sm:$0xf]
  %v5969 = vld [vmem:[%s4 + $0x28] sm:$0xf]
  %v5970 = vld [vmem:[%s4 + $0x2c] sm:$0xf]
  %v5971 = vld [vmem:[%s4 + $0x30] sm:$0xf]
  %v5972 = vld [vmem:[%s4 + $0x34] sm:$0xf]
  %v5973 = vld [vmem:[%s4 + $0x38] sm:$0xf]
  %v5974 = vld [vmem:[%s4 + $0x3c] sm:$0xf]
  %v5975 = vld [vmem:[%s4 + $0x40] sm:$0xf]
  %v5976 = vld [vmem:[%s4 + $0x44] sm:$0xf]
  %v5995 = vunpack.c.l.b16 %v5959
  %v5996 = vunpack.c.l.b16 %v5960
  %v5997 = vunpack.c.l.b16 %v5961
  %v5998 = vunpack.c.l.b16 %v5962
  %v5999 = vunpack.c.l.b16 %v5963
  %v6000 = vunpack.c.l.b16 %v5964
  %v6001 = vunpack.c.l.b16 %v5965
  %v6002 = vunpack.c.l.b16 %v5966
  %v6003 = vunpack.c.l.b16 %v5967
  %v6004 = vunpack.c.l.b16 %v5968
  %v6005 = vunpack.c.l.b16 %v5969
  %v6006 = vunpack.c.l.b16 %v5970
  %v6007 = vunpack.c.l.b16 %v5971
  %v6008 = vunpack.c.l.b16 %v5972
  %v6009 = vunpack.c.l.b16 %v5973
  %v6010 = vunpack.c.l.b16 %v5974
  %v6011 = vunpack.c.l.b16 %v5975
  %v6012 = vunpack.c.l.b16 %v5976
  %v6013 = vpack.c.b16 %v5996, %v5995
  %v6014 = vpack.c.b16 %v5998, %v5997
  %v6015 = vpack.c.b16 %v6000, %v5999
  %v6016 = vpack.c.b16 %v6002, %v6001
  %v6017 = vpack.c.b16 %v6004, %v6003
  %v6018 = vpack.c.b16 %v6006, %v6005
  %v6019 = vpack.c.b16 %v6008, %v6007
  %v6020 = vpack.c.b16 %v6010, %v6009
  %v6021 = vpack.c.b16 %v6012, %v6011
  %v6032 = vsel %vm5445, %v5897, 0
  %v6035 = vsel %vm5445, %v5899, 0
  %v6038 = vsel %vm5445, %v5901, 0
  %v6041 = vsel %vm5445, %v5903, 0
  %v6044 = vsel %vm5445, %v5905, 0
  %v6047 = vsel %vm5445, %v5907, 0
  %v6050 = vsel %vm5445, %v5909, 0
  %v6053 = vsel %vm5445, %v5911, 0
  %v6056 = vsel %vm5445, %v5913, 0
  %v6059 = vsel %vm5445, %v5915, 0
  %v6062 = vsel %vm5445, %v5917, 0
  %v6065 = vsel %vm5445, %v5919, 0
  %v6068 = vsel %vm5445, %v5921, 0
  %v6071 = vsel %vm5445, %v5923, 0
  %v6074 = vsel %vm5445, %v5925, 0
  %v6077 = vsel %vm5445, %v5927, 0
  %v6080 = vsel %vm5445, %v5929, 0
  %v6083 = vsel %vm5445, %v5931, 0
  %v6086 = vsel %vm5445, %v5933, 0
  %v6089 = vsel %vm5445, %v5935, 0
  %v6092 = vsel %vm5445, %v5937, 0
  %v6095 = vsel %vm5445, %v5939, 0
  %v6098 = vsel %vm5445, %v5941, 0
  %v6101 = vsel %vm5445, %v5943, 0
  %v6104 = vsel %vm5445, %v5945, 0
  %v6107 = vsel %vm5445, %v5947, 0
  %v6110 = vsel %vm5445, %v5949, 0
  %v6113 = vsel %vm5445, %v5951, 0
  %v6116 = vsel %vm5445, %v5953, 0
  %v6119 = vsel %vm5445, %v5955, 0
  %v6122 = vsel %vm5445, %v5957, 0
  %6124 = vmatpush.bf16.msra.mxu0 %v6020
  %6125 = vmatpush.bf16.msra.mxu0 %v6019
  %6126 = vmatpush.bf16.msra.mxu0 %v6018
  %6127 = vmatpush.bf16.msra.mxu0 %v6017
  %6128 = vmatpush.bf16.msra.mxu0 %v6016
  %6129 = vmatpush.bf16.msra.mxu0 %v6015
  %6130 = vmatpush.bf16.msra.mxu0 %v6014
  %6131 = vmatpush.bf16.msra.mxu0 %v6013
  %6132 = vmatmul.bf16.gmra.mxu0 %v5896
  %v6133 = vpop.f32.mrf.mxu0
  %v6134 = vadd.f32 0.0, %v6133
  %v6135 = vpop.f32.mrf.mxu0
  %v6136 = vadd.f32 0.0, %v6135
  %6137 = vmatmul.bf16.gmra.mxu0 %v5898
  %v6138 = vpop.f32.mrf.mxu0
  %v6139 = vadd.f32 0.0, %v6138
  %v6140 = vpop.f32.mrf.mxu0
  %v6141 = vadd.f32 0.0, %v6140
  %6142 = vmatmul.bf16.gmra.mxu0 %v5900
  %v6143 = vpop.f32.mrf.mxu0
  %v6144 = vadd.f32 0.0, %v6143
  %v6145 = vpop.f32.mrf.mxu0
  %v6146 = vadd.f32 0.0, %v6145
  %6147 = vmatmul.bf16.gmra.mxu0 %v5902
  %v6148 = vpop.f32.mrf.mxu0
  %v6149 = vadd.f32 0.0, %v6148
  %v6150 = vpop.f32.mrf.mxu0
  %v6151 = vadd.f32 0.0, %v6150
  %6152 = vmatmul.bf16.gmra.mxu0 %v5904
  %v6153 = vpop.f32.mrf.mxu0
  %v6154 = vadd.f32 0.0, %v6153
  %v6155 = vpop.f32.mrf.mxu0
  %v6156 = vadd.f32 0.0, %v6155
  %6157 = vmatmul.bf16.gmra.mxu0 %v5906
  %v6158 = vpop.f32.mrf.mxu0
  %v6159 = vadd.f32 0.0, %v6158
  %v6160 = vpop.f32.mrf.mxu0
  %v6161 = vadd.f32 0.0, %v6160
  %6162 = vmatmul.bf16.gmra.mxu0 %v5908
  %v6163 = vpop.f32.mrf.mxu0
  %v6164 = vadd.f32 0.0, %v6163
  %v6165 = vpop.f32.mrf.mxu0
  %v6166 = vadd.f32 0.0, %v6165
  %6167 = vmatmul.bf16.gmra.mxu0 %v5910
  %v6168 = vpop.f32.mrf.mxu0
  %v6169 = vadd.f32 0.0, %v6168
  %v6170 = vpop.f32.mrf.mxu0
  %v6171 = vadd.f32 0.0, %v6170
  %6172 = vmatmul.bf16.gmra.mxu0 %v5912
  %v6173 = vpop.f32.mrf.mxu0
  %v6174 = vadd.f32 0.0, %v6173
  %v6175 = vpop.f32.mrf.mxu0
  %v6176 = vadd.f32 0.0, %v6175
  %6177 = vmatmul.bf16.gmra.mxu0 %v5914
  %v6178 = vpop.f32.mrf.mxu0
  %v6179 = vadd.f32 0.0, %v6178
  %v6180 = vpop.f32.mrf.mxu0
  %v6181 = vadd.f32 0.0, %v6180
  %6182 = vmatmul.bf16.gmra.mxu0 %v5916
  %v6183 = vpop.f32.mrf.mxu0
  %v6184 = vadd.f32 0.0, %v6183
  %v6185 = vpop.f32.mrf.mxu0
  %v6186 = vadd.f32 0.0, %v6185
  %6187 = vmatmul.bf16.gmra.mxu0 %v5918
  %v6188 = vpop.f32.mrf.mxu0
  %v6189 = vadd.f32 0.0, %v6188
  %v6190 = vpop.f32.mrf.mxu0
  %v6191 = vadd.f32 0.0, %v6190
  %6192 = vmatmul.bf16.gmra.mxu0 %v5920
  %v6193 = vpop.f32.mrf.mxu0
  %v6194 = vadd.f32 0.0, %v6193
  %v6195 = vpop.f32.mrf.mxu0
  %v6196 = vadd.f32 0.0, %v6195
  %6197 = vmatmul.bf16.gmra.mxu0 %v5922
  %v6198 = vpop.f32.mrf.mxu0
  %v6199 = vadd.f32 0.0, %v6198
  %v6200 = vpop.f32.mrf.mxu0
  %v6201 = vadd.f32 0.0, %v6200
  %6202 = vmatmul.bf16.gmra.mxu0 %v5924
  %v6203 = vpop.f32.mrf.mxu0
  %v6204 = vadd.f32 0.0, %v6203
  %v6205 = vpop.f32.mrf.mxu0
  %v6206 = vadd.f32 0.0, %v6205
  %6207 = vmatmul.bf16.gmra.mxu0 %v5926
  %v6208 = vpop.f32.mrf.mxu0
  %v6209 = vadd.f32 0.0, %v6208
  %v6210 = vpop.f32.mrf.mxu0
  %v6211 = vadd.f32 0.0, %v6210
  %6212 = vmatmul.bf16.gmra.mxu0 %v5928
  %v6213 = vpop.f32.mrf.mxu0
  %v6214 = vadd.f32 0.0, %v6213
  %v6215 = vpop.f32.mrf.mxu0
  %v6216 = vadd.f32 0.0, %v6215
  %6217 = vmatmul.bf16.gmra.mxu0 %v5930
  %v6218 = vpop.f32.mrf.mxu0
  %v6219 = vadd.f32 0.0, %v6218
  %v6220 = vpop.f32.mrf.mxu0
  %v6221 = vadd.f32 0.0, %v6220
  %6222 = vmatmul.bf16.gmra.mxu0 %v5932
  %v6223 = vpop.f32.mrf.mxu0
  %v6224 = vadd.f32 0.0, %v6223
  %v6225 = vpop.f32.mrf.mxu0
  %v6226 = vadd.f32 0.0, %v6225
  %6227 = vmatmul.bf16.gmra.mxu0 %v5934
  %v6228 = vpop.f32.mrf.mxu0
  %v6229 = vadd.f32 0.0, %v6228
  %v6230 = vpop.f32.mrf.mxu0
  %v6231 = vadd.f32 0.0, %v6230
  %6232 = vmatmul.bf16.gmra.mxu0 %v5936
  %v6233 = vpop.f32.mrf.mxu0
  %v6234 = vadd.f32 0.0, %v6233
  %v6235 = vpop.f32.mrf.mxu0
  %v6236 = vadd.f32 0.0, %v6235
  %6237 = vmatmul.bf16.gmra.mxu0 %v5938
  %v6238 = vpop.f32.mrf.mxu0
  %v6239 = vadd.f32 0.0, %v6238
  %v6240 = vpop.f32.mrf.mxu0
  %v6241 = vadd.f32 0.0, %v6240
  %6242 = vmatmul.bf16.gmra.mxu0 %v5940
  %v6243 = vpop.f32.mrf.mxu0
  %v6244 = vadd.f32 0.0, %v6243
  %v6245 = vpop.f32.mrf.mxu0
  %v6246 = vadd.f32 0.0, %v6245
  %6247 = vmatmul.bf16.gmra.mxu0 %v5942
  %v6248 = vpop.f32.mrf.mxu0
  %v6249 = vadd.f32 0.0, %v6248
  %v6250 = vpop.f32.mrf.mxu0
  %v6251 = vadd.f32 0.0, %v6250
  %6252 = vmatmul.bf16.gmra.mxu0 %v5944
  %v6253 = vpop.f32.mrf.mxu0
  %v6254 = vadd.f32 0.0, %v6253
  %v6255 = vpop.f32.mrf.mxu0
  %v6256 = vadd.f32 0.0, %v6255
  %6257 = vmatmul.bf16.gmra.mxu0 %v5946
  %v6258 = vpop.f32.mrf.mxu0
  %v6259 = vadd.f32 0.0, %v6258
  %v6260 = vpop.f32.mrf.mxu0
  %v6261 = vadd.f32 0.0, %v6260
  %6262 = vmatmul.bf16.gmra.mxu0 %v5948
  %v6263 = vpop.f32.mrf.mxu0
  %v6264 = vadd.f32 0.0, %v6263
  %v6265 = vpop.f32.mrf.mxu0
  %v6266 = vadd.f32 0.0, %v6265
  %6267 = vmatmul.bf16.gmra.mxu0 %v5950
  %v6268 = vpop.f32.mrf.mxu0
  %v6269 = vadd.f32 0.0, %v6268
  %v6270 = vpop.f32.mrf.mxu0
  %v6271 = vadd.f32 0.0, %v6270
  %6272 = vmatmul.bf16.gmra.mxu0 %v5952
  %v6273 = vpop.f32.mrf.mxu0
  %v6274 = vadd.f32 0.0, %v6273
  %v6275 = vpop.f32.mrf.mxu0
  %v6276 = vadd.f32 0.0, %v6275
  %6277 = vmatmul.bf16.gmra.mxu0 %v5954
  %v6278 = vpop.f32.mrf.mxu0
  %v6279 = vadd.f32 0.0, %v6278
  %v6280 = vpop.f32.mrf.mxu0
  %v6281 = vadd.f32 0.0, %v6280
  %6282 = vmatmul.bf16.gmra.mxu0 %v5956
  %v6283 = vpop.f32.mrf.mxu0
  %v6284 = vadd.f32 0.0, %v6283
  %v6285 = vpop.f32.mrf.mxu0
  %v6286 = vadd.f32 0.0, %v6285
  %6287 = vmatmul.bf16.gmra.mxu0 %v5958
  %v6288 = vpop.f32.mrf.mxu0
  %v6289 = vadd.f32 0.0, %v6288
  %v6290 = vpop.f32.mrf.mxu0
  %v6291 = vadd.f32 0.0, %v6290
  %6292 = vdwg.mxu0
  %6293 = vmatpush.bf16.msra.mxu0 0
  %6294 = vmatpush.bf16.msra.mxu0 0
  %6295 = vmatpush.bf16.msra.mxu0 0
  %6296 = vmatpush.bf16.msra.mxu0 0
  %6297 = vmatpush.bf16.msra.mxu0 0
  %6298 = vmatpush.bf16.msra.mxu0 0
  %6299 = vmatpush.bf16.msra.mxu0 0
  %6300 = vmatpush.bf16.msra.mxu0 %v6021
  %6301 = vmatmul.bf16.gmra.mxu0 %v6032
  %v6302 = vpop.f32.mrf.mxu0
  %v6303 = vadd.f32 %v6134, %v6302
  %v6304 = vpop.f32.mrf.mxu0
  %v6305 = vadd.f32 %v6136, %v6304
  %6306 = vmatmul.bf16.gmra.mxu0 %v6035
  %v6307 = vpop.f32.mrf.mxu0
  %v6308 = vadd.f32 %v6139, %v6307
  %v6309 = vpop.f32.mrf.mxu0
  %v6310 = vadd.f32 %v6141, %v6309
  %6311 = vmatmul.bf16.gmra.mxu0 %v6038
  %v6312 = vpop.f32.mrf.mxu0
  %v6313 = vadd.f32 %v6144, %v6312
  %v6314 = vpop.f32.mrf.mxu0
  %v6315 = vadd.f32 %v6146, %v6314
  %6316 = vmatmul.bf16.gmra.mxu0 %v6041
  %v6317 = vpop.f32.mrf.mxu0
  %v6318 = vadd.f32 %v6149, %v6317
  %v6319 = vpop.f32.mrf.mxu0
  %v6320 = vadd.f32 %v6151, %v6319
  %6321 = vmatmul.bf16.gmra.mxu0 %v6044
  %v6322 = vpop.f32.mrf.mxu0
  %v6323 = vadd.f32 %v6154, %v6322
  %v6324 = vpop.f32.mrf.mxu0
  %v6325 = vadd.f32 %v6156, %v6324
  %6326 = vmatmul.bf16.gmra.mxu0 %v6047
  %v6327 = vpop.f32.mrf.mxu0
  %v6328 = vadd.f32 %v6159, %v6327
  %v6329 = vpop.f32.mrf.mxu0
  %v6330 = vadd.f32 %v6161, %v6329
  %6331 = vmatmul.bf16.gmra.mxu0 %v6050
  %v6332 = vpop.f32.mrf.mxu0
  %v6333 = vadd.f32 %v6164, %v6332
  %v6334 = vpop.f32.mrf.mxu0
  %v6335 = vadd.f32 %v6166, %v6334
  %6336 = vmatmul.bf16.gmra.mxu0 %v6053
  %v6337 = vpop.f32.mrf.mxu0
  %v6338 = vadd.f32 %v6169, %v6337
  %v6339 = vpop.f32.mrf.mxu0
  %v6340 = vadd.f32 %v6171, %v6339
  %6341 = vmatmul.bf16.gmra.mxu0 %v6056
  %v6342 = vpop.f32.mrf.mxu0
  %v6343 = vadd.f32 %v6174, %v6342
  %v6344 = vpop.f32.mrf.mxu0
  %v6345 = vadd.f32 %v6176, %v6344
  %6346 = vmatmul.bf16.gmra.mxu0 %v6059
  %v6347 = vpop.f32.mrf.mxu0
  %v6348 = vadd.f32 %v6179, %v6347
  %v6349 = vpop.f32.mrf.mxu0
  %v6350 = vadd.f32 %v6181, %v6349
  %6351 = vmatmul.bf16.gmra.mxu0 %v6062
  %v6352 = vpop.f32.mrf.mxu0
  %v6353 = vadd.f32 %v6184, %v6352
  %v6354 = vpop.f32.mrf.mxu0
  %v6355 = vadd.f32 %v6186, %v6354
  %6356 = vmatmul.bf16.gmra.mxu0 %v6065
  %v6357 = vpop.f32.mrf.mxu0
  %v6358 = vadd.f32 %v6189, %v6357
  %v6359 = vpop.f32.mrf.mxu0
  %v6360 = vadd.f32 %v6191, %v6359
  %6361 = vmatmul.bf16.gmra.mxu0 %v6068
  %v6362 = vpop.f32.mrf.mxu0
  %v6363 = vadd.f32 %v6194, %v6362
  %v6364 = vpop.f32.mrf.mxu0
  %v6365 = vadd.f32 %v6196, %v6364
  %6366 = vmatmul.bf16.gmra.mxu0 %v6071
  %v6367 = vpop.f32.mrf.mxu0
  %v6368 = vadd.f32 %v6199, %v6367
  %v6369 = vpop.f32.mrf.mxu0
  %v6370 = vadd.f32 %v6201, %v6369
  %6371 = vmatmul.bf16.gmra.mxu0 %v6074
  %v6372 = vpop.f32.mrf.mxu0
  %v6373 = vadd.f32 %v6204, %v6372
  %v6374 = vpop.f32.mrf.mxu0
  %v6375 = vadd.f32 %v6206, %v6374
  %6376 = vmatmul.bf16.gmra.mxu0 %v6077
  %v6377 = vpop.f32.mrf.mxu0
  %v6378 = vadd.f32 %v6209, %v6377
  %v6379 = vpop.f32.mrf.mxu0
  %v6380 = vadd.f32 %v6211, %v6379
  %6381 = vmatmul.bf16.gmra.mxu0 %v6080
  %v6382 = vpop.f32.mrf.mxu0
  %v6383 = vadd.f32 %v6214, %v6382
  %v6384 = vpop.f32.mrf.mxu0
  %v6385 = vadd.f32 %v6216, %v6384
  %6386 = vmatmul.bf16.gmra.mxu0 %v6083
  %v6387 = vpop.f32.mrf.mxu0
  %v6388 = vadd.f32 %v6219, %v6387
  %v6389 = vpop.f32.mrf.mxu0
  %v6390 = vadd.f32 %v6221, %v6389
  %6391 = vmatmul.bf16.gmra.mxu0 %v6086
  %v6392 = vpop.f32.mrf.mxu0
  %v6393 = vadd.f32 %v6224, %v6392
  %v6394 = vpop.f32.mrf.mxu0
  %v6395 = vadd.f32 %v6226, %v6394
  %6396 = vmatmul.bf16.gmra.mxu0 %v6089
  %v6397 = vpop.f32.mrf.mxu0
  %v6398 = vadd.f32 %v6229, %v6397
  %v6399 = vpop.f32.mrf.mxu0
  %v6400 = vadd.f32 %v6231, %v6399
  %6401 = vmatmul.bf16.gmra.mxu0 %v6092
  %v6402 = vpop.f32.mrf.mxu0
  %v6403 = vadd.f32 %v6234, %v6402
  %v6404 = vpop.f32.mrf.mxu0
  %v6405 = vadd.f32 %v6236, %v6404
  %6406 = vmatmul.bf16.gmra.mxu0 %v6095
  %v6407 = vpop.f32.mrf.mxu0
  %v6408 = vadd.f32 %v6239, %v6407
  %v6409 = vpop.f32.mrf.mxu0
  %v6410 = vadd.f32 %v6241, %v6409
  %6411 = vmatmul.bf16.gmra.mxu0 %v6098
  %v6412 = vpop.f32.mrf.mxu0
  %v6413 = vadd.f32 %v6244, %v6412
  %v6414 = vpop.f32.mrf.mxu0
  %v6415 = vadd.f32 %v6246, %v6414
  %6416 = vmatmul.bf16.gmra.mxu0 %v6101
  %v6417 = vpop.f32.mrf.mxu0
  %v6418 = vadd.f32 %v6249, %v6417
  %v6419 = vpop.f32.mrf.mxu0
  %v6420 = vadd.f32 %v6251, %v6419
  %6421 = vmatmul.bf16.gmra.mxu0 %v6104
  %v6422 = vpop.f32.mrf.mxu0
  %v6423 = vadd.f32 %v6254, %v6422
  %v6424 = vpop.f32.mrf.mxu0
  %v6425 = vadd.f32 %v6256, %v6424
  %6426 = vmatmul.bf16.gmra.mxu0 %v6107
  %v6427 = vpop.f32.mrf.mxu0
  %v6428 = vadd.f32 %v6259, %v6427
  %v6429 = vpop.f32.mrf.mxu0
  %v6430 = vadd.f32 %v6261, %v6429
  %6431 = vmatmul.bf16.gmra.mxu0 %v6110
  %v6432 = vpop.f32.mrf.mxu0
  %v6433 = vadd.f32 %v6264, %v6432
  %v6434 = vpop.f32.mrf.mxu0
  %v6435 = vadd.f32 %v6266, %v6434
  %6436 = vmatmul.bf16.gmra.mxu0 %v6113
  %v6437 = vpop.f32.mrf.mxu0
  %v6438 = vadd.f32 %v6269, %v6437
  %v6439 = vpop.f32.mrf.mxu0
  %v6440 = vadd.f32 %v6271, %v6439
  %6441 = vmatmul.bf16.gmra.mxu0 %v6116
  %v6442 = vpop.f32.mrf.mxu0
  %v6443 = vadd.f32 %v6274, %v6442
  %v6444 = vpop.f32.mrf.mxu0
  %v6445 = vadd.f32 %v6276, %v6444
  %6446 = vmatmul.bf16.gmra.mxu0 %v6119
  %v6447 = vpop.f32.mrf.mxu0
  %v6448 = vadd.f32 %v6279, %v6447
  %v6449 = vpop.f32.mrf.mxu0
  %v6450 = vadd.f32 %v6281, %v6449
  %6451 = vmatmul.bf16.gmra.mxu0 %v6122
  %v6452 = vpop.f32.mrf.mxu0
  %v6453 = vadd.f32 %v6284, %v6452
  %v6454 = vpop.f32.mrf.mxu0
  %v6455 = vadd.f32 %v6286, %v6454
  %6456 = vmatmul.bf16.gmra.mxu0 %v6077
  %v6457 = vpop.f32.mrf.mxu0
  %v6458 = vadd.f32 %v6289, %v6457
  %v6459 = vpop.f32.mrf.mxu0
  %v6460 = vadd.f32 %v6291, %v6459
  %6461 = vdwg.mxu0
  %v6462 = vld [vmem:[%s5] sm:$0x1]
  %v6463 = vperm.slane %v6462, 0
  %v6464 = vmul.f32 %v6303, %v6463
  %v6465 = vmul.f32 %v6305, %v6463
  %v6466 = vmul.f32 %v6308, %v6463
  %v6467 = vmul.f32 %v6310, %v6463
  %v6468 = vmul.f32 %v6313, %v6463
  %v6469 = vmul.f32 %v6315, %v6463
  %v6470 = vmul.f32 %v6318, %v6463
  %v6471 = vmul.f32 %v6320, %v6463
  %v6472 = vmul.f32 %v6323, %v6463
  %v6473 = vmul.f32 %v6325, %v6463
  %v6474 = vmul.f32 %v6328, %v6463
  %v6475 = vmul.f32 %v6330, %v6463
  %v6476 = vmul.f32 %v6333, %v6463
  %v6477 = vmul.f32 %v6335, %v6463
  %v6478 = vmul.f32 %v6338, %v6463
  %v6479 = vmul.f32 %v6340, %v6463
  %v6480 = vmul.f32 %v6343, %v6463
  %v6481 = vmul.f32 %v6345, %v6463
  %v6482 = vmul.f32 %v6348, %v6463
  %v6483 = vmul.f32 %v6350, %v6463
  %v6484 = vmul.f32 %v6353, %v6463
  %v6485 = vmul.f32 %v6355, %v6463
  %v6486 = vmul.f32 %v6358, %v6463
  %v6487 = vmul.f32 %v6360, %v6463
  %v6488 = vmul.f32 %v6363, %v6463
  %v6489 = vmul.f32 %v6365, %v6463
  %v6490 = vmul.f32 %v6368, %v6463
  %v6491 = vmul.f32 %v6370, %v6463
  %v6492 = vmul.f32 %v6373, %v6463
  %v6493 = vmul.f32 %v6375, %v6463
  %v6494 = vmul.f32 %v6378, %v6463
  %v6495 = vmul.f32 %v6380, %v6463
  %v6496 = vmul.f32 %v6383, %v6463
  %v6497 = vmul.f32 %v6385, %v6463
  %v6498 = vmul.f32 %v6388, %v6463
  %v6499 = vmul.f32 %v6390, %v6463
  %v6500 = vmul.f32 %v6393, %v6463
  %v6501 = vmul.f32 %v6395, %v6463
  %v6502 = vmul.f32 %v6398, %v6463
  %v6503 = vmul.f32 %v6400, %v6463
  %v6504 = vmul.f32 %v6403, %v6463
  %v6505 = vmul.f32 %v6405, %v6463
  %v6506 = vmul.f32 %v6408, %v6463
  %v6507 = vmul.f32 %v6410, %v6463
  %v6508 = vmul.f32 %v6413, %v6463
  %v6509 = vmul.f32 %v6415, %v6463
  %v6510 = vmul.f32 %v6418, %v6463
  %v6511 = vmul.f32 %v6420, %v6463
  %v6512 = vmul.f32 %v6423, %v6463
  %v6513 = vmul.f32 %v6425, %v6463
  %v6514 = vmul.f32 %v6428, %v6463
  %v6515 = vmul.f32 %v6430, %v6463
  %v6516 = vmul.f32 %v6433, %v6463
  %v6517 = vmul.f32 %v6435, %v6463
  %v6518 = vmul.f32 %v6438, %v6463
  %v6519 = vmul.f32 %v6440, %v6463
  %v6520 = vmul.f32 %v6443, %v6463
  %v6521 = vmul.f32 %v6445, %v6463
  %v6522 = vmul.f32 %v6448, %v6463
  %v6523 = vmul.f32 %v6450, %v6463
  %v6524 = vmul.f32 %v6453, %v6463
  %v6525 = vmul.f32 %v6455, %v6463
  %v6526 = vmul.f32 %v6458, %v6463
  %v6527 = vmul.f32 %v6460, %v6463
  %v6528 = vld [vmem:[%s5 + $0x1] sm:$0x1]
  %v6529 = vperm.slane %v6528, 0
  %v6530 = vadd.f32 %v6464, %v6529
  %v6531 = vadd.f32 %v6465, %v6529
  %v6532 = vadd.f32 %v6466, %v6529
  %v6533 = vadd.f32 %v6467, %v6529
  %v6534 = vadd.f32 %v6468, %v6529
  %v6535 = vadd.f32 %v6469, %v6529
  %v6536 = vadd.f32 %v6470, %v6529
  %v6537 = vadd.f32 %v6471, %v6529
  %v6538 = vadd.f32 %v6472, %v6529
  %v6539 = vadd.f32 %v6473, %v6529
  %v6540 = vadd.f32 %v6474, %v6529
  %v6541 = vadd.f32 %v6475, %v6529
  %v6542 = vadd.f32 %v6476, %v6529
  %v6543 = vadd.f32 %v6477, %v6529
  %v6544 = vadd.f32 %v6478, %v6529
  %v6545 = vadd.f32 %v6479, %v6529
  %v6546 = vadd.f32 %v6480, %v6529
  %v6547 = vadd.f32 %v6481, %v6529
  %v6548 = vadd.f32 %v6482, %v6529
  %v6549 = vadd.f32 %v6483, %v6529
  %v6550 = vadd.f32 %v6484, %v6529
  %v6551 = vadd.f32 %v6485, %v6529
  %v6552 = vadd.f32 %v6486, %v6529
  %v6553 = vadd.f32 %v6487, %v6529
  %v6554 = vadd.f32 %v6488, %v6529
  %v6555 = vadd.f32 %v6489, %v6529
  %v6556 = vadd.f32 %v6490, %v6529
  %v6557 = vadd.f32 %v6491, %v6529
  %v6558 = vadd.f32 %v6492, %v6529
  %v6559 = vadd.f32 %v6493, %v6529
  %v6560 = vadd.f32 %v6494, %v6529
  %v6561 = vadd.f32 %v6495, %v6529
  %v6562 = vadd.f32 %v6496, %v6529
  %v6563 = vadd.f32 %v6497, %v6529
  %v6564 = vadd.f32 %v6498, %v6529
  %v6565 = vadd.f32 %v6499, %v6529
  %v6566 = vadd.f32 %v6500, %v6529
  %v6567 = vadd.f32 %v6501, %v6529
  %v6568 = vadd.f32 %v6502, %v6529
  %v6569 = vadd.f32 %v6503, %v6529
  %v6570 = vadd.f32 %v6504, %v6529
  %v6571 = vadd.f32 %v6505, %v6529
  %v6572 = vadd.f32 %v6506, %v6529
  %v6573 = vadd.f32 %v6507, %v6529
  %v6574 = vadd.f32 %v6508, %v6529
  %v6575 = vadd.f32 %v6509, %v6529
  %v6576 = vadd.f32 %v6510, %v6529
  %v6577 = vadd.f32 %v6511, %v6529
  %v6578 = vadd.f32 %v6512, %v6529
  %v6579 = vadd.f32 %v6513, %v6529
  %v6580 = vadd.f32 %v6514, %v6529
  %v6581 = vadd.f32 %v6515, %v6529
  %v6582 = vadd.f32 %v6516, %v6529
  %v6583 = vadd.f32 %v6517, %v6529
  %v6584 = vadd.f32 %v6518, %v6529
  %v6585 = vadd.f32 %v6519, %v6529
  %v6586 = vadd.f32 %v6520, %v6529
  %v6587 = vadd.f32 %v6521, %v6529
  %v6588 = vadd.f32 %v6522, %v6529
  %v6589 = vadd.f32 %v6523, %v6529
  %v6590 = vadd.f32 %v6524, %v6529
  %v6591 = vadd.f32 %v6525, %v6529
  %v6592 = vadd.f32 %v6526, %v6529
  %v6593 = vadd.f32 %v6527, %v6529
  %v6594 = vmax.f32 %v6530, 0.0
  %v6595 = vmax.f32 %v6531, 0.0
  %v6596 = vmax.f32 %v6532, 0.0
  %v6597 = vmax.f32 %v6533, 0.0
  %v6598 = vmax.f32 %v6534, 0.0
  %v6599 = vmax.f32 %v6535, 0.0
  %v6600 = vmax.f32 %v6536, 0.0
  %v6601 = vmax.f32 %v6537, 0.0
  %v6602 = vmax.f32 %v6538, 0.0
  %v6603 = vmax.f32 %v6539, 0.0
  %v6604 = vmax.f32 %v6540, 0.0
  %v6605 = vmax.f32 %v6541, 0.0
  %v6606 = vmax.f32 %v6542, 0.0
  %v6607 = vmax.f32 %v6543, 0.0
  %v6608 = vmax.f32 %v6544, 0.0
  %v6609 = vmax.f32 %v6545, 0.0
  %v6610 = vmax.f32 %v6546, 0.0
  %v6611 = vmax.f32 %v6547, 0.0
  %v6612 = vmax.f32 %v6548, 0.0
  %v6613 = vmax.f32 %v6549, 0.0
  %v6614 = vmax.f32 %v6550, 0.0
  %v6615 = vmax.f32 %v6551, 0.0
  %v6616 = vmax.f32 %v6552, 0.0
  %v6617 = vmax.f32 %v6553, 0.0
  %v6618 = vmax.f32 %v6554, 0.0
  %v6619 = vmax.f32 %v6555, 0.0
  %v6620 = vmax.f32 %v6556, 0.0
  %v6621 = vmax.f32 %v6557, 0.0
  %v6622 = vmax.f32 %v6558, 0.0
  %v6623 = vmax.f32 %v6559, 0.0
  %v6624 = vmax.f32 %v6560, 0.0
  %v6625 = vmax.f32 %v6561, 0.0
  %v6626 = vmax.f32 %v6562, 0.0
  %v6627 = vmax.f32 %v6563, 0.0
  %v6628 = vmax.f32 %v6564, 0.0
  %v6629 = vmax.f32 %v6565, 0.0
  %v6630 = vmax.f32 %v6566, 0.0
  %v6631 = vmax.f32 %v6567, 0.0
  %v6632 = vmax.f32 %v6568, 0.0
  %v6633 = vmax.f32 %v6569, 0.0
  %v6634 = vmax.f32 %v6570, 0.0
  %v6635 = vmax.f32 %v6571, 0.0
  %v6636 = vmax.f32 %v6572, 0.0
  %v6637 = vmax.f32 %v6573, 0.0
  %v6638 = vmax.f32 %v6574, 0.0
  %v6639 = vmax.f32 %v6575, 0.0
  %v6640 = vmax.f32 %v6576, 0.0
  %v6641 = vmax.f32 %v6577, 0.0
  %v6642 = vmax.f32 %v6578, 0.0
  %v6643 = vmax.f32 %v6579, 0.0
  %v6644 = vmax.f32 %v6580, 0.0
  %v6645 = vmax.f32 %v6581, 0.0
  %v6646 = vmax.f32 %v6582, 0.0
  %v6647 = vmax.f32 %v6583, 0.0
  %v6648 = vmax.f32 %v6584, 0.0
  %v6649 = vmax.f32 %v6585, 0.0
  %v6650 = vmax.f32 %v6586, 0.0
  %v6651 = vmax.f32 %v6587, 0.0
  %v6652 = vmax.f32 %v6588, 0.0
  %v6653 = vmax.f32 %v6589, 0.0
  %v6654 = vmax.f32 %v6590, 0.0
  %v6655 = vmax.f32 %v6591, 0.0
  %v6656 = vmax.f32 %v6592, 0.0
  %v6657 = vmax.f32 %v6593, 0.0
  %v6658 = vld [vmem:[%s1] sm:$0x3]
  %v6660 = vrot.slane %v6658, 1
  %v6661 = vperm.slane %v6658, 0
  %v6662 = vperm.slane %v6660, 0
  %6729 = vrot.lane.b32.xlu0 %v6594, 8
  %v6730 = vpop.permute.xlu0 %6729
  %6731 = vrot.lane.b32.xlu0 %v6595, 8
  %v6732 = vpop.permute.xlu0 %6731
  %6733 = vrot.lane.b32.xlu0 %v6596, 8
  %v6734 = vpop.permute.xlu0 %6733
  %6735 = vrot.lane.b32.xlu0 %v6597, 8
  %v6736 = vpop.permute.xlu0 %6735
  %6737 = vrot.lane.b32.xlu0 %v6598, 8
  %v6738 = vpop.permute.xlu0 %6737
  %6739 = vrot.lane.b32.xlu0 %v6599, 8
  %v6740 = vpop.permute.xlu0 %6739
  %6741 = vrot.lane.b32.xlu0 %v6600, 8
  %v6742 = vpop.permute.xlu0 %6741
  %6743 = vrot.lane.b32.xlu0 %v6601, 8
  %v6744 = vpop.permute.xlu0 %6743
  %6745 = vrot.lane.b32.xlu0 %v6602, 8
  %v6746 = vpop.permute.xlu0 %6745
  %6747 = vrot.lane.b32.xlu0 %v6603, 8
  %v6748 = vpop.permute.xlu0 %6747
  %6749 = vrot.lane.b32.xlu0 %v6604, 8
  %v6750 = vpop.permute.xlu0 %6749
  %6751 = vrot.lane.b32.xlu0 %v6605, 8
  %v6752 = vpop.permute.xlu0 %6751
  %6753 = vrot.lane.b32.xlu0 %v6606, 8
  %v6754 = vpop.permute.xlu0 %6753
  %6755 = vrot.lane.b32.xlu0 %v6607, 8
  %v6756 = vpop.permute.xlu0 %6755
  %6757 = vrot.lane.b32.xlu0 %v6608, 8
  %v6758 = vpop.permute.xlu0 %6757
  %6759 = vrot.lane.b32.xlu0 %v6609, 8
  %v6760 = vpop.permute.xlu0 %6759
  %6761 = vrot.lane.b32.xlu0 %v6610, 8
  %v6762 = vpop.permute.xlu0 %6761
  %6763 = vrot.lane.b32.xlu0 %v6611, 8
  %v6764 = vpop.permute.xlu0 %6763
  %6765 = vrot.lane.b32.xlu0 %v6612, 8
  %v6766 = vpop.permute.xlu0 %6765
  %6767 = vrot.lane.b32.xlu0 %v6613, 8
  %v6768 = vpop.permute.xlu0 %6767
  %6769 = vrot.lane.b32.xlu0 %v6614, 8
  %v6770 = vpop.permute.xlu0 %6769
  %6771 = vrot.lane.b32.xlu0 %v6615, 8
  %v6772 = vpop.permute.xlu0 %6771
  %6773 = vrot.lane.b32.xlu0 %v6616, 8
  %v6774 = vpop.permute.xlu0 %6773
  %6775 = vrot.lane.b32.xlu0 %v6617, 8
  %v6776 = vpop.permute.xlu0 %6775
  %6777 = vrot.lane.b32.xlu0 %v6618, 8
  %v6778 = vpop.permute.xlu0 %6777
  %6779 = vrot.lane.b32.xlu0 %v6619, 8
  %v6780 = vpop.permute.xlu0 %6779
  %6781 = vrot.lane.b32.xlu0 %v6620, 8
  %v6782 = vpop.permute.xlu0 %6781
  %6783 = vrot.lane.b32.xlu0 %v6621, 8
  %v6784 = vpop.permute.xlu0 %6783
  %6785 = vrot.lane.b32.xlu0 %v6622, 8
  %v6786 = vpop.permute.xlu0 %6785
  %6787 = vrot.lane.b32.xlu0 %v6623, 8
  %v6788 = vpop.permute.xlu0 %6787
  %6789 = vrot.lane.b32.xlu0 %v6624, 8
  %v6790 = vpop.permute.xlu0 %6789
  %6791 = vrot.lane.b32.xlu0 %v6625, 8
  %v6792 = vpop.permute.xlu0 %6791
  %6793 = vrot.lane.b32.xlu0 %v6626, 8
  %v6794 = vpop.permute.xlu0 %6793
  %6795 = vrot.lane.b32.xlu0 %v6627, 8
  %v6796 = vpop.permute.xlu0 %6795
  %6797 = vrot.lane.b32.xlu0 %v6628, 8
  %v6798 = vpop.permute.xlu0 %6797
  %6799 = vrot.lane.b32.xlu0 %v6629, 8
  %v6800 = vpop.permute.xlu0 %6799
  %6801 = vrot.lane.b32.xlu0 %v6630, 8
  %v6802 = vpop.permute.xlu0 %6801
  %6803 = vrot.lane.b32.xlu0 %v6631, 8
  %v6804 = vpop.permute.xlu0 %6803
  %6805 = vrot.lane.b32.xlu0 %v6632, 8
  %v6806 = vpop.permute.xlu0 %6805
  %6807 = vrot.lane.b32.xlu0 %v6633, 8
  %v6808 = vpop.permute.xlu0 %6807
  %6809 = vrot.lane.b32.xlu0 %v6634, 8
  %v6810 = vpop.permute.xlu0 %6809
  %6811 = vrot.lane.b32.xlu0 %v6635, 8
  %v6812 = vpop.permute.xlu0 %6811
  %6813 = vrot.lane.b32.xlu0 %v6636, 8
  %v6814 = vpop.permute.xlu0 %6813
  %6815 = vrot.lane.b32.xlu0 %v6637, 8
  %v6816 = vpop.permute.xlu0 %6815
  %6817 = vrot.lane.b32.xlu0 %v6638, 8
  %v6818 = vpop.permute.xlu0 %6817
  %6819 = vrot.lane.b32.xlu0 %v6639, 8
  %v6820 = vpop.permute.xlu0 %6819
  %6821 = vrot.lane.b32.xlu0 %v6640, 8
  %v6822 = vpop.permute.xlu0 %6821
  %6823 = vrot.lane.b32.xlu0 %v6641, 8
  %v6824 = vpop.permute.xlu0 %6823
  %6825 = vrot.lane.b32.xlu0 %v6642, 8
  %v6826 = vpop.permute.xlu0 %6825
  %6827 = vrot.lane.b32.xlu0 %v6643, 8
  %v6828 = vpop.permute.xlu0 %6827
  %6829 = vrot.lane.b32.xlu0 %v6644, 8
  %v6830 = vpop.permute.xlu0 %6829
  %6831 = vrot.lane.b32.xlu0 %v6645, 8
  %v6832 = vpop.permute.xlu0 %6831
  %6833 = vrot.lane.b32.xlu0 %v6646, 8
  %v6834 = vpop.permute.xlu0 %6833
  %6835 = vrot.lane.b32.xlu0 %v6647, 8
  %v6836 = vpop.permute.xlu0 %6835
  %6837 = vrot.lane.b32.xlu0 %v6648, 8
  %v6838 = vpop.permute.xlu0 %6837
  %6839 = vrot.lane.b32.xlu0 %v6649, 8
  %v6840 = vpop.permute.xlu0 %6839
  %6841 = vrot.lane.b32.xlu0 %v6650, 8
  %v6842 = vpop.permute.xlu0 %6841
  %6843 = vrot.lane.b32.xlu0 %v6651, 8
  %v6844 = vpop.permute.xlu0 %6843
  %6845 = vrot.lane.b32.xlu0 %v6652, 8
  %v6846 = vpop.permute.xlu0 %6845
  %6847 = vrot.lane.b32.xlu0 %v6653, 8
  %v6848 = vpop.permute.xlu0 %6847
  %6849 = vrot.lane.b32.xlu0 %v6654, 8
  %v6850 = vpop.permute.xlu0 %6849
  %6851 = vrot.lane.b32.xlu0 %v6655, 8
  %v6852 = vpop.permute.xlu0 %6851
  %6853 = vrot.lane.b32.xlu0 %v6656, 8
  %v6854 = vpop.permute.xlu0 %6853
  %6855 = vrot.lane.b32.xlu0 %v6657, 8
  %v6856 = vpop.permute.xlu0 %6855
  %6921 = vrot.lane.b32.xlu0 %v36, 24
  %v6922 = vpop.permute.xlu0 %6921
  %6923 = vrot.lane.b32.xlu0 %v37, 24
  %v6924 = vpop.permute.xlu0 %6923
  %6925 = vrot.lane.b32.xlu0 %v38, 24
  %v6926 = vpop.permute.xlu0 %6925
  %6927 = vrot.lane.b32.xlu0 %v39, 24
  %v6928 = vpop.permute.xlu0 %6927
  %6929 = vrot.lane.b32.xlu0 %v40, 24
  %v6930 = vpop.permute.xlu0 %6929
  %6931 = vrot.lane.b32.xlu0 %v41, 24
  %v6932 = vpop.permute.xlu0 %6931
  %6933 = vrot.lane.b32.xlu0 %v42, 24
  %v6934 = vpop.permute.xlu0 %6933
  %6935 = vrot.lane.b32.xlu0 %v43, 24
  %v6936 = vpop.permute.xlu0 %6935
  %6937 = vrot.lane.b32.xlu0 %v44, 24
  %v6938 = vpop.permute.xlu0 %6937
  %6939 = vrot.lane.b32.xlu0 %v45, 24
  %v6940 = vpop.permute.xlu0 %6939
  %6941 = vrot.lane.b32.xlu0 %v46, 24
  %v6942 = vpop.permute.xlu0 %6941
  %6943 = vrot.lane.b32.xlu0 %v47, 24
  %v6944 = vpop.permute.xlu0 %6943
  %6945 = vrot.lane.b32.xlu0 %v48, 24
  %v6946 = vpop.permute.xlu0 %6945
  %6947 = vrot.lane.b32.xlu0 %v49, 24
  %v6948 = vpop.permute.xlu0 %6947
  %6949 = vrot.lane.b32.xlu0 %v50, 24
  %v6950 = vpop.permute.xlu0 %6949
  %6951 = vrot.lane.b32.xlu0 %v51, 24
  %v6952 = vpop.permute.xlu0 %6951
  %6953 = vrot.lane.b32.xlu0 %v52, 24
  %v6954 = vpop.permute.xlu0 %6953
  %6955 = vrot.lane.b32.xlu0 %v53, 24
  %v6956 = vpop.permute.xlu0 %6955
  %6957 = vrot.lane.b32.xlu0 %v54, 24
  %v6958 = vpop.permute.xlu0 %6957
  %6959 = vrot.lane.b32.xlu0 %v55, 24
  %v6960 = vpop.permute.xlu0 %6959
  %6961 = vrot.lane.b32.xlu0 %v56, 24
  %v6962 = vpop.permute.xlu0 %6961
  %6963 = vrot.lane.b32.xlu0 %v57, 24
  %v6964 = vpop.permute.xlu0 %6963
  %6965 = vrot.lane.b32.xlu0 %v58, 24
  %v6966 = vpop.permute.xlu0 %6965
  %6967 = vrot.lane.b32.xlu0 %v59, 24
  %v6968 = vpop.permute.xlu0 %6967
  %6969 = vrot.lane.b32.xlu0 %v60, 24
  %v6970 = vpop.permute.xlu0 %6969
  %6971 = vrot.lane.b32.xlu0 %v61, 24
  %v6972 = vpop.permute.xlu0 %6971
  %6973 = vrot.lane.b32.xlu0 %v62, 24
  %v6974 = vpop.permute.xlu0 %6973
  %6975 = vrot.lane.b32.xlu0 %v63, 24
  %v6976 = vpop.permute.xlu0 %6975
  %6977 = vrot.lane.b32.xlu0 %v64, 24
  %v6978 = vpop.permute.xlu0 %6977
  %6979 = vrot.lane.b32.xlu0 %v65, 24
  %v6980 = vpop.permute.xlu0 %6979
  %6981 = vrot.lane.b32.xlu0 %v66, 24
  %v6982 = vpop.permute.xlu0 %6981
  %6983 = vrot.lane.b32.xlu0 %v67, 24
  %v6984 = vpop.permute.xlu0 %6983
  %6985 = vrot.lane.b32.xlu0 %v68, 24
  %v6986 = vpop.permute.xlu0 %6985
  %6987 = vrot.lane.b32.xlu0 %v69, 24
  %v6988 = vpop.permute.xlu0 %6987
  %6989 = vrot.lane.b32.xlu0 %v70, 24
  %v6990 = vpop.permute.xlu0 %6989
  %6991 = vrot.lane.b32.xlu0 %v71, 24
  %v6992 = vpop.permute.xlu0 %6991
  %6993 = vrot.lane.b32.xlu0 %v72, 24
  %v6994 = vpop.permute.xlu0 %6993
  %6995 = vrot.lane.b32.xlu0 %v73, 24
  %v6996 = vpop.permute.xlu0 %6995
  %6997 = vrot.lane.b32.xlu0 %v74, 24
  %v6998 = vpop.permute.xlu0 %6997
  %6999 = vrot.lane.b32.xlu0 %v75, 24
  %v7000 = vpop.permute.xlu0 %6999
  %7001 = vrot.lane.b32.xlu0 %v76, 24
  %v7002 = vpop.permute.xlu0 %7001
  %7003 = vrot.lane.b32.xlu0 %v77, 24
  %v7004 = vpop.permute.xlu0 %7003
  %7005 = vrot.lane.b32.xlu0 %v78, 24
  %v7006 = vpop.permute.xlu0 %7005
  %7007 = vrot.lane.b32.xlu0 %v79, 24
  %v7008 = vpop.permute.xlu0 %7007
  %7009 = vrot.lane.b32.xlu0 %v80, 24
  %v7010 = vpop.permute.xlu0 %7009
  %7011 = vrot.lane.b32.xlu0 %v81, 24
  %v7012 = vpop.permute.xlu0 %7011
  %7013 = vrot.lane.b32.xlu0 %v82, 24
  %v7014 = vpop.permute.xlu0 %7013
  %7015 = vrot.lane.b32.xlu0 %v83, 24
  %v7016 = vpop.permute.xlu0 %7015
  %7017 = vrot.lane.b32.xlu0 %v84, 24
  %v7018 = vpop.permute.xlu0 %7017
  %7019 = vrot.lane.b32.xlu0 %v85, 24
  %v7020 = vpop.permute.xlu0 %7019
  %7021 = vrot.lane.b32.xlu0 %v86, 24
  %v7022 = vpop.permute.xlu0 %7021
  %7023 = vrot.lane.b32.xlu0 %v87, 24
  %v7024 = vpop.permute.xlu0 %7023
  %7025 = vrot.lane.b32.xlu0 %v88, 24
  %v7026 = vpop.permute.xlu0 %7025
  %7027 = vrot.lane.b32.xlu0 %v89, 24
  %v7028 = vpop.permute.xlu0 %7027
  %7029 = vrot.lane.b32.xlu0 %v90, 24
  %v7030 = vpop.permute.xlu0 %7029
  %7031 = vrot.lane.b32.xlu0 %v91, 24
  %v7032 = vpop.permute.xlu0 %7031
  %7033 = vrot.lane.b32.xlu0 %v92, 24
  %v7034 = vpop.permute.xlu0 %7033
  %7035 = vrot.lane.b32.xlu0 %v93, 24
  %v7036 = vpop.permute.xlu0 %7035
  %7037 = vrot.lane.b32.xlu0 %v94, 24
  %v7038 = vpop.permute.xlu0 %7037
  %7039 = vrot.lane.b32.xlu0 %v95, 24
  %v7040 = vpop.permute.xlu0 %7039
  %7041 = vrot.lane.b32.xlu0 %v96, 24
  %v7042 = vpop.permute.xlu0 %7041
  %7043 = vrot.lane.b32.xlu0 %v97, 24
  %v7044 = vpop.permute.xlu0 %7043
  %7045 = vrot.lane.b32.xlu0 %v98, 24
  %v7046 = vpop.permute.xlu0 %7045
  %7047 = vrot.lane.b32.xlu0 %v99, 24
  %v7048 = vpop.permute.xlu0 %7047
  %vm7113 = vcmask 64512
  %v7114 = vsel %vm7113, %v6661, %v6730
  %v7115 = vsel %vm7113, %v6661, %v6732
  %v7116 = vsel %vm7113, %v6661, %v6734
  %v7117 = vsel %vm7113, %v6661, %v6736
  %v7118 = vsel %vm7113, %v6661, %v6738
  %v7119 = vsel %vm7113, %v6661, %v6740
  %v7120 = vsel %vm7113, %v6661, %v6742
  %v7121 = vsel %vm7113, %v6661, %v6744
  %v7122 = vsel %vm7113, %v6661, %v6746
  %v7123 = vsel %vm7113, %v6661, %v6748
  %v7124 = vsel %vm7113, %v6661, %v6750
  %v7125 = vsel %vm7113, %v6661, %v6752
  %v7126 = vsel %vm7113, %v6661, %v6754
  %v7127 = vsel %vm7113, %v6661, %v6756
  %v7128 = vsel %vm7113, %v6661, %v6758
  %v7129 = vsel %vm7113, %v6661, %v6760
  %v7130 = vsel %vm7113, %v6661, %v6762
  %v7131 = vsel %vm7113, %v6661, %v6764
  %v7132 = vsel %vm7113, %v6661, %v6766
  %v7133 = vsel %vm7113, %v6661, %v6768
  %v7134 = vsel %vm7113, %v6661, %v6770
  %v7135 = vsel %vm7113, %v6661, %v6772
  %v7136 = vsel %vm7113, %v6661, %v6774
  %v7137 = vsel %vm7113, %v6661, %v6776
  %v7138 = vsel %vm7113, %v6661, %v6778
  %v7139 = vsel %vm7113, %v6661, %v6780
  %v7140 = vsel %vm7113, %v6661, %v6782
  %v7141 = vsel %vm7113, %v6661, %v6784
  %v7142 = vsel %vm7113, %v6661, %v6786
  %v7143 = vsel %vm7113, %v6661, %v6788
  %v7144 = vsel %vm7113, %v6661, %v6790
  %v7145 = vsel %vm7113, %v6661, %v6792
  %v7146 = vsel %vm7113, %v6662, %v6794
  %v7147 = vsel %vm7113, %v6662, %v6796
  %v7148 = vsel %vm7113, %v6662, %v6798
  %v7149 = vsel %vm7113, %v6662, %v6800
  %v7150 = vsel %vm7113, %v6662, %v6802
  %v7151 = vsel %vm7113, %v6662, %v6804
  %v7152 = vsel %vm7113, %v6662, %v6806
  %v7153 = vsel %vm7113, %v6662, %v6808
  %v7154 = vsel %vm7113, %v6662, %v6810
  %v7155 = vsel %vm7113, %v6662, %v6812
  %v7156 = vsel %vm7113, %v6662, %v6814
  %v7157 = vsel %vm7113, %v6662, %v6816
  %v7158 = vsel %vm7113, %v6662, %v6818
  %v7159 = vsel %vm7113, %v6662, %v6820
  %v7160 = vsel %vm7113, %v6662, %v6822
  %v7161 = vsel %vm7113, %v6662, %v6824
  %v7162 = vsel %vm7113, %v6662, %v6826
  %v7163 = vsel %vm7113, %v6662, %v6828
  %v7164 = vsel %vm7113, %v6662, %v6830
  %v7165 = vsel %vm7113, %v6662, %v6832
  %v7166 = vsel %vm7113, %v6662, %v6834
  %v7167 = vsel %vm7113, %v6662, %v6836
  %v7168 = vsel %vm7113, %v6662, %v6838
  %v7169 = vsel %vm7113, %v6662, %v6840
  %v7170 = vsel %vm7113, %v6662, %v6842
  %v7171 = vsel %vm7113, %v6662, %v6844
  %v7172 = vsel %vm7113, %v6662, %v6846
  %v7173 = vsel %vm7113, %v6662, %v6848
  %v7174 = vsel %vm7113, %v6662, %v6850
  %v7175 = vsel %vm7113, %v6662, %v6852
  %v7176 = vsel %vm7113, %v6662, %v6854
  %v7177 = vsel %vm7113, %v6662, %v6856
  %v7178 = vsel %vm2781, %v7114, %v6922
  %v7179 = vsel %vm2781, %v7115, %v6924
  %v7180 = vsel %vm2781, %v7116, %v6926
  %v7181 = vsel %vm2781, %v7117, %v6928
  %v7182 = vsel %vm2781, %v7118, %v6930
  %v7183 = vsel %vm2781, %v7119, %v6932
  %v7184 = vsel %vm2781, %v7120, %v6934
  %v7185 = vsel %vm2781, %v7121, %v6936
  %v7186 = vsel %vm2781, %v7122, %v6938
  %v7187 = vsel %vm2781, %v7123, %v6940
  %v7188 = vsel %vm2781, %v7124, %v6942
  %v7189 = vsel %vm2781, %v7125, %v6944
  %v7190 = vsel %vm2781, %v7126, %v6946
  %v7191 = vsel %vm2781, %v7127, %v6948
  %v7192 = vsel %vm2781, %v7128, %v6950
  %v7193 = vsel %vm2781, %v7129, %v6952
  %v7194 = vsel %vm2781, %v7130, %v6954
  %v7195 = vsel %vm2781, %v7131, %v6956
  %v7196 = vsel %vm2781, %v7132, %v6958
  %v7197 = vsel %vm2781, %v7133, %v6960
  %v7198 = vsel %vm2781, %v7134, %v6962
  %v7199 = vsel %vm2781, %v7135, %v6964
  %v7200 = vsel %vm2781, %v7136, %v6966
  %v7201 = vsel %vm2781, %v7137, %v6968
  %v7202 = vsel %vm2781, %v7138, %v6970
  %v7203 = vsel %vm2781, %v7139, %v6972
  %v7204 = vsel %vm2781, %v7140, %v6974
  %v7205 = vsel %vm2781, %v7141, %v6976
  %v7206 = vsel %vm2781, %v7142, %v6978
  %v7207 = vsel %vm2781, %v7143, %v6980
  %v7208 = vsel %vm2781, %v7144, %v6982
  %v7209 = vsel %vm2781, %v7145, %v6984
  %v7210 = vsel %vm2781, %v7146, %v6986
  %v7211 = vsel %vm2781, %v7147, %v6988
  %v7212 = vsel %vm2781, %v7148, %v6990
  %v7213 = vsel %vm2781, %v7149, %v6992
  %v7214 = vsel %vm2781, %v7150, %v6994
  %v7215 = vsel %vm2781, %v7151, %v6996
  %v7216 = vsel %vm2781, %v7152, %v6998
  %v7217 = vsel %vm2781, %v7153, %v7000
  %v7218 = vsel %vm2781, %v7154, %v7002
  %v7219 = vsel %vm2781, %v7155, %v7004
  %v7220 = vsel %vm2781, %v7156, %v7006
  %v7221 = vsel %vm2781, %v7157, %v7008
  %v7222 = vsel %vm2781, %v7158, %v7010
  %v7223 = vsel %vm2781, %v7159, %v7012
  %v7224 = vsel %vm2781, %v7160, %v7014
  %v7225 = vsel %vm2781, %v7161, %v7016
  %v7226 = vsel %vm2781, %v7162, %v7018
  %v7227 = vsel %vm2781, %v7163, %v7020
  %v7228 = vsel %vm2781, %v7164, %v7022
  %v7229 = vsel %vm2781, %v7165, %v7024
  %v7230 = vsel %vm2781, %v7166, %v7026
  %v7231 = vsel %vm2781, %v7167, %v7028
  %v7232 = vsel %vm2781, %v7168, %v7030
  %v7233 = vsel %vm2781, %v7169, %v7032
  %v7234 = vsel %vm2781, %v7170, %v7034
  %v7235 = vsel %vm2781, %v7171, %v7036
  %v7236 = vsel %vm2781, %v7172, %v7038
  %v7237 = vsel %vm2781, %v7173, %v7040
  %v7238 = vsel %vm2781, %v7174, %v7042
  %v7239 = vsel %vm2781, %v7175, %v7044
  %v7240 = vsel %vm2781, %v7176, %v7046
  %v7241 = vsel %vm2781, %v7177, %v7048
  %v7306 = vrot.slane %v7178, 7
  %v7307 = vrot.slane %v7179, 7
  %v7308 = vsel %vm165, %v7306, %v7307
  %v7309 = vrot.slane %v7180, 7
  %v7310 = vrot.slane %v7181, 7
  %v7311 = vsel %vm165, %v7309, %v7310
  %v7312 = vrot.slane %v7182, 7
  %v7313 = vrot.slane %v7183, 7
  %v7314 = vsel %vm165, %v7312, %v7313
  %v7315 = vrot.slane %v7184, 7
  %v7316 = vrot.slane %v7185, 7
  %v7317 = vsel %vm165, %v7315, %v7316
  %v7318 = vrot.slane %v7186, 7
  %v7319 = vrot.slane %v7187, 7
  %v7320 = vsel %vm165, %v7318, %v7319
  %v7321 = vrot.slane %v7188, 7
  %v7322 = vrot.slane %v7189, 7
  %v7323 = vsel %vm165, %v7321, %v7322
  %v7324 = vrot.slane %v7190, 7
  %v7325 = vrot.slane %v7191, 7
  %v7326 = vsel %vm165, %v7324, %v7325
  %v7327 = vrot.slane %v7192, 7
  %v7328 = vrot.slane %v7193, 7
  %v7329 = vsel %vm165, %v7327, %v7328
  %v7330 = vrot.slane %v7194, 7
  %v7331 = vrot.slane %v7195, 7
  %v7332 = vsel %vm165, %v7330, %v7331
  %v7333 = vrot.slane %v7196, 7
  %v7334 = vrot.slane %v7197, 7
  %v7335 = vsel %vm165, %v7333, %v7334
  %v7336 = vrot.slane %v7198, 7
  %v7337 = vrot.slane %v7199, 7
  %v7338 = vsel %vm165, %v7336, %v7337
  %v7339 = vrot.slane %v7200, 7
  %v7340 = vrot.slane %v7201, 7
  %v7341 = vsel %vm165, %v7339, %v7340
  %v7342 = vrot.slane %v7202, 7
  %v7343 = vrot.slane %v7203, 7
  %v7344 = vsel %vm165, %v7342, %v7343
  %v7345 = vrot.slane %v7204, 7
  %v7346 = vrot.slane %v7205, 7
  %v7347 = vsel %vm165, %v7345, %v7346
  %v7348 = vrot.slane %v7206, 7
  %v7349 = vrot.slane %v7207, 7
  %v7350 = vsel %vm165, %v7348, %v7349
  %v7351 = vrot.slane %v7208, 7
  %v7352 = vrot.slane %v7209, 7
  %v7353 = vsel %vm165, %v7351, %v7352
  %v7354 = vrot.slane %v7210, 7
  %v7355 = vrot.slane %v7211, 7
  %v7356 = vsel %vm165, %v7354, %v7355
  %v7357 = vrot.slane %v7212, 7
  %v7358 = vrot.slane %v7213, 7
  %v7359 = vsel %vm165, %v7357, %v7358
  %v7360 = vrot.slane %v7214, 7
  %v7361 = vrot.slane %v7215, 7
  %v7362 = vsel %vm165, %v7360, %v7361
  %v7363 = vrot.slane %v7216, 7
  %v7364 = vrot.slane %v7217, 7
  %v7365 = vsel %vm165, %v7363, %v7364
  %v7366 = vrot.slane %v7218, 7
  %v7367 = vrot.slane %v7219, 7
  %v7368 = vsel %vm165, %v7366, %v7367
  %v7369 = vrot.slane %v7220, 7
  %v7370 = vrot.slane %v7221, 7
  %v7371 = vsel %vm165, %v7369, %v7370
  %v7372 = vrot.slane %v7222, 7
  %v7373 = vrot.slane %v7223, 7
  %v7374 = vsel %vm165, %v7372, %v7373
  %v7375 = vrot.slane %v7224, 7
  %v7376 = vrot.slane %v7225, 7
  %v7377 = vsel %vm165, %v7375, %v7376
  %v7378 = vrot.slane %v7226, 7
  %v7379 = vrot.slane %v7227, 7
  %v7380 = vsel %vm165, %v7378, %v7379
  %v7381 = vrot.slane %v7228, 7
  %v7382 = vrot.slane %v7229, 7
  %v7383 = vsel %vm165, %v7381, %v7382
  %v7384 = vrot.slane %v7230, 7
  %v7385 = vrot.slane %v7231, 7
  %v7386 = vsel %vm165, %v7384, %v7385
  %v7387 = vrot.slane %v7232, 7
  %v7388 = vrot.slane %v7233, 7
  %v7389 = vsel %vm165, %v7387, %v7388
  %v7390 = vrot.slane %v7234, 7
  %v7391 = vrot.slane %v7235, 7
  %v7392 = vsel %vm165, %v7390, %v7391
  %v7393 = vrot.slane %v7236, 7
  %v7394 = vrot.slane %v7237, 7
  %v7395 = vsel %vm165, %v7393, %v7394
  %v7396 = vrot.slane %v7238, 7
  %v7397 = vrot.slane %v7239, 7
  %v7398 = vsel %vm165, %v7396, %v7397
  %v7399 = vrot.slane %v7240, 7
  %v7400 = vrot.slane %v7241, 7
  %v7401 = vsel %vm165, %v7399, %v7400
  %v7496 = vsel %vm165, 0.0, %v7306
  %v7497 = vsel %vm165, 0.0, %v7309
  %v7498 = vsel %vm165, 0.0, %v7312
  %v7499 = vsel %vm165, 0.0, %v7315
  %v7500 = vsel %vm165, 0.0, %v7318
  %v7501 = vsel %vm165, 0.0, %v7321
  %v7502 = vsel %vm165, 0.0, %v7324
  %v7503 = vsel %vm165, 0.0, %v7327
  %v7504 = vsel %vm165, 0.0, %v7330
  %v7505 = vsel %vm165, 0.0, %v7333
  %v7506 = vsel %vm165, 0.0, %v7336
  %v7507 = vsel %vm165, 0.0, %v7339
  %v7508 = vsel %vm165, 0.0, %v7342
  %v7509 = vsel %vm165, 0.0, %v7345
  %v7510 = vsel %vm165, 0.0, %v7348
  %v7511 = vsel %vm165, 0.0, %v7351
  %v7512 = vsel %vm165, 0.0, %v7354
  %v7513 = vsel %vm165, 0.0, %v7357
  %v7514 = vsel %vm165, 0.0, %v7360
  %v7515 = vsel %vm165, 0.0, %v7363
  %v7516 = vsel %vm165, 0.0, %v7366
  %v7517 = vsel %vm165, 0.0, %v7369
  %v7518 = vsel %vm165, 0.0, %v7372
  %v7519 = vsel %vm165, 0.0, %v7375
  %v7520 = vsel %vm165, 0.0, %v7378
  %v7521 = vsel %vm165, 0.0, %v7381
  %v7522 = vsel %vm165, 0.0, %v7384
  %v7523 = vsel %vm165, 0.0, %v7387
  %v7524 = vsel %vm165, 0.0, %v7390
  %v7525 = vsel %vm165, 0.0, %v7393
  %v7526 = vsel %vm165, 0.0, %v7396
  %v7527 = vsel %vm165, 0.0, %v7399
  %v7528 = vsel %vm165, %v7307, 0.0
  %v7529 = vsel %vm165, %v7310, 0.0
  %v7530 = vsel %vm165, %v7313, 0.0
  %v7531 = vsel %vm165, %v7316, 0.0
  %v7532 = vsel %vm165, %v7319, 0.0
  %v7533 = vsel %vm165, %v7322, 0.0
  %v7534 = vsel %vm165, %v7325, 0.0
  %v7535 = vsel %vm165, %v7328, 0.0
  %v7536 = vsel %vm165, %v7331, 0.0
  %v7537 = vsel %vm165, %v7334, 0.0
  %v7538 = vsel %vm165, %v7337, 0.0
  %v7539 = vsel %vm165, %v7340, 0.0
  %v7540 = vsel %vm165, %v7343, 0.0
  %v7541 = vsel %vm165, %v7346, 0.0
  %v7542 = vsel %vm165, %v7349, 0.0
  %v7543 = vsel %vm165, %v7352, 0.0
  %v7544 = vsel %vm165, %v7355, 0.0
  %v7545 = vsel %vm165, %v7358, 0.0
  %v7546 = vsel %vm165, %v7361, 0.0
  %v7547 = vsel %vm165, %v7364, 0.0
  %v7548 = vsel %vm165, %v7367, 0.0
  %v7549 = vsel %vm165, %v7370, 0.0
  %v7550 = vsel %vm165, %v7373, 0.0
  %v7551 = vsel %vm165, %v7376, 0.0
  %v7552 = vsel %vm165, %v7379, 0.0
  %v7553 = vsel %vm165, %v7382, 0.0
  %v7554 = vsel %vm165, %v7385, 0.0
  %v7555 = vsel %vm165, %v7388, 0.0
  %v7556 = vsel %vm165, %v7391, 0.0
  %v7557 = vsel %vm165, %v7394, 0.0
  %v7558 = vsel %vm165, %v7397, 0.0
  %v7559 = vsel %vm165, %v7400, 0.0
  %v7620 = vrot.slane %v7496, 1
  %v7621 = vrot.slane %v7308, 1
  %v7622 = vsel %vm488, %v7620, %v7621
  %v7623 = vrot.slane %v7528, 1
  %v7624 = vsel %vm488, %v7621, %v7623
  %v7625 = vrot.slane %v7497, 1
  %v7626 = vrot.slane %v7311, 1
  %v7627 = vsel %vm488, %v7625, %v7626
  %v7628 = vrot.slane %v7529, 1
  %v7629 = vsel %vm488, %v7626, %v7628
  %v7630 = vrot.slane %v7498, 1
  %v7631 = vrot.slane %v7314, 1
  %v7632 = vsel %vm488, %v7630, %v7631
  %v7633 = vrot.slane %v7530, 1
  %v7634 = vsel %vm488, %v7631, %v7633
  %v7635 = vrot.slane %v7499, 1
  %v7636 = vrot.slane %v7317, 1
  %v7637 = vsel %vm488, %v7635, %v7636
  %v7638 = vrot.slane %v7531, 1
  %v7639 = vsel %vm488, %v7636, %v7638
  %v7640 = vrot.slane %v7500, 1
  %v7641 = vrot.slane %v7320, 1
  %v7642 = vsel %vm488, %v7640, %v7641
  %v7643 = vrot.slane %v7532, 1
  %v7644 = vsel %vm488, %v7641, %v7643
  %v7645 = vrot.slane %v7501, 1
  %v7646 = vrot.slane %v7323, 1
  %v7647 = vsel %vm488, %v7645, %v7646
  %v7648 = vrot.slane %v7533, 1
  %v7649 = vsel %vm488, %v7646, %v7648
  %v7650 = vrot.slane %v7502, 1
  %v7651 = vrot.slane %v7326, 1
  %v7652 = vsel %vm488, %v7650, %v7651
  %v7653 = vrot.slane %v7534, 1
  %v7654 = vsel %vm488, %v7651, %v7653
  %v7655 = vrot.slane %v7503, 1
  %v7656 = vrot.slane %v7329, 1
  %v7657 = vsel %vm488, %v7655, %v7656
  %v7658 = vrot.slane %v7535, 1
  %v7659 = vsel %vm488, %v7656, %v7658
  %v7660 = vrot.slane %v7504, 1
  %v7661 = vrot.slane %v7332, 1
  %v7662 = vsel %vm488, %v7660, %v7661
  %v7663 = vrot.slane %v7536, 1
  %v7664 = vsel %vm488, %v7661, %v7663
  %v7665 = vrot.slane %v7505, 1
  %v7666 = vrot.slane %v7335, 1
  %v7667 = vsel %vm488, %v7665, %v7666
  %v7668 = vrot.slane %v7537, 1
  %v7669 = vsel %vm488, %v7666, %v7668
  %v7670 = vrot.slane %v7506, 1
  %v7671 = vrot.slane %v7338, 1
  %v7672 = vsel %vm488, %v7670, %v7671
  %v7673 = vrot.slane %v7538, 1
  %v7674 = vsel %vm488, %v7671, %v7673
  %v7675 = vrot.slane %v7507, 1
  %v7676 = vrot.slane %v7341, 1
  %v7677 = vsel %vm488, %v7675, %v7676
  %v7678 = vrot.slane %v7539, 1
  %v7679 = vsel %vm488, %v7676, %v7678
  %v7680 = vrot.slane %v7508, 1
  %v7681 = vrot.slane %v7344, 1
  %v7682 = vsel %vm488, %v7680, %v7681
  %v7683 = vrot.slane %v7540, 1
  %v7684 = vsel %vm488, %v7681, %v7683
  %v7685 = vrot.slane %v7509, 1
  %v7686 = vrot.slane %v7347, 1
  %v7687 = vsel %vm488, %v7685, %v7686
  %v7688 = vrot.slane %v7541, 1
  %v7689 = vsel %vm488, %v7686, %v7688
  %v7690 = vrot.slane %v7510, 1
  %v7691 = vrot.slane %v7350, 1
  %v7692 = vsel %vm488, %v7690, %v7691
  %v7693 = vrot.slane %v7542, 1
  %v7694 = vsel %vm488, %v7691, %v7693
  %v7695 = vrot.slane %v7512, 1
  %v7696 = vrot.slane %v7356, 1
  %v7697 = vsel %vm488, %v7695, %v7696
  %v7698 = vrot.slane %v7544, 1
  %v7699 = vsel %vm488, %v7696, %v7698
  %v7700 = vrot.slane %v7513, 1
  %v7701 = vrot.slane %v7359, 1
  %v7702 = vsel %vm488, %v7700, %v7701
  %v7703 = vrot.slane %v7545, 1
  %v7704 = vsel %vm488, %v7701, %v7703
  %v7705 = vrot.slane %v7514, 1
  %v7706 = vrot.slane %v7362, 1
  %v7707 = vsel %vm488, %v7705, %v7706
  %v7708 = vrot.slane %v7546, 1
  %v7709 = vsel %vm488, %v7706, %v7708
  %v7710 = vrot.slane %v7515, 1
  %v7711 = vrot.slane %v7365, 1
  %v7712 = vsel %vm488, %v7710, %v7711
  %v7713 = vrot.slane %v7547, 1
  %v7714 = vsel %vm488, %v7711, %v7713
  %v7715 = vrot.slane %v7516, 1
  %v7716 = vrot.slane %v7368, 1
  %v7717 = vsel %vm488, %v7715, %v7716
  %v7718 = vrot.slane %v7548, 1
  %v7719 = vsel %vm488, %v7716, %v7718
  %v7720 = vrot.slane %v7517, 1
  %v7721 = vrot.slane %v7371, 1
  %v7722 = vsel %vm488, %v7720, %v7721
  %v7723 = vrot.slane %v7549, 1
  %v7724 = vsel %vm488, %v7721, %v7723
  %v7725 = vrot.slane %v7518, 1
  %v7726 = vrot.slane %v7374, 1
  %v7727 = vsel %vm488, %v7725, %v7726
  %v7728 = vrot.slane %v7550, 1
  %v7729 = vsel %vm488, %v7726, %v7728
  %v7730 = vrot.slane %v7519, 1
  %v7731 = vrot.slane %v7377, 1
  %v7732 = vsel %vm488, %v7730, %v7731
  %v7733 = vrot.slane %v7551, 1
  %v7734 = vsel %vm488, %v7731, %v7733
  %v7735 = vrot.slane %v7520, 1
  %v7736 = vrot.slane %v7380, 1
  %v7737 = vsel %vm488, %v7735, %v7736
  %v7738 = vrot.slane %v7552, 1
  %v7739 = vsel %vm488, %v7736, %v7738
  %v7740 = vrot.slane %v7521, 1
  %v7741 = vrot.slane %v7383, 1
  %v7742 = vsel %vm488, %v7740, %v7741
  %v7743 = vrot.slane %v7553, 1
  %v7744 = vsel %vm488, %v7741, %v7743
  %v7745 = vrot.slane %v7522, 1
  %v7746 = vrot.slane %v7386, 1
  %v7747 = vsel %vm488, %v7745, %v7746
  %v7748 = vrot.slane %v7554, 1
  %v7749 = vsel %vm488, %v7746, %v7748
  %v7750 = vrot.slane %v7523, 1
  %v7751 = vrot.slane %v7389, 1
  %v7752 = vsel %vm488, %v7750, %v7751
  %v7753 = vrot.slane %v7555, 1
  %v7754 = vsel %vm488, %v7751, %v7753
  %v7755 = vrot.slane %v7524, 1
  %v7756 = vrot.slane %v7392, 1
  %v7757 = vsel %vm488, %v7755, %v7756
  %v7758 = vrot.slane %v7556, 1
  %v7759 = vsel %vm488, %v7756, %v7758
  %v7760 = vrot.slane %v7525, 1
  %v7761 = vrot.slane %v7395, 1
  %v7762 = vsel %vm488, %v7760, %v7761
  %v7763 = vrot.slane %v7557, 1
  %v7764 = vsel %vm488, %v7761, %v7763
  %v7765 = vrot.slane %v7526, 1
  %v7766 = vrot.slane %v7398, 1
  %v7767 = vsel %vm488, %v7765, %v7766
  %v7768 = vrot.slane %v7558, 1
  %v7769 = vsel %vm488, %v7766, %v7768
  %7770 = vrot.lane.b32.xlu0 %v491, 27
  %v7771 = vpop.permute.xlu0 %7770
  %7772 = vrot.lane.b32.xlu0 %v493, 27
  %v7773 = vpop.permute.xlu0 %7772
  %7774 = vrot.lane.b32.xlu0 %v7622, 27
  %v7775 = vpop.permute.xlu0 %7774
  %7776 = vrot.lane.b32.xlu0 %v7624, 27
  %v7777 = vpop.permute.xlu0 %7776
  %7778 = vrot.lane.b32.xlu0 %v7627, 27
  %v7779 = vpop.permute.xlu0 %7778
  %7780 = vrot.lane.b32.xlu0 %v7629, 27
  %v7781 = vpop.permute.xlu0 %7780
  %7782 = vrot.lane.b32.xlu0 %v7632, 27
  %v7783 = vpop.permute.xlu0 %7782
  %7784 = vrot.lane.b32.xlu0 %v7634, 27
  %v7785 = vpop.permute.xlu0 %7784
  %7786 = vrot.lane.b32.xlu0 %v7637, 27
  %v7787 = vpop.permute.xlu0 %7786
  %7788 = vrot.lane.b32.xlu0 %v7639, 27
  %v7789 = vpop.permute.xlu0 %7788
  %7790 = vrot.lane.b32.xlu0 %v7642, 27
  %v7791 = vpop.permute.xlu0 %7790
  %7792 = vrot.lane.b32.xlu0 %v7644, 27
  %v7793 = vpop.permute.xlu0 %7792
  %7794 = vrot.lane.b32.xlu0 %v7647, 27
  %v7795 = vpop.permute.xlu0 %7794
  %7796 = vrot.lane.b32.xlu0 %v7649, 27
  %v7797 = vpop.permute.xlu0 %7796
  %7798 = vrot.lane.b32.xlu0 %v7652, 27
  %v7799 = vpop.permute.xlu0 %7798
  %7800 = vrot.lane.b32.xlu0 %v7654, 27
  %v7801 = vpop.permute.xlu0 %7800
  %7802 = vrot.lane.b32.xlu0 %v7657, 27
  %v7803 = vpop.permute.xlu0 %7802
  %7804 = vrot.lane.b32.xlu0 %v7659, 27
  %v7805 = vpop.permute.xlu0 %7804
  %7806 = vrot.lane.b32.xlu0 %v7662, 27
  %v7807 = vpop.permute.xlu0 %7806
  %7808 = vrot.lane.b32.xlu0 %v7664, 27
  %v7809 = vpop.permute.xlu0 %7808
  %7810 = vrot.lane.b32.xlu0 %v7667, 27
  %v7811 = vpop.permute.xlu0 %7810
  %7812 = vrot.lane.b32.xlu0 %v7669, 27
  %v7813 = vpop.permute.xlu0 %7812
  %7814 = vrot.lane.b32.xlu0 %v7672, 27
  %v7815 = vpop.permute.xlu0 %7814
  %7816 = vrot.lane.b32.xlu0 %v7674, 27
  %v7817 = vpop.permute.xlu0 %7816
  %7818 = vrot.lane.b32.xlu0 %v7677, 27
  %v7819 = vpop.permute.xlu0 %7818
  %7820 = vrot.lane.b32.xlu0 %v7679, 27
  %v7821 = vpop.permute.xlu0 %7820
  %7822 = vrot.lane.b32.xlu0 %v7682, 27
  %v7823 = vpop.permute.xlu0 %7822
  %7824 = vrot.lane.b32.xlu0 %v7684, 27
  %v7825 = vpop.permute.xlu0 %7824
  %7826 = vrot.lane.b32.xlu0 %v7687, 27
  %v7827 = vpop.permute.xlu0 %7826
  %7828 = vrot.lane.b32.xlu0 %v7689, 27
  %v7829 = vpop.permute.xlu0 %7828
  %7830 = vrot.lane.b32.xlu0 %v7692, 27
  %v7831 = vpop.permute.xlu0 %7830
  %7832 = vrot.lane.b32.xlu0 %v7694, 27
  %v7833 = vpop.permute.xlu0 %7832
  %7834 = vrot.lane.b32.xlu0 %v7697, 27
  %v7835 = vpop.permute.xlu0 %7834
  %7836 = vrot.lane.b32.xlu0 %v7699, 27
  %v7837 = vpop.permute.xlu0 %7836
  %7838 = vrot.lane.b32.xlu0 %v7702, 27
  %v7839 = vpop.permute.xlu0 %7838
  %7840 = vrot.lane.b32.xlu0 %v7704, 27
  %v7841 = vpop.permute.xlu0 %7840
  %7842 = vrot.lane.b32.xlu0 %v7707, 27
  %v7843 = vpop.permute.xlu0 %7842
  %7844 = vrot.lane.b32.xlu0 %v7709, 27
  %v7845 = vpop.permute.xlu0 %7844
  %7846 = vrot.lane.b32.xlu0 %v7712, 27
  %v7847 = vpop.permute.xlu0 %7846
  %7848 = vrot.lane.b32.xlu0 %v7714, 27
  %v7849 = vpop.permute.xlu0 %7848
  %7850 = vrot.lane.b32.xlu0 %v7717, 27
  %v7851 = vpop.permute.xlu0 %7850
  %7852 = vrot.lane.b32.xlu0 %v7719, 27
  %v7853 = vpop.permute.xlu0 %7852
  %7854 = vrot.lane.b32.xlu0 %v7722, 27
  %v7855 = vpop.permute.xlu0 %7854
  %7856 = vrot.lane.b32.xlu0 %v7724, 27
  %v7857 = vpop.permute.xlu0 %7856
  %7858 = vrot.lane.b32.xlu0 %v7727, 27
  %v7859 = vpop.permute.xlu0 %7858
  %7860 = vrot.lane.b32.xlu0 %v7729, 27
  %v7861 = vpop.permute.xlu0 %7860
  %7862 = vrot.lane.b32.xlu0 %v7732, 27
  %v7863 = vpop.permute.xlu0 %7862
  %7864 = vrot.lane.b32.xlu0 %v7734, 27
  %v7865 = vpop.permute.xlu0 %7864
  %7866 = vrot.lane.b32.xlu0 %v7737, 27
  %v7867 = vpop.permute.xlu0 %7866
  %7868 = vrot.lane.b32.xlu0 %v7739, 27
  %v7869 = vpop.permute.xlu0 %7868
  %7870 = vrot.lane.b32.xlu0 %v7742, 27
  %v7871 = vpop.permute.xlu0 %7870
  %7872 = vrot.lane.b32.xlu0 %v7744, 27
  %v7873 = vpop.permute.xlu0 %7872
  %7874 = vrot.lane.b32.xlu0 %v7747, 27
  %v7875 = vpop.permute.xlu0 %7874
  %7876 = vrot.lane.b32.xlu0 %v7749, 27
  %v7877 = vpop.permute.xlu0 %7876
  %7878 = vrot.lane.b32.xlu0 %v7752, 27
  %v7879 = vpop.permute.xlu0 %7878
  %7880 = vrot.lane.b32.xlu0 %v7754, 27
  %v7881 = vpop.permute.xlu0 %7880
  %7882 = vrot.lane.b32.xlu0 %v7757, 27
  %v7883 = vpop.permute.xlu0 %7882
  %7884 = vrot.lane.b32.xlu0 %v7759, 27
  %v7885 = vpop.permute.xlu0 %7884
  %7886 = vrot.lane.b32.xlu0 %v7762, 27
  %v7887 = vpop.permute.xlu0 %7886
  %7888 = vrot.lane.b32.xlu0 %v7764, 27
  %v7889 = vpop.permute.xlu0 %7888
  %7890 = vrot.lane.b32.xlu0 %v7767, 27
  %v7891 = vpop.permute.xlu0 %7890
  %7892 = vrot.lane.b32.xlu0 %v7769, 27
  %v7893 = vpop.permute.xlu0 %7892
  %v7956 = vrot.slane %v7496, 2
  %v7957 = vrot.slane %v7308, 2
  %v7958 = vsel %vm830, %v7956, %v7957
  %v7959 = vrot.slane %v7528, 2
  %v7960 = vsel %vm830, %v7957, %v7959
  %v7961 = vrot.slane %v7497, 2
  %v7962 = vrot.slane %v7311, 2
  %v7963 = vsel %vm830, %v7961, %v7962
  %v7964 = vrot.slane %v7529, 2
  %v7965 = vsel %vm830, %v7962, %v7964
  %v7966 = vrot.slane %v7498, 2
  %v7967 = vrot.slane %v7314, 2
  %v7968 = vsel %vm830, %v7966, %v7967
  %v7969 = vrot.slane %v7530, 2
  %v7970 = vsel %vm830, %v7967, %v7969
  %v7971 = vrot.slane %v7499, 2
  %v7972 = vrot.slane %v7317, 2
  %v7973 = vsel %vm830, %v7971, %v7972
  %v7974 = vrot.slane %v7531, 2
  %v7975 = vsel %vm830, %v7972, %v7974
  %v7976 = vrot.slane %v7500, 2
  %v7977 = vrot.slane %v7320, 2
  %v7978 = vsel %vm830, %v7976, %v7977
  %v7979 = vrot.slane %v7532, 2
  %v7980 = vsel %vm830, %v7977, %v7979
  %v7981 = vrot.slane %v7501, 2
  %v7982 = vrot.slane %v7323, 2
  %v7983 = vsel %vm830, %v7981, %v7982
  %v7984 = vrot.slane %v7533, 2
  %v7985 = vsel %vm830, %v7982, %v7984
  %v7986 = vrot.slane %v7502, 2
  %v7987 = vrot.slane %v7326, 2
  %v7988 = vsel %vm830, %v7986, %v7987
  %v7989 = vrot.slane %v7534, 2
  %v7990 = vsel %vm830, %v7987, %v7989
  %v7991 = vrot.slane %v7503, 2
  %v7992 = vrot.slane %v7329, 2
  %v7993 = vsel %vm830, %v7991, %v7992
  %v7994 = vrot.slane %v7535, 2
  %v7995 = vsel %vm830, %v7992, %v7994
  %v7996 = vrot.slane %v7504, 2
  %v7997 = vrot.slane %v7332, 2
  %v7998 = vsel %vm830, %v7996, %v7997
  %v7999 = vrot.slane %v7536, 2
  %v8000 = vsel %vm830, %v7997, %v7999
  %v8001 = vrot.slane %v7505, 2
  %v8002 = vrot.slane %v7335, 2
  %v8003 = vsel %vm830, %v8001, %v8002
  %v8004 = vrot.slane %v7537, 2
  %v8005 = vsel %vm830, %v8002, %v8004
  %v8006 = vrot.slane %v7506, 2
  %v8007 = vrot.slane %v7338, 2
  %v8008 = vsel %vm830, %v8006, %v8007
  %v8009 = vrot.slane %v7538, 2
  %v8010 = vsel %vm830, %v8007, %v8009
  %v8011 = vrot.slane %v7507, 2
  %v8012 = vrot.slane %v7341, 2
  %v8013 = vsel %vm830, %v8011, %v8012
  %v8014 = vrot.slane %v7539, 2
  %v8015 = vsel %vm830, %v8012, %v8014
  %v8016 = vrot.slane %v7508, 2
  %v8017 = vrot.slane %v7344, 2
  %v8018 = vsel %vm830, %v8016, %v8017
  %v8019 = vrot.slane %v7540, 2
  %v8020 = vsel %vm830, %v8017, %v8019
  %v8021 = vrot.slane %v7509, 2
  %v8022 = vrot.slane %v7347, 2
  %v8023 = vsel %vm830, %v8021, %v8022
  %v8024 = vrot.slane %v7541, 2
  %v8025 = vsel %vm830, %v8022, %v8024
  %v8026 = vrot.slane %v7510, 2
  %v8027 = vrot.slane %v7350, 2
  %v8028 = vsel %vm830, %v8026, %v8027
  %v8029 = vrot.slane %v7542, 2
  %v8030 = vsel %vm830, %v8027, %v8029
  %v8031 = vrot.slane %v7512, 2
  %v8032 = vrot.slane %v7356, 2
  %v8033 = vsel %vm830, %v8031, %v8032
  %v8034 = vrot.slane %v7544, 2
  %v8035 = vsel %vm830, %v8032, %v8034
  %v8036 = vrot.slane %v7513, 2
  %v8037 = vrot.slane %v7359, 2
  %v8038 = vsel %vm830, %v8036, %v8037
  %v8039 = vrot.slane %v7545, 2
  %v8040 = vsel %vm830, %v8037, %v8039
  %v8041 = vrot.slane %v7514, 2
  %v8042 = vrot.slane %v7362, 2
  %v8043 = vsel %vm830, %v8041, %v8042
  %v8044 = vrot.slane %v7546, 2
  %v8045 = vsel %vm830, %v8042, %v8044
  %v8046 = vrot.slane %v7515, 2
  %v8047 = vrot.slane %v7365, 2
  %v8048 = vsel %vm830, %v8046, %v8047
  %v8049 = vrot.slane %v7547, 2
  %v8050 = vsel %vm830, %v8047, %v8049
  %v8051 = vrot.slane %v7516, 2
  %v8052 = vrot.slane %v7368, 2
  %v8053 = vsel %vm830, %v8051, %v8052
  %v8054 = vrot.slane %v7548, 2
  %v8055 = vsel %vm830, %v8052, %v8054
  %v8056 = vrot.slane %v7517, 2
  %v8057 = vrot.slane %v7371, 2
  %v8058 = vsel %vm830, %v8056, %v8057
  %v8059 = vrot.slane %v7549, 2
  %v8060 = vsel %vm830, %v8057, %v8059
  %v8061 = vrot.slane %v7518, 2
  %v8062 = vrot.slane %v7374, 2
  %v8063 = vsel %vm830, %v8061, %v8062
  %v8064 = vrot.slane %v7550, 2
  %v8065 = vsel %vm830, %v8062, %v8064
  %v8066 = vrot.slane %v7519, 2
  %v8067 = vrot.slane %v7377, 2
  %v8068 = vsel %vm830, %v8066, %v8067
  %v8069 = vrot.slane %v7551, 2
  %v8070 = vsel %vm830, %v8067, %v8069
  %v8071 = vrot.slane %v7520, 2
  %v8072 = vrot.slane %v7380, 2
  %v8073 = vsel %vm830, %v8071, %v8072
  %v8074 = vrot.slane %v7552, 2
  %v8075 = vsel %vm830, %v8072, %v8074
  %v8076 = vrot.slane %v7521, 2
  %v8077 = vrot.slane %v7383, 2
  %v8078 = vsel %vm830, %v8076, %v8077
  %v8079 = vrot.slane %v7553, 2
  %v8080 = vsel %vm830, %v8077, %v8079
  %v8081 = vrot.slane %v7522, 2
  %v8082 = vrot.slane %v7386, 2
  %v8083 = vsel %vm830, %v8081, %v8082
  %v8084 = vrot.slane %v7554, 2
  %v8085 = vsel %vm830, %v8082, %v8084
  %v8086 = vrot.slane %v7523, 2
  %v8087 = vrot.slane %v7389, 2
  %v8088 = vsel %vm830, %v8086, %v8087
  %v8089 = vrot.slane %v7555, 2
  %v8090 = vsel %vm830, %v8087, %v8089
  %v8091 = vrot.slane %v7524, 2
  %v8092 = vrot.slane %v7392, 2
  %v8093 = vsel %vm830, %v8091, %v8092
  %v8094 = vrot.slane %v7556, 2
  %v8095 = vsel %vm830, %v8092, %v8094
  %v8096 = vrot.slane %v7525, 2
  %v8097 = vrot.slane %v7395, 2
  %v8098 = vsel %vm830, %v8096, %v8097
  %v8099 = vrot.slane %v7557, 2
  %v8100 = vsel %vm830, %v8097, %v8099
  %v8101 = vrot.slane %v7526, 2
  %v8102 = vrot.slane %v7398, 2
  %v8103 = vsel %vm830, %v8101, %v8102
  %v8104 = vrot.slane %v7558, 2
  %v8105 = vsel %vm830, %v8102, %v8104
  %8106 = vrot.lane.b32.xlu0 %v833, 54
  %v8107 = vpop.permute.xlu0 %8106
  %8108 = vrot.lane.b32.xlu0 %v835, 54
  %v8109 = vpop.permute.xlu0 %8108
  %8110 = vrot.lane.b32.xlu0 %v7958, 54
  %v8111 = vpop.permute.xlu0 %8110
  %8112 = vrot.lane.b32.xlu0 %v7960, 54
  %v8113 = vpop.permute.xlu0 %8112
  %8114 = vrot.lane.b32.xlu0 %v7963, 54
  %v8115 = vpop.permute.xlu0 %8114
  %8116 = vrot.lane.b32.xlu0 %v7965, 54
  %v8117 = vpop.permute.xlu0 %8116
  %8118 = vrot.lane.b32.xlu0 %v7968, 54
  %v8119 = vpop.permute.xlu0 %8118
  %8120 = vrot.lane.b32.xlu0 %v7970, 54
  %v8121 = vpop.permute.xlu0 %8120
  %8122 = vrot.lane.b32.xlu0 %v7973, 54
  %v8123 = vpop.permute.xlu0 %8122
  %8124 = vrot.lane.b32.xlu0 %v7975, 54
  %v8125 = vpop.permute.xlu0 %8124
  %8126 = vrot.lane.b32.xlu0 %v7978, 54
  %v8127 = vpop.permute.xlu0 %8126
  %8128 = vrot.lane.b32.xlu0 %v7980, 54
  %v8129 = vpop.permute.xlu0 %8128
  %8130 = vrot.lane.b32.xlu0 %v7983, 54
  %v8131 = vpop.permute.xlu0 %8130
  %8132 = vrot.lane.b32.xlu0 %v7985, 54
  %v8133 = vpop.permute.xlu0 %8132
  %8134 = vrot.lane.b32.xlu0 %v7988, 54
  %v8135 = vpop.permute.xlu0 %8134
  %8136 = vrot.lane.b32.xlu0 %v7990, 54
  %v8137 = vpop.permute.xlu0 %8136
  %8138 = vrot.lane.b32.xlu0 %v7993, 54
  %v8139 = vpop.permute.xlu0 %8138
  %8140 = vrot.lane.b32.xlu0 %v7995, 54
  %v8141 = vpop.permute.xlu0 %8140
  %8142 = vrot.lane.b32.xlu0 %v7998, 54
  %v8143 = vpop.permute.xlu0 %8142
  %8144 = vrot.lane.b32.xlu0 %v8000, 54
  %v8145 = vpop.permute.xlu0 %8144
  %8146 = vrot.lane.b32.xlu0 %v8003, 54
  %v8147 = vpop.permute.xlu0 %8146
  %8148 = vrot.lane.b32.xlu0 %v8005, 54
  %v8149 = vpop.permute.xlu0 %8148
  %8150 = vrot.lane.b32.xlu0 %v8008, 54
  %v8151 = vpop.permute.xlu0 %8150
  %8152 = vrot.lane.b32.xlu0 %v8010, 54
  %v8153 = vpop.permute.xlu0 %8152
  %8154 = vrot.lane.b32.xlu0 %v8013, 54
  %v8155 = vpop.permute.xlu0 %8154
  %8156 = vrot.lane.b32.xlu0 %v8015, 54
  %v8157 = vpop.permute.xlu0 %8156
  %8158 = vrot.lane.b32.xlu0 %v8018, 54
  %v8159 = vpop.permute.xlu0 %8158
  %8160 = vrot.lane.b32.xlu0 %v8020, 54
  %v8161 = vpop.permute.xlu0 %8160
  %8162 = vrot.lane.b32.xlu0 %v8023, 54
  %v8163 = vpop.permute.xlu0 %8162
  %8164 = vrot.lane.b32.xlu0 %v8025, 54
  %v8165 = vpop.permute.xlu0 %8164
  %8166 = vrot.lane.b32.xlu0 %v8028, 54
  %v8167 = vpop.permute.xlu0 %8166
  %8168 = vrot.lane.b32.xlu0 %v8030, 54
  %v8169 = vpop.permute.xlu0 %8168
  %8170 = vrot.lane.b32.xlu0 %v8033, 54
  %v8171 = vpop.permute.xlu0 %8170
  %8172 = vrot.lane.b32.xlu0 %v8035, 54
  %v8173 = vpop.permute.xlu0 %8172
  %8174 = vrot.lane.b32.xlu0 %v8038, 54
  %v8175 = vpop.permute.xlu0 %8174
  %8176 = vrot.lane.b32.xlu0 %v8040, 54
  %v8177 = vpop.permute.xlu0 %8176
  %8178 = vrot.lane.b32.xlu0 %v8043, 54
  %v8179 = vpop.permute.xlu0 %8178
  %8180 = vrot.lane.b32.xlu0 %v8045, 54
  %v8181 = vpop.permute.xlu0 %8180
  %8182 = vrot.lane.b32.xlu0 %v8048, 54
  %v8183 = vpop.permute.xlu0 %8182
  %8184 = vrot.lane.b32.xlu0 %v8050, 54
  %v8185 = vpop.permute.xlu0 %8184
  %8186 = vrot.lane.b32.xlu0 %v8053, 54
  %v8187 = vpop.permute.xlu0 %8186
  %8188 = vrot.lane.b32.xlu0 %v8055, 54
  %v8189 = vpop.permute.xlu0 %8188
  %8190 = vrot.lane.b32.xlu0 %v8058, 54
  %v8191 = vpop.permute.xlu0 %8190
  %8192 = vrot.lane.b32.xlu0 %v8060, 54
  %v8193 = vpop.permute.xlu0 %8192
  %8194 = vrot.lane.b32.xlu0 %v8063, 54
  %v8195 = vpop.permute.xlu0 %8194
  %8196 = vrot.lane.b32.xlu0 %v8065, 54
  %v8197 = vpop.permute.xlu0 %8196
  %8198 = vrot.lane.b32.xlu0 %v8068, 54
  %v8199 = vpop.permute.xlu0 %8198
  %8200 = vrot.lane.b32.xlu0 %v8070, 54
  %v8201 = vpop.permute.xlu0 %8200
  %8202 = vrot.lane.b32.xlu0 %v8073, 54
  %v8203 = vpop.permute.xlu0 %8202
  %8204 = vrot.lane.b32.xlu0 %v8075, 54
  %v8205 = vpop.permute.xlu0 %8204
  %8206 = vrot.lane.b32.xlu0 %v8078, 54
  %v8207 = vpop.permute.xlu0 %8206
  %8208 = vrot.lane.b32.xlu0 %v8080, 54
  %v8209 = vpop.permute.xlu0 %8208
  %8210 = vrot.lane.b32.xlu0 %v8083, 54
  %v8211 = vpop.permute.xlu0 %8210
  %8212 = vrot.lane.b32.xlu0 %v8085, 54
  %v8213 = vpop.permute.xlu0 %8212
  %8214 = vrot.lane.b32.xlu0 %v8088, 54
  %v8215 = vpop.permute.xlu0 %8214
  %8216 = vrot.lane.b32.xlu0 %v8090, 54
  %v8217 = vpop.permute.xlu0 %8216
  %8218 = vrot.lane.b32.xlu0 %v8093, 54
  %v8219 = vpop.permute.xlu0 %8218
  %8220 = vrot.lane.b32.xlu0 %v8095, 54
  %v8221 = vpop.permute.xlu0 %8220
  %8222 = vrot.lane.b32.xlu0 %v8098, 54
  %v8223 = vpop.permute.xlu0 %8222
  %8224 = vrot.lane.b32.xlu0 %v8100, 54
  %v8225 = vpop.permute.xlu0 %8224
  %8226 = vrot.lane.b32.xlu0 %v8103, 54
  %v8227 = vpop.permute.xlu0 %8226
  %8228 = vrot.lane.b32.xlu0 %v8105, 54
  %v8229 = vpop.permute.xlu0 %8228
  %8294 = vrot.lane.b32.xlu0 %v7496, 81
  %v8295 = vpop.permute.xlu0 %8294
  %8296 = vrot.lane.b32.xlu0 %v7308, 81
  %v8297 = vpop.permute.xlu0 %8296
  %8298 = vrot.lane.b32.xlu0 %v7497, 81
  %v8299 = vpop.permute.xlu0 %8298
  %8300 = vrot.lane.b32.xlu0 %v7311, 81
  %v8301 = vpop.permute.xlu0 %8300
  %8302 = vrot.lane.b32.xlu0 %v7498, 81
  %v8303 = vpop.permute.xlu0 %8302
  %8304 = vrot.lane.b32.xlu0 %v7314, 81
  %v8305 = vpop.permute.xlu0 %8304
  %8306 = vrot.lane.b32.xlu0 %v7499, 81
  %v8307 = vpop.permute.xlu0 %8306
  %8308 = vrot.lane.b32.xlu0 %v7317, 81
  %v8309 = vpop.permute.xlu0 %8308
  %8310 = vrot.lane.b32.xlu0 %v7500, 81
  %v8311 = vpop.permute.xlu0 %8310
  %8312 = vrot.lane.b32.xlu0 %v7320, 81
  %v8313 = vpop.permute.xlu0 %8312
  %8314 = vrot.lane.b32.xlu0 %v7501, 81
  %v8315 = vpop.permute.xlu0 %8314
  %8316 = vrot.lane.b32.xlu0 %v7323, 81
  %v8317 = vpop.permute.xlu0 %8316
  %8318 = vrot.lane.b32.xlu0 %v7502, 81
  %v8319 = vpop.permute.xlu0 %8318
  %8320 = vrot.lane.b32.xlu0 %v7326, 81
  %v8321 = vpop.permute.xlu0 %8320
  %8322 = vrot.lane.b32.xlu0 %v7503, 81
  %v8323 = vpop.permute.xlu0 %8322
  %8324 = vrot.lane.b32.xlu0 %v7329, 81
  %v8325 = vpop.permute.xlu0 %8324
  %8326 = vrot.lane.b32.xlu0 %v7504, 81
  %v8327 = vpop.permute.xlu0 %8326
  %8328 = vrot.lane.b32.xlu0 %v7332, 81
  %v8329 = vpop.permute.xlu0 %8328
  %8330 = vrot.lane.b32.xlu0 %v7505, 81
  %v8331 = vpop.permute.xlu0 %8330
  %8332 = vrot.lane.b32.xlu0 %v7335, 81
  %v8333 = vpop.permute.xlu0 %8332
  %8334 = vrot.lane.b32.xlu0 %v7506, 81
  %v8335 = vpop.permute.xlu0 %8334
  %8336 = vrot.lane.b32.xlu0 %v7338, 81
  %v8337 = vpop.permute.xlu0 %8336
  %8338 = vrot.lane.b32.xlu0 %v7507, 81
  %v8339 = vpop.permute.xlu0 %8338
  %8340 = vrot.lane.b32.xlu0 %v7341, 81
  %v8341 = vpop.permute.xlu0 %8340
  %8342 = vrot.lane.b32.xlu0 %v7508, 81
  %v8343 = vpop.permute.xlu0 %8342
  %8344 = vrot.lane.b32.xlu0 %v7344, 81
  %v8345 = vpop.permute.xlu0 %8344
  %8346 = vrot.lane.b32.xlu0 %v7509, 81
  %v8347 = vpop.permute.xlu0 %8346
  %8348 = vrot.lane.b32.xlu0 %v7347, 81
  %v8349 = vpop.permute.xlu0 %8348
  %8350 = vrot.lane.b32.xlu0 %v7510, 81
  %v8351 = vpop.permute.xlu0 %8350
  %8352 = vrot.lane.b32.xlu0 %v7350, 81
  %v8353 = vpop.permute.xlu0 %8352
  %8354 = vrot.lane.b32.xlu0 %v7511, 81
  %v8355 = vpop.permute.xlu0 %8354
  %8356 = vrot.lane.b32.xlu0 %v7353, 81
  %v8357 = vpop.permute.xlu0 %8356
  %8358 = vrot.lane.b32.xlu0 %v7512, 81
  %v8359 = vpop.permute.xlu0 %8358
  %8360 = vrot.lane.b32.xlu0 %v7356, 81
  %v8361 = vpop.permute.xlu0 %8360
  %8362 = vrot.lane.b32.xlu0 %v7513, 81
  %v8363 = vpop.permute.xlu0 %8362
  %8364 = vrot.lane.b32.xlu0 %v7359, 81
  %v8365 = vpop.permute.xlu0 %8364
  %8366 = vrot.lane.b32.xlu0 %v7514, 81
  %v8367 = vpop.permute.xlu0 %8366
  %8368 = vrot.lane.b32.xlu0 %v7362, 81
  %v8369 = vpop.permute.xlu0 %8368
  %8370 = vrot.lane.b32.xlu0 %v7515, 81
  %v8371 = vpop.permute.xlu0 %8370
  %8372 = vrot.lane.b32.xlu0 %v7365, 81
  %v8373 = vpop.permute.xlu0 %8372
  %8374 = vrot.lane.b32.xlu0 %v7516, 81
  %v8375 = vpop.permute.xlu0 %8374
  %8376 = vrot.lane.b32.xlu0 %v7368, 81
  %v8377 = vpop.permute.xlu0 %8376
  %8378 = vrot.lane.b32.xlu0 %v7517, 81
  %v8379 = vpop.permute.xlu0 %8378
  %8380 = vrot.lane.b32.xlu0 %v7371, 81
  %v8381 = vpop.permute.xlu0 %8380
  %8382 = vrot.lane.b32.xlu0 %v7518, 81
  %v8383 = vpop.permute.xlu0 %8382
  %8384 = vrot.lane.b32.xlu0 %v7374, 81
  %v8385 = vpop.permute.xlu0 %8384
  %8386 = vrot.lane.b32.xlu0 %v7519, 81
  %v8387 = vpop.permute.xlu0 %8386
  %8388 = vrot.lane.b32.xlu0 %v7377, 81
  %v8389 = vpop.permute.xlu0 %8388
  %8390 = vrot.lane.b32.xlu0 %v7520, 81
  %v8391 = vpop.permute.xlu0 %8390
  %8392 = vrot.lane.b32.xlu0 %v7380, 81
  %v8393 = vpop.permute.xlu0 %8392
  %8394 = vrot.lane.b32.xlu0 %v7521, 81
  %v8395 = vpop.permute.xlu0 %8394
  %8396 = vrot.lane.b32.xlu0 %v7383, 81
  %v8397 = vpop.permute.xlu0 %8396
  %8398 = vrot.lane.b32.xlu0 %v7522, 81
  %v8399 = vpop.permute.xlu0 %8398
  %8400 = vrot.lane.b32.xlu0 %v7386, 81
  %v8401 = vpop.permute.xlu0 %8400
  %8402 = vrot.lane.b32.xlu0 %v7523, 81
  %v8403 = vpop.permute.xlu0 %8402
  %8404 = vrot.lane.b32.xlu0 %v7389, 81
  %v8405 = vpop.permute.xlu0 %8404
  %8406 = vrot.lane.b32.xlu0 %v7524, 81
  %v8407 = vpop.permute.xlu0 %8406
  %8408 = vrot.lane.b32.xlu0 %v7392, 81
  %v8409 = vpop.permute.xlu0 %8408
  %8410 = vrot.lane.b32.xlu0 %v7525, 81
  %v8411 = vpop.permute.xlu0 %8410
  %8412 = vrot.lane.b32.xlu0 %v7395, 81
  %v8413 = vpop.permute.xlu0 %8412
  %8414 = vrot.lane.b32.xlu0 %v7526, 81
  %v8415 = vpop.permute.xlu0 %8414
  %8416 = vrot.lane.b32.xlu0 %v7398, 81
  %v8417 = vpop.permute.xlu0 %8416
  %8418 = vrot.lane.b32.xlu0 %v7527, 81
  %v8419 = vpop.permute.xlu0 %8418
  %8420 = vrot.lane.b32.xlu0 %v7401, 81
  %v8421 = vpop.permute.xlu0 %8420
  %v8488 = vrot.slane %v7511, 1
  %v8489 = vrot.slane %v7353, 1
  %v8490 = vsel %vm488, %v8488, %v8489
  %v8491 = vrot.slane %v7543, 1
  %v8492 = vsel %vm488, %v8489, %v8491
  %v8493 = vrot.slane %v7527, 1
  %v8494 = vrot.slane %v7401, 1
  %v8495 = vsel %vm488, %v8493, %v8494
  %v8496 = vrot.slane %v7559, 1
  %v8497 = vsel %vm488, %v8494, %v8496
  %8498 = vrot.lane.b32.xlu0 %v7622, 108
  %v8499 = vpop.permute.xlu0 %8498
  %8500 = vrot.lane.b32.xlu0 %v7624, 108
  %v8501 = vpop.permute.xlu0 %8500
  %8502 = vrot.lane.b32.xlu0 %v7627, 108
  %v8503 = vpop.permute.xlu0 %8502
  %8504 = vrot.lane.b32.xlu0 %v7629, 108
  %v8505 = vpop.permute.xlu0 %8504
  %8506 = vrot.lane.b32.xlu0 %v7632, 108
  %v8507 = vpop.permute.xlu0 %8506
  %8508 = vrot.lane.b32.xlu0 %v7634, 108
  %v8509 = vpop.permute.xlu0 %8508
  %8510 = vrot.lane.b32.xlu0 %v7637, 108
  %v8511 = vpop.permute.xlu0 %8510
  %8512 = vrot.lane.b32.xlu0 %v7639, 108
  %v8513 = vpop.permute.xlu0 %8512
  %8514 = vrot.lane.b32.xlu0 %v7642, 108
  %v8515 = vpop.permute.xlu0 %8514
  %8516 = vrot.lane.b32.xlu0 %v7644, 108
  %v8517 = vpop.permute.xlu0 %8516
  %8518 = vrot.lane.b32.xlu0 %v7647, 108
  %v8519 = vpop.permute.xlu0 %8518
  %8520 = vrot.lane.b32.xlu0 %v7649, 108
  %v8521 = vpop.permute.xlu0 %8520
  %8522 = vrot.lane.b32.xlu0 %v7652, 108
  %v8523 = vpop.permute.xlu0 %8522
  %8524 = vrot.lane.b32.xlu0 %v7654, 108
  %v8525 = vpop.permute.xlu0 %8524
  %8526 = vrot.lane.b32.xlu0 %v7657, 108
  %v8527 = vpop.permute.xlu0 %8526
  %8528 = vrot.lane.b32.xlu0 %v7659, 108
  %v8529 = vpop.permute.xlu0 %8528
  %8530 = vrot.lane.b32.xlu0 %v7662, 108
  %v8531 = vpop.permute.xlu0 %8530
  %8532 = vrot.lane.b32.xlu0 %v7664, 108
  %v8533 = vpop.permute.xlu0 %8532
  %8534 = vrot.lane.b32.xlu0 %v7667, 108
  %v8535 = vpop.permute.xlu0 %8534
  %8536 = vrot.lane.b32.xlu0 %v7669, 108
  %v8537 = vpop.permute.xlu0 %8536
  %8538 = vrot.lane.b32.xlu0 %v7672, 108
  %v8539 = vpop.permute.xlu0 %8538
  %8540 = vrot.lane.b32.xlu0 %v7674, 108
  %v8541 = vpop.permute.xlu0 %8540
  %8542 = vrot.lane.b32.xlu0 %v7677, 108
  %v8543 = vpop.permute.xlu0 %8542
  %8544 = vrot.lane.b32.xlu0 %v7679, 108
  %v8545 = vpop.permute.xlu0 %8544
  %8546 = vrot.lane.b32.xlu0 %v7682, 108
  %v8547 = vpop.permute.xlu0 %8546
  %8548 = vrot.lane.b32.xlu0 %v7684, 108
  %v8549 = vpop.permute.xlu0 %8548
  %8550 = vrot.lane.b32.xlu0 %v7687, 108
  %v8551 = vpop.permute.xlu0 %8550
  %8552 = vrot.lane.b32.xlu0 %v7689, 108
  %v8553 = vpop.permute.xlu0 %8552
  %8554 = vrot.lane.b32.xlu0 %v7692, 108
  %v8555 = vpop.permute.xlu0 %8554
  %8556 = vrot.lane.b32.xlu0 %v7694, 108
  %v8557 = vpop.permute.xlu0 %8556
  %8558 = vrot.lane.b32.xlu0 %v8490, 108
  %v8559 = vpop.permute.xlu0 %8558
  %8560 = vrot.lane.b32.xlu0 %v8492, 108
  %v8561 = vpop.permute.xlu0 %8560
  %8562 = vrot.lane.b32.xlu0 %v7697, 108
  %v8563 = vpop.permute.xlu0 %8562
  %8564 = vrot.lane.b32.xlu0 %v7699, 108
  %v8565 = vpop.permute.xlu0 %8564
  %8566 = vrot.lane.b32.xlu0 %v7702, 108
  %v8567 = vpop.permute.xlu0 %8566
  %8568 = vrot.lane.b32.xlu0 %v7704, 108
  %v8569 = vpop.permute.xlu0 %8568
  %8570 = vrot.lane.b32.xlu0 %v7707, 108
  %v8571 = vpop.permute.xlu0 %8570
  %8572 = vrot.lane.b32.xlu0 %v7709, 108
  %v8573 = vpop.permute.xlu0 %8572
  %8574 = vrot.lane.b32.xlu0 %v7712, 108
  %v8575 = vpop.permute.xlu0 %8574
  %8576 = vrot.lane.b32.xlu0 %v7714, 108
  %v8577 = vpop.permute.xlu0 %8576
  %8578 = vrot.lane.b32.xlu0 %v7717, 108
  %v8579 = vpop.permute.xlu0 %8578
  %8580 = vrot.lane.b32.xlu0 %v7719, 108
  %v8581 = vpop.permute.xlu0 %8580
  %8582 = vrot.lane.b32.xlu0 %v7722, 108
  %v8583 = vpop.permute.xlu0 %8582
  %8584 = vrot.lane.b32.xlu0 %v7724, 108
  %v8585 = vpop.permute.xlu0 %8584
  %8586 = vrot.lane.b32.xlu0 %v7727, 108
  %v8587 = vpop.permute.xlu0 %8586
  %8588 = vrot.lane.b32.xlu0 %v7729, 108
  %v8589 = vpop.permute.xlu0 %8588
  %8590 = vrot.lane.b32.xlu0 %v7732, 108
  %v8591 = vpop.permute.xlu0 %8590
  %8592 = vrot.lane.b32.xlu0 %v7734, 108
  %v8593 = vpop.permute.xlu0 %8592
  %8594 = vrot.lane.b32.xlu0 %v7737, 108
  %v8595 = vpop.permute.xlu0 %8594
  %8596 = vrot.lane.b32.xlu0 %v7739, 108
  %v8597 = vpop.permute.xlu0 %8596
  %8598 = vrot.lane.b32.xlu0 %v7742, 108
  %v8599 = vpop.permute.xlu0 %8598
  %8600 = vrot.lane.b32.xlu0 %v7744, 108
  %v8601 = vpop.permute.xlu0 %8600
  %8602 = vrot.lane.b32.xlu0 %v7747, 108
  %v8603 = vpop.permute.xlu0 %8602
  %8604 = vrot.lane.b32.xlu0 %v7749, 108
  %v8605 = vpop.permute.xlu0 %8604
  %8606 = vrot.lane.b32.xlu0 %v7752, 108
  %v8607 = vpop.permute.xlu0 %8606
  %8608 = vrot.lane.b32.xlu0 %v7754, 108
  %v8609 = vpop.permute.xlu0 %8608
  %8610 = vrot.lane.b32.xlu0 %v7757, 108
  %v8611 = vpop.permute.xlu0 %8610
  %8612 = vrot.lane.b32.xlu0 %v7759, 108
  %v8613 = vpop.permute.xlu0 %8612
  %8614 = vrot.lane.b32.xlu0 %v7762, 108
  %v8615 = vpop.permute.xlu0 %8614
  %8616 = vrot.lane.b32.xlu0 %v7764, 108
  %v8617 = vpop.permute.xlu0 %8616
  %8618 = vrot.lane.b32.xlu0 %v7767, 108
  %v8619 = vpop.permute.xlu0 %8618
  %8620 = vrot.lane.b32.xlu0 %v7769, 108
  %v8621 = vpop.permute.xlu0 %8620
  %8622 = vrot.lane.b32.xlu0 %v8495, 108
  %v8623 = vpop.permute.xlu0 %8622
  %8624 = vrot.lane.b32.xlu0 %v8497, 108
  %v8625 = vpop.permute.xlu0 %8624
  %v8690 = vrot.slane %v7511, 2
  %v8691 = vrot.slane %v7353, 2
  %v8692 = vsel %vm830, %v8690, %v8691
  %v8693 = vrot.slane %v7543, 2
  %v8694 = vsel %vm830, %v8691, %v8693
  %v8695 = vrot.slane %v7527, 2
  %v8696 = vrot.slane %v7401, 2
  %v8697 = vsel %vm830, %v8695, %v8696
  %v8698 = vrot.slane %v7559, 2
  %v8699 = vsel %vm830, %v8696, %v8698
  %8700 = vrot.lane.b32.xlu0 %v7958, 7
  %v8701 = vpop.permute.xlu0 %8700
  %8702 = vrot.lane.b32.xlu0 %v7960, 7
  %v8703 = vpop.permute.xlu0 %8702
  %8704 = vrot.lane.b32.xlu0 %v7963, 7
  %v8705 = vpop.permute.xlu0 %8704
  %8706 = vrot.lane.b32.xlu0 %v7965, 7
  %v8707 = vpop.permute.xlu0 %8706
  %8708 = vrot.lane.b32.xlu0 %v7968, 7
  %v8709 = vpop.permute.xlu0 %8708
  %8710 = vrot.lane.b32.xlu0 %v7970, 7
  %v8711 = vpop.permute.xlu0 %8710
  %8712 = vrot.lane.b32.xlu0 %v7973, 7
  %v8713 = vpop.permute.xlu0 %8712
  %8714 = vrot.lane.b32.xlu0 %v7975, 7
  %v8715 = vpop.permute.xlu0 %8714
  %8716 = vrot.lane.b32.xlu0 %v7978, 7
  %v8717 = vpop.permute.xlu0 %8716
  %8718 = vrot.lane.b32.xlu0 %v7980, 7
  %v8719 = vpop.permute.xlu0 %8718
  %8720 = vrot.lane.b32.xlu0 %v7983, 7
  %v8721 = vpop.permute.xlu0 %8720
  %8722 = vrot.lane.b32.xlu0 %v7985, 7
  %v8723 = vpop.permute.xlu0 %8722
  %8724 = vrot.lane.b32.xlu0 %v7988, 7
  %v8725 = vpop.permute.xlu0 %8724
  %8726 = vrot.lane.b32.xlu0 %v7990, 7
  %v8727 = vpop.permute.xlu0 %8726
  %8728 = vrot.lane.b32.xlu0 %v7993, 7
  %v8729 = vpop.permute.xlu0 %8728
  %8730 = vrot.lane.b32.xlu0 %v7995, 7
  %v8731 = vpop.permute.xlu0 %8730
  %8732 = vrot.lane.b32.xlu0 %v7998, 7
  %v8733 = vpop.permute.xlu0 %8732
  %8734 = vrot.lane.b32.xlu0 %v8000, 7
  %v8735 = vpop.permute.xlu0 %8734
  %8736 = vrot.lane.b32.xlu0 %v8003, 7
  %v8737 = vpop.permute.xlu0 %8736
  %8738 = vrot.lane.b32.xlu0 %v8005, 7
  %v8739 = vpop.permute.xlu0 %8738
  %8740 = vrot.lane.b32.xlu0 %v8008, 7
  %v8741 = vpop.permute.xlu0 %8740
  %8742 = vrot.lane.b32.xlu0 %v8010, 7
  %v8743 = vpop.permute.xlu0 %8742
  %8744 = vrot.lane.b32.xlu0 %v8013, 7
  %v8745 = vpop.permute.xlu0 %8744
  %8746 = vrot.lane.b32.xlu0 %v8015, 7
  %v8747 = vpop.permute.xlu0 %8746
  %8748 = vrot.lane.b32.xlu0 %v8018, 7
  %v8749 = vpop.permute.xlu0 %8748
  %8750 = vrot.lane.b32.xlu0 %v8020, 7
  %v8751 = vpop.permute.xlu0 %8750
  %8752 = vrot.lane.b32.xlu0 %v8023, 7
  %v8753 = vpop.permute.xlu0 %8752
  %8754 = vrot.lane.b32.xlu0 %v8025, 7
  %v8755 = vpop.permute.xlu0 %8754
  %8756 = vrot.lane.b32.xlu0 %v8028, 7
  %v8757 = vpop.permute.xlu0 %8756
  %8758 = vrot.lane.b32.xlu0 %v8030, 7
  %v8759 = vpop.permute.xlu0 %8758
  %8760 = vrot.lane.b32.xlu0 %v8692, 7
  %v8761 = vpop.permute.xlu0 %8760
  %8762 = vrot.lane.b32.xlu0 %v8694, 7
  %v8763 = vpop.permute.xlu0 %8762
  %8764 = vrot.lane.b32.xlu0 %v8033, 7
  %v8765 = vpop.permute.xlu0 %8764
  %8766 = vrot.lane.b32.xlu0 %v8035, 7
  %v8767 = vpop.permute.xlu0 %8766
  %8768 = vrot.lane.b32.xlu0 %v8038, 7
  %v8769 = vpop.permute.xlu0 %8768
  %8770 = vrot.lane.b32.xlu0 %v8040, 7
  %v8771 = vpop.permute.xlu0 %8770
  %8772 = vrot.lane.b32.xlu0 %v8043, 7
  %v8773 = vpop.permute.xlu0 %8772
  %8774 = vrot.lane.b32.xlu0 %v8045, 7
  %v8775 = vpop.permute.xlu0 %8774
  %8776 = vrot.lane.b32.xlu0 %v8048, 7
  %v8777 = vpop.permute.xlu0 %8776
  %8778 = vrot.lane.b32.xlu0 %v8050, 7
  %v8779 = vpop.permute.xlu0 %8778
  %8780 = vrot.lane.b32.xlu0 %v8053, 7
  %v8781 = vpop.permute.xlu0 %8780
  %8782 = vrot.lane.b32.xlu0 %v8055, 7
  %v8783 = vpop.permute.xlu0 %8782
  %8784 = vrot.lane.b32.xlu0 %v8058, 7
  %v8785 = vpop.permute.xlu0 %8784
  %8786 = vrot.lane.b32.xlu0 %v8060, 7
  %v8787 = vpop.permute.xlu0 %8786
  %8788 = vrot.lane.b32.xlu0 %v8063, 7
  %v8789 = vpop.permute.xlu0 %8788
  %8790 = vrot.lane.b32.xlu0 %v8065, 7
  %v8791 = vpop.permute.xlu0 %8790
  %8792 = vrot.lane.b32.xlu0 %v8068, 7
  %v8793 = vpop.permute.xlu0 %8792
  %8794 = vrot.lane.b32.xlu0 %v8070, 7
  %v8795 = vpop.permute.xlu0 %8794
  %8796 = vrot.lane.b32.xlu0 %v8073, 7
  %v8797 = vpop.permute.xlu0 %8796
  %8798 = vrot.lane.b32.xlu0 %v8075, 7
  %v8799 = vpop.permute.xlu0 %8798
  %8800 = vrot.lane.b32.xlu0 %v8078, 7
  %v8801 = vpop.permute.xlu0 %8800
  %8802 = vrot.lane.b32.xlu0 %v8080, 7
  %v8803 = vpop.permute.xlu0 %8802
  %8804 = vrot.lane.b32.xlu0 %v8083, 7
  %v8805 = vpop.permute.xlu0 %8804
  %8806 = vrot.lane.b32.xlu0 %v8085, 7
  %v8807 = vpop.permute.xlu0 %8806
  %8808 = vrot.lane.b32.xlu0 %v8088, 7
  %v8809 = vpop.permute.xlu0 %8808
  %8810 = vrot.lane.b32.xlu0 %v8090, 7
  %v8811 = vpop.permute.xlu0 %8810
  %8812 = vrot.lane.b32.xlu0 %v8093, 7
  %v8813 = vpop.permute.xlu0 %8812
  %8814 = vrot.lane.b32.xlu0 %v8095, 7
  %v8815 = vpop.permute.xlu0 %8814
  %8816 = vrot.lane.b32.xlu0 %v8098, 7
  %v8817 = vpop.permute.xlu0 %8816
  %8818 = vrot.lane.b32.xlu0 %v8100, 7
  %v8819 = vpop.permute.xlu0 %8818
  %8820 = vrot.lane.b32.xlu0 %v8103, 7
  %v8821 = vpop.permute.xlu0 %8820
  %8822 = vrot.lane.b32.xlu0 %v8105, 7
  %v8823 = vpop.permute.xlu0 %8822
  %8824 = vrot.lane.b32.xlu0 %v8697, 7
  %v8825 = vpop.permute.xlu0 %8824
  %8826 = vrot.lane.b32.xlu0 %v8699, 7
  %v8827 = vpop.permute.xlu0 %8826
  %8892 = vrot.lane.b32.xlu0 %v7497, 34
  %v8893 = vpop.permute.xlu0 %8892
  %8894 = vrot.lane.b32.xlu0 %v7311, 34
  %v8895 = vpop.permute.xlu0 %8894
  %8896 = vrot.lane.b32.xlu0 %v7498, 34
  %v8897 = vpop.permute.xlu0 %8896
  %8898 = vrot.lane.b32.xlu0 %v7314, 34
  %v8899 = vpop.permute.xlu0 %8898
  %8900 = vrot.lane.b32.xlu0 %v7499, 34
  %v8901 = vpop.permute.xlu0 %8900
  %8902 = vrot.lane.b32.xlu0 %v7317, 34
  %v8903 = vpop.permute.xlu0 %8902
  %8904 = vrot.lane.b32.xlu0 %v7500, 34
  %v8905 = vpop.permute.xlu0 %8904
  %8906 = vrot.lane.b32.xlu0 %v7320, 34
  %v8907 = vpop.permute.xlu0 %8906
  %8908 = vrot.lane.b32.xlu0 %v7501, 34
  %v8909 = vpop.permute.xlu0 %8908
  %8910 = vrot.lane.b32.xlu0 %v7323, 34
  %v8911 = vpop.permute.xlu0 %8910
  %8912 = vrot.lane.b32.xlu0 %v7502, 34
  %v8913 = vpop.permute.xlu0 %8912
  %8914 = vrot.lane.b32.xlu0 %v7326, 34
  %v8915 = vpop.permute.xlu0 %8914
  %8916 = vrot.lane.b32.xlu0 %v7503, 34
  %v8917 = vpop.permute.xlu0 %8916
  %8918 = vrot.lane.b32.xlu0 %v7329, 34
  %v8919 = vpop.permute.xlu0 %8918
  %8920 = vrot.lane.b32.xlu0 %v7504, 34
  %v8921 = vpop.permute.xlu0 %8920
  %8922 = vrot.lane.b32.xlu0 %v7332, 34
  %v8923 = vpop.permute.xlu0 %8922
  %8924 = vrot.lane.b32.xlu0 %v7505, 34
  %v8925 = vpop.permute.xlu0 %8924
  %8926 = vrot.lane.b32.xlu0 %v7335, 34
  %v8927 = vpop.permute.xlu0 %8926
  %8928 = vrot.lane.b32.xlu0 %v7506, 34
  %v8929 = vpop.permute.xlu0 %8928
  %8930 = vrot.lane.b32.xlu0 %v7338, 34
  %v8931 = vpop.permute.xlu0 %8930
  %8932 = vrot.lane.b32.xlu0 %v7507, 34
  %v8933 = vpop.permute.xlu0 %8932
  %8934 = vrot.lane.b32.xlu0 %v7341, 34
  %v8935 = vpop.permute.xlu0 %8934
  %8936 = vrot.lane.b32.xlu0 %v7508, 34
  %v8937 = vpop.permute.xlu0 %8936
  %8938 = vrot.lane.b32.xlu0 %v7344, 34
  %v8939 = vpop.permute.xlu0 %8938
  %8940 = vrot.lane.b32.xlu0 %v7509, 34
  %v8941 = vpop.permute.xlu0 %8940
  %8942 = vrot.lane.b32.xlu0 %v7347, 34
  %v8943 = vpop.permute.xlu0 %8942
  %8944 = vrot.lane.b32.xlu0 %v7510, 34
  %v8945 = vpop.permute.xlu0 %8944
  %8946 = vrot.lane.b32.xlu0 %v7350, 34
  %v8947 = vpop.permute.xlu0 %8946
  %8948 = vrot.lane.b32.xlu0 %v7511, 34
  %v8949 = vpop.permute.xlu0 %8948
  %8950 = vrot.lane.b32.xlu0 %v7353, 34
  %v8951 = vpop.permute.xlu0 %8950
  %8952 = vrot.lane.b32.xlu0 %v360, 34
  %v8953 = vpop.permute.xlu0 %8952
  %8954 = vrot.lane.b32.xlu0 %v167, 34
  %v8955 = vpop.permute.xlu0 %8954
  %8956 = vrot.lane.b32.xlu0 %v7513, 34
  %v8957 = vpop.permute.xlu0 %8956
  %8958 = vrot.lane.b32.xlu0 %v7359, 34
  %v8959 = vpop.permute.xlu0 %8958
  %8960 = vrot.lane.b32.xlu0 %v7514, 34
  %v8961 = vpop.permute.xlu0 %8960
  %8962 = vrot.lane.b32.xlu0 %v7362, 34
  %v8963 = vpop.permute.xlu0 %8962
  %8964 = vrot.lane.b32.xlu0 %v7515, 34
  %v8965 = vpop.permute.xlu0 %8964
  %8966 = vrot.lane.b32.xlu0 %v7365, 34
  %v8967 = vpop.permute.xlu0 %8966
  %8968 = vrot.lane.b32.xlu0 %v7516, 34
  %v8969 = vpop.permute.xlu0 %8968
  %8970 = vrot.lane.b32.xlu0 %v7368, 34
  %v8971 = vpop.permute.xlu0 %8970
  %8972 = vrot.lane.b32.xlu0 %v7517, 34
  %v8973 = vpop.permute.xlu0 %8972
  %8974 = vrot.lane.b32.xlu0 %v7371, 34
  %v8975 = vpop.permute.xlu0 %8974
  %8976 = vrot.lane.b32.xlu0 %v7518, 34
  %v8977 = vpop.permute.xlu0 %8976
  %8978 = vrot.lane.b32.xlu0 %v7374, 34
  %v8979 = vpop.permute.xlu0 %8978
  %8980 = vrot.lane.b32.xlu0 %v7519, 34
  %v8981 = vpop.permute.xlu0 %8980
  %8982 = vrot.lane.b32.xlu0 %v7377, 34
  %v8983 = vpop.permute.xlu0 %8982
  %8984 = vrot.lane.b32.xlu0 %v7520, 34
  %v8985 = vpop.permute.xlu0 %8984
  %8986 = vrot.lane.b32.xlu0 %v7380, 34
  %v8987 = vpop.permute.xlu0 %8986
  %8988 = vrot.lane.b32.xlu0 %v7521, 34
  %v8989 = vpop.permute.xlu0 %8988
  %8990 = vrot.lane.b32.xlu0 %v7383, 34
  %v8991 = vpop.permute.xlu0 %8990
  %8992 = vrot.lane.b32.xlu0 %v7522, 34
  %v8993 = vpop.permute.xlu0 %8992
  %8994 = vrot.lane.b32.xlu0 %v7386, 34
  %v8995 = vpop.permute.xlu0 %8994
  %8996 = vrot.lane.b32.xlu0 %v7523, 34
  %v8997 = vpop.permute.xlu0 %8996
  %8998 = vrot.lane.b32.xlu0 %v7389, 34
  %v8999 = vpop.permute.xlu0 %8998
  %9000 = vrot.lane.b32.xlu0 %v7524, 34
  %v9001 = vpop.permute.xlu0 %9000
  %9002 = vrot.lane.b32.xlu0 %v7392, 34
  %v9003 = vpop.permute.xlu0 %9002
  %9004 = vrot.lane.b32.xlu0 %v7525, 34
  %v9005 = vpop.permute.xlu0 %9004
  %9006 = vrot.lane.b32.xlu0 %v7395, 34
  %v9007 = vpop.permute.xlu0 %9006
  %9008 = vrot.lane.b32.xlu0 %v7526, 34
  %v9009 = vpop.permute.xlu0 %9008
  %9010 = vrot.lane.b32.xlu0 %v7398, 34
  %v9011 = vpop.permute.xlu0 %9010
  %9012 = vrot.lane.b32.xlu0 %v7527, 34
  %v9013 = vpop.permute.xlu0 %9012
  %9014 = vrot.lane.b32.xlu0 %v7401, 34
  %v9015 = vpop.permute.xlu0 %9014
  %9078 = vrot.lane.b32.xlu0 %v7627, 61
  %v9079 = vpop.permute.xlu0 %9078
  %9080 = vrot.lane.b32.xlu0 %v7629, 61
  %v9081 = vpop.permute.xlu0 %9080
  %9082 = vrot.lane.b32.xlu0 %v7632, 61
  %v9083 = vpop.permute.xlu0 %9082
  %9084 = vrot.lane.b32.xlu0 %v7634, 61
  %v9085 = vpop.permute.xlu0 %9084
  %9086 = vrot.lane.b32.xlu0 %v7637, 61
  %v9087 = vpop.permute.xlu0 %9086
  %9088 = vrot.lane.b32.xlu0 %v7639, 61
  %v9089 = vpop.permute.xlu0 %9088
  %9090 = vrot.lane.b32.xlu0 %v7642, 61
  %v9091 = vpop.permute.xlu0 %9090
  %9092 = vrot.lane.b32.xlu0 %v7644, 61
  %v9093 = vpop.permute.xlu0 %9092
  %9094 = vrot.lane.b32.xlu0 %v7647, 61
  %v9095 = vpop.permute.xlu0 %9094
  %9096 = vrot.lane.b32.xlu0 %v7649, 61
  %v9097 = vpop.permute.xlu0 %9096
  %9098 = vrot.lane.b32.xlu0 %v7652, 61
  %v9099 = vpop.permute.xlu0 %9098
  %9100 = vrot.lane.b32.xlu0 %v7654, 61
  %v9101 = vpop.permute.xlu0 %9100
  %9102 = vrot.lane.b32.xlu0 %v7657, 61
  %v9103 = vpop.permute.xlu0 %9102
  %9104 = vrot.lane.b32.xlu0 %v7659, 61
  %v9105 = vpop.permute.xlu0 %9104
  %9106 = vrot.lane.b32.xlu0 %v7662, 61
  %v9107 = vpop.permute.xlu0 %9106
  %9108 = vrot.lane.b32.xlu0 %v7664, 61
  %v9109 = vpop.permute.xlu0 %9108
  %9110 = vrot.lane.b32.xlu0 %v7667, 61
  %v9111 = vpop.permute.xlu0 %9110
  %9112 = vrot.lane.b32.xlu0 %v7669, 61
  %v9113 = vpop.permute.xlu0 %9112
  %9114 = vrot.lane.b32.xlu0 %v7672, 61
  %v9115 = vpop.permute.xlu0 %9114
  %9116 = vrot.lane.b32.xlu0 %v7674, 61
  %v9117 = vpop.permute.xlu0 %9116
  %9118 = vrot.lane.b32.xlu0 %v7677, 61
  %v9119 = vpop.permute.xlu0 %9118
  %9120 = vrot.lane.b32.xlu0 %v7679, 61
  %v9121 = vpop.permute.xlu0 %9120
  %9122 = vrot.lane.b32.xlu0 %v7682, 61
  %v9123 = vpop.permute.xlu0 %9122
  %9124 = vrot.lane.b32.xlu0 %v7684, 61
  %v9125 = vpop.permute.xlu0 %9124
  %9126 = vrot.lane.b32.xlu0 %v7687, 61
  %v9127 = vpop.permute.xlu0 %9126
  %9128 = vrot.lane.b32.xlu0 %v7689, 61
  %v9129 = vpop.permute.xlu0 %9128
  %9130 = vrot.lane.b32.xlu0 %v7692, 61
  %v9131 = vpop.permute.xlu0 %9130
  %9132 = vrot.lane.b32.xlu0 %v7694, 61
  %v9133 = vpop.permute.xlu0 %9132
  %9134 = vrot.lane.b32.xlu0 %v8490, 61
  %v9135 = vpop.permute.xlu0 %9134
  %9136 = vrot.lane.b32.xlu0 %v8492, 61
  %v9137 = vpop.permute.xlu0 %9136
  %9138 = vrot.lane.b32.xlu0 %v491, 61
  %v9139 = vpop.permute.xlu0 %9138
  %9140 = vrot.lane.b32.xlu0 %v493, 61
  %v9141 = vpop.permute.xlu0 %9140
  %9142 = vrot.lane.b32.xlu0 %v7702, 61
  %v9143 = vpop.permute.xlu0 %9142
  %9144 = vrot.lane.b32.xlu0 %v7704, 61
  %v9145 = vpop.permute.xlu0 %9144
  %9146 = vrot.lane.b32.xlu0 %v7707, 61
  %v9147 = vpop.permute.xlu0 %9146
  %9148 = vrot.lane.b32.xlu0 %v7709, 61
  %v9149 = vpop.permute.xlu0 %9148
  %9150 = vrot.lane.b32.xlu0 %v7712, 61
  %v9151 = vpop.permute.xlu0 %9150
  %9152 = vrot.lane.b32.xlu0 %v7714, 61
  %v9153 = vpop.permute.xlu0 %9152
  %9154 = vrot.lane.b32.xlu0 %v7717, 61
  %v9155 = vpop.permute.xlu0 %9154
  %9156 = vrot.lane.b32.xlu0 %v7719, 61
  %v9157 = vpop.permute.xlu0 %9156
  %9158 = vrot.lane.b32.xlu0 %v7722, 61
  %v9159 = vpop.permute.xlu0 %9158
  %9160 = vrot.lane.b32.xlu0 %v7724, 61
  %v9161 = vpop.permute.xlu0 %9160
  %9162 = vrot.lane.b32.xlu0 %v7727, 61
  %v9163 = vpop.permute.xlu0 %9162
  %9164 = vrot.lane.b32.xlu0 %v7729, 61
  %v9165 = vpop.permute.xlu0 %9164
  %9166 = vrot.lane.b32.xlu0 %v7732, 61
  %v9167 = vpop.permute.xlu0 %9166
  %9168 = vrot.lane.b32.xlu0 %v7734, 61
  %v9169 = vpop.permute.xlu0 %9168
  %9170 = vrot.lane.b32.xlu0 %v7737, 61
  %v9171 = vpop.permute.xlu0 %9170
  %9172 = vrot.lane.b32.xlu0 %v7739, 61
  %v9173 = vpop.permute.xlu0 %9172
  %9174 = vrot.lane.b32.xlu0 %v7742, 61
  %v9175 = vpop.permute.xlu0 %9174
  %9176 = vrot.lane.b32.xlu0 %v7744, 61
  %v9177 = vpop.permute.xlu0 %9176
  %9178 = vrot.lane.b32.xlu0 %v7747, 61
  %v9179 = vpop.permute.xlu0 %9178
  %9180 = vrot.lane.b32.xlu0 %v7749, 61
  %v9181 = vpop.permute.xlu0 %9180
  %9182 = vrot.lane.b32.xlu0 %v7752, 61
  %v9183 = vpop.permute.xlu0 %9182
  %9184 = vrot.lane.b32.xlu0 %v7754, 61
  %v9185 = vpop.permute.xlu0 %9184
  %9186 = vrot.lane.b32.xlu0 %v7757, 61
  %v9187 = vpop.permute.xlu0 %9186
  %9188 = vrot.lane.b32.xlu0 %v7759, 61
  %v9189 = vpop.permute.xlu0 %9188
  %9190 = vrot.lane.b32.xlu0 %v7762, 61
  %v9191 = vpop.permute.xlu0 %9190
  %9192 = vrot.lane.b32.xlu0 %v7764, 61
  %v9193 = vpop.permute.xlu0 %9192
  %9194 = vrot.lane.b32.xlu0 %v7767, 61
  %v9195 = vpop.permute.xlu0 %9194
  %9196 = vrot.lane.b32.xlu0 %v7769, 61
  %v9197 = vpop.permute.xlu0 %9196
  %9198 = vrot.lane.b32.xlu0 %v8495, 61
  %v9199 = vpop.permute.xlu0 %9198
  %9200 = vrot.lane.b32.xlu0 %v8497, 61
  %v9201 = vpop.permute.xlu0 %9200
  %9264 = vrot.lane.b32.xlu0 %v7963, 88
  %v9265 = vpop.permute.xlu0 %9264
  %9266 = vrot.lane.b32.xlu0 %v7965, 88
  %v9267 = vpop.permute.xlu0 %9266
  %9268 = vrot.lane.b32.xlu0 %v7968, 88
  %v9269 = vpop.permute.xlu0 %9268
  %9270 = vrot.lane.b32.xlu0 %v7970, 88
  %v9271 = vpop.permute.xlu0 %9270
  %9272 = vrot.lane.b32.xlu0 %v7973, 88
  %v9273 = vpop.permute.xlu0 %9272
  %9274 = vrot.lane.b32.xlu0 %v7975, 88
  %v9275 = vpop.permute.xlu0 %9274
  %9276 = vrot.lane.b32.xlu0 %v7978, 88
  %v9277 = vpop.permute.xlu0 %9276
  %9278 = vrot.lane.b32.xlu0 %v7980, 88
  %v9279 = vpop.permute.xlu0 %9278
  %9280 = vrot.lane.b32.xlu0 %v7983, 88
  %v9281 = vpop.permute.xlu0 %9280
  %9282 = vrot.lane.b32.xlu0 %v7985, 88
  %v9283 = vpop.permute.xlu0 %9282
  %9284 = vrot.lane.b32.xlu0 %v7988, 88
  %v9285 = vpop.permute.xlu0 %9284
  %9286 = vrot.lane.b32.xlu0 %v7990, 88
  %v9287 = vpop.permute.xlu0 %9286
  %9288 = vrot.lane.b32.xlu0 %v7993, 88
  %v9289 = vpop.permute.xlu0 %9288
  %9290 = vrot.lane.b32.xlu0 %v7995, 88
  %v9291 = vpop.permute.xlu0 %9290
  %9292 = vrot.lane.b32.xlu0 %v7998, 88
  %v9293 = vpop.permute.xlu0 %9292
  %9294 = vrot.lane.b32.xlu0 %v8000, 88
  %v9295 = vpop.permute.xlu0 %9294
  %9296 = vrot.lane.b32.xlu0 %v8003, 88
  %v9297 = vpop.permute.xlu0 %9296
  %9298 = vrot.lane.b32.xlu0 %v8005, 88
  %v9299 = vpop.permute.xlu0 %9298
  %9300 = vrot.lane.b32.xlu0 %v8008, 88
  %v9301 = vpop.permute.xlu0 %9300
  %9302 = vrot.lane.b32.xlu0 %v8010, 88
  %v9303 = vpop.permute.xlu0 %9302
  %9304 = vrot.lane.b32.xlu0 %v8013, 88
  %v9305 = vpop.permute.xlu0 %9304
  %9306 = vrot.lane.b32.xlu0 %v8015, 88
  %v9307 = vpop.permute.xlu0 %9306
  %9308 = vrot.lane.b32.xlu0 %v8018, 88
  %v9309 = vpop.permute.xlu0 %9308
  %9310 = vrot.lane.b32.xlu0 %v8020, 88
  %v9311 = vpop.permute.xlu0 %9310
  %9312 = vrot.lane.b32.xlu0 %v8023, 88
  %v9313 = vpop.permute.xlu0 %9312
  %9314 = vrot.lane.b32.xlu0 %v8025, 88
  %v9315 = vpop.permute.xlu0 %9314
  %9316 = vrot.lane.b32.xlu0 %v8028, 88
  %v9317 = vpop.permute.xlu0 %9316
  %9318 = vrot.lane.b32.xlu0 %v8030, 88
  %v9319 = vpop.permute.xlu0 %9318
  %9320 = vrot.lane.b32.xlu0 %v8692, 88
  %v9321 = vpop.permute.xlu0 %9320
  %9322 = vrot.lane.b32.xlu0 %v8694, 88
  %v9323 = vpop.permute.xlu0 %9322
  %9324 = vrot.lane.b32.xlu0 %v833, 88
  %v9325 = vpop.permute.xlu0 %9324
  %9326 = vrot.lane.b32.xlu0 %v835, 88
  %v9327 = vpop.permute.xlu0 %9326
  %9328 = vrot.lane.b32.xlu0 %v8038, 88
  %v9329 = vpop.permute.xlu0 %9328
  %9330 = vrot.lane.b32.xlu0 %v8040, 88
  %v9331 = vpop.permute.xlu0 %9330
  %9332 = vrot.lane.b32.xlu0 %v8043, 88
  %v9333 = vpop.permute.xlu0 %9332
  %9334 = vrot.lane.b32.xlu0 %v8045, 88
  %v9335 = vpop.permute.xlu0 %9334
  %9336 = vrot.lane.b32.xlu0 %v8048, 88
  %v9337 = vpop.permute.xlu0 %9336
  %9338 = vrot.lane.b32.xlu0 %v8050, 88
  %v9339 = vpop.permute.xlu0 %9338
  %9340 = vrot.lane.b32.xlu0 %v8053, 88
  %v9341 = vpop.permute.xlu0 %9340
  %9342 = vrot.lane.b32.xlu0 %v8055, 88
  %v9343 = vpop.permute.xlu0 %9342
  %9344 = vrot.lane.b32.xlu0 %v8058, 88
  %v9345 = vpop.permute.xlu0 %9344
  %9346 = vrot.lane.b32.xlu0 %v8060, 88
  %v9347 = vpop.permute.xlu0 %9346
  %9348 = vrot.lane.b32.xlu0 %v8063, 88
  %v9349 = vpop.permute.xlu0 %9348
  %9350 = vrot.lane.b32.xlu0 %v8065, 88
  %v9351 = vpop.permute.xlu0 %9350
  %9352 = vrot.lane.b32.xlu0 %v8068, 88
  %v9353 = vpop.permute.xlu0 %9352
  %9354 = vrot.lane.b32.xlu0 %v8070, 88
  %v9355 = vpop.permute.xlu0 %9354
  %9356 = vrot.lane.b32.xlu0 %v8073, 88
  %v9357 = vpop.permute.xlu0 %9356
  %9358 = vrot.lane.b32.xlu0 %v8075, 88
  %v9359 = vpop.permute.xlu0 %9358
  %9360 = vrot.lane.b32.xlu0 %v8078, 88
  %v9361 = vpop.permute.xlu0 %9360
  %9362 = vrot.lane.b32.xlu0 %v8080, 88
  %v9363 = vpop.permute.xlu0 %9362
  %9364 = vrot.lane.b32.xlu0 %v8083, 88
  %v9365 = vpop.permute.xlu0 %9364
  %9366 = vrot.lane.b32.xlu0 %v8085, 88
  %v9367 = vpop.permute.xlu0 %9366
  %9368 = vrot.lane.b32.xlu0 %v8088, 88
  %v9369 = vpop.permute.xlu0 %9368
  %9370 = vrot.lane.b32.xlu0 %v8090, 88
  %v9371 = vpop.permute.xlu0 %9370
  %9372 = vrot.lane.b32.xlu0 %v8093, 88
  %v9373 = vpop.permute.xlu0 %9372
  %9374 = vrot.lane.b32.xlu0 %v8095, 88
  %v9375 = vpop.permute.xlu0 %9374
  %9376 = vrot.lane.b32.xlu0 %v8098, 88
  %v9377 = vpop.permute.xlu0 %9376
  %9378 = vrot.lane.b32.xlu0 %v8100, 88
  %v9379 = vpop.permute.xlu0 %9378
  %9380 = vrot.lane.b32.xlu0 %v8103, 88
  %v9381 = vpop.permute.xlu0 %9380
  %9382 = vrot.lane.b32.xlu0 %v8105, 88
  %v9383 = vpop.permute.xlu0 %9382
  %9384 = vrot.lane.b32.xlu0 %v8697, 88
  %v9385 = vpop.permute.xlu0 %9384
  %9386 = vrot.lane.b32.xlu0 %v8699, 88
  %v9387 = vpop.permute.xlu0 %9386
  %v9450 = vsel %vm2893, %v360, %v7771
  %v9451 = vsel %vm2893, %v167, %v7773
  %v9452 = vsel %vm2893, %v7496, %v7775
  %v9453 = vsel %vm2893, %v7308, %v7777
  %v9454 = vsel %vm2893, %v7497, %v7779
  %v9455 = vsel %vm2893, %v7311, %v7781
  %v9456 = vsel %vm2893, %v7498, %v7783
  %v9457 = vsel %vm2893, %v7314, %v7785
  %v9458 = vsel %vm2893, %v7499, %v7787
  %v9459 = vsel %vm2893, %v7317, %v7789
  %v9460 = vsel %vm2893, %v7500, %v7791
  %v9461 = vsel %vm2893, %v7320, %v7793
  %v9462 = vsel %vm2893, %v7501, %v7795
  %v9463 = vsel %vm2893, %v7323, %v7797
  %v9464 = vsel %vm2893, %v7502, %v7799
  %v9465 = vsel %vm2893, %v7326, %v7801
  %v9466 = vsel %vm2893, %v7503, %v7803
  %v9467 = vsel %vm2893, %v7329, %v7805
  %v9468 = vsel %vm2893, %v7504, %v7807
  %v9469 = vsel %vm2893, %v7332, %v7809
  %v9470 = vsel %vm2893, %v7505, %v7811
  %v9471 = vsel %vm2893, %v7335, %v7813
  %v9472 = vsel %vm2893, %v7506, %v7815
  %v9473 = vsel %vm2893, %v7338, %v7817
  %v9474 = vsel %vm2893, %v7507, %v7819
  %v9475 = vsel %vm2893, %v7341, %v7821
  %v9476 = vsel %vm2893, %v7508, %v7823
  %v9477 = vsel %vm2893, %v7344, %v7825
  %v9478 = vsel %vm2893, %v7509, %v7827
  %v9479 = vsel %vm2893, %v7347, %v7829
  %v9480 = vsel %vm2893, %v7510, %v7831
  %v9481 = vsel %vm2893, %v7350, %v7833
  %v9482 = vsel %vm2893, %v7512, %v7835
  %v9483 = vsel %vm2893, %v7356, %v7837
  %v9484 = vsel %vm2893, %v7513, %v7839
  %v9485 = vsel %vm2893, %v7359, %v7841
  %v9486 = vsel %vm2893, %v7514, %v7843
  %v9487 = vsel %vm2893, %v7362, %v7845
  %v9488 = vsel %vm2893, %v7515, %v7847
  %v9489 = vsel %vm2893, %v7365, %v7849
  %v9490 = vsel %vm2893, %v7516, %v7851
  %v9491 = vsel %vm2893, %v7368, %v7853
  %v9492 = vsel %vm2893, %v7517, %v7855
  %v9493 = vsel %vm2893, %v7371, %v7857
  %v9494 = vsel %vm2893, %v7518, %v7859
  %v9495 = vsel %vm2893, %v7374, %v7861
  %v9496 = vsel %vm2893, %v7519, %v7863
  %v9497 = vsel %vm2893, %v7377, %v7865
  %v9498 = vsel %vm2893, %v7520, %v7867
  %v9499 = vsel %vm2893, %v7380, %v7869
  %v9500 = vsel %vm2893, %v7521, %v7871
  %v9501 = vsel %vm2893, %v7383, %v7873
  %v9502 = vsel %vm2893, %v7522, %v7875
  %v9503 = vsel %vm2893, %v7386, %v7877
  %v9504 = vsel %vm2893, %v7523, %v7879
  %v9505 = vsel %vm2893, %v7389, %v7881
  %v9506 = vsel %vm2893, %v7524, %v7883
  %v9507 = vsel %vm2893, %v7392, %v7885
  %v9508 = vsel %vm2893, %v7525, %v7887
  %v9509 = vsel %vm2893, %v7395, %v7889
  %v9510 = vsel %vm2893, %v7526, %v7891
  %v9511 = vsel %vm2893, %v7398, %v7893
  %vm9512 = vcmask 441344
  %v9513 = vsel %vm9512, %v9450, %v8107
  %v9514 = vsel %vm9512, %v9451, %v8109
  %v9515 = vsel %vm9512, %v9452, %v8111
  %v9516 = vsel %vm9512, %v9453, %v8113
  %v9517 = vsel %vm9512, %v9454, %v8115
  %v9518 = vsel %vm9512, %v9455, %v8117
  %v9519 = vsel %vm9512, %v9456, %v8119
  %v9520 = vsel %vm9512, %v9457, %v8121
  %v9521 = vsel %vm9512, %v9458, %v8123
  %v9522 = vsel %vm9512, %v9459, %v8125
  %v9523 = vsel %vm9512, %v9460, %v8127
  %v9524 = vsel %vm9512, %v9461, %v8129
  %v9525 = vsel %vm9512, %v9462, %v8131
  %v9526 = vsel %vm9512, %v9463, %v8133
  %v9527 = vsel %vm9512, %v9464, %v8135
  %v9528 = vsel %vm9512, %v9465, %v8137
  %v9529 = vsel %vm9512, %v9466, %v8139
  %v9530 = vsel %vm9512, %v9467, %v8141
  %v9531 = vsel %vm9512, %v9468, %v8143
  %v9532 = vsel %vm9512, %v9469, %v8145
  %v9533 = vsel %vm9512, %v9470, %v8147
  %v9534 = vsel %vm9512, %v9471, %v8149
  %v9535 = vsel %vm9512, %v9472, %v8151
  %v9536 = vsel %vm9512, %v9473, %v8153
  %v9537 = vsel %vm9512, %v9474, %v8155
  %v9538 = vsel %vm9512, %v9475, %v8157
  %v9539 = vsel %vm9512, %v9476, %v8159
  %v9540 = vsel %vm9512, %v9477, %v8161
  %v9541 = vsel %vm9512, %v9478, %v8163
  %v9542 = vsel %vm9512, %v9479, %v8165
  %v9543 = vsel %vm9512, %v9480, %v8167
  %v9544 = vsel %vm9512, %v9481, %v8169
  %v9545 = vsel %vm9512, %v9482, %v8171
  %v9546 = vsel %vm9512, %v9483, %v8173
  %v9547 = vsel %vm9512, %v9484, %v8175
  %v9548 = vsel %vm9512, %v9485, %v8177
  %v9549 = vsel %vm9512, %v9486, %v8179
  %v9550 = vsel %vm9512, %v9487, %v8181
  %v9551 = vsel %vm9512, %v9488, %v8183
  %v9552 = vsel %vm9512, %v9489, %v8185
  %v9553 = vsel %vm9512, %v9490, %v8187
  %v9554 = vsel %vm9512, %v9491, %v8189
  %v9555 = vsel %vm9512, %v9492, %v8191
  %v9556 = vsel %vm9512, %v9493, %v8193
  %v9557 = vsel %vm9512, %v9494, %v8195
  %v9558 = vsel %vm9512, %v9495, %v8197
  %v9559 = vsel %vm9512, %v9496, %v8199
  %v9560 = vsel %vm9512, %v9497, %v8201
  %v9561 = vsel %vm9512, %v9498, %v8203
  %v9562 = vsel %vm9512, %v9499, %v8205
  %v9563 = vsel %vm9512, %v9500, %v8207
  %v9564 = vsel %vm9512, %v9501, %v8209
  %v9565 = vsel %vm9512, %v9502, %v8211
  %v9566 = vsel %vm9512, %v9503, %v8213
  %v9567 = vsel %vm9512, %v9504, %v8215
  %v9568 = vsel %vm9512, %v9505, %v8217
  %v9569 = vsel %vm9512, %v9506, %v8219
  %v9570 = vsel %vm9512, %v9507, %v8221
  %v9571 = vsel %vm9512, %v9508, %v8223
  %v9572 = vsel %vm9512, %v9509, %v8225
  %v9573 = vsel %vm9512, %v9510, %v8227
  %v9574 = vsel %vm9512, %v9511, %v8229
  %vm9575 = vcmask 662528
  %v9576 = vsel %vm9575, %v9513, %v8295
  %v9577 = vsel %vm9575, %v9514, %v8297
  %v9578 = vsel %vm9575, %v9515, %v8299
  %v9579 = vsel %vm9575, %v9516, %v8301
  %v9580 = vsel %vm9575, %v9517, %v8303
  %v9581 = vsel %vm9575, %v9518, %v8305
  %v9582 = vsel %vm9575, %v9519, %v8307
  %v9583 = vsel %vm9575, %v9520, %v8309
  %v9584 = vsel %vm9575, %v9521, %v8311
  %v9585 = vsel %vm9575, %v9522, %v8313
  %v9586 = vsel %vm9575, %v9523, %v8315
  %v9587 = vsel %vm9575, %v9524, %v8317
  %v9588 = vsel %vm9575, %v9525, %v8319
  %v9589 = vsel %vm9575, %v9526, %v8321
  %v9590 = vsel %vm9575, %v9527, %v8323
  %v9591 = vsel %vm9575, %v9528, %v8325
  %v9592 = vsel %vm9575, %v9529, %v8327
  %v9593 = vsel %vm9575, %v9530, %v8329
  %v9594 = vsel %vm9575, %v9531, %v8331
  %v9595 = vsel %vm9575, %v9532, %v8333
  %v9596 = vsel %vm9575, %v9533, %v8335
  %v9597 = vsel %vm9575, %v9534, %v8337
  %v9598 = vsel %vm9575, %v9535, %v8339
  %v9599 = vsel %vm9575, %v9536, %v8341
  %v9600 = vsel %vm9575, %v9537, %v8343
  %v9601 = vsel %vm9575, %v9538, %v8345
  %v9602 = vsel %vm9575, %v9539, %v8347
  %v9603 = vsel %vm9575, %v9540, %v8349
  %v9604 = vsel %vm9575, %v9541, %v8351
  %v9605 = vsel %vm9575, %v9542, %v8353
  %v9606 = vsel %vm9575, %v9543, %v8355
  %v9607 = vsel %vm9575, %v9544, %v8357
  %v9608 = vsel %vm9575, %v9513, %v8359
  %v9609 = vsel %vm9575, %v9514, %v8361
  %v9610 = vsel %vm9575, %v9545, %v8363
  %v9611 = vsel %vm9575, %v9546, %v8365
  %v9612 = vsel %vm9575, %v9547, %v8367
  %v9613 = vsel %vm9575, %v9548, %v8369
  %v9614 = vsel %vm9575, %v9549, %v8371
  %v9615 = vsel %vm9575, %v9550, %v8373
  %v9616 = vsel %vm9575, %v9551, %v8375
  %v9617 = vsel %vm9575, %v9552, %v8377
  %v9618 = vsel %vm9575, %v9553, %v8379
  %v9619 = vsel %vm9575, %v9554, %v8381
  %v9620 = vsel %vm9575, %v9555, %v8383
  %v9621 = vsel %vm9575, %v9556, %v8385
  %v9622 = vsel %vm9575, %v9557, %v8387
  %v9623 = vsel %vm9575, %v9558, %v8389
  %v9624 = vsel %vm9575, %v9559, %v8391
  %v9625 = vsel %vm9575, %v9560, %v8393
  %v9626 = vsel %vm9575, %v9561, %v8395
  %v9627 = vsel %vm9575, %v9562, %v8397
  %v9628 = vsel %vm9575, %v9563, %v8399
  %v9629 = vsel %vm9575, %v9564, %v8401
  %v9630 = vsel %vm9575, %v9565, %v8403
  %v9631 = vsel %vm9575, %v9566, %v8405
  %v9632 = vsel %vm9575, %v9567, %v8407
  %v9633 = vsel %vm9575, %v9568, %v8409
  %v9634 = vsel %vm9575, %v9569, %v8411
  %v9635 = vsel %vm9575, %v9570, %v8413
  %v9636 = vsel %vm9575, %v9571, %v8415
  %v9637 = vsel %vm9575, %v9572, %v8417
  %v9638 = vsel %vm9575, %v9573, %v8419
  %v9639 = vsel %vm9575, %v9574, %v8421
  %vm9640 = vcmask 883712
  %v9641 = vsel %vm9640, %v9576, %v8499
  %v9642 = vsel %vm9640, %v9577, %v8501
  %v9643 = vsel %vm9640, %v9578, %v8503
  %v9644 = vsel %vm9640, %v9579, %v8505
  %v9645 = vsel %vm9640, %v9580, %v8507
  %v9646 = vsel %vm9640, %v9581, %v8509
  %v9647 = vsel %vm9640, %v9582, %v8511
  %v9648 = vsel %vm9640, %v9583, %v8513
  %v9649 = vsel %vm9640, %v9584, %v8515
  %v9650 = vsel %vm9640, %v9585, %v8517
  %v9651 = vsel %vm9640, %v9586, %v8519
  %v9652 = vsel %vm9640, %v9587, %v8521
  %v9653 = vsel %vm9640, %v9588, %v8523
  %v9654 = vsel %vm9640, %v9589, %v8525
  %v9655 = vsel %vm9640, %v9590, %v8527
  %v9656 = vsel %vm9640, %v9591, %v8529
  %v9657 = vsel %vm9640, %v9592, %v8531
  %v9658 = vsel %vm9640, %v9593, %v8533
  %v9659 = vsel %vm9640, %v9594, %v8535
  %v9660 = vsel %vm9640, %v9595, %v8537
  %v9661 = vsel %vm9640, %v9596, %v8539
  %v9662 = vsel %vm9640, %v9597, %v8541
  %v9663 = vsel %vm9640, %v9598, %v8543
  %v9664 = vsel %vm9640, %v9599, %v8545
  %v9665 = vsel %vm9640, %v9600, %v8547
  %v9666 = vsel %vm9640, %v9601, %v8549
  %v9667 = vsel %vm9640, %v9602, %v8551
  %v9668 = vsel %vm9640, %v9603, %v8553
  %v9669 = vsel %vm9640, %v9604, %v8555
  %v9670 = vsel %vm9640, %v9605, %v8557
  %v9671 = vsel %vm9640, %v9606, %v8559
  %v9672 = vsel %vm9640, %v9607, %v8561
  %v9673 = vsel %vm9640, %v9608, %v8563
  %v9674 = vsel %vm9640, %v9609, %v8565
  %v9675 = vsel %vm9640, %v9610, %v8567
  %v9676 = vsel %vm9640, %v9611, %v8569
  %v9677 = vsel %vm9640, %v9612, %v8571
  %v9678 = vsel %vm9640, %v9613, %v8573
  %v9679 = vsel %vm9640, %v9614, %v8575
  %v9680 = vsel %vm9640, %v9615, %v8577
  %v9681 = vsel %vm9640, %v9616, %v8579
  %v9682 = vsel %vm9640, %v9617, %v8581
  %v9683 = vsel %vm9640, %v9618, %v8583
  %v9684 = vsel %vm9640, %v9619, %v8585
  %v9685 = vsel %vm9640, %v9620, %v8587
  %v9686 = vsel %vm9640, %v9621, %v8589
  %v9687 = vsel %vm9640, %v9622, %v8591
  %v9688 = vsel %vm9640, %v9623, %v8593
  %v9689 = vsel %vm9640, %v9624, %v8595
  %v9690 = vsel %vm9640, %v9625, %v8597
  %v9691 = vsel %vm9640, %v9626, %v8599
  %v9692 = vsel %vm9640, %v9627, %v8601
  %v9693 = vsel %vm9640, %v9628, %v8603
  %v9694 = vsel %vm9640, %v9629, %v8605
  %v9695 = vsel %vm9640, %v9630, %v8607
  %v9696 = vsel %vm9640, %v9631, %v8609
  %v9697 = vsel %vm9640, %v9632, %v8611
  %v9698 = vsel %vm9640, %v9633, %v8613
  %v9699 = vsel %vm9640, %v9634, %v8615
  %v9700 = vsel %vm9640, %v9635, %v8617
  %v9701 = vsel %vm9640, %v9636, %v8619
  %v9702 = vsel %vm9640, %v9637, %v8621
  %v9703 = vsel %vm9640, %v9638, %v8623
  %v9704 = vsel %vm9640, %v9639, %v8625
  %vm9705 = vcmask 56320
  %v9706 = vsel %vm9705, %v8499, %v8701
  %v9707 = vsel %vm9705, %v8501, %v8703
  %v9708 = vsel %vm9705, %v8503, %v8705
  %v9709 = vsel %vm9705, %v8505, %v8707
  %v9710 = vsel %vm9705, %v8507, %v8709
  %v9711 = vsel %vm9705, %v8509, %v8711
  %v9712 = vsel %vm9705, %v8511, %v8713
  %v9713 = vsel %vm9705, %v8513, %v8715
  %v9714 = vsel %vm9705, %v8515, %v8717
  %v9715 = vsel %vm9705, %v8517, %v8719
  %v9716 = vsel %vm9705, %v8519, %v8721
  %v9717 = vsel %vm9705, %v8521, %v8723
  %v9718 = vsel %vm9705, %v8523, %v8725
  %v9719 = vsel %vm9705, %v8525, %v8727
  %v9720 = vsel %vm9705, %v8527, %v8729
  %v9721 = vsel %vm9705, %v8529, %v8731
  %v9722 = vsel %vm9705, %v8531, %v8733
  %v9723 = vsel %vm9705, %v8533, %v8735
  %v9724 = vsel %vm9705, %v8535, %v8737
  %v9725 = vsel %vm9705, %v8537, %v8739
  %v9726 = vsel %vm9705, %v8539, %v8741
  %v9727 = vsel %vm9705, %v8541, %v8743
  %v9728 = vsel %vm9705, %v8543, %v8745
  %v9729 = vsel %vm9705, %v8545, %v8747
  %v9730 = vsel %vm9705, %v8547, %v8749
  %v9731 = vsel %vm9705, %v8549, %v8751
  %v9732 = vsel %vm9705, %v8551, %v8753
  %v9733 = vsel %vm9705, %v8553, %v8755
  %v9734 = vsel %vm9705, %v8555, %v8757
  %v9735 = vsel %vm9705, %v8557, %v8759
  %v9736 = vsel %vm9705, %v8559, %v8761
  %v9737 = vsel %vm9705, %v8561, %v8763
  %v9738 = vsel %vm9705, %v8563, %v8765
  %v9739 = vsel %vm9705, %v8565, %v8767
  %v9740 = vsel %vm9705, %v8567, %v8769
  %v9741 = vsel %vm9705, %v8569, %v8771
  %v9742 = vsel %vm9705, %v8571, %v8773
  %v9743 = vsel %vm9705, %v8573, %v8775
  %v9744 = vsel %vm9705, %v8575, %v8777
  %v9745 = vsel %vm9705, %v8577, %v8779
  %v9746 = vsel %vm9705, %v8579, %v8781
  %v9747 = vsel %vm9705, %v8581, %v8783
  %v9748 = vsel %vm9705, %v8583, %v8785
  %v9749 = vsel %vm9705, %v8585, %v8787
  %v9750 = vsel %vm9705, %v8587, %v8789
  %v9751 = vsel %vm9705, %v8589, %v8791
  %v9752 = vsel %vm9705, %v8591, %v8793
  %v9753 = vsel %vm9705, %v8593, %v8795
  %v9754 = vsel %vm9705, %v8595, %v8797
  %v9755 = vsel %vm9705, %v8597, %v8799
  %v9756 = vsel %vm9705, %v8599, %v8801
  %v9757 = vsel %vm9705, %v8601, %v8803
  %v9758 = vsel %vm9705, %v8603, %v8805
  %v9759 = vsel %vm9705, %v8605, %v8807
  %v9760 = vsel %vm9705, %v8607, %v8809
  %v9761 = vsel %vm9705, %v8609, %v8811
  %v9762 = vsel %vm9705, %v8611, %v8813
  %v9763 = vsel %vm9705, %v8613, %v8815
  %v9764 = vsel %vm9705, %v8615, %v8817
  %v9765 = vsel %vm9705, %v8617, %v8819
  %v9766 = vsel %vm9705, %v8619, %v8821
  %v9767 = vsel %vm9705, %v8621, %v8823
  %v9768 = vsel %vm9705, %v8623, %v8825
  %v9769 = vsel %vm9705, %v8625, %v8827
  %vm9770 = vcmask 277504
  %v9771 = vsel %vm9770, %v9706, %v8893
  %v9772 = vsel %vm9770, %v9707, %v8895
  %v9773 = vsel %vm9770, %v9708, %v8897
  %v9774 = vsel %vm9770, %v9709, %v8899
  %v9775 = vsel %vm9770, %v9710, %v8901
  %v9776 = vsel %vm9770, %v9711, %v8903
  %v9777 = vsel %vm9770, %v9712, %v8905
  %v9778 = vsel %vm9770, %v9713, %v8907
  %v9779 = vsel %vm9770, %v9714, %v8909
  %v9780 = vsel %vm9770, %v9715, %v8911
  %v9781 = vsel %vm9770, %v9716, %v8913
  %v9782 = vsel %vm9770, %v9717, %v8915
  %v9783 = vsel %vm9770, %v9718, %v8917
  %v9784 = vsel %vm9770, %v9719, %v8919
  %v9785 = vsel %vm9770, %v9720, %v8921
  %v9786 = vsel %vm9770, %v9721, %v8923
  %v9787 = vsel %vm9770, %v9722, %v8925
  %v9788 = vsel %vm9770, %v9723, %v8927
  %v9789 = vsel %vm9770, %v9724, %v8929
  %v9790 = vsel %vm9770, %v9725, %v8931
  %v9791 = vsel %vm9770, %v9726, %v8933
  %v9792 = vsel %vm9770, %v9727, %v8935
  %v9793 = vsel %vm9770, %v9728, %v8937
  %v9794 = vsel %vm9770, %v9729, %v8939
  %v9795 = vsel %vm9770, %v9730, %v8941
  %v9796 = vsel %vm9770, %v9731, %v8943
  %v9797 = vsel %vm9770, %v9732, %v8945
  %v9798 = vsel %vm9770, %v9733, %v8947
  %v9799 = vsel %vm9770, %v9734, %v8949
  %v9800 = vsel %vm9770, %v9735, %v8951
  %v9801 = vsel %vm9770, %v9736, %v8953
  %v9802 = vsel %vm9770, %v9737, %v8955
  %v9803 = vsel %vm9770, %v9738, %v8957
  %v9804 = vsel %vm9770, %v9739, %v8959
  %v9805 = vsel %vm9770, %v9740, %v8961
  %v9806 = vsel %vm9770, %v9741, %v8963
  %v9807 = vsel %vm9770, %v9742, %v8965
  %v9808 = vsel %vm9770, %v9743, %v8967
  %v9809 = vsel %vm9770, %v9744, %v8969
  %v9810 = vsel %vm9770, %v9745, %v8971
  %v9811 = vsel %vm9770, %v9746, %v8973
  %v9812 = vsel %vm9770, %v9747, %v8975
  %v9813 = vsel %vm9770, %v9748, %v8977
  %v9814 = vsel %vm9770, %v9749, %v8979
  %v9815 = vsel %vm9770, %v9750, %v8981
  %v9816 = vsel %vm9770, %v9751, %v8983
  %v9817 = vsel %vm9770, %v9752, %v8985
  %v9818 = vsel %vm9770, %v9753, %v8987
  %v9819 = vsel %vm9770, %v9754, %v8989
  %v9820 = vsel %vm9770, %v9755, %v8991
  %v9821 = vsel %vm9770, %v9756, %v8993
  %v9822 = vsel %vm9770, %v9757, %v8995
  %v9823 = vsel %vm9770, %v9758, %v8997
  %v9824 = vsel %vm9770, %v9759, %v8999
  %v9825 = vsel %vm9770, %v9760, %v9001
  %v9826 = vsel %vm9770, %v9761, %v9003
  %v9827 = vsel %vm9770, %v9762, %v9005
  %v9828 = vsel %vm9770, %v9763, %v9007
  %v9829 = vsel %vm9770, %v9764, %v9009
  %v9830 = vsel %vm9770, %v9765, %v9011
  %v9831 = vsel %vm9770, %v9766, %v9013
  %v9832 = vsel %vm9770, %v9767, %v9015
  %v9833 = vsel %vm9770, %v9768, %v8953
  %v9834 = vsel %vm9770, %v9769, %v8955
  %vm9835 = vcmask 498688
  %v9836 = vsel %vm9835, %v9771, %v9079
  %v9837 = vsel %vm9835, %v9772, %v9081
  %v9838 = vsel %vm9835, %v9773, %v9083
  %v9839 = vsel %vm9835, %v9774, %v9085
  %v9840 = vsel %vm9835, %v9775, %v9087
  %v9841 = vsel %vm9835, %v9776, %v9089
  %v9842 = vsel %vm9835, %v9777, %v9091
  %v9843 = vsel %vm9835, %v9778, %v9093
  %v9844 = vsel %vm9835, %v9779, %v9095
  %v9845 = vsel %vm9835, %v9780, %v9097
  %v9846 = vsel %vm9835, %v9781, %v9099
  %v9847 = vsel %vm9835, %v9782, %v9101
  %v9848 = vsel %vm9835, %v9783, %v9103
  %v9849 = vsel %vm9835, %v9784, %v9105
  %v9850 = vsel %vm9835, %v9785, %v9107
  %v9851 = vsel %vm9835, %v9786, %v9109
  %v9852 = vsel %vm9835, %v9787, %v9111
  %v9853 = vsel %vm9835, %v9788, %v9113
  %v9854 = vsel %vm9835, %v9789, %v9115
  %v9855 = vsel %vm9835, %v9790, %v9117
  %v9856 = vsel %vm9835, %v9791, %v9119
  %v9857 = vsel %vm9835, %v9792, %v9121
  %v9858 = vsel %vm9835, %v9793, %v9123
  %v9859 = vsel %vm9835, %v9794, %v9125
  %v9860 = vsel %vm9835, %v9795, %v9127
  %v9861 = vsel %vm9835, %v9796, %v9129
  %v9862 = vsel %vm9835, %v9797, %v9131
  %v9863 = vsel %vm9835, %v9798, %v9133
  %v9864 = vsel %vm9835, %v9799, %v9135
  %v9865 = vsel %vm9835, %v9800, %v9137
  %v9866 = vsel %vm9835, %v9801, %v9139
  %v9867 = vsel %vm9835, %v9802, %v9141
  %v9868 = vsel %vm9835, %v9803, %v9143
  %v9869 = vsel %vm9835, %v9804, %v9145
  %v9870 = vsel %vm9835, %v9805, %v9147
  %v9871 = vsel %vm9835, %v9806, %v9149
  %v9872 = vsel %vm9835, %v9807, %v9151
  %v9873 = vsel %vm9835, %v9808, %v9153
  %v9874 = vsel %vm9835, %v9809, %v9155
  %v9875 = vsel %vm9835, %v9810, %v9157
  %v9876 = vsel %vm9835, %v9811, %v9159
  %v9877 = vsel %vm9835, %v9812, %v9161
  %v9878 = vsel %vm9835, %v9813, %v9163
  %v9879 = vsel %vm9835, %v9814, %v9165
  %v9880 = vsel %vm9835, %v9815, %v9167
  %v9881 = vsel %vm9835, %v9816, %v9169
  %v9882 = vsel %vm9835, %v9817, %v9171
  %v9883 = vsel %vm9835, %v9818, %v9173
  %v9884 = vsel %vm9835, %v9819, %v9175
  %v9885 = vsel %vm9835, %v9820, %v9177
  %v9886 = vsel %vm9835, %v9821, %v9179
  %v9887 = vsel %vm9835, %v9822, %v9181
  %v9888 = vsel %vm9835, %v9823, %v9183
  %v9889 = vsel %vm9835, %v9824, %v9185
  %v9890 = vsel %vm9835, %v9825, %v9187
  %v9891 = vsel %vm9835, %v9826, %v9189
  %v9892 = vsel %vm9835, %v9827, %v9191
  %v9893 = vsel %vm9835, %v9828, %v9193
  %v9894 = vsel %vm9835, %v9829, %v9195
  %v9895 = vsel %vm9835, %v9830, %v9197
  %v9896 = vsel %vm9835, %v9831, %v9199
  %v9897 = vsel %vm9835, %v9832, %v9201
  %v9898 = vsel %vm9835, %v9833, %v9139
  %v9899 = vsel %vm9835, %v9834, %v9141
  %vm9900 = vcmask 719872
  %v9901 = vsel %vm9900, %v9836, %v9265
  %v9902 = vsel %vm9900, %v9837, %v9267
  %v9903 = vsel %vm9900, %v9838, %v9269
  %v9904 = vsel %vm9900, %v9839, %v9271
  %v9905 = vsel %vm9900, %v9840, %v9273
  %v9906 = vsel %vm9900, %v9841, %v9275
  %v9907 = vsel %vm9900, %v9842, %v9277
  %v9908 = vsel %vm9900, %v9843, %v9279
  %v9909 = vsel %vm9900, %v9844, %v9281
  %v9910 = vsel %vm9900, %v9845, %v9283
  %v9911 = vsel %vm9900, %v9846, %v9285
  %v9912 = vsel %vm9900, %v9847, %v9287
  %v9913 = vsel %vm9900, %v9848, %v9289
  %v9914 = vsel %vm9900, %v9849, %v9291
  %v9915 = vsel %vm9900, %v9850, %v9293
  %v9916 = vsel %vm9900, %v9851, %v9295
  %v9917 = vsel %vm9900, %v9852, %v9297
  %v9918 = vsel %vm9900, %v9853, %v9299
  %v9919 = vsel %vm9900, %v9854, %v9301
  %v9920 = vsel %vm9900, %v9855, %v9303
  %v9921 = vsel %vm9900, %v9856, %v9305
  %v9922 = vsel %vm9900, %v9857, %v9307
  %v9923 = vsel %vm9900, %v9858, %v9309
  %v9924 = vsel %vm9900, %v9859, %v9311
  %v9925 = vsel %vm9900, %v9860, %v9313
  %v9926 = vsel %vm9900, %v9861, %v9315
  %v9927 = vsel %vm9900, %v9862, %v9317
  %v9928 = vsel %vm9900, %v9863, %v9319
  %v9929 = vsel %vm9900, %v9864, %v9321
  %v9930 = vsel %vm9900, %v9865, %v9323
  %v9931 = vsel %vm9900, %v9866, %v9325
  %v9932 = vsel %vm9900, %v9867, %v9327
  %v9933 = vsel %vm9900, %v9868, %v9329
  %v9934 = vsel %vm9900, %v9869, %v9331
  %v9935 = vsel %vm9900, %v9870, %v9333
  %v9936 = vsel %vm9900, %v9871, %v9335
  %v9937 = vsel %vm9900, %v9872, %v9337
  %v9938 = vsel %vm9900, %v9873, %v9339
  %v9939 = vsel %vm9900, %v9874, %v9341
  %v9940 = vsel %vm9900, %v9875, %v9343
  %v9941 = vsel %vm9900, %v9876, %v9345
  %v9942 = vsel %vm9900, %v9877, %v9347
  %v9943 = vsel %vm9900, %v9878, %v9349
  %v9944 = vsel %vm9900, %v9879, %v9351
  %v9945 = vsel %vm9900, %v9880, %v9353
  %v9946 = vsel %vm9900, %v9881, %v9355
  %v9947 = vsel %vm9900, %v9882, %v9357
  %v9948 = vsel %vm9900, %v9883, %v9359
  %v9949 = vsel %vm9900, %v9884, %v9361
  %v9950 = vsel %vm9900, %v9885, %v9363
  %v9951 = vsel %vm9900, %v9886, %v9365
  %v9952 = vsel %vm9900, %v9887, %v9367
  %v9953 = vsel %vm9900, %v9888, %v9369
  %v9954 = vsel %vm9900, %v9889, %v9371
  %v9955 = vsel %vm9900, %v9890, %v9373
  %v9956 = vsel %vm9900, %v9891, %v9375
  %v9957 = vsel %vm9900, %v9892, %v9377
  %v9958 = vsel %vm9900, %v9893, %v9379
  %v9959 = vsel %vm9900, %v9894, %v9381
  %v9960 = vsel %vm9900, %v9895, %v9383
  %v9961 = vsel %vm9900, %v9896, %v9385
  %v9962 = vsel %vm9900, %v9897, %v9387
  %v9963 = vsel %vm9900, %v9898, %v9325
  %v9964 = vsel %vm9900, %v9899, %v9327
  %v9965 = vpack.c.bf16 %v9642, %v9641
  %v9966 = vpack.c.bf16 %v9902, %v9901
  %v9967 = vpack.c.bf16 %v9644, %v9643
  %v9968 = vpack.c.bf16 %v9904, %v9903
  %v9969 = vpack.c.bf16 %v9646, %v9645
  %v9970 = vpack.c.bf16 %v9906, %v9905
  %v9971 = vpack.c.bf16 %v9648, %v9647
  %v9972 = vpack.c.bf16 %v9908, %v9907
  %v9973 = vpack.c.bf16 %v9650, %v9649
  %v9974 = vpack.c.bf16 %v9910, %v9909
  %v9975 = vpack.c.bf16 %v9652, %v9651
  %v9976 = vpack.c.bf16 %v9912, %v9911
  %v9977 = vpack.c.bf16 %v9654, %v9653
  %v9978 = vpack.c.bf16 %v9914, %v9913
  %v9979 = vpack.c.bf16 %v9656, %v9655
  %v9980 = vpack.c.bf16 %v9916, %v9915
  %v9981 = vpack.c.bf16 %v9658, %v9657
  %v9982 = vpack.c.bf16 %v9918, %v9917
  %v9983 = vpack.c.bf16 %v9660, %v9659
  %v9984 = vpack.c.bf16 %v9920, %v9919
  %v9985 = vpack.c.bf16 %v9662, %v9661
  %v9986 = vpack.c.bf16 %v9922, %v9921
  %v9987 = vpack.c.bf16 %v9664, %v9663
  %v9988 = vpack.c.bf16 %v9924, %v9923
  %v9989 = vpack.c.bf16 %v9666, %v9665
  %v9990 = vpack.c.bf16 %v9926, %v9925
  %v9991 = vpack.c.bf16 %v9668, %v9667
  %v9992 = vpack.c.bf16 %v9928, %v9927
  %v9993 = vpack.c.bf16 %v9670, %v9669
  %v9994 = vpack.c.bf16 %v9930, %v9929
  %v9995 = vpack.c.bf16 %v9672, %v9671
  %v9996 = vpack.c.bf16 %v9932, %v9931
  %v9997 = vpack.c.bf16 %v9674, %v9673
  %v9998 = vpack.c.bf16 %v9934, %v9933
  %v9999 = vpack.c.bf16 %v9676, %v9675
  %v10000 = vpack.c.bf16 %v9936, %v9935
  %v10001 = vpack.c.bf16 %v9678, %v9677
  %v10002 = vpack.c.bf16 %v9938, %v9937
  %v10003 = vpack.c.bf16 %v9680, %v9679
  %v10004 = vpack.c.bf16 %v9940, %v9939
  %v10005 = vpack.c.bf16 %v9682, %v9681
  %v10006 = vpack.c.bf16 %v9942, %v9941
  %v10007 = vpack.c.bf16 %v9684, %v9683
  %v10008 = vpack.c.bf16 %v9944, %v9943
  %v10009 = vpack.c.bf16 %v9686, %v9685
  %v10010 = vpack.c.bf16 %v9946, %v9945
  %v10011 = vpack.c.bf16 %v9688, %v9687
  %v10012 = vpack.c.bf16 %v9948, %v9947
  %v10013 = vpack.c.bf16 %v9690, %v9689
  %v10014 = vpack.c.bf16 %v9950, %v9949
  %v10015 = vpack.c.bf16 %v9692, %v9691
  %v10016 = vpack.c.bf16 %v9952, %v9951
  %v10017 = vpack.c.bf16 %v9694, %v9693
  %v10018 = vpack.c.bf16 %v9954, %v9953
  %v10019 = vpack.c.bf16 %v9696, %v9695
  %v10020 = vpack.c.bf16 %v9956, %v9955
  %v10021 = vpack.c.bf16 %v9698, %v9697
  %v10022 = vpack.c.bf16 %v9958, %v9957
  %v10023 = vpack.c.bf16 %v9700, %v9699
  %v10024 = vpack.c.bf16 %v9960, %v9959
  %v10025 = vpack.c.bf16 %v9702, %v9701
  %v10026 = vpack.c.bf16 %v9962, %v9961
  %v10027 = vpack.c.bf16 %v9704, %v9703
  %v10028 = vpack.c.bf16 %v9964, %v9963
  %v10029 = vld [vmem:[%s6] sm:$0xf]
  %v10030 = vld [vmem:[%s6 + $0x4] sm:$0xf]
  %v10031 = vld [vmem:[%s6 + $0x8] sm:$0xf]
  %v10032 = vld [vmem:[%s6 + $0xc] sm:$0xf]
  %v10033 = vld [vmem:[%s6 + $0x10] sm:$0xf]
  %v10034 = vld [vmem:[%s6 + $0x14] sm:$0xf]
  %v10035 = vld [vmem:[%s6 + $0x18] sm:$0xf]
  %v10036 = vld [vmem:[%s6 + $0x1c] sm:$0xf]
  %v10037 = vld [vmem:[%s6 + $0x20] sm:$0xf]
  %v10038 = vld [vmem:[%s6 + $0x24] sm:$0xf]
  %v10039 = vld [vmem:[%s6 + $0x28] sm:$0xf]
  %v10040 = vld [vmem:[%s6 + $0x2c] sm:$0xf]
  %v10041 = vld [vmem:[%s6 + $0x30] sm:$0xf]
  %v10042 = vld [vmem:[%s6 + $0x34] sm:$0xf]
  %v10043 = vld [vmem:[%s6 + $0x38] sm:$0xf]
  %v10044 = vld [vmem:[%s6 + $0x3c] sm:$0xf]
  %v10045 = vld [vmem:[%s6 + $0x40] sm:$0xf]
  %v10046 = vld [vmem:[%s6 + $0x44] sm:$0xf]
  %v10047 = vld [vmem:[%s6 + $0x48] sm:$0xf]
  %v10048 = vld [vmem:[%s6 + $0x4c] sm:$0xf]
  %v10049 = vld [vmem:[%s6 + $0x50] sm:$0xf]
  %v10050 = vld [vmem:[%s6 + $0x54] sm:$0xf]
  %v10051 = vld [vmem:[%s6 + $0x58] sm:$0xf]
  %v10052 = vld [vmem:[%s6 + $0x5c] sm:$0xf]
  %v10053 = vld [vmem:[%s6 + $0x60] sm:$0xf]
  %v10054 = vld [vmem:[%s6 + $0x64] sm:$0xf]
  %v10055 = vld [vmem:[%s6 + $0x68] sm:$0xf]
  %v10056 = vld [vmem:[%s6 + $0x6c] sm:$0xf]
  %v10057 = vld [vmem:[%s6 + $0x70] sm:$0xf]
  %v10058 = vld [vmem:[%s6 + $0x74] sm:$0xf]
  %v10059 = vld [vmem:[%s6 + $0x78] sm:$0x3]
  %v10091 = vunpack.c.l.b16 %v10029
  %v10092 = vunpack.c.l.b16 %v10030
  %v10093 = vunpack.c.l.b16 %v10031
  %v10094 = vunpack.c.l.b16 %v10032
  %v10095 = vunpack.c.l.b16 %v10033
  %v10096 = vunpack.c.l.b16 %v10034
  %v10097 = vunpack.c.l.b16 %v10035
  %v10098 = vunpack.c.l.b16 %v10036
  %v10099 = vunpack.c.l.b16 %v10037
  %v10100 = vunpack.c.l.b16 %v10038
  %v10101 = vunpack.c.l.b16 %v10039
  %v10102 = vunpack.c.l.b16 %v10040
  %v10103 = vunpack.c.l.b16 %v10041
  %v10104 = vunpack.c.l.b16 %v10042
  %v10105 = vunpack.c.l.b16 %v10043
  %v10106 = vunpack.c.l.b16 %v10044
  %v10107 = vunpack.c.l.b16 %v10045
  %v10108 = vunpack.c.l.b16 %v10046
  %v10109 = vunpack.c.l.b16 %v10047
  %v10110 = vunpack.c.l.b16 %v10048
  %v10111 = vunpack.c.l.b16 %v10049
  %v10112 = vunpack.c.l.b16 %v10050
  %v10113 = vunpack.c.l.b16 %v10051
  %v10114 = vunpack.c.l.b16 %v10052
  %v10115 = vunpack.c.l.b16 %v10053
  %v10116 = vunpack.c.l.b16 %v10054
  %v10117 = vunpack.c.l.b16 %v10055
  %v10118 = vunpack.c.l.b16 %v10056
  %v10119 = vunpack.c.l.b16 %v10057
  %v10120 = vunpack.c.l.b16 %v10058
  %v10121 = vunpack.c.l.b16 %v10059
  %v10122 = vpack.c.b16 %v10092, %v10091
  %v10123 = vpack.c.b16 %v10094, %v10093
  %v10124 = vpack.c.b16 %v10096, %v10095
  %v10125 = vpack.c.b16 %v10098, %v10097
  %v10126 = vpack.c.b16 %v10100, %v10099
  %v10127 = vpack.c.b16 %v10102, %v10101
  %v10128 = vpack.c.b16 %v10104, %v10103
  %v10129 = vpack.c.b16 %v10106, %v10105
  %v10130 = vpack.c.b16 %v10108, %v10107
  %v10131 = vpack.c.b16 %v10110, %v10109
  %v10132 = vpack.c.b16 %v10112, %v10111
  %v10133 = vpack.c.b16 %v10114, %v10113
  %v10134 = vpack.c.b16 %v10116, %v10115
  %v10135 = vpack.c.b16 %v10118, %v10117
  %v10136 = vpack.c.b16 %v10120, %v10119
  %v10137 = vpack.c.b16 %v10121, %v10121
  %vm10153 = vcmask 941056
  %v10155 = vsel %vm10153, %v9966, 0
  %v10158 = vsel %vm10153, %v9968, 0
  %v10161 = vsel %vm10153, %v9970, 0
  %v10164 = vsel %vm10153, %v9972, 0
  %v10167 = vsel %vm10153, %v9974, 0
  %v10170 = vsel %vm10153, %v9976, 0
  %v10173 = vsel %vm10153, %v9978, 0
  %v10176 = vsel %vm10153, %v9980, 0
  %v10179 = vsel %vm10153, %v9982, 0
  %v10182 = vsel %vm10153, %v9984, 0
  %v10185 = vsel %vm10153, %v9986, 0
  %v10188 = vsel %vm10153, %v9988, 0
  %v10191 = vsel %vm10153, %v9990, 0
  %v10194 = vsel %vm10153, %v9992, 0
  %v10197 = vsel %vm10153, %v9994, 0
  %v10200 = vsel %vm10153, %v9996, 0
  %v10203 = vsel %vm10153, %v9998, 0
  %v10206 = vsel %vm10153, %v10000, 0
  %v10209 = vsel %vm10153, %v10002, 0
  %v10212 = vsel %vm10153, %v10004, 0
  %v10215 = vsel %vm10153, %v10006, 0
  %v10218 = vsel %vm10153, %v10008, 0
  %v10221 = vsel %vm10153, %v10010, 0
  %v10224 = vsel %vm10153, %v10012, 0
  %v10227 = vsel %vm10153, %v10014, 0
  %v10230 = vsel %vm10153, %v10016, 0
  %v10233 = vsel %vm10153, %v10018, 0
  %v10236 = vsel %vm10153, %v10020, 0
  %v10239 = vsel %vm10153, %v10022, 0
  %v10242 = vsel %vm10153, %v10024, 0
  %v10245 = vsel %vm10153, %v10026, 0
  %v10248 = vsel %vm10153, %v10028, 0
  %vm10250 = vcmask 1041408
  %v10251 = vsel %vm165, 4294967295, 65535
  %v10252 = vsel %vm10250, %v10251, 0
  %v10254 = vand.u32 %v10137, %v10252
  %10256 = vmatpush.bf16.msra.mxu0 %v10129
  %10257 = vmatpush.bf16.msra.mxu0 %v10128
  %10258 = vmatpush.bf16.msra.mxu0 %v10127
  %10259 = vmatpush.bf16.msra.mxu0 %v10126
  %10260 = vmatpush.bf16.msra.mxu0 %v10125
  %10261 = vmatpush.bf16.msra.mxu0 %v10124
  %10262 = vmatpush.bf16.msra.mxu0 %v10123
  %10263 = vmatpush.bf16.msra.mxu0 %v10122
  %10264 = vmatmul.bf16.gmra.mxu0 %v9965
  %v10265 = vpop.f32.mrf.mxu0
  %v10266 = vadd.f32 0.0, %v10265
  %v10267 = vpop.f32.mrf.mxu0
  %v10268 = vadd.f32 0.0, %v10267
  %10269 = vmatmul.bf16.gmra.mxu0 %v9967
  %v10270 = vpop.f32.mrf.mxu0
  %v10271 = vadd.f32 0.0, %v10270
  %v10272 = vpop.f32.mrf.mxu0
  %v10273 = vadd.f32 0.0, %v10272
  %10274 = vmatmul.bf16.gmra.mxu0 %v9969
  %v10275 = vpop.f32.mrf.mxu0
  %v10276 = vadd.f32 0.0, %v10275
  %v10277 = vpop.f32.mrf.mxu0
  %v10278 = vadd.f32 0.0, %v10277
  %10279 = vmatmul.bf16.gmra.mxu0 %v9971
  %v10280 = vpop.f32.mrf.mxu0
  %v10281 = vadd.f32 0.0, %v10280
  %v10282 = vpop.f32.mrf.mxu0
  %v10283 = vadd.f32 0.0, %v10282
  %10284 = vmatmul.bf16.gmra.mxu0 %v9973
  %v10285 = vpop.f32.mrf.mxu0
  %v10286 = vadd.f32 0.0, %v10285
  %v10287 = vpop.f32.mrf.mxu0
  %v10288 = vadd.f32 0.0, %v10287
  %10289 = vmatmul.bf16.gmra.mxu0 %v9975
  %v10290 = vpop.f32.mrf.mxu0
  %v10291 = vadd.f32 0.0, %v10290
  %v10292 = vpop.f32.mrf.mxu0
  %v10293 = vadd.f32 0.0, %v10292
  %10294 = vmatmul.bf16.gmra.mxu0 %v9977
  %v10295 = vpop.f32.mrf.mxu0
  %v10296 = vadd.f32 0.0, %v10295
  %v10297 = vpop.f32.mrf.mxu0
  %v10298 = vadd.f32 0.0, %v10297
  %10299 = vmatmul.bf16.gmra.mxu0 %v9979
  %v10300 = vpop.f32.mrf.mxu0
  %v10301 = vadd.f32 0.0, %v10300
  %v10302 = vpop.f32.mrf.mxu0
  %v10303 = vadd.f32 0.0, %v10302
  %10304 = vmatmul.bf16.gmra.mxu0 %v9981
  %v10305 = vpop.f32.mrf.mxu0
  %v10306 = vadd.f32 0.0, %v10305
  %v10307 = vpop.f32.mrf.mxu0
  %v10308 = vadd.f32 0.0, %v10307
  %10309 = vmatmul.bf16.gmra.mxu0 %v9983
  %v10310 = vpop.f32.mrf.mxu0
  %v10311 = vadd.f32 0.0, %v10310
  %v10312 = vpop.f32.mrf.mxu0
  %v10313 = vadd.f32 0.0, %v10312
  %10314 = vmatmul.bf16.gmra.mxu0 %v9985
  %v10315 = vpop.f32.mrf.mxu0
  %v10316 = vadd.f32 0.0, %v10315
  %v10317 = vpop.f32.mrf.mxu0
  %v10318 = vadd.f32 0.0, %v10317
  %10319 = vmatmul.bf16.gmra.mxu0 %v9987
  %v10320 = vpop.f32.mrf.mxu0
  %v10321 = vadd.f32 0.0, %v10320
  %v10322 = vpop.f32.mrf.mxu0
  %v10323 = vadd.f32 0.0, %v10322
  %10324 = vmatmul.bf16.gmra.mxu0 %v9989
  %v10325 = vpop.f32.mrf.mxu0
  %v10326 = vadd.f32 0.0, %v10325
  %v10327 = vpop.f32.mrf.mxu0
  %v10328 = vadd.f32 0.0, %v10327
  %10329 = vmatmul.bf16.gmra.mxu0 %v9991
  %v10330 = vpop.f32.mrf.mxu0
  %v10331 = vadd.f32 0.0, %v10330
  %v10332 = vpop.f32.mrf.mxu0
  %v10333 = vadd.f32 0.0, %v10332
  %10334 = vmatmul.bf16.gmra.mxu0 %v9993
  %v10335 = vpop.f32.mrf.mxu0
  %v10336 = vadd.f32 0.0, %v10335
  %v10337 = vpop.f32.mrf.mxu0
  %v10338 = vadd.f32 0.0, %v10337
  %10339 = vmatmul.bf16.gmra.mxu0 %v9995
  %v10340 = vpop.f32.mrf.mxu0
  %v10341 = vadd.f32 0.0, %v10340
  %v10342 = vpop.f32.mrf.mxu0
  %v10343 = vadd.f32 0.0, %v10342
  %10344 = vmatmul.bf16.gmra.mxu0 %v9997
  %v10345 = vpop.f32.mrf.mxu0
  %v10346 = vadd.f32 0.0, %v10345
  %v10347 = vpop.f32.mrf.mxu0
  %v10348 = vadd.f32 0.0, %v10347
  %10349 = vmatmul.bf16.gmra.mxu0 %v9999
  %v10350 = vpop.f32.mrf.mxu0
  %v10351 = vadd.f32 0.0, %v10350
  %v10352 = vpop.f32.mrf.mxu0
  %v10353 = vadd.f32 0.0, %v10352
  %10354 = vmatmul.bf16.gmra.mxu0 %v10001
  %v10355 = vpop.f32.mrf.mxu0
  %v10356 = vadd.f32 0.0, %v10355
  %v10357 = vpop.f32.mrf.mxu0
  %v10358 = vadd.f32 0.0, %v10357
  %10359 = vmatmul.bf16.gmra.mxu0 %v10003
  %v10360 = vpop.f32.mrf.mxu0
  %v10361 = vadd.f32 0.0, %v10360
  %v10362 = vpop.f32.mrf.mxu0
  %v10363 = vadd.f32 0.0, %v10362
  %10364 = vmatmul.bf16.gmra.mxu0 %v10005
  %v10365 = vpop.f32.mrf.mxu0
  %v10366 = vadd.f32 0.0, %v10365
  %v10367 = vpop.f32.mrf.mxu0
  %v10368 = vadd.f32 0.0, %v10367
  %10369 = vmatmul.bf16.gmra.mxu0 %v10007
  %v10370 = vpop.f32.mrf.mxu0
  %v10371 = vadd.f32 0.0, %v10370
  %v10372 = vpop.f32.mrf.mxu0
  %v10373 = vadd.f32 0.0, %v10372
  %10374 = vmatmul.bf16.gmra.mxu0 %v10009
  %v10375 = vpop.f32.mrf.mxu0
  %v10376 = vadd.f32 0.0, %v10375
  %v10377 = vpop.f32.mrf.mxu0
  %v10378 = vadd.f32 0.0, %v10377
  %10379 = vmatmul.bf16.gmra.mxu0 %v10011
  %v10380 = vpop.f32.mrf.mxu0
  %v10381 = vadd.f32 0.0, %v10380
  %v10382 = vpop.f32.mrf.mxu0
  %v10383 = vadd.f32 0.0, %v10382
  %10384 = vmatmul.bf16.gmra.mxu0 %v10013
  %v10385 = vpop.f32.mrf.mxu0
  %v10386 = vadd.f32 0.0, %v10385
  %v10387 = vpop.f32.mrf.mxu0
  %v10388 = vadd.f32 0.0, %v10387
  %10389 = vmatmul.bf16.gmra.mxu0 %v10015
  %v10390 = vpop.f32.mrf.mxu0
  %v10391 = vadd.f32 0.0, %v10390
  %v10392 = vpop.f32.mrf.mxu0
  %v10393 = vadd.f32 0.0, %v10392
  %10394 = vmatmul.bf16.gmra.mxu0 %v10017
  %v10395 = vpop.f32.mrf.mxu0
  %v10396 = vadd.f32 0.0, %v10395
  %v10397 = vpop.f32.mrf.mxu0
  %v10398 = vadd.f32 0.0, %v10397
  %10399 = vmatmul.bf16.gmra.mxu0 %v10019
  %v10400 = vpop.f32.mrf.mxu0
  %v10401 = vadd.f32 0.0, %v10400
  %v10402 = vpop.f32.mrf.mxu0
  %v10403 = vadd.f32 0.0, %v10402
  %10404 = vmatmul.bf16.gmra.mxu0 %v10021
  %v10405 = vpop.f32.mrf.mxu0
  %v10406 = vadd.f32 0.0, %v10405
  %v10407 = vpop.f32.mrf.mxu0
  %v10408 = vadd.f32 0.0, %v10407
  %10409 = vmatmul.bf16.gmra.mxu0 %v10023
  %v10410 = vpop.f32.mrf.mxu0
  %v10411 = vadd.f32 0.0, %v10410
  %v10412 = vpop.f32.mrf.mxu0
  %v10413 = vadd.f32 0.0, %v10412
  %10414 = vmatmul.bf16.gmra.mxu0 %v10025
  %v10415 = vpop.f32.mrf.mxu0
  %v10416 = vadd.f32 0.0, %v10415
  %v10417 = vpop.f32.mrf.mxu0
  %v10418 = vadd.f32 0.0, %v10417
  %10419 = vmatmul.bf16.gmra.mxu0 %v10027
  %v10420 = vpop.f32.mrf.mxu0
  %v10421 = vadd.f32 0.0, %v10420
  %v10422 = vpop.f32.mrf.mxu0
  %v10423 = vadd.f32 0.0, %v10422
  %10424 = vdwg.mxu0
  %10425 = vmatpush.bf16.msra.mxu0 %v10254
  %10426 = vmatpush.bf16.msra.mxu0 %v10136
  %10427 = vmatpush.bf16.msra.mxu0 %v10135
  %10428 = vmatpush.bf16.msra.mxu0 %v10134
  %10429 = vmatpush.bf16.msra.mxu0 %v10133
  %10430 = vmatpush.bf16.msra.mxu0 %v10132
  %10431 = vmatpush.bf16.msra.mxu0 %v10131
  %10432 = vmatpush.bf16.msra.mxu0 %v10130
  %10433 = vmatmul.bf16.gmra.mxu0 %v10155
  %v10434 = vpop.f32.mrf.mxu0
  %v10435 = vadd.f32 %v10266, %v10434
  %v10436 = vpop.f32.mrf.mxu0
  %v10437 = vadd.f32 %v10268, %v10436
  %10438 = vmatmul.bf16.gmra.mxu0 %v10158
  %v10439 = vpop.f32.mrf.mxu0
  %v10440 = vadd.f32 %v10271, %v10439
  %v10441 = vpop.f32.mrf.mxu0
  %v10442 = vadd.f32 %v10273, %v10441
  %10443 = vmatmul.bf16.gmra.mxu0 %v10161
  %v10444 = vpop.f32.mrf.mxu0
  %v10445 = vadd.f32 %v10276, %v10444
  %v10446 = vpop.f32.mrf.mxu0
  %v10447 = vadd.f32 %v10278, %v10446
  %10448 = vmatmul.bf16.gmra.mxu0 %v10164
  %v10449 = vpop.f32.mrf.mxu0
  %v10450 = vadd.f32 %v10281, %v10449
  %v10451 = vpop.f32.mrf.mxu0
  %v10452 = vadd.f32 %v10283, %v10451
  %10453 = vmatmul.bf16.gmra.mxu0 %v10167
  %v10454 = vpop.f32.mrf.mxu0
  %v10455 = vadd.f32 %v10286, %v10454
  %v10456 = vpop.f32.mrf.mxu0
  %v10457 = vadd.f32 %v10288, %v10456
  %10458 = vmatmul.bf16.gmra.mxu0 %v10170
  %v10459 = vpop.f32.mrf.mxu0
  %v10460 = vadd.f32 %v10291, %v10459
  %v10461 = vpop.f32.mrf.mxu0
  %v10462 = vadd.f32 %v10293, %v10461
  %10463 = vmatmul.bf16.gmra.mxu0 %v10173
  %v10464 = vpop.f32.mrf.mxu0
  %v10465 = vadd.f32 %v10296, %v10464
  %v10466 = vpop.f32.mrf.mxu0
  %v10467 = vadd.f32 %v10298, %v10466
  %10468 = vmatmul.bf16.gmra.mxu0 %v10176
  %v10469 = vpop.f32.mrf.mxu0
  %v10470 = vadd.f32 %v10301, %v10469
  %v10471 = vpop.f32.mrf.mxu0
  %v10472 = vadd.f32 %v10303, %v10471
  %10473 = vmatmul.bf16.gmra.mxu0 %v10179
  %v10474 = vpop.f32.mrf.mxu0
  %v10475 = vadd.f32 %v10306, %v10474
  %v10476 = vpop.f32.mrf.mxu0
  %v10477 = vadd.f32 %v10308, %v10476
  %10478 = vmatmul.bf16.gmra.mxu0 %v10182
  %v10479 = vpop.f32.mrf.mxu0
  %v10480 = vadd.f32 %v10311, %v10479
  %v10481 = vpop.f32.mrf.mxu0
  %v10482 = vadd.f32 %v10313, %v10481
  %10483 = vmatmul.bf16.gmra.mxu0 %v10185
  %v10484 = vpop.f32.mrf.mxu0
  %v10485 = vadd.f32 %v10316, %v10484
  %v10486 = vpop.f32.mrf.mxu0
  %v10487 = vadd.f32 %v10318, %v10486
  %10488 = vmatmul.bf16.gmra.mxu0 %v10188
  %v10489 = vpop.f32.mrf.mxu0
  %v10490 = vadd.f32 %v10321, %v10489
  %v10491 = vpop.f32.mrf.mxu0
  %v10492 = vadd.f32 %v10323, %v10491
  %10493 = vmatmul.bf16.gmra.mxu0 %v10191
  %v10494 = vpop.f32.mrf.mxu0
  %v10495 = vadd.f32 %v10326, %v10494
  %v10496 = vpop.f32.mrf.mxu0
  %v10497 = vadd.f32 %v10328, %v10496
  %10498 = vmatmul.bf16.gmra.mxu0 %v10194
  %v10499 = vpop.f32.mrf.mxu0
  %v10500 = vadd.f32 %v10331, %v10499
  %v10501 = vpop.f32.mrf.mxu0
  %v10502 = vadd.f32 %v10333, %v10501
  %10503 = vmatmul.bf16.gmra.mxu0 %v10197
  %v10504 = vpop.f32.mrf.mxu0
  %v10505 = vadd.f32 %v10336, %v10504
  %v10506 = vpop.f32.mrf.mxu0
  %v10507 = vadd.f32 %v10338, %v10506
  %10508 = vmatmul.bf16.gmra.mxu0 %v10200
  %v10509 = vpop.f32.mrf.mxu0
  %v10510 = vadd.f32 %v10341, %v10509
  %v10511 = vpop.f32.mrf.mxu0
  %v10512 = vadd.f32 %v10343, %v10511
  %10513 = vmatmul.bf16.gmra.mxu0 %v10203
  %v10514 = vpop.f32.mrf.mxu0
  %v10515 = vadd.f32 %v10346, %v10514
  %v10516 = vpop.f32.mrf.mxu0
  %v10517 = vadd.f32 %v10348, %v10516
  %10518 = vmatmul.bf16.gmra.mxu0 %v10206
  %v10519 = vpop.f32.mrf.mxu0
  %v10520 = vadd.f32 %v10351, %v10519
  %v10521 = vpop.f32.mrf.mxu0
  %v10522 = vadd.f32 %v10353, %v10521
  %10523 = vmatmul.bf16.gmra.mxu0 %v10209
  %v10524 = vpop.f32.mrf.mxu0
  %v10525 = vadd.f32 %v10356, %v10524
  %v10526 = vpop.f32.mrf.mxu0
  %v10527 = vadd.f32 %v10358, %v10526
  %10528 = vmatmul.bf16.gmra.mxu0 %v10212
  %v10529 = vpop.f32.mrf.mxu0
  %v10530 = vadd.f32 %v10361, %v10529
  %v10531 = vpop.f32.mrf.mxu0
  %v10532 = vadd.f32 %v10363, %v10531
  %10533 = vmatmul.bf16.gmra.mxu0 %v10215
  %v10534 = vpop.f32.mrf.mxu0
  %v10535 = vadd.f32 %v10366, %v10534
  %v10536 = vpop.f32.mrf.mxu0
  %v10537 = vadd.f32 %v10368, %v10536
  %10538 = vmatmul.bf16.gmra.mxu0 %v10218
  %v10539 = vpop.f32.mrf.mxu0
  %v10540 = vadd.f32 %v10371, %v10539
  %v10541 = vpop.f32.mrf.mxu0
  %v10542 = vadd.f32 %v10373, %v10541
  %10543 = vmatmul.bf16.gmra.mxu0 %v10221
  %v10544 = vpop.f32.mrf.mxu0
  %v10545 = vadd.f32 %v10376, %v10544
  %v10546 = vpop.f32.mrf.mxu0
  %v10547 = vadd.f32 %v10378, %v10546
  %10548 = vmatmul.bf16.gmra.mxu0 %v10224
  %v10549 = vpop.f32.mrf.mxu0
  %v10550 = vadd.f32 %v10381, %v10549
  %v10551 = vpop.f32.mrf.mxu0
  %v10552 = vadd.f32 %v10383, %v10551
  %10553 = vmatmul.bf16.gmra.mxu0 %v10227
  %v10554 = vpop.f32.mrf.mxu0
  %v10555 = vadd.f32 %v10386, %v10554
  %v10556 = vpop.f32.mrf.mxu0
  %v10557 = vadd.f32 %v10388, %v10556
  %10558 = vmatmul.bf16.gmra.mxu0 %v10230
  %v10559 = vpop.f32.mrf.mxu0
  %v10560 = vadd.f32 %v10391, %v10559
  %v10561 = vpop.f32.mrf.mxu0
  %v10562 = vadd.f32 %v10393, %v10561
  %10563 = vmatmul.bf16.gmra.mxu0 %v10233
  %v10564 = vpop.f32.mrf.mxu0
  %v10565 = vadd.f32 %v10396, %v10564
  %v10566 = vpop.f32.mrf.mxu0
  %v10567 = vadd.f32 %v10398, %v10566
  %10568 = vmatmul.bf16.gmra.mxu0 %v10236
  %v10569 = vpop.f32.mrf.mxu0
  %v10570 = vadd.f32 %v10401, %v10569
  %v10571 = vpop.f32.mrf.mxu0
  %v10572 = vadd.f32 %v10403, %v10571
  %10573 = vmatmul.bf16.gmra.mxu0 %v10239
  %v10574 = vpop.f32.mrf.mxu0
  %v10575 = vadd.f32 %v10406, %v10574
  %v10576 = vpop.f32.mrf.mxu0
  %v10577 = vadd.f32 %v10408, %v10576
  %10578 = vmatmul.bf16.gmra.mxu0 %v10242
  %v10579 = vpop.f32.mrf.mxu0
  %v10580 = vadd.f32 %v10411, %v10579
  %v10581 = vpop.f32.mrf.mxu0
  %v10582 = vadd.f32 %v10413, %v10581
  %10583 = vmatmul.bf16.gmra.mxu0 %v10245
  %v10584 = vpop.f32.mrf.mxu0
  %v10585 = vadd.f32 %v10416, %v10584
  %v10586 = vpop.f32.mrf.mxu0
  %v10587 = vadd.f32 %v10418, %v10586
  %10588 = vmatmul.bf16.gmra.mxu0 %v10248
  %v10589 = vpop.f32.mrf.mxu0
  %v10590 = vadd.f32 %v10421, %v10589
  %v10591 = vpop.f32.mrf.mxu0
  %v10592 = vadd.f32 %v10423, %v10591
  %10593 = vdwg.mxu0
  %v10594 = vld [vmem:[%s7] sm:$0x1]
  %v10595 = vperm.slane %v10594, 0
  %v10596 = vmul.f32 %v10435, %v10595
  %v10597 = vmul.f32 %v10437, %v10595
  %v10598 = vmul.f32 %v10440, %v10595
  %v10599 = vmul.f32 %v10442, %v10595
  %v10600 = vmul.f32 %v10445, %v10595
  %v10601 = vmul.f32 %v10447, %v10595
  %v10602 = vmul.f32 %v10450, %v10595
  %v10603 = vmul.f32 %v10452, %v10595
  %v10604 = vmul.f32 %v10455, %v10595
  %v10605 = vmul.f32 %v10457, %v10595
  %v10606 = vmul.f32 %v10460, %v10595
  %v10607 = vmul.f32 %v10462, %v10595
  %v10608 = vmul.f32 %v10465, %v10595
  %v10609 = vmul.f32 %v10467, %v10595
  %v10610 = vmul.f32 %v10470, %v10595
  %v10611 = vmul.f32 %v10472, %v10595
  %v10612 = vmul.f32 %v10475, %v10595
  %v10613 = vmul.f32 %v10477, %v10595
  %v10614 = vmul.f32 %v10480, %v10595
  %v10615 = vmul.f32 %v10482, %v10595
  %v10616 = vmul.f32 %v10485, %v10595
  %v10617 = vmul.f32 %v10487, %v10595
  %v10618 = vmul.f32 %v10490, %v10595
  %v10619 = vmul.f32 %v10492, %v10595
  %v10620 = vmul.f32 %v10495, %v10595
  %v10621 = vmul.f32 %v10497, %v10595
  %v10622 = vmul.f32 %v10500, %v10595
  %v10623 = vmul.f32 %v10502, %v10595
  %v10624 = vmul.f32 %v10505, %v10595
  %v10625 = vmul.f32 %v10507, %v10595
  %v10626 = vmul.f32 %v10510, %v10595
  %v10627 = vmul.f32 %v10512, %v10595
  %v10628 = vmul.f32 %v10515, %v10595
  %v10629 = vmul.f32 %v10517, %v10595
  %v10630 = vmul.f32 %v10520, %v10595
  %v10631 = vmul.f32 %v10522, %v10595
  %v10632 = vmul.f32 %v10525, %v10595
  %v10633 = vmul.f32 %v10527, %v10595
  %v10634 = vmul.f32 %v10530, %v10595
  %v10635 = vmul.f32 %v10532, %v10595
  %v10636 = vmul.f32 %v10535, %v10595
  %v10637 = vmul.f32 %v10537, %v10595
  %v10638 = vmul.f32 %v10540, %v10595
  %v10639 = vmul.f32 %v10542, %v10595
  %v10640 = vmul.f32 %v10545, %v10595
  %v10641 = vmul.f32 %v10547, %v10595
  %v10642 = vmul.f32 %v10550, %v10595
  %v10643 = vmul.f32 %v10552, %v10595
  %v10644 = vmul.f32 %v10555, %v10595
  %v10645 = vmul.f32 %v10557, %v10595
  %v10646 = vmul.f32 %v10560, %v10595
  %v10647 = vmul.f32 %v10562, %v10595
  %v10648 = vmul.f32 %v10565, %v10595
  %v10649 = vmul.f32 %v10567, %v10595
  %v10650 = vmul.f32 %v10570, %v10595
  %v10651 = vmul.f32 %v10572, %v10595
  %v10652 = vmul.f32 %v10575, %v10595
  %v10653 = vmul.f32 %v10577, %v10595
  %v10654 = vmul.f32 %v10580, %v10595
  %v10655 = vmul.f32 %v10582, %v10595
  %v10656 = vmul.f32 %v10585, %v10595
  %v10657 = vmul.f32 %v10587, %v10595
  %v10658 = vmul.f32 %v10590, %v10595
  %v10659 = vmul.f32 %v10592, %v10595
  %v10660 = vld [vmem:[%s7 + $0x1] sm:$0x1]
  %v10661 = vperm.slane %v10660, 0
  %v10662 = vadd.f32 %v10596, %v10661
  %v10663 = vadd.f32 %v10597, %v10661
  %v10664 = vadd.f32 %v10598, %v10661
  %v10665 = vadd.f32 %v10599, %v10661
  %v10666 = vadd.f32 %v10600, %v10661
  %v10667 = vadd.f32 %v10601, %v10661
  %v10668 = vadd.f32 %v10602, %v10661
  %v10669 = vadd.f32 %v10603, %v10661
  %v10670 = vadd.f32 %v10604, %v10661
  %v10671 = vadd.f32 %v10605, %v10661
  %v10672 = vadd.f32 %v10606, %v10661
  %v10673 = vadd.f32 %v10607, %v10661
  %v10674 = vadd.f32 %v10608, %v10661
  %v10675 = vadd.f32 %v10609, %v10661
  %v10676 = vadd.f32 %v10610, %v10661
  %v10677 = vadd.f32 %v10611, %v10661
  %v10678 = vadd.f32 %v10612, %v10661
  %v10679 = vadd.f32 %v10613, %v10661
  %v10680 = vadd.f32 %v10614, %v10661
  %v10681 = vadd.f32 %v10615, %v10661
  %v10682 = vadd.f32 %v10616, %v10661
  %v10683 = vadd.f32 %v10617, %v10661
  %v10684 = vadd.f32 %v10618, %v10661
  %v10685 = vadd.f32 %v10619, %v10661
  %v10686 = vadd.f32 %v10620, %v10661
  %v10687 = vadd.f32 %v10621, %v10661
  %v10688 = vadd.f32 %v10622, %v10661
  %v10689 = vadd.f32 %v10623, %v10661
  %v10690 = vadd.f32 %v10624, %v10661
  %v10691 = vadd.f32 %v10625, %v10661
  %v10692 = vadd.f32 %v10626, %v10661
  %v10693 = vadd.f32 %v10627, %v10661
  %v10694 = vadd.f32 %v10628, %v10661
  %v10695 = vadd.f32 %v10629, %v10661
  %v10696 = vadd.f32 %v10630, %v10661
  %v10697 = vadd.f32 %v10631, %v10661
  %v10698 = vadd.f32 %v10632, %v10661
  %v10699 = vadd.f32 %v10633, %v10661
  %v10700 = vadd.f32 %v10634, %v10661
  %v10701 = vadd.f32 %v10635, %v10661
  %v10702 = vadd.f32 %v10636, %v10661
  %v10703 = vadd.f32 %v10637, %v10661
  %v10704 = vadd.f32 %v10638, %v10661
  %v10705 = vadd.f32 %v10639, %v10661
  %v10706 = vadd.f32 %v10640, %v10661
  %v10707 = vadd.f32 %v10641, %v10661
  %v10708 = vadd.f32 %v10642, %v10661
  %v10709 = vadd.f32 %v10643, %v10661
  %v10710 = vadd.f32 %v10644, %v10661
  %v10711 = vadd.f32 %v10645, %v10661
  %v10712 = vadd.f32 %v10646, %v10661
  %v10713 = vadd.f32 %v10647, %v10661
  %v10714 = vadd.f32 %v10648, %v10661
  %v10715 = vadd.f32 %v10649, %v10661
  %v10716 = vadd.f32 %v10650, %v10661
  %v10717 = vadd.f32 %v10651, %v10661
  %v10718 = vadd.f32 %v10652, %v10661
  %v10719 = vadd.f32 %v10653, %v10661
  %v10720 = vadd.f32 %v10654, %v10661
  %v10721 = vadd.f32 %v10655, %v10661
  %v10722 = vadd.f32 %v10656, %v10661
  %v10723 = vadd.f32 %v10657, %v10661
  %v10724 = vadd.f32 %v10658, %v10661
  %v10725 = vadd.f32 %v10659, %v10661
  %v10726 = vmax.f32 %v10662, 0.0
  %v10727 = vmax.f32 %v10663, 0.0
  %v10728 = vmax.f32 %v10664, 0.0
  %v10729 = vmax.f32 %v10665, 0.0
  %v10730 = vmax.f32 %v10666, 0.0
  %v10731 = vmax.f32 %v10667, 0.0
  %v10732 = vmax.f32 %v10668, 0.0
  %v10733 = vmax.f32 %v10669, 0.0
  %v10734 = vmax.f32 %v10670, 0.0
  %v10735 = vmax.f32 %v10671, 0.0
  %v10736 = vmax.f32 %v10672, 0.0
  %v10737 = vmax.f32 %v10673, 0.0
  %v10738 = vmax.f32 %v10674, 0.0
  %v10739 = vmax.f32 %v10675, 0.0
  %v10740 = vmax.f32 %v10676, 0.0
  %v10741 = vmax.f32 %v10677, 0.0
  %v10742 = vmax.f32 %v10678, 0.0
  %v10743 = vmax.f32 %v10679, 0.0
  %v10744 = vmax.f32 %v10680, 0.0
  %v10745 = vmax.f32 %v10681, 0.0
  %v10746 = vmax.f32 %v10682, 0.0
  %v10747 = vmax.f32 %v10683, 0.0
  %v10748 = vmax.f32 %v10684, 0.0
  %v10749 = vmax.f32 %v10685, 0.0
  %v10750 = vmax.f32 %v10686, 0.0
  %v10751 = vmax.f32 %v10687, 0.0
  %v10752 = vmax.f32 %v10688, 0.0
  %v10753 = vmax.f32 %v10689, 0.0
  %v10754 = vmax.f32 %v10690, 0.0
  %v10755 = vmax.f32 %v10691, 0.0
  %v10756 = vmax.f32 %v10692, 0.0
  %v10757 = vmax.f32 %v10693, 0.0
  %v10758 = vmax.f32 %v10694, 0.0
  %v10759 = vmax.f32 %v10695, 0.0
  %v10760 = vmax.f32 %v10696, 0.0
  %v10761 = vmax.f32 %v10697, 0.0
  %v10762 = vmax.f32 %v10698, 0.0
  %v10763 = vmax.f32 %v10699, 0.0
  %v10764 = vmax.f32 %v10700, 0.0
  %v10765 = vmax.f32 %v10701, 0.0
  %v10766 = vmax.f32 %v10702, 0.0
  %v10767 = vmax.f32 %v10703, 0.0
  %v10768 = vmax.f32 %v10704, 0.0
  %v10769 = vmax.f32 %v10705, 0.0
  %v10770 = vmax.f32 %v10706, 0.0
  %v10771 = vmax.f32 %v10707, 0.0
  %v10772 = vmax.f32 %v10708, 0.0
  %v10773 = vmax.f32 %v10709, 0.0
  %v10774 = vmax.f32 %v10710, 0.0
  %v10775 = vmax.f32 %v10711, 0.0
  %v10776 = vmax.f32 %v10712, 0.0
  %v10777 = vmax.f32 %v10713, 0.0
  %v10778 = vmax.f32 %v10714, 0.0
  %v10779 = vmax.f32 %v10715, 0.0
  %v10780 = vmax.f32 %v10716, 0.0
  %v10781 = vmax.f32 %v10717, 0.0
  %v10782 = vmax.f32 %v10718, 0.0
  %v10783 = vmax.f32 %v10719, 0.0
  %v10784 = vmax.f32 %v10720, 0.0
  %v10785 = vmax.f32 %v10721, 0.0
  %v10786 = vmax.f32 %v10722, 0.0
  %v10787 = vmax.f32 %v10723, 0.0
  %v10788 = vmax.f32 %v10724, 0.0
  %v10789 = vmax.f32 %v10725, 0.0
  %v10790 = vpack.c.bf16 %v10727, %v10726
  %v10791 = vpack.c.bf16 %v10729, %v10728
  %v10792 = vpack.c.bf16 %v10731, %v10730
  %v10793 = vpack.c.bf16 %v10733, %v10732
  %v10794 = vpack.c.bf16 %v10735, %v10734
  %v10795 = vpack.c.bf16 %v10737, %v10736
  %v10796 = vpack.c.bf16 %v10739, %v10738
  %v10797 = vpack.c.bf16 %v10741, %v10740
  %v10798 = vpack.c.bf16 %v10743, %v10742
  %v10799 = vpack.c.bf16 %v10745, %v10744
  %v10800 = vpack.c.bf16 %v10747, %v10746
  %v10801 = vpack.c.bf16 %v10749, %v10748
  %v10802 = vpack.c.bf16 %v10751, %v10750
  %v10803 = vpack.c.bf16 %v10753, %v10752
  %v10804 = vpack.c.bf16 %v10755, %v10754
  %v10805 = vpack.c.bf16 %v10757, %v10756
  %v10806 = vpack.c.bf16 %v10759, %v10758
  %v10807 = vpack.c.bf16 %v10761, %v10760
  %v10808 = vpack.c.bf16 %v10763, %v10762
  %v10809 = vpack.c.bf16 %v10765, %v10764
  %v10810 = vpack.c.bf16 %v10767, %v10766
  %v10811 = vpack.c.bf16 %v10769, %v10768
  %v10812 = vpack.c.bf16 %v10771, %v10770
  %v10813 = vpack.c.bf16 %v10773, %v10772
  %v10814 = vpack.c.bf16 %v10775, %v10774
  %v10815 = vpack.c.bf16 %v10777, %v10776
  %v10816 = vpack.c.bf16 %v10779, %v10778
  %v10817 = vpack.c.bf16 %v10781, %v10780
  %v10818 = vpack.c.bf16 %v10783, %v10782
  %v10819 = vpack.c.bf16 %v10785, %v10784
  %v10820 = vpack.c.bf16 %v10787, %v10786
  %v10821 = vpack.c.bf16 %v10789, %v10788
  %v10822 = vld [vmem:[%s8] sm:$0xf]
  %v10823 = vld [vmem:[%s8 + $0x4] sm:$0xf]
  %v10826 = vunpack.c.l.b16 %v10822
  %v10827 = vunpack.c.l.b16 %v10823
  %v10828 = vpack.c.b16 %v10827, %v10826
  %v10831 = vsel %vm5445, %v10790, 0
  %v10834 = vsel %vm5445, %v10791, 0
  %v10837 = vsel %vm5445, %v10792, 0
  %v10840 = vsel %vm5445, %v10793, 0
  %v10843 = vsel %vm5445, %v10794, 0
  %v10846 = vsel %vm5445, %v10795, 0
  %v10849 = vsel %vm5445, %v10796, 0
  %v10852 = vsel %vm5445, %v10797, 0
  %v10855 = vsel %vm5445, %v10798, 0
  %v10858 = vsel %vm5445, %v10799, 0
  %v10861 = vsel %vm5445, %v10800, 0
  %v10864 = vsel %vm5445, %v10801, 0
  %v10867 = vsel %vm5445, %v10802, 0
  %v10870 = vsel %vm5445, %v10803, 0
  %v10873 = vsel %vm5445, %v10804, 0
  %v10876 = vsel %vm5445, %v10805, 0
  %v10879 = vsel %vm5445, %v10806, 0
  %v10882 = vsel %vm5445, %v10807, 0
  %v10885 = vsel %vm5445, %v10808, 0
  %v10888 = vsel %vm5445, %v10809, 0
  %v10891 = vsel %vm5445, %v10810, 0
  %v10894 = vsel %vm5445, %v10811, 0
  %v10897 = vsel %vm5445, %v10812, 0
  %v10900 = vsel %vm5445, %v10813, 0
  %v10903 = vsel %vm5445, %v10814, 0
  %v10906 = vsel %vm5445, %v10815, 0
  %v10909 = vsel %vm5445, %v10816, 0
  %v10912 = vsel %vm5445, %v10817, 0
  %v10915 = vsel %vm5445, %v10818, 0
  %v10918 = vsel %vm5445, %v10819, 0
  %v10921 = vsel %vm5445, %v10820, 0
  %v10924 = vsel %vm5445, %v10821, 0
  %10926 = vmatpush.bf16.msra.mxu0 0
  %10927 = vmatpush.bf16.msra.mxu0 0
  %10928 = vmatpush.bf16.msra.mxu0 0
  %10929 = vmatpush.bf16.msra.mxu0 0
  %10930 = vmatpush.bf16.msra.mxu0 0
  %10931 = vmatpush.bf16.msra.mxu0 0
  %10932 = vmatpush.bf16.msra.mxu0 0
  %10933 = vmatpush.bf16.msra.mxu0 %v10828
  %10934 = vmatmul.bf16.gmra.mxu0 %v10831
  %v10935 = vpop.f32.mrf.mxu0
  %v10936 = vadd.f32 0.0, %v10935
  %v10937 = vpop.f32.mrf.mxu0
  %v10938 = vadd.f32 0.0, %v10937
  %10939 = vmatmul.bf16.gmra.mxu0 %v10834
  %v10940 = vpop.f32.mrf.mxu0
  %v10941 = vadd.f32 0.0, %v10940
  %v10942 = vpop.f32.mrf.mxu0
  %v10943 = vadd.f32 0.0, %v10942
  %10944 = vmatmul.bf16.gmra.mxu0 %v10837
  %v10945 = vpop.f32.mrf.mxu0
  %v10946 = vadd.f32 0.0, %v10945
  %v10947 = vpop.f32.mrf.mxu0
  %v10948 = vadd.f32 0.0, %v10947
  %10949 = vmatmul.bf16.gmra.mxu0 %v10840
  %v10950 = vpop.f32.mrf.mxu0
  %v10951 = vadd.f32 0.0, %v10950
  %v10952 = vpop.f32.mrf.mxu0
  %v10953 = vadd.f32 0.0, %v10952
  %10954 = vmatmul.bf16.gmra.mxu0 %v10843
  %v10955 = vpop.f32.mrf.mxu0
  %v10956 = vadd.f32 0.0, %v10955
  %v10957 = vpop.f32.mrf.mxu0
  %v10958 = vadd.f32 0.0, %v10957
  %10959 = vmatmul.bf16.gmra.mxu0 %v10846
  %v10960 = vpop.f32.mrf.mxu0
  %v10961 = vadd.f32 0.0, %v10960
  %v10962 = vpop.f32.mrf.mxu0
  %v10963 = vadd.f32 0.0, %v10962
  %10964 = vmatmul.bf16.gmra.mxu0 %v10849
  %v10965 = vpop.f32.mrf.mxu0
  %v10966 = vadd.f32 0.0, %v10965
  %v10967 = vpop.f32.mrf.mxu0
  %v10968 = vadd.f32 0.0, %v10967
  %10969 = vmatmul.bf16.gmra.mxu0 %v10852
  %v10970 = vpop.f32.mrf.mxu0
  %v10971 = vadd.f32 0.0, %v10970
  %v10972 = vpop.f32.mrf.mxu0
  %v10973 = vadd.f32 0.0, %v10972
  %10974 = vmatmul.bf16.gmra.mxu0 %v10855
  %v10975 = vpop.f32.mrf.mxu0
  %v10976 = vadd.f32 0.0, %v10975
  %v10977 = vpop.f32.mrf.mxu0
  %v10978 = vadd.f32 0.0, %v10977
  %10979 = vmatmul.bf16.gmra.mxu0 %v10858
  %v10980 = vpop.f32.mrf.mxu0
  %v10981 = vadd.f32 0.0, %v10980
  %v10982 = vpop.f32.mrf.mxu0
  %v10983 = vadd.f32 0.0, %v10982
  %10984 = vmatmul.bf16.gmra.mxu0 %v10861
  %v10985 = vpop.f32.mrf.mxu0
  %v10986 = vadd.f32 0.0, %v10985
  %v10987 = vpop.f32.mrf.mxu0
  %v10988 = vadd.f32 0.0, %v10987
  %10989 = vmatmul.bf16.gmra.mxu0 %v10864
  %v10990 = vpop.f32.mrf.mxu0
  %v10991 = vadd.f32 0.0, %v10990
  %v10992 = vpop.f32.mrf.mxu0
  %v10993 = vadd.f32 0.0, %v10992
  %10994 = vmatmul.bf16.gmra.mxu0 %v10867
  %v10995 = vpop.f32.mrf.mxu0
  %v10996 = vadd.f32 0.0, %v10995
  %v10997 = vpop.f32.mrf.mxu0
  %v10998 = vadd.f32 0.0, %v10997
  %10999 = vmatmul.bf16.gmra.mxu0 %v10870
  %v11000 = vpop.f32.mrf.mxu0
  %v11001 = vadd.f32 0.0, %v11000
  %v11002 = vpop.f32.mrf.mxu0
  %v11003 = vadd.f32 0.0, %v11002
  %11004 = vmatmul.bf16.gmra.mxu0 %v10873
  %v11005 = vpop.f32.mrf.mxu0
  %v11006 = vadd.f32 0.0, %v11005
  %v11007 = vpop.f32.mrf.mxu0
  %v11008 = vadd.f32 0.0, %v11007
  %11009 = vmatmul.bf16.gmra.mxu0 %v10876
  %v11010 = vpop.f32.mrf.mxu0
  %v11011 = vadd.f32 0.0, %v11010
  %v11012 = vpop.f32.mrf.mxu0
  %v11013 = vadd.f32 0.0, %v11012
  %11014 = vmatmul.bf16.gmra.mxu0 %v10879
  %v11015 = vpop.f32.mrf.mxu0
  %v11016 = vadd.f32 0.0, %v11015
  %v11017 = vpop.f32.mrf.mxu0
  %v11018 = vadd.f32 0.0, %v11017
  %11019 = vmatmul.bf16.gmra.mxu0 %v10882
  %v11020 = vpop.f32.mrf.mxu0
  %v11021 = vadd.f32 0.0, %v11020
  %v11022 = vpop.f32.mrf.mxu0
  %v11023 = vadd.f32 0.0, %v11022
  %11024 = vmatmul.bf16.gmra.mxu0 %v10885
  %v11025 = vpop.f32.mrf.mxu0
  %v11026 = vadd.f32 0.0, %v11025
  %v11027 = vpop.f32.mrf.mxu0
  %v11028 = vadd.f32 0.0, %v11027
  %11029 = vmatmul.bf16.gmra.mxu0 %v10888
  %v11030 = vpop.f32.mrf.mxu0
  %v11031 = vadd.f32 0.0, %v11030
  %v11032 = vpop.f32.mrf.mxu0
  %v11033 = vadd.f32 0.0, %v11032
  %11034 = vmatmul.bf16.gmra.mxu0 %v10891
  %v11035 = vpop.f32.mrf.mxu0
  %v11036 = vadd.f32 0.0, %v11035
  %v11037 = vpop.f32.mrf.mxu0
  %v11038 = vadd.f32 0.0, %v11037
  %11039 = vmatmul.bf16.gmra.mxu0 %v10894
  %v11040 = vpop.f32.mrf.mxu0
  %v11041 = vadd.f32 0.0, %v11040
  %v11042 = vpop.f32.mrf.mxu0
  %v11043 = vadd.f32 0.0, %v11042
  %11044 = vmatmul.bf16.gmra.mxu0 %v10897
  %v11045 = vpop.f32.mrf.mxu0
  %v11046 = vadd.f32 0.0, %v11045
  %v11047 = vpop.f32.mrf.mxu0
  %v11048 = vadd.f32 0.0, %v11047
  %11049 = vmatmul.bf16.gmra.mxu0 %v10900
  %v11050 = vpop.f32.mrf.mxu0
  %v11051 = vadd.f32 0.0, %v11050
  %v11052 = vpop.f32.mrf.mxu0
  %v11053 = vadd.f32 0.0, %v11052
  %11054 = vmatmul.bf16.gmra.mxu0 %v10903
  %v11055 = vpop.f32.mrf.mxu0
  %v11056 = vadd.f32 0.0, %v11055
  %v11057 = vpop.f32.mrf.mxu0
  %v11058 = vadd.f32 0.0, %v11057
  %11059 = vmatmul.bf16.gmra.mxu0 %v10906
  %v11060 = vpop.f32.mrf.mxu0
  %v11061 = vadd.f32 0.0, %v11060
  %v11062 = vpop.f32.mrf.mxu0
  %v11063 = vadd.f32 0.0, %v11062
  %11064 = vmatmul.bf16.gmra.mxu0 %v10909
  %v11065 = vpop.f32.mrf.mxu0
  %v11066 = vadd.f32 0.0, %v11065
  %v11067 = vpop.f32.mrf.mxu0
  %v11068 = vadd.f32 0.0, %v11067
  %11069 = vmatmul.bf16.gmra.mxu0 %v10912
  %v11070 = vpop.f32.mrf.mxu0
  %v11071 = vadd.f32 0.0, %v11070
  %v11072 = vpop.f32.mrf.mxu0
  %v11073 = vadd.f32 0.0, %v11072
  %11074 = vmatmul.bf16.gmra.mxu0 %v10915
  %v11075 = vpop.f32.mrf.mxu0
  %v11076 = vadd.f32 0.0, %v11075
  %v11077 = vpop.f32.mrf.mxu0
  %v11078 = vadd.f32 0.0, %v11077
  %11079 = vmatmul.bf16.gmra.mxu0 %v10918
  %v11080 = vpop.f32.mrf.mxu0
  %v11081 = vadd.f32 0.0, %v11080
  %v11082 = vpop.f32.mrf.mxu0
  %v11083 = vadd.f32 0.0, %v11082
  %11084 = vmatmul.bf16.gmra.mxu0 %v10921
  %v11085 = vpop.f32.mrf.mxu0
  %v11086 = vadd.f32 0.0, %v11085
  %v11087 = vpop.f32.mrf.mxu0
  %v11088 = vadd.f32 0.0, %v11087
  %11089 = vmatmul.bf16.gmra.mxu0 %v10924
  %v11090 = vpop.f32.mrf.mxu0
  %v11091 = vadd.f32 0.0, %v11090
  %v11092 = vpop.f32.mrf.mxu0
  %v11093 = vadd.f32 0.0, %v11092
  %11094 = vdwg.mxu0
  %v11095 = vld [vmem:[%s9] sm:$0x1]
  %v11096 = vperm.slane %v11095, 0
  %v11097 = vmul.f32 %v10936, %v11096
  %v11098 = vmul.f32 %v10938, %v11096
  %v11099 = vmul.f32 %v10941, %v11096
  %v11100 = vmul.f32 %v10943, %v11096
  %v11101 = vmul.f32 %v10946, %v11096
  %v11102 = vmul.f32 %v10948, %v11096
  %v11103 = vmul.f32 %v10951, %v11096
  %v11104 = vmul.f32 %v10953, %v11096
  %v11105 = vmul.f32 %v10956, %v11096
  %v11106 = vmul.f32 %v10958, %v11096
  %v11107 = vmul.f32 %v10961, %v11096
  %v11108 = vmul.f32 %v10963, %v11096
  %v11109 = vmul.f32 %v10966, %v11096
  %v11110 = vmul.f32 %v10968, %v11096
  %v11111 = vmul.f32 %v10971, %v11096
  %v11112 = vmul.f32 %v10973, %v11096
  %v11113 = vmul.f32 %v10976, %v11096
  %v11114 = vmul.f32 %v10978, %v11096
  %v11115 = vmul.f32 %v10981, %v11096
  %v11116 = vmul.f32 %v10983, %v11096
  %v11117 = vmul.f32 %v10986, %v11096
  %v11118 = vmul.f32 %v10988, %v11096
  %v11119 = vmul.f32 %v10991, %v11096
  %v11120 = vmul.f32 %v10993, %v11096
  %v11121 = vmul.f32 %v10996, %v11096
  %v11122 = vmul.f32 %v10998, %v11096
  %v11123 = vmul.f32 %v11001, %v11096
  %v11124 = vmul.f32 %v11003, %v11096
  %v11125 = vmul.f32 %v11006, %v11096
  %v11126 = vmul.f32 %v11008, %v11096
  %v11127 = vmul.f32 %v11011, %v11096
  %v11128 = vmul.f32 %v11013, %v11096
  %v11129 = vmul.f32 %v11016, %v11096
  %v11130 = vmul.f32 %v11018, %v11096
  %v11131 = vmul.f32 %v11021, %v11096
  %v11132 = vmul.f32 %v11023, %v11096
  %v11133 = vmul.f32 %v11026, %v11096
  %v11134 = vmul.f32 %v11028, %v11096
  %v11135 = vmul.f32 %v11031, %v11096
  %v11136 = vmul.f32 %v11033, %v11096
  %v11137 = vmul.f32 %v11036, %v11096
  %v11138 = vmul.f32 %v11038, %v11096
  %v11139 = vmul.f32 %v11041, %v11096
  %v11140 = vmul.f32 %v11043, %v11096
  %v11141 = vmul.f32 %v11046, %v11096
  %v11142 = vmul.f32 %v11048, %v11096
  %v11143 = vmul.f32 %v11051, %v11096
  %v11144 = vmul.f32 %v11053, %v11096
  %v11145 = vmul.f32 %v11056, %v11096
  %v11146 = vmul.f32 %v11058, %v11096
  %v11147 = vmul.f32 %v11061, %v11096
  %v11148 = vmul.f32 %v11063, %v11096
  %v11149 = vmul.f32 %v11066, %v11096
  %v11150 = vmul.f32 %v11068, %v11096
  %v11151 = vmul.f32 %v11071, %v11096
  %v11152 = vmul.f32 %v11073, %v11096
  %v11153 = vmul.f32 %v11076, %v11096
  %v11154 = vmul.f32 %v11078, %v11096
  %v11155 = vmul.f32 %v11081, %v11096
  %v11156 = vmul.f32 %v11083, %v11096
  %v11157 = vmul.f32 %v11086, %v11096
  %v11158 = vmul.f32 %v11088, %v11096
  %v11159 = vmul.f32 %v11091, %v11096
  %v11160 = vmul.f32 %v11093, %v11096
  %v11161 = vld [vmem:[%s9 + $0x1] sm:$0x1]
  %v11162 = vperm.slane %v11161, 0
  %v11163 = vadd.f32 %v11097, %v11162
  %v11164 = vadd.f32 %v11098, %v11162
  %v11165 = vadd.f32 %v11099, %v11162
  %v11166 = vadd.f32 %v11100, %v11162
  %v11167 = vadd.f32 %v11101, %v11162
  %v11168 = vadd.f32 %v11102, %v11162
  %v11169 = vadd.f32 %v11103, %v11162
  %v11170 = vadd.f32 %v11104, %v11162
  %v11171 = vadd.f32 %v11105, %v11162
  %v11172 = vadd.f32 %v11106, %v11162
  %v11173 = vadd.f32 %v11107, %v11162
  %v11174 = vadd.f32 %v11108, %v11162
  %v11175 = vadd.f32 %v11109, %v11162
  %v11176 = vadd.f32 %v11110, %v11162
  %v11177 = vadd.f32 %v11111, %v11162
  %v11178 = vadd.f32 %v11112, %v11162
  %v11179 = vadd.f32 %v11113, %v11162
  %v11180 = vadd.f32 %v11114, %v11162
  %v11181 = vadd.f32 %v11115, %v11162
  %v11182 = vadd.f32 %v11116, %v11162
  %v11183 = vadd.f32 %v11117, %v11162
  %v11184 = vadd.f32 %v11118, %v11162
  %v11185 = vadd.f32 %v11119, %v11162
  %v11186 = vadd.f32 %v11120, %v11162
  %v11187 = vadd.f32 %v11121, %v11162
  %v11188 = vadd.f32 %v11122, %v11162
  %v11189 = vadd.f32 %v11123, %v11162
  %v11190 = vadd.f32 %v11124, %v11162
  %v11191 = vadd.f32 %v11125, %v11162
  %v11192 = vadd.f32 %v11126, %v11162
  %v11193 = vadd.f32 %v11127, %v11162
  %v11194 = vadd.f32 %v11128, %v11162
  %v11195 = vadd.f32 %v11129, %v11162
  %v11196 = vadd.f32 %v11130, %v11162
  %v11197 = vadd.f32 %v11131, %v11162
  %v11198 = vadd.f32 %v11132, %v11162
  %v11199 = vadd.f32 %v11133, %v11162
  %v11200 = vadd.f32 %v11134, %v11162
  %v11201 = vadd.f32 %v11135, %v11162
  %v11202 = vadd.f32 %v11136, %v11162
  %v11203 = vadd.f32 %v11137, %v11162
  %v11204 = vadd.f32 %v11138, %v11162
  %v11205 = vadd.f32 %v11139, %v11162
  %v11206 = vadd.f32 %v11140, %v11162
  %v11207 = vadd.f32 %v11141, %v11162
  %v11208 = vadd.f32 %v11142, %v11162
  %v11209 = vadd.f32 %v11143, %v11162
  %v11210 = vadd.f32 %v11144, %v11162
  %v11211 = vadd.f32 %v11145, %v11162
  %v11212 = vadd.f32 %v11146, %v11162
  %v11213 = vadd.f32 %v11147, %v11162
  %v11214 = vadd.f32 %v11148, %v11162
  %v11215 = vadd.f32 %v11149, %v11162
  %v11216 = vadd.f32 %v11150, %v11162
  %v11217 = vadd.f32 %v11151, %v11162
  %v11218 = vadd.f32 %v11152, %v11162
  %v11219 = vadd.f32 %v11153, %v11162
  %v11220 = vadd.f32 %v11154, %v11162
  %v11221 = vadd.f32 %v11155, %v11162
  %v11222 = vadd.f32 %v11156, %v11162
  %v11223 = vadd.f32 %v11157, %v11162
  %v11224 = vadd.f32 %v11158, %v11162
  %v11225 = vadd.f32 %v11159, %v11162
  %v11226 = vadd.f32 %v11160, %v11162
  %11227 = vst.msk [vmem:[%s10] sm:$0xff] %vm2330, %v11163
  %11228 = vst.msk [vmem:[%s10 + $0x8] sm:$0xff] %vm2330, %v11164
  %11229 = vst.msk [vmem:[%s10 + $0x10] sm:$0xff] %vm2330, %v11165
  %11230 = vst.msk [vmem:[%s10 + $0x18] sm:$0xff] %vm2330, %v11166
  %11231 = vst.msk [vmem:[%s10 + $0x20] sm:$0xff] %vm2330, %v11167
  %11232 = vst.msk [vmem:[%s10 + $0x28] sm:$0xff] %vm2330, %v11168
  %11233 = vst.msk [vmem:[%s10 + $0x30] sm:$0xff] %vm2330, %v11169
  %11234 = vst.msk [vmem:[%s10 + $0x38] sm:$0xff] %vm2330, %v11170
  %11235 = vst.msk [vmem:[%s10 + $0x40] sm:$0xff] %vm2330, %v11171
  %11236 = vst.msk [vmem:[%s10 + $0x48] sm:$0xff] %vm2330, %v11172
  %11237 = vst.msk [vmem:[%s10 + $0x50] sm:$0xff] %vm2330, %v11173
  %11238 = vst.msk [vmem:[%s10 + $0x58] sm:$0xff] %vm2330, %v11174
  %11239 = vst.msk [vmem:[%s10 + $0x60] sm:$0xff] %vm2330, %v11175
  %11240 = vst.msk [vmem:[%s10 + $0x68] sm:$0xff] %vm2330, %v11176
  %11241 = vst.msk [vmem:[%s10 + $0x70] sm:$0xff] %vm2330, %v11177
  %11242 = vst.msk [vmem:[%s10 + $0x78] sm:$0xff] %vm2330, %v11178
  %11243 = vst.msk [vmem:[%s10 + $0x80] sm:$0xff] %vm2330, %v11179
  %11244 = vst.msk [vmem:[%s10 + $0x88] sm:$0xff] %vm2330, %v11180
  %11245 = vst.msk [vmem:[%s10 + $0x90] sm:$0xff] %vm2330, %v11181
  %11246 = vst.msk [vmem:[%s10 + $0x98] sm:$0xff] %vm2330, %v11182
  %11247 = vst.msk [vmem:[%s10 + $0xa0] sm:$0xff] %vm2330, %v11183
  %11248 = vst.msk [vmem:[%s10 + $0xa8] sm:$0xff] %vm2330, %v11184
  %11249 = vst.msk [vmem:[%s10 + $0xb0] sm:$0xff] %vm2330, %v11185
  %11250 = vst.msk [vmem:[%s10 + $0xb8] sm:$0xff] %vm2330, %v11186
  %11251 = vst.msk [vmem:[%s10 + $0xc0] sm:$0xff] %vm2330, %v11187
  %11252 = vst.msk [vmem:[%s10 + $0xc8] sm:$0xff] %vm2330, %v11188
  %11253 = vst.msk [vmem:[%s10 + $0xd0] sm:$0xff] %vm2330, %v11189
  %11254 = vst.msk [vmem:[%s10 + $0xd8] sm:$0xff] %vm2330, %v11190
  %11255 = vst.msk [vmem:[%s10 + $0xe0] sm:$0xff] %vm2330, %v11191
  %11256 = vst.msk [vmem:[%s10 + $0xe8] sm:$0xff] %vm2330, %v11192
  %11257 = vst.msk [vmem:[%s10 + $0xf0] sm:$0xff] %vm2330, %v11193
  %11258 = vst.msk [vmem:[%s10 + $0xf8] sm:$0xff] %vm2330, %v11194
  %11259 = vst.msk [vmem:[%s10 + $0x100] sm:$0xff] %vm2330, %v11195
  %11260 = vst.msk [vmem:[%s10 + $0x108] sm:$0xff] %vm2330, %v11196
  %11261 = vst.msk [vmem:[%s10 + $0x110] sm:$0xff] %vm2330, %v11197
  %11262 = vst.msk [vmem:[%s10 + $0x118] sm:$0xff] %vm2330, %v11198
  %11263 = vst.msk [vmem:[%s10 + $0x120] sm:$0xff] %vm2330, %v11199
  %11264 = vst.msk [vmem:[%s10 + $0x128] sm:$0xff] %vm2330, %v11200
  %11265 = vst.msk [vmem:[%s10 + $0x130] sm:$0xff] %vm2330, %v11201
  %11266 = vst.msk [vmem:[%s10 + $0x138] sm:$0xff] %vm2330, %v11202
  %11267 = vst.msk [vmem:[%s10 + $0x140] sm:$0xff] %vm2330, %v11203
  %11268 = vst.msk [vmem:[%s10 + $0x148] sm:$0xff] %vm2330, %v11204
  %11269 = vst.msk [vmem:[%s10 + $0x150] sm:$0xff] %vm2330, %v11205
  %11270 = vst.msk [vmem:[%s10 + $0x158] sm:$0xff] %vm2330, %v11206
  %11271 = vst.msk [vmem:[%s10 + $0x160] sm:$0xff] %vm2330, %v11207
  %11272 = vst.msk [vmem:[%s10 + $0x168] sm:$0xff] %vm2330, %v11208
  %11273 = vst.msk [vmem:[%s10 + $0x170] sm:$0xff] %vm2330, %v11209
  %11274 = vst.msk [vmem:[%s10 + $0x178] sm:$0xff] %vm2330, %v11210
  %11275 = vst.msk [vmem:[%s10 + $0x180] sm:$0xff] %vm2330, %v11211
  %11276 = vst.msk [vmem:[%s10 + $0x188] sm:$0xff] %vm2330, %v11212
  %11277 = vst.msk [vmem:[%s10 + $0x190] sm:$0xff] %vm2330, %v11213
  %11278 = vst.msk [vmem:[%s10 + $0x198] sm:$0xff] %vm2330, %v11214
  %11279 = vst.msk [vmem:[%s10 + $0x1a0] sm:$0xff] %vm2330, %v11215
  %11280 = vst.msk [vmem:[%s10 + $0x1a8] sm:$0xff] %vm2330, %v11216
  %11281 = vst.msk [vmem:[%s10 + $0x1b0] sm:$0xff] %vm2330, %v11217
  %11282 = vst.msk [vmem:[%s10 + $0x1b8] sm:$0xff] %vm2330, %v11218
  %11283 = vst.msk [vmem:[%s10 + $0x1c0] sm:$0xff] %vm2330, %v11219
  %11284 = vst.msk [vmem:[%s10 + $0x1c8] sm:$0xff] %vm2330, %v11220
  %11285 = vst.msk [vmem:[%s10 + $0x1d0] sm:$0xff] %vm2330, %v11221
  %11286 = vst.msk [vmem:[%s10 + $0x1d8] sm:$0xff] %vm2330, %v11222
  %11287 = vst.msk [vmem:[%s10 + $0x1e0] sm:$0xff] %vm2330, %v11223
  %11288 = vst.msk [vmem:[%s10 + $0x1e8] sm:$0xff] %vm2330, %v11224
  %11289 = vst.msk [vmem:[%s10 + $0x1f0] sm:$0xff] %vm2330, %v11225
  %11290 = vst.msk [vmem:[%s10 + $0x1f8] sm:$0xff] %vm2330, %v11226
  // Predicated region
  $region42: #{encoder_decoder_forward.3} parent=0 // pred_check
    _
  $region43: #{encoder_decoder_forward.3} parent=0 // pred_check_branch
    %11292 = sbr.rel (0) target = $region45
  $region44: #{encoder_decoder_forward.3} parent=0 // pred_region
    _
  $region45: #{encoder_decoder_forward.3} parent=0 // pred_fallthru
    _
  // Predicated region
  $region46: #{encoder_decoder_forward.3} parent=0 // pred_check
    _
  $region47: #{encoder_decoder_forward.3} parent=0 // pred_check_branch
    %11294 = sbr.rel (0) target = $region49
  $region48: #{encoder_decoder_forward.3} parent=0 // pred_region
    _
  $region49: #{encoder_decoder_forward.3} parent=0 // pred_fallthru
    _

</llo_original>
